<compile_context>
chip_gen: v6e
topology: v6e:2x2x1
jax: 0.10.0
libtpu: 0.0.40
codegen_flags: <defaults>
</compile_context>

<pallas_src>
import math
from functools import partial

import jax
import jax.numpy as jnp
from jax.experimental import pallas as pl
from jax.experimental.pallas import tpu as pltpu

F32 = jnp.float32

# per-head weight order:
# w_in, b_in, w_ipx, w_ipz, conv_w, conv_b, w_xall, w_dt, b_dt, A_row, Dv,
# w_outproj, w_out, b_out
_PER_HEAD = 14


def _silu(v):
    return v * jax.nn.sigmoid(v)


def _head_forward(x_flat, sfx, nb, L,
                  w_in, b_in, w_ipx, w_ipz, conv_w, conv_b,
                  w_xall, w_dt, b_dt, A_row, Dv, w_outproj, w_out, b_out):
    """One head.  The dense path is batch-folded (M = nb*L); the selective-scan
    tail is evaluated at the last timestep only (everything earlier is dead
    w.r.t. the final score)."""
    BL = nb * L
    D = w_in.shape[1]
    N = A_row.shape[1]

    # ---------- batch-folded dense path (M = B*L) ----------
    h0 = jnp.dot(x_flat, w_in[...], preferred_element_type=F32) + b_in[...]     # (BL, D)

    # Mamba in_proj (bias-free), x branch for every row.
    xpart = jnp.dot(h0, w_ipx[...], preferred_element_type=F32)                 # (BL, D)

    # causal depthwise conv (kernel=2, padding=1, sliced to L) + SiLU.
    # roll brings row r-1 into row r; zero every batch's first timestep
    # (removes both the circular wrap and any cross-batch leakage).
    rolled = pltpu.roll(xpart, shift=1, axis=0)
    row_ids = jax.lax.broadcasted_iota(jnp.int32, (BL, D), 0)
    is_first = (row_ids == 0)
    for b in range(1, nb):
        is_first = is_first | (row_ids == b * L)
    x_prev = jnp.where(is_first, 0.0, rolled)
    u = _silu(x_prev * conv_w[0:1, :] + xpart * conv_w[1:2, :] + conv_b[...])   # (BL, D)

    # fused x_proj: output columns = [B | C | dt_low]
    xproj = jnp.dot(u, w_xall[...], preferred_element_type=F32)                 # (BL, 2N+R)
    Bm = xproj[:, :N]                                                           # (BL, N)
    dt_low = xproj[:, 2 * N:]                                                   # (BL, R)
    delta = jax.nn.softplus(
        jnp.dot(dt_low, w_dt[...], preferred_element_type=F32) + b_dt[...])     # (BL, D)

    dU = delta * u                                                               # (BL, D)
    A = A_row[...]                                                               # (1, N)

    # ---------- per-batch last-timestep tail ----------
    outs = []
    for b in range(nb):
        lo = b * L
        last = lo + L - 1

        # suffix sums S_t = sum_{s>t} delta_s for this batch row (mask matmul)
        S_b = jnp.dot(sfx, delta[lo:lo + L, :], preferred_element_type=F32)      # (L, D)
        ST = jnp.transpose(S_b)                                                  # (D, L)
        duT = jnp.transpose(dU[lo:lo + L, :])                                    # (D, L)
        Bm_b = Bm[lo:lo + L, :]                                                  # (L, N)

        # closed-form last state: h_L = sum_t exp(A*S_t) * (delta_t u_t) B_t.
        # All terms are independent (no loop-carried exp); exponent <= 0.
        terms = [jnp.exp(ST[:, t:t + 1] * A) * (duT[:, t:t + 1] * Bm_b[t:t + 1, :])
                 for t in range(L)]
        while len(terms) > 1:                       # pairwise add tree
            nxt = [terms[j] + terms[j + 1] for j in range(0, len(terms) - 1, 2)]
            if len(terms) % 2:
                nxt.append(terms[-1])
            terms = nxt
        h = terms[0]                                                             # (D, N)

        # y = C_L . h  (contract d_state on both operands -> no h transpose)
        c_b = xproj[last:last + 1, N:2 * N]                                      # (1, N)
        y = jax.lax.dot_general(c_b, h, (((1,), (1,)), ((), ())),
                                preferred_element_type=F32)                      # (1, D)

        z = jnp.dot(h0[last:last + 1, :], w_ipz[...], preferred_element_type=F32)
        y = (y + u[last:last + 1, :] * Dv[...]) * _silu(z)                       # (1, D)

        m_out = jnp.dot(y, w_outproj[...], preferred_element_type=F32)           # (1, D)
        tmp = h0[last:last + 1, :] + m_out            # residual, last timestep
        # out_layer at the last timestep (== permute(0,2,1)[:, :, -1])
        outs.append(jnp.dot(tmp, w_out[...], preferred_element_type=F32) + b_out[...])
    return outs                                        # nb arrays, each (1, out)


def _fused_forward_kernel(num_head, nb, L, x_ref, *refs):
    o_ref = refs[-1]
    b_score_ref = refs[-2]
    ws_refs = refs[-2 - num_head:-2]

    x_flat = x_ref[...]                               # (nb*L, input_size)

    # strictly-upper-triangular (L, L) suffix-sum mask, built once from iota
    # and shared by all heads / batch rows.
    r_l = jax.lax.broadcasted_iota(jnp.int32, (L, L), 0)
    c_l = jax.lax.broadcasted_iota(jnp.int32, (L, L), 1)
    sfx = (c_l > r_l).astype(F32)

    scores = [b_score_ref[...] for _ in range(nb)]    # each (1, 1)
    for i in range(num_head):
        hrefs = refs[i * _PER_HEAD:(i + 1) * _PER_HEAD]
        outs = _head_forward(x_flat, sfx, nb, L, *hrefs)
        # TODO(synk): nn.Dropout(0.1) is stochastic in train mode; identity here.
        w_row = ws_refs[i][...]                       # (1, output_size)
        for b in range(nb):
            # score Linear as a VPU multiply + lane reduce (no tiny MXU op)
            scores[b] = scores[b] + jnp.sum(outs[b] * w_row, axis=1, keepdims=True)
    for b in range(nb):
        o_ref[b:b + 1, :] = scores[b]


def mamba_forward(x, head_params, w_score_rows, b_score):
    """x: (B, L, input_size) -> score: (B, 1). One fused, grid-less kernel."""
    B, L, in_f = x.shape
    num_head = len(head_params)

    flat = []
    for hp in head_params:
        flat.extend(hp)
    flat.extend(w_score_rows)
    flat.append(b_score)

    x_flat = x.reshape(B * L, in_f)
    out = pl.pallas_call(
        partial(_fused_forward_kernel, num_head, B, L),
        out_shape=jax.ShapeDtypeStruct((B, 1), F32),
    )(x_flat, *flat)
    return out


# ----------------------------- parameter setup -----------------------------
def init_params(key, input_size, hidden_sizes, output_size, num_head, d_state, d_conv):
    assert d_conv == 2
    heads = []
    keys = jax.random.split(key, num_head + 1)
    scale = 0.05
    for i in range(num_head):
        D = hidden_sizes[i]
        R = max(1, math.ceil(D / 16))                 # dt_rank = "auto"
        k = jax.random.split(keys[i], 12)
        w_in = jax.random.normal(k[0], (input_size, D), F32) * scale
        b_in = jnp.zeros((1, D), F32)
        # Mamba (expand=1 -> d_inner == D); in/x/out_proj are bias-free
        w_ipx = jax.random.normal(k[1], (D, D), F32) * scale
        w_ipz = jax.random.normal(k[2], (D, D), F32) * scale
        conv_w = jax.random.normal(k[3], (d_conv, D), F32) * scale
        conv_b = jnp.zeros((1, D), F32)
        w_xB = jax.random.normal(k[4], (D, d_state), F32) * scale
        w_xC = jax.random.normal(k[5], (D, d_state), F32) * scale
        w_xdt = jax.random.normal(k[6], (D, R), F32) * scale
        w_xall = jnp.concatenate([w_xB, w_xC, w_xdt], axis=1)    # (D, 2N+R)
        w_dt = jax.random.normal(k[7], (R, D), F32) * scale
        b_dt = jax.random.normal(k[8], (1, D), F32) * scale
        # A = -exp(A_log), A_log = log(arange(1, N+1)); values are broadcast
        # over channels, so only a (1, N) row is shipped to the kernel.
        A_row = -jnp.arange(1, d_state + 1, dtype=F32).reshape(1, d_state)
        Dv = jnp.ones((1, D), F32)
        w_outproj = jax.random.normal(k[9], (D, D), F32) * scale
        w_out = jax.random.normal(k[10], (D, output_size), F32) * scale
        b_out = jnp.zeros((1, output_size), F32)
        heads.append((w_in, b_in, w_ipx, w_ipz, conv_w, conv_b, w_xall,
                      w_dt, b_dt, A_row, Dv, w_outproj, w_out, b_out))
    ks = jax.random.split(keys[-1], num_head)
    w_score_rows = [jax.random.normal(ks[i], (1, output_size), F32) * scale
                    for i in range(num_head)]
    b_score = jnp.zeros((1, 1), F32)
    return heads, w_score_rows, b_score


if __name__ == "__main__":
    B, L = 2, 8
    input_size, output_size = 6, 6
    hidden_sizes = [64, 128]
    num_head = 2
    d_state, d_conv = 128, 2

    key = jax.random.PRNGKey(0)
    kx, kp = jax.random.split(key)
    x = jax.random.normal(kx, (B, L, input_size), F32)
    heads, w_score_rows, b_score = init_params(
        kp, input_size, hidden_sizes, output_size, num_head, d_state, d_conv)

    fwd = jax.jit(mamba_forward)
    score = fwd(x, heads, w_score_rows, b_score)
    jax.block_until_ready(score)
    assert score.shape == (B, 1)
    assert bool(jnp.all(jnp.isfinite(score)))
    print("KERNEL_OK")
</pallas_src>

<mosaic_0001>
module attributes {stable_mosaic.version = 11 : i64} {
  func.func @_fused_forward_kernel(%arg0: memref<16x6xf32, #tpu.memory_space<vmem>>, %arg1: memref<6x64xf32, #tpu.memory_space<vmem>>, %arg2: memref<1x64xf32, #tpu.memory_space<vmem>>, %arg3: memref<64x64xf32, #tpu.memory_space<vmem>>, %arg4: memref<64x64xf32, #tpu.memory_space<vmem>>, %arg5: memref<2x64xf32, #tpu.memory_space<vmem>>, %arg6: memref<1x64xf32, #tpu.memory_space<vmem>>, %arg7: memref<64x260xf32, #tpu.memory_space<vmem>>, %arg8: memref<4x64xf32, #tpu.memory_space<vmem>>, %arg9: memref<1x64xf32, #tpu.memory_space<vmem>>, %arg10: memref<1x128xf32, #tpu.memory_space<vmem>>, %arg11: memref<1x64xf32, #tpu.memory_space<vmem>>, %arg12: memref<64x64xf32, #tpu.memory_space<vmem>>, %arg13: memref<64x6xf32, #tpu.memory_space<vmem>>, %arg14: memref<1x6xf32, #tpu.memory_space<vmem>>, %arg15: memref<6x128xf32, #tpu.memory_space<vmem>>, %arg16: memref<1x128xf32, #tpu.memory_space<vmem>>, %arg17: memref<128x128xf32, #tpu.memory_space<vmem>>, %arg18: memref<128x128xf32, #tpu.memory_space<vmem>>, %arg19: memref<2x128xf32, #tpu.memory_space<vmem>>, %arg20: memref<1x128xf32, #tpu.memory_space<vmem>>, %arg21: memref<128x264xf32, #tpu.memory_space<vmem>>, %arg22: memref<8x128xf32, #tpu.memory_space<vmem>>, %arg23: memref<1x128xf32, #tpu.memory_space<vmem>>, %arg24: memref<1x128xf32, #tpu.memory_space<vmem>>, %arg25: memref<1x128xf32, #tpu.memory_space<vmem>>, %arg26: memref<128x128xf32, #tpu.memory_space<vmem>>, %arg27: memref<128x6xf32, #tpu.memory_space<vmem>>, %arg28: memref<1x6xf32, #tpu.memory_space<vmem>>, %arg29: memref<1x6xf32, #tpu.memory_space<vmem>>, %arg30: memref<1x6xf32, #tpu.memory_space<vmem>>, %arg31: memref<1x1xf32, #tpu.memory_space<vmem>>, %arg32: memref<2x1xf32, #tpu.memory_space<vmem>>) attributes {dimension_semantics = [], scalar_prefetch = 0 : i64, scratch_operands = 0 : i64, tpu.core_type = #tpu.core_type<tc>} {
    %c0 = arith.constant 0 : index
    %c0_0 = arith.constant 0 : index
    %0 = vector.load %arg0[%c0, %c0_0] : memref<16x6xf32, #tpu.memory_space<vmem>>, vector<16x6xf32>
    %1 = tpu.iota {dimensions = array<i32: 0>} : vector<8x8xi32>
    %2 = tpu.iota {dimensions = array<i32: 1>} : vector<8x8xi32>
    %3 = arith.cmpi sgt, %2, %1 : vector<8x8xi32>
    %4 = arith.extui %3 : vector<8x8xi1> to vector<8x8xi32>
    %5 = arith.sitofp %4 : vector<8x8xi32> to vector<8x8xf32>
    %c0_1 = arith.constant 0 : index
    %c0_2 = arith.constant 0 : index
    %6 = vector.load %arg31[%c0_1, %c0_2] : memref<1x1xf32, #tpu.memory_space<vmem>>, vector<1x1xf32>
    %c0_3 = arith.constant 0 : index
    %c0_4 = arith.constant 0 : index
    %7 = vector.load %arg31[%c0_3, %c0_4] : memref<1x1xf32, #tpu.memory_space<vmem>>, vector<1x1xf32>
    %c0_5 = arith.constant 0 : index
    %c0_6 = arith.constant 0 : index
    %8 = vector.load %arg1[%c0_5, %c0_6] : memref<6x64xf32, #tpu.memory_space<vmem>>, vector<6x64xf32>
    %cst = arith.constant dense<0.000000e+00> : vector<16x64xf32>
    %9 = tpu.matmul %0, %8, %cst {dimension_numbers = #tpu.dot_dimension_numbers<[1], [0], [0], [1], [0, 0, 1, 1], [], []>} : vector<16x6xf32>, vector<6x64xf32>, vector<16x64xf32> -> vector<16x64xf32>
    %c0_7 = arith.constant 0 : index
    %c0_8 = arith.constant 0 : index
    %10 = vector.load %arg2[%c0_7, %c0_8] : memref<1x64xf32, #tpu.memory_space<vmem>>, vector<1x64xf32>
    %11 = vector.broadcast %10 : vector<1x64xf32> to vector<16x64xf32>
    %12 = arith.addf %9, %11 : vector<16x64xf32>
    %c0_9 = arith.constant 0 : index
    %c0_10 = arith.constant 0 : index
    %13 = vector.load %arg3[%c0_9, %c0_10] : memref<64x64xf32, #tpu.memory_space<vmem>>, vector<64x64xf32>
    %cst_11 = arith.constant dense<0.000000e+00> : vector<16x64xf32>
    %14 = tpu.matmul %12, %13, %cst_11 {dimension_numbers = #tpu.dot_dimension_numbers<[1], [0], [0], [1], [0, 0, 1, 1], [], []>} : vector<16x64xf32>, vector<64x64xf32>, vector<16x64xf32> -> vector<16x64xf32>
    %c1_i32 = arith.constant 1 : i32
    %15 = tpu.dynamic_rotate %14 by %c1_i32 dim 0 : vector<16x64xf32>, i32 -> vector<16x64xf32>
    %16 = tpu.iota {dimensions = array<i32: 0>} : vector<16x64xi32>
    %c0_i32 = arith.constant 0 : i32
    %17 = vector.broadcast %c0_i32 : i32 to vector<16x64xi32>
    %18 = arith.cmpi eq, %16, %17 : vector<16x64xi32>
    %c8_i32 = arith.constant 8 : i32
    %19 = vector.broadcast %c8_i32 : i32 to vector<16x64xi32>
    %20 = arith.cmpi eq, %16, %19 : vector<16x64xi32>
    %21 = arith.ori %18, %20 : vector<16x64xi1>
    %cst_12 = arith.constant 0.000000e+00 : f32
    %22 = vector.broadcast %cst_12 : f32 to vector<16x64xf32>
    %23 = arith.select %21, %22, %15 : vector<16x64xi1>, vector<16x64xf32>
    %c0_13 = arith.constant 0 : index
    %c0_14 = arith.constant 0 : index
    %24 = vector.load %arg5[%c0_13, %c0_14] : memref<2x64xf32, #tpu.memory_space<vmem>>, vector<1x64xf32>
    %25 = vector.broadcast %24 : vector<1x64xf32> to vector<16x64xf32>
    %26 = arith.mulf %23, %25 : vector<16x64xf32>
    %c1 = arith.constant 1 : index
    %c0_15 = arith.constant 0 : index
    %27 = vector.load %arg5[%c1, %c0_15] : memref<2x64xf32, #tpu.memory_space<vmem>>, vector<1x64xf32>
    %28 = vector.broadcast %27 : vector<1x64xf32> to vector<16x64xf32>
    %29 = arith.mulf %14, %28 : vector<16x64xf32>
    %30 = arith.addf %26, %29 : vector<16x64xf32>
    %c0_16 = arith.constant 0 : index
    %c0_17 = arith.constant 0 : index
    %31 = vector.load %arg6[%c0_16, %c0_17] : memref<1x64xf32, #tpu.memory_space<vmem>>, vector<1x64xf32>
    %32 = vector.broadcast %31 : vector<1x64xf32> to vector<16x64xf32>
    %33 = arith.addf %30, %32 : vector<16x64xf32>
    %34 = arith.negf %33 : vector<16x64xf32>
    %35 = math.exp %34 : vector<16x64xf32>
    %cst_18 = arith.constant 1.000000e+00 : f32
    %36 = vector.broadcast %cst_18 : f32 to vector<16x64xf32>
    %37 = arith.addf %36, %35 : vector<16x64xf32>
    %38 = arith.divf %36, %37 : vector<16x64xf32>
    %39 = arith.mulf %33, %38 : vector<16x64xf32>
    %c0_19 = arith.constant 0 : index
    %c0_20 = arith.constant 0 : index
    %40 = vector.load %arg7[%c0_19, %c0_20] : memref<64x260xf32, #tpu.memory_space<vmem>>, vector<64x260xf32>
    %cst_21 = arith.constant dense<0.000000e+00> : vector<16x260xf32>
    %41 = tpu.matmul %39, %40, %cst_21 {dimension_numbers = #tpu.dot_dimension_numbers<[1], [0], [0], [1], [0, 0, 1, 1], [], []>} : vector<16x64xf32>, vector<64x260xf32>, vector<16x260xf32> -> vector<16x260xf32>
    %42 = vector.extract_strided_slice %41 {offsets = [0, 0], sizes = [16, 128], strides = [1, 1]} : vector<16x260xf32> to vector<16x128xf32>
    %43 = vector.extract_strided_slice %41 {offsets = [0, 256], sizes = [16, 4], strides = [1, 1]} : vector<16x260xf32> to vector<16x4xf32>
    %c0_22 = arith.constant 0 : index
    %c0_23 = arith.constant 0 : index
    %44 = vector.load %arg8[%c0_22, %c0_23] : memref<4x64xf32, #tpu.memory_space<vmem>>, vector<4x64xf32>
    %cst_24 = arith.constant dense<0.000000e+00> : vector<16x64xf32>
    %45 = tpu.matmul %43, %44, %cst_24 {dimension_numbers = #tpu.dot_dimension_numbers<[1], [0], [0], [1], [0, 0, 1, 1], [], []>} : vector<16x4xf32>, vector<4x64xf32>, vector<16x64xf32> -> vector<16x64xf32>
    %c0_25 = arith.constant 0 : index
    %c0_26 = arith.constant 0 : index
    %46 = vector.load %arg9[%c0_25, %c0_26] : memref<1x64xf32, #tpu.memory_space<vmem>>, vector<1x64xf32>
    %47 = vector.broadcast %46 : vector<1x64xf32> to vector<16x64xf32>
    %48 = arith.addf %45, %47 : vector<16x64xf32>
    %cst_27 = arith.constant 0.000000e+00 : f32
    %49 = vector.broadcast %cst_27 : f32 to vector<16x64xf32>
    %50 = arith.maximumf %48, %49 : vector<16x64xf32>
    %51 = vector.broadcast %cst_27 : f32 to vector<16x64xf32>
    %52 = arith.subf %48, %51 : vector<16x64xf32>
    %53 = arith.cmpf one, %52, %52 : vector<16x64xf32>
    %54 = vector.broadcast %cst_27 : f32 to vector<16x64xf32>
    %55 = arith.addf %48, %54 : vector<16x64xf32>
    %56 = math.absf %52 : vector<16x64xf32>
    %cst_28 = arith.constant 0.000000e+00 : f32
    %57 = vector.broadcast %cst_28 : f32 to vector<16x64xf32>
    %58 = arith.subf %57, %56 : vector<16x64xf32>
    %59 = math.exp %58 : vector<16x64xf32>
    %60 = math.log1p %59 : vector<16x64xf32>
    %61 = arith.addf %50, %60 : vector<16x64xf32>
    %62 = arith.select %53, %55, %61 : vector<16x64xi1>, vector<16x64xf32>
    %63 = arith.mulf %62, %39 : vector<16x64xf32>
    %c0_29 = arith.constant 0 : index
    %c0_30 = arith.constant 0 : index
    %64 = vector.load %arg10[%c0_29, %c0_30] : memref<1x128xf32, #tpu.memory_space<vmem>>, vector<1x128xf32>
    %65 = vector.extract_strided_slice %62 {offsets = [0, 0], sizes = [8, 64], strides = [1, 1]} : vector<16x64xf32> to vector<8x64xf32>
    %cst_31 = arith.constant dense<0.000000e+00> : vector<8x64xf32>
    %66 = tpu.matmul %5, %65, %cst_31 {dimension_numbers = #tpu.dot_dimension_numbers<[1], [0], [0], [1], [0, 0, 1, 1], [], []>} : vector<8x8xf32>, vector<8x64xf32>, vector<8x64xf32> -> vector<8x64xf32>
    %67 = tpu.transpose %66, [1, 0] : vector<8x64xf32> -> vector<64x8xf32>
    %68 = vector.extract_strided_slice %63 {offsets = [0, 0], sizes = [8, 64], strides = [1, 1]} : vector<16x64xf32> to vector<8x64xf32>
    %69 = tpu.transpose %68, [1, 0] : vector<8x64xf32> -> vector<64x8xf32>
    %70 = vector.extract_strided_slice %42 {offsets = [0, 0], sizes = [8, 128], strides = [1, 1]} : vector<16x128xf32> to vector<8x128xf32>
    %71 = vector.extract_strided_slice %67 {offsets = [0, 0], sizes = [64, 1], strides = [1, 1]} : vector<64x8xf32> to vector<64x1xf32>
    %72 = vector.broadcast %71 : vector<64x1xf32> to vector<64x128xf32>
    %73 = vector.broadcast %64 : vector<1x128xf32> to vector<64x128xf32>
    %74 = arith.mulf %72, %73 : vector<64x128xf32>
    %75 = math.exp %74 : vector<64x128xf32>
    %76 = vector.extract_strided_slice %69 {offsets = [0, 0], sizes = [64, 1], strides = [1, 1]} : vector<64x8xf32> to vector<64x1xf32>
    %77 = vector.extract_strided_slice %70 {offsets = [0, 0], sizes = [1, 128], strides = [1, 1]} : vector<8x128xf32> to vector<1x128xf32>
    %78 = vector.broadcast %76 : vector<64x1xf32> to vector<64x128xf32>
    %79 = vector.broadcast %77 : vector<1x128xf32> to vector<64x128xf32>
    %80 = arith.mulf %78, %79 : vector<64x128xf32>
    %81 = arith.mulf %75, %80 : vector<64x128xf32>
    %82 = vector.extract_strided_slice %67 {offsets = [0, 1], sizes = [64, 1], strides = [1, 1]} : vector<64x8xf32> to vector<64x1xf32>
    %83 = vector.broadcast %82 : vector<64x1xf32> to vector<64x128xf32>
    %84 = vector.broadcast %64 : vector<1x128xf32> to vector<64x128xf32>
    %85 = arith.mulf %83, %84 : vector<64x128xf32>
    %86 = math.exp %85 : vector<64x128xf32>
    %87 = vector.extract_strided_slice %69 {offsets = [0, 1], sizes = [64, 1], strides = [1, 1]} : vector<64x8xf32> to vector<64x1xf32>
    %88 = vector.extract_strided_slice %70 {offsets = [1, 0], sizes = [1, 128], strides = [1, 1]} : vector<8x128xf32> to vector<1x128xf32>
    %89 = vector.broadcast %87 : vector<64x1xf32> to vector<64x128xf32>
    %90 = vector.broadcast %88 : vector<1x128xf32> to vector<64x128xf32>
    %91 = arith.mulf %89, %90 : vector<64x128xf32>
    %92 = arith.mulf %86, %91 : vector<64x128xf32>
    %93 = vector.extract_strided_slice %67 {offsets = [0, 2], sizes = [64, 1], strides = [1, 1]} : vector<64x8xf32> to vector<64x1xf32>
    %94 = vector.broadcast %93 : vector<64x1xf32> to vector<64x128xf32>
    %95 = vector.broadcast %64 : vector<1x128xf32> to vector<64x128xf32>
    %96 = arith.mulf %94, %95 : vector<64x128xf32>
    %97 = math.exp %96 : vector<64x128xf32>
    %98 = vector.extract_strided_slice %69 {offsets = [0, 2], sizes = [64, 1], strides = [1, 1]} : vector<64x8xf32> to vector<64x1xf32>
    %99 = vector.extract_strided_slice %70 {offsets = [2, 0], sizes = [1, 128], strides = [1, 1]} : vector<8x128xf32> to vector<1x128xf32>
    %100 = vector.broadcast %98 : vector<64x1xf32> to vector<64x128xf32>
    %101 = vector.broadcast %99 : vector<1x128xf32> to vector<64x128xf32>
    %102 = arith.mulf %100, %101 : vector<64x128xf32>
    %103 = arith.mulf %97, %102 : vector<64x128xf32>
    %104 = vector.extract_strided_slice %67 {offsets = [0, 3], sizes = [64, 1], strides = [1, 1]} : vector<64x8xf32> to vector<64x1xf32>
    %105 = vector.broadcast %104 : vector<64x1xf32> to vector<64x128xf32>
    %106 = vector.broadcast %64 : vector<1x128xf32> to vector<64x128xf32>
    %107 = arith.mulf %105, %106 : vector<64x128xf32>
    %108 = math.exp %107 : vector<64x128xf32>
    %109 = vector.extract_strided_slice %69 {offsets = [0, 3], sizes = [64, 1], strides = [1, 1]} : vector<64x8xf32> to vector<64x1xf32>
    %110 = vector.extract_strided_slice %70 {offsets = [3, 0], sizes = [1, 128], strides = [1, 1]} : vector<8x128xf32> to vector<1x128xf32>
    %111 = vector.broadcast %109 : vector<64x1xf32> to vector<64x128xf32>
    %112 = vector.broadcast %110 : vector<1x128xf32> to vector<64x128xf32>
    %113 = arith.mulf %111, %112 : vector<64x128xf32>
    %114 = arith.mulf %108, %113 : vector<64x128xf32>
    %115 = vector.extract_strided_slice %67 {offsets = [0, 4], sizes = [64, 1], strides = [1, 1]} : vector<64x8xf32> to vector<64x1xf32>
    %116 = vector.broadcast %115 : vector<64x1xf32> to vector<64x128xf32>
    %117 = vector.broadcast %64 : vector<1x128xf32> to vector<64x128xf32>
    %118 = arith.mulf %116, %117 : vector<64x128xf32>
    %119 = math.exp %118 : vector<64x128xf32>
    %120 = vector.extract_strided_slice %69 {offsets = [0, 4], sizes = [64, 1], strides = [1, 1]} : vector<64x8xf32> to vector<64x1xf32>
    %121 = vector.extract_strided_slice %70 {offsets = [4, 0], sizes = [1, 128], strides = [1, 1]} : vector<8x128xf32> to vector<1x128xf32>
    %122 = vector.broadcast %120 : vector<64x1xf32> to vector<64x128xf32>
    %123 = vector.broadcast %121 : vector<1x128xf32> to vector<64x128xf32>
    %124 = arith.mulf %122, %123 : vector<64x128xf32>
    %125 = arith.mulf %119, %124 : vector<64x128xf32>
    %126 = vector.extract_strided_slice %67 {offsets = [0, 5], sizes = [64, 1], strides = [1, 1]} : vector<64x8xf32> to vector<64x1xf32>
    %127 = vector.broadcast %126 : vector<64x1xf32> to vector<64x128xf32>
    %128 = vector.broadcast %64 : vector<1x128xf32> to vector<64x128xf32>
    %129 = arith.mulf %127, %128 : vector<64x128xf32>
    %130 = math.exp %129 : vector<64x128xf32>
    %131 = vector.extract_strided_slice %69 {offsets = [0, 5], sizes = [64, 1], strides = [1, 1]} : vector<64x8xf32> to vector<64x1xf32>
    %132 = vector.extract_strided_slice %70 {offsets = [5, 0], sizes = [1, 128], strides = [1, 1]} : vector<8x128xf32> to vector<1x128xf32>
    %133 = vector.broadcast %131 : vector<64x1xf32> to vector<64x128xf32>
    %134 = vector.broadcast %132 : vector<1x128xf32> to vector<64x128xf32>
    %135 = arith.mulf %133, %134 : vector<64x128xf32>
    %136 = arith.mulf %130, %135 : vector<64x128xf32>
    %137 = vector.extract_strided_slice %67 {offsets = [0, 6], sizes = [64, 1], strides = [1, 1]} : vector<64x8xf32> to vector<64x1xf32>
    %138 = vector.broadcast %137 : vector<64x1xf32> to vector<64x128xf32>
    %139 = vector.broadcast %64 : vector<1x128xf32> to vector<64x128xf32>
    %140 = arith.mulf %138, %139 : vector<64x128xf32>
    %141 = math.exp %140 : vector<64x128xf32>
    %142 = vector.extract_strided_slice %69 {offsets = [0, 6], sizes = [64, 1], strides = [1, 1]} : vector<64x8xf32> to vector<64x1xf32>
    %143 = vector.extract_strided_slice %70 {offsets = [6, 0], sizes = [1, 128], strides = [1, 1]} : vector<8x128xf32> to vector<1x128xf32>
    %144 = vector.broadcast %142 : vector<64x1xf32> to vector<64x128xf32>
    %145 = vector.broadcast %143 : vector<1x128xf32> to vector<64x128xf32>
    %146 = arith.mulf %144, %145 : vector<64x128xf32>
    %147 = arith.mulf %141, %146 : vector<64x128xf32>
    %148 = vector.extract_strided_slice %67 {offsets = [0, 7], sizes = [64, 1], strides = [1, 1]} : vector<64x8xf32> to vector<64x1xf32>
    %149 = vector.broadcast %148 : vector<64x1xf32> to vector<64x128xf32>
    %150 = vector.broadcast %64 : vector<1x128xf32> to vector<64x128xf32>
    %151 = arith.mulf %149, %150 : vector<64x128xf32>
    %152 = math.exp %151 : vector<64x128xf32>
    %153 = vector.extract_strided_slice %69 {offsets = [0, 7], sizes = [64, 1], strides = [1, 1]} : vector<64x8xf32> to vector<64x1xf32>
    %154 = vector.extract_strided_slice %70 {offsets = [7, 0], sizes = [1, 128], strides = [1, 1]} : vector<8x128xf32> to vector<1x128xf32>
    %155 = vector.broadcast %153 : vector<64x1xf32> to vector<64x128xf32>
    %156 = vector.broadcast %154 : vector<1x128xf32> to vector<64x128xf32>
    %157 = arith.mulf %155, %156 : vector<64x128xf32>
    %158 = arith.mulf %152, %157 : vector<64x128xf32>
    %159 = arith.addf %81, %92 : vector<64x128xf32>
    %160 = arith.addf %103, %114 : vector<64x128xf32>
    %161 = arith.addf %125, %136 : vector<64x128xf32>
    %162 = arith.addf %147, %158 : vector<64x128xf32>
    %163 = arith.addf %159, %160 : vector<64x128xf32>
    %164 = arith.addf %161, %162 : vector<64x128xf32>
    %165 = arith.addf %163, %164 : vector<64x128xf32>
    %166 = vector.extract_strided_slice %41 {offsets = [7, 128], sizes = [1, 128], strides = [1, 1]} : vector<16x260xf32> to vector<1x128xf32>
    %cst_32 = arith.constant dense<0.000000e+00> : vector<1x64xf32>
    %167 = tpu.matmul %166, %165, %cst_32 {dimension_numbers = #tpu.dot_dimension_numbers<[1], [1], [0], [0], [0, 0, 1, 0], [], []>} : vector<1x128xf32>, vector<64x128xf32>, vector<1x64xf32> -> vector<1x64xf32>
    %168 = vector.extract_strided_slice %12 {offsets = [7, 0], sizes = [1, 64], strides = [1, 1]} : vector<16x64xf32> to vector<1x64xf32>
    %c0_33 = arith.constant 0 : index
    %c0_34 = arith.constant 0 : index
    %169 = vector.load %arg4[%c0_33, %c0_34] : memref<64x64xf32, #tpu.memory_space<vmem>>, vector<64x64xf32>
    %cst_35 = arith.constant dense<0.000000e+00> : vector<1x64xf32>
    %170 = tpu.matmul %168, %169, %cst_35 {dimension_numbers = #tpu.dot_dimension_numbers<[1], [0], [0], [1], [0, 0, 1, 1], [], []>} : vector<1x64xf32>, vector<64x64xf32>, vector<1x64xf32> -> vector<1x64xf32>
    %171 = vector.extract_strided_slice %39 {offsets = [7, 0], sizes = [1, 64], strides = [1, 1]} : vector<16x64xf32> to vector<1x64xf32>
    %c0_36 = arith.constant 0 : index
    %c0_37 = arith.constant 0 : index
    %172 = vector.load %arg11[%c0_36, %c0_37] : memref<1x64xf32, #tpu.memory_space<vmem>>, vector<1x64xf32>
    %173 = arith.mulf %171, %172 : vector<1x64xf32>
    %174 = arith.addf %167, %173 : vector<1x64xf32>
    %175 = arith.negf %170 : vector<1x64xf32>
    %176 = math.exp %175 : vector<1x64xf32>
    %cst_38 = arith.constant 1.000000e+00 : f32
    %177 = vector.broadcast %cst_38 : f32 to vector<1x64xf32>
    %178 = arith.addf %177, %176 : vector<1x64xf32>
    %179 = arith.divf %177, %178 : vector<1x64xf32>
    %180 = arith.mulf %170, %179 : vector<1x64xf32>
    %181 = arith.mulf %174, %180 : vector<1x64xf32>
    %c0_39 = arith.constant 0 : index
    %c0_40 = arith.constant 0 : index
    %182 = vector.load %arg12[%c0_39, %c0_40] : memref<64x64xf32, #tpu.memory_space<vmem>>, vector<64x64xf32>
    %cst_41 = arith.constant dense<0.000000e+00> : vector<1x64xf32>
    %183 = tpu.matmul %181, %182, %cst_41 {dimension_numbers = #tpu.dot_dimension_numbers<[1], [0], [0], [1], [0, 0, 1, 1], [], []>} : vector<1x64xf32>, vector<64x64xf32>, vector<1x64xf32> -> vector<1x64xf32>
    %184 = vector.extract_strided_slice %12 {offsets = [7, 0], sizes = [1, 64], strides = [1, 1]} : vector<16x64xf32> to vector<1x64xf32>
    %185 = arith.addf %184, %183 : vector<1x64xf32>
    %c0_42 = arith.constant 0 : index
    %c0_43 = arith.constant 0 : index
    %186 = vector.load %arg13[%c0_42, %c0_43] : memref<64x6xf32, #tpu.memory_space<vmem>>, vector<64x6xf32>
    %cst_44 = arith.constant dense<0.000000e+00> : vector<1x6xf32>
    %187 = tpu.matmul %185, %186, %cst_44 {dimension_numbers = #tpu.dot_dimension_numbers<[1], [0], [0], [1], [0, 0, 1, 1], [], []>} : vector<1x64xf32>, vector<64x6xf32>, vector<1x6xf32> -> vector<1x6xf32>
    %c0_45 = arith.constant 0 : index
    %c0_46 = arith.constant 0 : index
    %188 = vector.load %arg14[%c0_45, %c0_46] : memref<1x6xf32, #tpu.memory_space<vmem>>, vector<1x6xf32>
    %189 = arith.addf %187, %188 : vector<1x6xf32>
    %190 = vector.extract_strided_slice %62 {offsets = [8, 0], sizes = [8, 64], strides = [1, 1]} : vector<16x64xf32> to vector<8x64xf32>
    %cst_47 = arith.constant dense<0.000000e+00> : vector<8x64xf32>
    %191 = tpu.matmul %5, %190, %cst_47 {dimension_numbers = #tpu.dot_dimension_numbers<[1], [0], [0], [1], [0, 0, 1, 1], [], []>} : vector<8x8xf32>, vector<8x64xf32>, vector<8x64xf32> -> vector<8x64xf32>
    %192 = tpu.transpose %191, [1, 0] : vector<8x64xf32> -> vector<64x8xf32>
    %193 = vector.extract_strided_slice %63 {offsets = [8, 0], sizes = [8, 64], strides = [1, 1]} : vector<16x64xf32> to vector<8x64xf32>
    %194 = tpu.transpose %193, [1, 0] : vector<8x64xf32> -> vector<64x8xf32>
    %195 = vector.extract_strided_slice %42 {offsets = [8, 0], sizes = [8, 128], strides = [1, 1]} : vector<16x128xf32> to vector<8x128xf32>
    %196 = vector.extract_strided_slice %192 {offsets = [0, 0], sizes = [64, 1], strides = [1, 1]} : vector<64x8xf32> to vector<64x1xf32>
    %197 = vector.broadcast %196 : vector<64x1xf32> to vector<64x128xf32>
    %198 = vector.broadcast %64 : vector<1x128xf32> to vector<64x128xf32>
    %199 = arith.mulf %197, %198 : vector<64x128xf32>
    %200 = math.exp %199 : vector<64x128xf32>
    %201 = vector.extract_strided_slice %194 {offsets = [0, 0], sizes = [64, 1], strides = [1, 1]} : vector<64x8xf32> to vector<64x1xf32>
    %202 = vector.extract_strided_slice %195 {offsets = [0, 0], sizes = [1, 128], strides = [1, 1]} : vector<8x128xf32> to vector<1x128xf32>
    %203 = vector.broadcast %201 : vector<64x1xf32> to vector<64x128xf32>
    %204 = vector.broadcast %202 : vector<1x128xf32> to vector<64x128xf32>
    %205 = arith.mulf %203, %204 : vector<64x128xf32>
    %206 = arith.mulf %200, %205 : vector<64x128xf32>
    %207 = vector.extract_strided_slice %192 {offsets = [0, 1], sizes = [64, 1], strides = [1, 1]} : vector<64x8xf32> to vector<64x1xf32>
    %208 = vector.broadcast %207 : vector<64x1xf32> to vector<64x128xf32>
    %209 = vector.broadcast %64 : vector<1x128xf32> to vector<64x128xf32>
    %210 = arith.mulf %208, %209 : vector<64x128xf32>
    %211 = math.exp %210 : vector<64x128xf32>
    %212 = vector.extract_strided_slice %194 {offsets = [0, 1], sizes = [64, 1], strides = [1, 1]} : vector<64x8xf32> to vector<64x1xf32>
    %213 = vector.extract_strided_slice %195 {offsets = [1, 0], sizes = [1, 128], strides = [1, 1]} : vector<8x128xf32> to vector<1x128xf32>
    %214 = vector.broadcast %212 : vector<64x1xf32> to vector<64x128xf32>
    %215 = vector.broadcast %213 : vector<1x128xf32> to vector<64x128xf32>
    %216 = arith.mulf %214, %215 : vector<64x128xf32>
    %217 = arith.mulf %211, %216 : vector<64x128xf32>
    %218 = vector.extract_strided_slice %192 {offsets = [0, 2], sizes = [64, 1], strides = [1, 1]} : vector<64x8xf32> to vector<64x1xf32>
    %219 = vector.broadcast %218 : vector<64x1xf32> to vector<64x128xf32>
    %220 = vector.broadcast %64 : vector<1x128xf32> to vector<64x128xf32>
    %221 = arith.mulf %219, %220 : vector<64x128xf32>
    %222 = math.exp %221 : vector<64x128xf32>
    %223 = vector.extract_strided_slice %194 {offsets = [0, 2], sizes = [64, 1], strides = [1, 1]} : vector<64x8xf32> to vector<64x1xf32>
    %224 = vector.extract_strided_slice %195 {offsets = [2, 0], sizes = [1, 128], strides = [1, 1]} : vector<8x128xf32> to vector<1x128xf32>
    %225 = vector.broadcast %223 : vector<64x1xf32> to vector<64x128xf32>
    %226 = vector.broadcast %224 : vector<1x128xf32> to vector<64x128xf32>
    %227 = arith.mulf %225, %226 : vector<64x128xf32>
    %228 = arith.mulf %222, %227 : vector<64x128xf32>
    %229 = vector.extract_strided_slice %192 {offsets = [0, 3], sizes = [64, 1], strides = [1, 1]} : vector<64x8xf32> to vector<64x1xf32>
    %230 = vector.broadcast %229 : vector<64x1xf32> to vector<64x128xf32>
    %231 = vector.broadcast %64 : vector<1x128xf32> to vector<64x128xf32>
    %232 = arith.mulf %230, %231 : vector<64x128xf32>
    %233 = math.exp %232 : vector<64x128xf32>
    %234 = vector.extract_strided_slice %194 {offsets = [0, 3], sizes = [64, 1], strides = [1, 1]} : vector<64x8xf32> to vector<64x1xf32>
    %235 = vector.extract_strided_slice %195 {offsets = [3, 0], sizes = [1, 128], strides = [1, 1]} : vector<8x128xf32> to vector<1x128xf32>
    %236 = vector.broadcast %234 : vector<64x1xf32> to vector<64x128xf32>
    %237 = vector.broadcast %235 : vector<1x128xf32> to vector<64x128xf32>
    %238 = arith.mulf %236, %237 : vector<64x128xf32>
    %239 = arith.mulf %233, %238 : vector<64x128xf32>
    %240 = vector.extract_strided_slice %192 {offsets = [0, 4], sizes = [64, 1], strides = [1, 1]} : vector<64x8xf32> to vector<64x1xf32>
    %241 = vector.broadcast %240 : vector<64x1xf32> to vector<64x128xf32>
    %242 = vector.broadcast %64 : vector<1x128xf32> to vector<64x128xf32>
    %243 = arith.mulf %241, %242 : vector<64x128xf32>
    %244 = math.exp %243 : vector<64x128xf32>
    %245 = vector.extract_strided_slice %194 {offsets = [0, 4], sizes = [64, 1], strides = [1, 1]} : vector<64x8xf32> to vector<64x1xf32>
    %246 = vector.extract_strided_slice %195 {offsets = [4, 0], sizes = [1, 128], strides = [1, 1]} : vector<8x128xf32> to vector<1x128xf32>
    %247 = vector.broadcast %245 : vector<64x1xf32> to vector<64x128xf32>
    %248 = vector.broadcast %246 : vector<1x128xf32> to vector<64x128xf32>
    %249 = arith.mulf %247, %248 : vector<64x128xf32>
    %250 = arith.mulf %244, %249 : vector<64x128xf32>
    %251 = vector.extract_strided_slice %192 {offsets = [0, 5], sizes = [64, 1], strides = [1, 1]} : vector<64x8xf32> to vector<64x1xf32>
    %252 = vector.broadcast %251 : vector<64x1xf32> to vector<64x128xf32>
    %253 = vector.broadcast %64 : vector<1x128xf32> to vector<64x128xf32>
    %254 = arith.mulf %252, %253 : vector<64x128xf32>
    %255 = math.exp %254 : vector<64x128xf32>
    %256 = vector.extract_strided_slice %194 {offsets = [0, 5], sizes = [64, 1], strides = [1, 1]} : vector<64x8xf32> to vector<64x1xf32>
    %257 = vector.extract_strided_slice %195 {offsets = [5, 0], sizes = [1, 128], strides = [1, 1]} : vector<8x128xf32> to vector<1x128xf32>
    %258 = vector.broadcast %256 : vector<64x1xf32> to vector<64x128xf32>
    %259 = vector.broadcast %257 : vector<1x128xf32> to vector<64x128xf32>
    %260 = arith.mulf %258, %259 : vector<64x128xf32>
    %261 = arith.mulf %255, %260 : vector<64x128xf32>
    %262 = vector.extract_strided_slice %192 {offsets = [0, 6], sizes = [64, 1], strides = [1, 1]} : vector<64x8xf32> to vector<64x1xf32>
    %263 = vector.broadcast %262 : vector<64x1xf32> to vector<64x128xf32>
    %264 = vector.broadcast %64 : vector<1x128xf32> to vector<64x128xf32>
    %265 = arith.mulf %263, %264 : vector<64x128xf32>
    %266 = math.exp %265 : vector<64x128xf32>
    %267 = vector.extract_strided_slice %194 {offsets = [0, 6], sizes = [64, 1], strides = [1, 1]} : vector<64x8xf32> to vector<64x1xf32>
    %268 = vector.extract_strided_slice %195 {offsets = [6, 0], sizes = [1, 128], strides = [1, 1]} : vector<8x128xf32> to vector<1x128xf32>
    %269 = vector.broadcast %267 : vector<64x1xf32> to vector<64x128xf32>
    %270 = vector.broadcast %268 : vector<1x128xf32> to vector<64x128xf32>
    %271 = arith.mulf %269, %270 : vector<64x128xf32>
    %272 = arith.mulf %266, %271 : vector<64x128xf32>
    %273 = vector.extract_strided_slice %192 {offsets = [0, 7], sizes = [64, 1], strides = [1, 1]} : vector<64x8xf32> to vector<64x1xf32>
    %274 = vector.broadcast %273 : vector<64x1xf32> to vector<64x128xf32>
    %275 = vector.broadcast %64 : vector<1x128xf32> to vector<64x128xf32>
    %276 = arith.mulf %274, %275 : vector<64x128xf32>
    %277 = math.exp %276 : vector<64x128xf32>
    %278 = vector.extract_strided_slice %194 {offsets = [0, 7], sizes = [64, 1], strides = [1, 1]} : vector<64x8xf32> to vector<64x1xf32>
    %279 = vector.extract_strided_slice %195 {offsets = [7, 0], sizes = [1, 128], strides = [1, 1]} : vector<8x128xf32> to vector<1x128xf32>
    %280 = vector.broadcast %278 : vector<64x1xf32> to vector<64x128xf32>
    %281 = vector.broadcast %279 : vector<1x128xf32> to vector<64x128xf32>
    %282 = arith.mulf %280, %281 : vector<64x128xf32>
    %283 = arith.mulf %277, %282 : vector<64x128xf32>
    %284 = arith.addf %206, %217 : vector<64x128xf32>
    %285 = arith.addf %228, %239 : vector<64x128xf32>
    %286 = arith.addf %250, %261 : vector<64x128xf32>
    %287 = arith.addf %272, %283 : vector<64x128xf32>
    %288 = arith.addf %284, %285 : vector<64x128xf32>
    %289 = arith.addf %286, %287 : vector<64x128xf32>
    %290 = arith.addf %288, %289 : vector<64x128xf32>
    %291 = vector.extract_strided_slice %41 {offsets = [15, 128], sizes = [1, 128], strides = [1, 1]} : vector<16x260xf32> to vector<1x128xf32>
    %cst_48 = arith.constant dense<0.000000e+00> : vector<1x64xf32>
    %292 = tpu.matmul %291, %290, %cst_48 {dimension_numbers = #tpu.dot_dimension_numbers<[1], [1], [0], [0], [0, 0, 1, 0], [], []>} : vector<1x128xf32>, vector<64x128xf32>, vector<1x64xf32> -> vector<1x64xf32>
    %293 = vector.extract_strided_slice %12 {offsets = [15, 0], sizes = [1, 64], strides = [1, 1]} : vector<16x64xf32> to vector<1x64xf32>
    %c0_49 = arith.constant 0 : index
    %c0_50 = arith.constant 0 : index
    %294 = vector.load %arg4[%c0_49, %c0_50] : memref<64x64xf32, #tpu.memory_space<vmem>>, vector<64x64xf32>
    %cst_51 = arith.constant dense<0.000000e+00> : vector<1x64xf32>
    %295 = tpu.matmul %293, %294, %cst_51 {dimension_numbers = #tpu.dot_dimension_numbers<[1], [0], [0], [1], [0, 0, 1, 1], [], []>} : vector<1x64xf32>, vector<64x64xf32>, vector<1x64xf32> -> vector<1x64xf32>
    %296 = vector.extract_strided_slice %39 {offsets = [15, 0], sizes = [1, 64], strides = [1, 1]} : vector<16x64xf32> to vector<1x64xf32>
    %c0_52 = arith.constant 0 : index
    %c0_53 = arith.constant 0 : index
    %297 = vector.load %arg11[%c0_52, %c0_53] : memref<1x64xf32, #tpu.memory_space<vmem>>, vector<1x64xf32>
    %298 = arith.mulf %296, %297 : vector<1x64xf32>
    %299 = arith.addf %292, %298 : vector<1x64xf32>
    %300 = arith.negf %295 : vector<1x64xf32>
    %301 = math.exp %300 : vector<1x64xf32>
    %cst_54 = arith.constant 1.000000e+00 : f32
    %302 = vector.broadcast %cst_54 : f32 to vector<1x64xf32>
    %303 = arith.addf %302, %301 : vector<1x64xf32>
    %304 = arith.divf %302, %303 : vector<1x64xf32>
    %305 = arith.mulf %295, %304 : vector<1x64xf32>
    %306 = arith.mulf %299, %305 : vector<1x64xf32>
    %c0_55 = arith.constant 0 : index
    %c0_56 = arith.constant 0 : index
    %307 = vector.load %arg12[%c0_55, %c0_56] : memref<64x64xf32, #tpu.memory_space<vmem>>, vector<64x64xf32>
    %cst_57 = arith.constant dense<0.000000e+00> : vector<1x64xf32>
    %308 = tpu.matmul %306, %307, %cst_57 {dimension_numbers = #tpu.dot_dimension_numbers<[1], [0], [0], [1], [0, 0, 1, 1], [], []>} : vector<1x64xf32>, vector<64x64xf32>, vector<1x64xf32> -> vector<1x64xf32>
    %309 = vector.extract_strided_slice %12 {offsets = [15, 0], sizes = [1, 64], strides = [1, 1]} : vector<16x64xf32> to vector<1x64xf32>
    %310 = arith.addf %309, %308 : vector<1x64xf32>
    %c0_58 = arith.constant 0 : index
    %c0_59 = arith.constant 0 : index
    %311 = vector.load %arg13[%c0_58, %c0_59] : memref<64x6xf32, #tpu.memory_space<vmem>>, vector<64x6xf32>
    %cst_60 = arith.constant dense<0.000000e+00> : vector<1x6xf32>
    %312 = tpu.matmul %310, %311, %cst_60 {dimension_numbers = #tpu.dot_dimension_numbers<[1], [0], [0], [1], [0, 0, 1, 1], [], []>} : vector<1x64xf32>, vector<64x6xf32>, vector<1x6xf32> -> vector<1x6xf32>
    %c0_61 = arith.constant 0 : index
    %c0_62 = arith.constant 0 : index
    %313 = vector.load %arg14[%c0_61, %c0_62] : memref<1x6xf32, #tpu.memory_space<vmem>>, vector<1x6xf32>
    %314 = arith.addf %312, %313 : vector<1x6xf32>
    %c0_63 = arith.constant 0 : index
    %c0_64 = arith.constant 0 : index
    %315 = vector.load %arg29[%c0_63, %c0_64] : memref<1x6xf32, #tpu.memory_space<vmem>>, vector<1x6xf32>
    %316 = arith.mulf %189, %315 : vector<1x6xf32>
    %cst_65 = arith.constant dense<0.000000e+00> : vector<1xf32>
    %317 = vector.multi_reduction <add>, %316, %cst_65 [1] : vector<1x6xf32> to vector<1xf32>
    %318 = vector.shape_cast %317 : vector<1xf32> to vector<1x1xf32>
    %319 = arith.addf %6, %318 : vector<1x1xf32>
    %320 = arith.mulf %314, %315 : vector<1x6xf32>
    %cst_66 = arith.constant dense<0.000000e+00> : vector<1xf32>
    %321 = vector.multi_reduction <add>, %320, %cst_66 [1] : vector<1x6xf32> to vector<1xf32>
    %322 = vector.shape_cast %321 : vector<1xf32> to vector<1x1xf32>
    %323 = arith.addf %7, %322 : vector<1x1xf32>
    %c0_67 = arith.constant 0 : index
    %c0_68 = arith.constant 0 : index
    %324 = vector.load %arg15[%c0_67, %c0_68] : memref<6x128xf32, #tpu.memory_space<vmem>>, vector<6x128xf32>
    %cst_69 = arith.constant dense<0.000000e+00> : vector<16x128xf32>
    %325 = tpu.matmul %0, %324, %cst_69 {dimension_numbers = #tpu.dot_dimension_numbers<[1], [0], [0], [1], [0, 0, 1, 1], [], []>} : vector<16x6xf32>, vector<6x128xf32>, vector<16x128xf32> -> vector<16x128xf32>
    %c0_70 = arith.constant 0 : index
    %c0_71 = arith.constant 0 : index
    %326 = vector.load %arg16[%c0_70, %c0_71] : memref<1x128xf32, #tpu.memory_space<vmem>>, vector<1x128xf32>
    %327 = vector.broadcast %326 : vector<1x128xf32> to vector<16x128xf32>
    %328 = arith.addf %325, %327 : vector<16x128xf32>
    %c0_72 = arith.constant 0 : index
    %c0_73 = arith.constant 0 : index
    %329 = vector.load %arg17[%c0_72, %c0_73] : memref<128x128xf32, #tpu.memory_space<vmem>>, vector<128x128xf32>
    %cst_74 = arith.constant dense<0.000000e+00> : vector<16x128xf32>
    %330 = tpu.matmul %328, %329, %cst_74 {dimension_numbers = #tpu.dot_dimension_numbers<[1], [0], [0], [1], [0, 0, 1, 1], [], []>} : vector<16x128xf32>, vector<128x128xf32>, vector<16x128xf32> -> vector<16x128xf32>
    %c1_i32_75 = arith.constant 1 : i32
    %331 = tpu.dynamic_rotate %330 by %c1_i32_75 dim 0 : vector<16x128xf32>, i32 -> vector<16x128xf32>
    %332 = tpu.iota {dimensions = array<i32: 0>} : vector<16x128xi32>
    %c0_i32_76 = arith.constant 0 : i32
    %333 = vector.broadcast %c0_i32_76 : i32 to vector<16x128xi32>
    %334 = arith.cmpi eq, %332, %333 : vector<16x128xi32>
    %c8_i32_77 = arith.constant 8 : i32
    %335 = vector.broadcast %c8_i32_77 : i32 to vector<16x128xi32>
    %336 = arith.cmpi eq, %332, %335 : vector<16x128xi32>
    %337 = arith.ori %334, %336 : vector<16x128xi1>
    %cst_78 = arith.constant 0.000000e+00 : f32
    %338 = vector.broadcast %cst_78 : f32 to vector<16x128xf32>
    %339 = arith.select %337, %338, %331 : vector<16x128xi1>, vector<16x128xf32>
    %c0_79 = arith.constant 0 : index
    %c0_80 = arith.constant 0 : index
    %340 = vector.load %arg19[%c0_79, %c0_80] : memref<2x128xf32, #tpu.memory_space<vmem>>, vector<1x128xf32>
    %341 = vector.broadcast %340 : vector<1x128xf32> to vector<16x128xf32>
    %342 = arith.mulf %339, %341 : vector<16x128xf32>
    %c1_81 = arith.constant 1 : index
    %c0_82 = arith.constant 0 : index
    %343 = vector.load %arg19[%c1_81, %c0_82] : memref<2x128xf32, #tpu.memory_space<vmem>>, vector<1x128xf32>
    %344 = vector.broadcast %343 : vector<1x128xf32> to vector<16x128xf32>
    %345 = arith.mulf %330, %344 : vector<16x128xf32>
    %346 = arith.addf %342, %345 : vector<16x128xf32>
    %c0_83 = arith.constant 0 : index
    %c0_84 = arith.constant 0 : index
    %347 = vector.load %arg20[%c0_83, %c0_84] : memref<1x128xf32, #tpu.memory_space<vmem>>, vector<1x128xf32>
    %348 = vector.broadcast %347 : vector<1x128xf32> to vector<16x128xf32>
    %349 = arith.addf %346, %348 : vector<16x128xf32>
    %350 = arith.negf %349 : vector<16x128xf32>
    %351 = math.exp %350 : vector<16x128xf32>
    %cst_85 = arith.constant 1.000000e+00 : f32
    %352 = vector.broadcast %cst_85 : f32 to vector<16x128xf32>
    %353 = arith.addf %352, %351 : vector<16x128xf32>
    %354 = arith.divf %352, %353 : vector<16x128xf32>
    %355 = arith.mulf %349, %354 : vector<16x128xf32>
    %c0_86 = arith.constant 0 : index
    %c0_87 = arith.constant 0 : index
    %356 = vector.load %arg21[%c0_86, %c0_87] : memref<128x264xf32, #tpu.memory_space<vmem>>, vector<128x264xf32>
    %cst_88 = arith.constant dense<0.000000e+00> : vector<16x264xf32>
    %357 = tpu.matmul %355, %356, %cst_88 {dimension_numbers = #tpu.dot_dimension_numbers<[1], [0], [0], [1], [0, 0, 1, 1], [], []>} : vector<16x128xf32>, vector<128x264xf32>, vector<16x264xf32> -> vector<16x264xf32>
    %358 = vector.extract_strided_slice %357 {offsets = [0, 0], sizes = [16, 128], strides = [1, 1]} : vector<16x264xf32> to vector<16x128xf32>
    %359 = vector.extract_strided_slice %357 {offsets = [0, 256], sizes = [16, 8], strides = [1, 1]} : vector<16x264xf32> to vector<16x8xf32>
    %c0_89 = arith.constant 0 : index
    %c0_90 = arith.constant 0 : index
    %360 = vector.load %arg22[%c0_89, %c0_90] : memref<8x128xf32, #tpu.memory_space<vmem>>, vector<8x128xf32>
    %cst_91 = arith.constant dense<0.000000e+00> : vector<16x128xf32>
    %361 = tpu.matmul %359, %360, %cst_91 {dimension_numbers = #tpu.dot_dimension_numbers<[1], [0], [0], [1], [0, 0, 1, 1], [], []>} : vector<16x8xf32>, vector<8x128xf32>, vector<16x128xf32> -> vector<16x128xf32>
    %c0_92 = arith.constant 0 : index
    %c0_93 = arith.constant 0 : index
    %362 = vector.load %arg23[%c0_92, %c0_93] : memref<1x128xf32, #tpu.memory_space<vmem>>, vector<1x128xf32>
    %363 = vector.broadcast %362 : vector<1x128xf32> to vector<16x128xf32>
    %364 = arith.addf %361, %363 : vector<16x128xf32>
    %cst_94 = arith.constant 0.000000e+00 : f32
    %365 = vector.broadcast %cst_94 : f32 to vector<16x128xf32>
    %366 = arith.maximumf %364, %365 : vector<16x128xf32>
    %367 = vector.broadcast %cst_94 : f32 to vector<16x128xf32>
    %368 = arith.subf %364, %367 : vector<16x128xf32>
    %369 = arith.cmpf one, %368, %368 : vector<16x128xf32>
    %370 = vector.broadcast %cst_94 : f32 to vector<16x128xf32>
    %371 = arith.addf %364, %370 : vector<16x128xf32>
    %372 = math.absf %368 : vector<16x128xf32>
    %cst_95 = arith.constant 0.000000e+00 : f32
    %373 = vector.broadcast %cst_95 : f32 to vector<16x128xf32>
    %374 = arith.subf %373, %372 : vector<16x128xf32>
    %375 = math.exp %374 : vector<16x128xf32>
    %376 = math.log1p %375 : vector<16x128xf32>
    %377 = arith.addf %366, %376 : vector<16x128xf32>
    %378 = arith.select %369, %371, %377 : vector<16x128xi1>, vector<16x128xf32>
    %379 = arith.mulf %378, %355 : vector<16x128xf32>
    %c0_96 = arith.constant 0 : index
    %c0_97 = arith.constant 0 : index
    %380 = vector.load %arg24[%c0_96, %c0_97] : memref<1x128xf32, #tpu.memory_space<vmem>>, vector<1x128xf32>
    %381 = vector.extract_strided_slice %378 {offsets = [0, 0], sizes = [8, 128], strides = [1, 1]} : vector<16x128xf32> to vector<8x128xf32>
    %cst_98 = arith.constant dense<0.000000e+00> : vector<8x128xf32>
    %382 = tpu.matmul %5, %381, %cst_98 {dimension_numbers = #tpu.dot_dimension_numbers<[1], [0], [0], [1], [0, 0, 1, 1], [], []>} : vector<8x8xf32>, vector<8x128xf32>, vector<8x128xf32> -> vector<8x128xf32>
    %383 = tpu.transpose %382, [1, 0] : vector<8x128xf32> -> vector<128x8xf32>
    %384 = vector.extract_strided_slice %379 {offsets = [0, 0], sizes = [8, 128], strides = [1, 1]} : vector<16x128xf32> to vector<8x128xf32>
    %385 = tpu.transpose %384, [1, 0] : vector<8x128xf32> -> vector<128x8xf32>
    %386 = vector.extract_strided_slice %358 {offsets = [0, 0], sizes = [8, 128], strides = [1, 1]} : vector<16x128xf32> to vector<8x128xf32>
    %387 = vector.extract_strided_slice %383 {offsets = [0, 0], sizes = [128, 1], strides = [1, 1]} : vector<128x8xf32> to vector<128x1xf32>
    %388 = vector.broadcast %387 : vector<128x1xf32> to vector<128x128xf32>
    %389 = vector.broadcast %380 : vector<1x128xf32> to vector<128x128xf32>
    %390 = arith.mulf %388, %389 : vector<128x128xf32>
    %391 = math.exp %390 : vector<128x128xf32>
    %392 = vector.extract_strided_slice %385 {offsets = [0, 0], sizes = [128, 1], strides = [1, 1]} : vector<128x8xf32> to vector<128x1xf32>
    %393 = vector.extract_strided_slice %386 {offsets = [0, 0], sizes = [1, 128], strides = [1, 1]} : vector<8x128xf32> to vector<1x128xf32>
    %394 = vector.broadcast %392 : vector<128x1xf32> to vector<128x128xf32>
    %395 = vector.broadcast %393 : vector<1x128xf32> to vector<128x128xf32>
    %396 = arith.mulf %394, %395 : vector<128x128xf32>
    %397 = arith.mulf %391, %396 : vector<128x128xf32>
    %398 = vector.extract_strided_slice %383 {offsets = [0, 1], sizes = [128, 1], strides = [1, 1]} : vector<128x8xf32> to vector<128x1xf32>
    %399 = vector.broadcast %398 : vector<128x1xf32> to vector<128x128xf32>
    %400 = vector.broadcast %380 : vector<1x128xf32> to vector<128x128xf32>
    %401 = arith.mulf %399, %400 : vector<128x128xf32>
    %402 = math.exp %401 : vector<128x128xf32>
    %403 = vector.extract_strided_slice %385 {offsets = [0, 1], sizes = [128, 1], strides = [1, 1]} : vector<128x8xf32> to vector<128x1xf32>
    %404 = vector.extract_strided_slice %386 {offsets = [1, 0], sizes = [1, 128], strides = [1, 1]} : vector<8x128xf32> to vector<1x128xf32>
    %405 = vector.broadcast %403 : vector<128x1xf32> to vector<128x128xf32>
    %406 = vector.broadcast %404 : vector<1x128xf32> to vector<128x128xf32>
    %407 = arith.mulf %405, %406 : vector<128x128xf32>
    %408 = arith.mulf %402, %407 : vector<128x128xf32>
    %409 = vector.extract_strided_slice %383 {offsets = [0, 2], sizes = [128, 1], strides = [1, 1]} : vector<128x8xf32> to vector<128x1xf32>
    %410 = vector.broadcast %409 : vector<128x1xf32> to vector<128x128xf32>
    %411 = vector.broadcast %380 : vector<1x128xf32> to vector<128x128xf32>
    %412 = arith.mulf %410, %411 : vector<128x128xf32>
    %413 = math.exp %412 : vector<128x128xf32>
    %414 = vector.extract_strided_slice %385 {offsets = [0, 2], sizes = [128, 1], strides = [1, 1]} : vector<128x8xf32> to vector<128x1xf32>
    %415 = vector.extract_strided_slice %386 {offsets = [2, 0], sizes = [1, 128], strides = [1, 1]} : vector<8x128xf32> to vector<1x128xf32>
    %416 = vector.broadcast %414 : vector<128x1xf32> to vector<128x128xf32>
    %417 = vector.broadcast %415 : vector<1x128xf32> to vector<128x128xf32>
    %418 = arith.mulf %416, %417 : vector<128x128xf32>
    %419 = arith.mulf %413, %418 : vector<128x128xf32>
    %420 = vector.extract_strided_slice %383 {offsets = [0, 3], sizes = [128, 1], strides = [1, 1]} : vector<128x8xf32> to vector<128x1xf32>
    %421 = vector.broadcast %420 : vector<128x1xf32> to vector<128x128xf32>
    %422 = vector.broadcast %380 : vector<1x128xf32> to vector<128x128xf32>
    %423 = arith.mulf %421, %422 : vector<128x128xf32>
    %424 = math.exp %423 : vector<128x128xf32>
    %425 = vector.extract_strided_slice %385 {offsets = [0, 3], sizes = [128, 1], strides = [1, 1]} : vector<128x8xf32> to vector<128x1xf32>
    %426 = vector.extract_strided_slice %386 {offsets = [3, 0], sizes = [1, 128], strides = [1, 1]} : vector<8x128xf32> to vector<1x128xf32>
    %427 = vector.broadcast %425 : vector<128x1xf32> to vector<128x128xf32>
    %428 = vector.broadcast %426 : vector<1x128xf32> to vector<128x128xf32>
    %429 = arith.mulf %427, %428 : vector<128x128xf32>
    %430 = arith.mulf %424, %429 : vector<128x128xf32>
    %431 = vector.extract_strided_slice %383 {offsets = [0, 4], sizes = [128, 1], strides = [1, 1]} : vector<128x8xf32> to vector<128x1xf32>
    %432 = vector.broadcast %431 : vector<128x1xf32> to vector<128x128xf32>
    %433 = vector.broadcast %380 : vector<1x128xf32> to vector<128x128xf32>
    %434 = arith.mulf %432, %433 : vector<128x128xf32>
    %435 = math.exp %434 : vector<128x128xf32>
    %436 = vector.extract_strided_slice %385 {offsets = [0, 4], sizes = [128, 1], strides = [1, 1]} : vector<128x8xf32> to vector<128x1xf32>
    %437 = vector.extract_strided_slice %386 {offsets = [4, 0], sizes = [1, 128], strides = [1, 1]} : vector<8x128xf32> to vector<1x128xf32>
    %438 = vector.broadcast %436 : vector<128x1xf32> to vector<128x128xf32>
    %439 = vector.broadcast %437 : vector<1x128xf32> to vector<128x128xf32>
    %440 = arith.mulf %438, %439 : vector<128x128xf32>
    %441 = arith.mulf %435, %440 : vector<128x128xf32>
    %442 = vector.extract_strided_slice %383 {offsets = [0, 5], sizes = [128, 1], strides = [1, 1]} : vector<128x8xf32> to vector<128x1xf32>
    %443 = vector.broadcast %442 : vector<128x1xf32> to vector<128x128xf32>
    %444 = vector.broadcast %380 : vector<1x128xf32> to vector<128x128xf32>
    %445 = arith.mulf %443, %444 : vector<128x128xf32>
    %446 = math.exp %445 : vector<128x128xf32>
    %447 = vector.extract_strided_slice %385 {offsets = [0, 5], sizes = [128, 1], strides = [1, 1]} : vector<128x8xf32> to vector<128x1xf32>
    %448 = vector.extract_strided_slice %386 {offsets = [5, 0], sizes = [1, 128], strides = [1, 1]} : vector<8x128xf32> to vector<1x128xf32>
    %449 = vector.broadcast %447 : vector<128x1xf32> to vector<128x128xf32>
    %450 = vector.broadcast %448 : vector<1x128xf32> to vector<128x128xf32>
    %451 = arith.mulf %449, %450 : vector<128x128xf32>
    %452 = arith.mulf %446, %451 : vector<128x128xf32>
    %453 = vector.extract_strided_slice %383 {offsets = [0, 6], sizes = [128, 1], strides = [1, 1]} : vector<128x8xf32> to vector<128x1xf32>
    %454 = vector.broadcast %453 : vector<128x1xf32> to vector<128x128xf32>
    %455 = vector.broadcast %380 : vector<1x128xf32> to vector<128x128xf32>
    %456 = arith.mulf %454, %455 : vector<128x128xf32>
    %457 = math.exp %456 : vector<128x128xf32>
    %458 = vector.extract_strided_slice %385 {offsets = [0, 6], sizes = [128, 1], strides = [1, 1]} : vector<128x8xf32> to vector<128x1xf32>
    %459 = vector.extract_strided_slice %386 {offsets = [6, 0], sizes = [1, 128], strides = [1, 1]} : vector<8x128xf32> to vector<1x128xf32>
    %460 = vector.broadcast %458 : vector<128x1xf32> to vector<128x128xf32>
    %461 = vector.broadcast %459 : vector<1x128xf32> to vector<128x128xf32>
    %462 = arith.mulf %460, %461 : vector<128x128xf32>
    %463 = arith.mulf %457, %462 : vector<128x128xf32>
    %464 = vector.extract_strided_slice %383 {offsets = [0, 7], sizes = [128, 1], strides = [1, 1]} : vector<128x8xf32> to vector<128x1xf32>
    %465 = vector.broadcast %464 : vector<128x1xf32> to vector<128x128xf32>
    %466 = vector.broadcast %380 : vector<1x128xf32> to vector<128x128xf32>
    %467 = arith.mulf %465, %466 : vector<128x128xf32>
    %468 = math.exp %467 : vector<128x128xf32>
    %469 = vector.extract_strided_slice %385 {offsets = [0, 7], sizes = [128, 1], strides = [1, 1]} : vector<128x8xf32> to vector<128x1xf32>
    %470 = vector.extract_strided_slice %386 {offsets = [7, 0], sizes = [1, 128], strides = [1, 1]} : vector<8x128xf32> to vector<1x128xf32>
    %471 = vector.broadcast %469 : vector<128x1xf32> to vector<128x128xf32>
    %472 = vector.broadcast %470 : vector<1x128xf32> to vector<128x128xf32>
    %473 = arith.mulf %471, %472 : vector<128x128xf32>
    %474 = arith.mulf %468, %473 : vector<128x128xf32>
    %475 = arith.addf %397, %408 : vector<128x128xf32>
    %476 = arith.addf %419, %430 : vector<128x128xf32>
    %477 = arith.addf %441, %452 : vector<128x128xf32>
    %478 = arith.addf %463, %474 : vector<128x128xf32>
    %479 = arith.addf %475, %476 : vector<128x128xf32>
    %480 = arith.addf %477, %478 : vector<128x128xf32>
    %481 = arith.addf %479, %480 : vector<128x128xf32>
    %482 = vector.extract_strided_slice %357 {offsets = [7, 128], sizes = [1, 128], strides = [1, 1]} : vector<16x264xf32> to vector<1x128xf32>
    %cst_99 = arith.constant dense<0.000000e+00> : vector<1x128xf32>
    %483 = tpu.matmul %482, %481, %cst_99 {dimension_numbers = #tpu.dot_dimension_numbers<[1], [1], [0], [0], [0, 0, 1, 0], [], []>} : vector<1x128xf32>, vector<128x128xf32>, vector<1x128xf32> -> vector<1x128xf32>
    %484 = vector.extract_strided_slice %328 {offsets = [7, 0], sizes = [1, 128], strides = [1, 1]} : vector<16x128xf32> to vector<1x128xf32>
    %c0_100 = arith.constant 0 : index
    %c0_101 = arith.constant 0 : index
    %485 = vector.load %arg18[%c0_100, %c0_101] : memref<128x128xf32, #tpu.memory_space<vmem>>, vector<128x128xf32>
    %cst_102 = arith.constant dense<0.000000e+00> : vector<1x128xf32>
    %486 = tpu.matmul %484, %485, %cst_102 {dimension_numbers = #tpu.dot_dimension_numbers<[1], [0], [0], [1], [0, 0, 1, 1], [], []>} : vector<1x128xf32>, vector<128x128xf32>, vector<1x128xf32> -> vector<1x128xf32>
    %487 = vector.extract_strided_slice %355 {offsets = [7, 0], sizes = [1, 128], strides = [1, 1]} : vector<16x128xf32> to vector<1x128xf32>
    %c0_103 = arith.constant 0 : index
    %c0_104 = arith.constant 0 : index
    %488 = vector.load %arg25[%c0_103, %c0_104] : memref<1x128xf32, #tpu.memory_space<vmem>>, vector<1x128xf32>
    %489 = arith.mulf %487, %488 : vector<1x128xf32>
    %490 = arith.addf %483, %489 : vector<1x128xf32>
    %491 = arith.negf %486 : vector<1x128xf32>
    %492 = math.exp %491 : vector<1x128xf32>
    %cst_105 = arith.constant 1.000000e+00 : f32
    %493 = vector.broadcast %cst_105 : f32 to vector<1x128xf32>
    %494 = arith.addf %493, %492 : vector<1x128xf32>
    %495 = arith.divf %493, %494 : vector<1x128xf32>
    %496 = arith.mulf %486, %495 : vector<1x128xf32>
    %497 = arith.mulf %490, %496 : vector<1x128xf32>
    %c0_106 = arith.constant 0 : index
    %c0_107 = arith.constant 0 : index
    %498 = vector.load %arg26[%c0_106, %c0_107] : memref<128x128xf32, #tpu.memory_space<vmem>>, vector<128x128xf32>
    %cst_108 = arith.constant dense<0.000000e+00> : vector<1x128xf32>
    %499 = tpu.matmul %497, %498, %cst_108 {dimension_numbers = #tpu.dot_dimension_numbers<[1], [0], [0], [1], [0, 0, 1, 1], [], []>} : vector<1x128xf32>, vector<128x128xf32>, vector<1x128xf32> -> vector<1x128xf32>
    %500 = vector.extract_strided_slice %328 {offsets = [7, 0], sizes = [1, 128], strides = [1, 1]} : vector<16x128xf32> to vector<1x128xf32>
    %501 = arith.addf %500, %499 : vector<1x128xf32>
    %c0_109 = arith.constant 0 : index
    %c0_110 = arith.constant 0 : index
    %502 = vector.load %arg27[%c0_109, %c0_110] : memref<128x6xf32, #tpu.memory_space<vmem>>, vector<128x6xf32>
    %cst_111 = arith.constant dense<0.000000e+00> : vector<1x6xf32>
    %503 = tpu.matmul %501, %502, %cst_111 {dimension_numbers = #tpu.dot_dimension_numbers<[1], [0], [0], [1], [0, 0, 1, 1], [], []>} : vector<1x128xf32>, vector<128x6xf32>, vector<1x6xf32> -> vector<1x6xf32>
    %c0_112 = arith.constant 0 : index
    %c0_113 = arith.constant 0 : index
    %504 = vector.load %arg28[%c0_112, %c0_113] : memref<1x6xf32, #tpu.memory_space<vmem>>, vector<1x6xf32>
    %505 = arith.addf %503, %504 : vector<1x6xf32>
    %506 = vector.extract_strided_slice %378 {offsets = [8, 0], sizes = [8, 128], strides = [1, 1]} : vector<16x128xf32> to vector<8x128xf32>
    %cst_114 = arith.constant dense<0.000000e+00> : vector<8x128xf32>
    %507 = tpu.matmul %5, %506, %cst_114 {dimension_numbers = #tpu.dot_dimension_numbers<[1], [0], [0], [1], [0, 0, 1, 1], [], []>} : vector<8x8xf32>, vector<8x128xf32>, vector<8x128xf32> -> vector<8x128xf32>
    %508 = tpu.transpose %507, [1, 0] : vector<8x128xf32> -> vector<128x8xf32>
    %509 = vector.extract_strided_slice %379 {offsets = [8, 0], sizes = [8, 128], strides = [1, 1]} : vector<16x128xf32> to vector<8x128xf32>
    %510 = tpu.transpose %509, [1, 0] : vector<8x128xf32> -> vector<128x8xf32>
    %511 = vector.extract_strided_slice %358 {offsets = [8, 0], sizes = [8, 128], strides = [1, 1]} : vector<16x128xf32> to vector<8x128xf32>
    %512 = vector.extract_strided_slice %508 {offsets = [0, 0], sizes = [128, 1], strides = [1, 1]} : vector<128x8xf32> to vector<128x1xf32>
    %513 = vector.broadcast %512 : vector<128x1xf32> to vector<128x128xf32>
    %514 = vector.broadcast %380 : vector<1x128xf32> to vector<128x128xf32>
    %515 = arith.mulf %513, %514 : vector<128x128xf32>
    %516 = math.exp %515 : vector<128x128xf32>
    %517 = vector.extract_strided_slice %510 {offsets = [0, 0], sizes = [128, 1], strides = [1, 1]} : vector<128x8xf32> to vector<128x1xf32>
    %518 = vector.extract_strided_slice %511 {offsets = [0, 0], sizes = [1, 128], strides = [1, 1]} : vector<8x128xf32> to vector<1x128xf32>
    %519 = vector.broadcast %517 : vector<128x1xf32> to vector<128x128xf32>
    %520 = vector.broadcast %518 : vector<1x128xf32> to vector<128x128xf32>
    %521 = arith.mulf %519, %520 : vector<128x128xf32>
    %522 = arith.mulf %516, %521 : vector<128x128xf32>
    %523 = vector.extract_strided_slice %508 {offsets = [0, 1], sizes = [128, 1], strides = [1, 1]} : vector<128x8xf32> to vector<128x1xf32>
    %524 = vector.broadcast %523 : vector<128x1xf32> to vector<128x128xf32>
    %525 = vector.broadcast %380 : vector<1x128xf32> to vector<128x128xf32>
    %526 = arith.mulf %524, %525 : vector<128x128xf32>
    %527 = math.exp %526 : vector<128x128xf32>
    %528 = vector.extract_strided_slice %510 {offsets = [0, 1], sizes = [128, 1], strides = [1, 1]} : vector<128x8xf32> to vector<128x1xf32>
    %529 = vector.extract_strided_slice %511 {offsets = [1, 0], sizes = [1, 128], strides = [1, 1]} : vector<8x128xf32> to vector<1x128xf32>
    %530 = vector.broadcast %528 : vector<128x1xf32> to vector<128x128xf32>
    %531 = vector.broadcast %529 : vector<1x128xf32> to vector<128x128xf32>
    %532 = arith.mulf %530, %531 : vector<128x128xf32>
    %533 = arith.mulf %527, %532 : vector<128x128xf32>
    %534 = vector.extract_strided_slice %508 {offsets = [0, 2], sizes = [128, 1], strides = [1, 1]} : vector<128x8xf32> to vector<128x1xf32>
    %535 = vector.broadcast %534 : vector<128x1xf32> to vector<128x128xf32>
    %536 = vector.broadcast %380 : vector<1x128xf32> to vector<128x128xf32>
    %537 = arith.mulf %535, %536 : vector<128x128xf32>
    %538 = math.exp %537 : vector<128x128xf32>
    %539 = vector.extract_strided_slice %510 {offsets = [0, 2], sizes = [128, 1], strides = [1, 1]} : vector<128x8xf32> to vector<128x1xf32>
    %540 = vector.extract_strided_slice %511 {offsets = [2, 0], sizes = [1, 128], strides = [1, 1]} : vector<8x128xf32> to vector<1x128xf32>
    %541 = vector.broadcast %539 : vector<128x1xf32> to vector<128x128xf32>
    %542 = vector.broadcast %540 : vector<1x128xf32> to vector<128x128xf32>
    %543 = arith.mulf %541, %542 : vector<128x128xf32>
    %544 = arith.mulf %538, %543 : vector<128x128xf32>
    %545 = vector.extract_strided_slice %508 {offsets = [0, 3], sizes = [128, 1], strides = [1, 1]} : vector<128x8xf32> to vector<128x1xf32>
    %546 = vector.broadcast %545 : vector<128x1xf32> to vector<128x128xf32>
    %547 = vector.broadcast %380 : vector<1x128xf32> to vector<128x128xf32>
    %548 = arith.mulf %546, %547 : vector<128x128xf32>
    %549 = math.exp %548 : vector<128x128xf32>
    %550 = vector.extract_strided_slice %510 {offsets = [0, 3], sizes = [128, 1], strides = [1, 1]} : vector<128x8xf32> to vector<128x1xf32>
    %551 = vector.extract_strided_slice %511 {offsets = [3, 0], sizes = [1, 128], strides = [1, 1]} : vector<8x128xf32> to vector<1x128xf32>
    %552 = vector.broadcast %550 : vector<128x1xf32> to vector<128x128xf32>
    %553 = vector.broadcast %551 : vector<1x128xf32> to vector<128x128xf32>
    %554 = arith.mulf %552, %553 : vector<128x128xf32>
    %555 = arith.mulf %549, %554 : vector<128x128xf32>
    %556 = vector.extract_strided_slice %508 {offsets = [0, 4], sizes = [128, 1], strides = [1, 1]} : vector<128x8xf32> to vector<128x1xf32>
    %557 = vector.broadcast %556 : vector<128x1xf32> to vector<128x128xf32>
    %558 = vector.broadcast %380 : vector<1x128xf32> to vector<128x128xf32>
    %559 = arith.mulf %557, %558 : vector<128x128xf32>
    %560 = math.exp %559 : vector<128x128xf32>
    %561 = vector.extract_strided_slice %510 {offsets = [0, 4], sizes = [128, 1], strides = [1, 1]} : vector<128x8xf32> to vector<128x1xf32>
    %562 = vector.extract_strided_slice %511 {offsets = [4, 0], sizes = [1, 128], strides = [1, 1]} : vector<8x128xf32> to vector<1x128xf32>
    %563 = vector.broadcast %561 : vector<128x1xf32> to vector<128x128xf32>
    %564 = vector.broadcast %562 : vector<1x128xf32> to vector<128x128xf32>
    %565 = arith.mulf %563, %564 : vector<128x128xf32>
    %566 = arith.mulf %560, %565 : vector<128x128xf32>
    %567 = vector.extract_strided_slice %508 {offsets = [0, 5], sizes = [128, 1], strides = [1, 1]} : vector<128x8xf32> to vector<128x1xf32>
    %568 = vector.broadcast %567 : vector<128x1xf32> to vector<128x128xf32>
    %569 = vector.broadcast %380 : vector<1x128xf32> to vector<128x128xf32>
    %570 = arith.mulf %568, %569 : vector<128x128xf32>
    %571 = math.exp %570 : vector<128x128xf32>
    %572 = vector.extract_strided_slice %510 {offsets = [0, 5], sizes = [128, 1], strides = [1, 1]} : vector<128x8xf32> to vector<128x1xf32>
    %573 = vector.extract_strided_slice %511 {offsets = [5, 0], sizes = [1, 128], strides = [1, 1]} : vector<8x128xf32> to vector<1x128xf32>
    %574 = vector.broadcast %572 : vector<128x1xf32> to vector<128x128xf32>
    %575 = vector.broadcast %573 : vector<1x128xf32> to vector<128x128xf32>
    %576 = arith.mulf %574, %575 : vector<128x128xf32>
    %577 = arith.mulf %571, %576 : vector<128x128xf32>
    %578 = vector.extract_strided_slice %508 {offsets = [0, 6], sizes = [128, 1], strides = [1, 1]} : vector<128x8xf32> to vector<128x1xf32>
    %579 = vector.broadcast %578 : vector<128x1xf32> to vector<128x128xf32>
    %580 = vector.broadcast %380 : vector<1x128xf32> to vector<128x128xf32>
    %581 = arith.mulf %579, %580 : vector<128x128xf32>
    %582 = math.exp %581 : vector<128x128xf32>
    %583 = vector.extract_strided_slice %510 {offsets = [0, 6], sizes = [128, 1], strides = [1, 1]} : vector<128x8xf32> to vector<128x1xf32>
    %584 = vector.extract_strided_slice %511 {offsets = [6, 0], sizes = [1, 128], strides = [1, 1]} : vector<8x128xf32> to vector<1x128xf32>
    %585 = vector.broadcast %583 : vector<128x1xf32> to vector<128x128xf32>
    %586 = vector.broadcast %584 : vector<1x128xf32> to vector<128x128xf32>
    %587 = arith.mulf %585, %586 : vector<128x128xf32>
    %588 = arith.mulf %582, %587 : vector<128x128xf32>
    %589 = vector.extract_strided_slice %508 {offsets = [0, 7], sizes = [128, 1], strides = [1, 1]} : vector<128x8xf32> to vector<128x1xf32>
    %590 = vector.broadcast %589 : vector<128x1xf32> to vector<128x128xf32>
    %591 = vector.broadcast %380 : vector<1x128xf32> to vector<128x128xf32>
    %592 = arith.mulf %590, %591 : vector<128x128xf32>
    %593 = math.exp %592 : vector<128x128xf32>
    %594 = vector.extract_strided_slice %510 {offsets = [0, 7], sizes = [128, 1], strides = [1, 1]} : vector<128x8xf32> to vector<128x1xf32>
    %595 = vector.extract_strided_slice %511 {offsets = [7, 0], sizes = [1, 128], strides = [1, 1]} : vector<8x128xf32> to vector<1x128xf32>
    %596 = vector.broadcast %594 : vector<128x1xf32> to vector<128x128xf32>
    %597 = vector.broadcast %595 : vector<1x128xf32> to vector<128x128xf32>
    %598 = arith.mulf %596, %597 : vector<128x128xf32>
    %599 = arith.mulf %593, %598 : vector<128x128xf32>
    %600 = arith.addf %522, %533 : vector<128x128xf32>
    %601 = arith.addf %544, %555 : vector<128x128xf32>
    %602 = arith.addf %566, %577 : vector<128x128xf32>
    %603 = arith.addf %588, %599 : vector<128x128xf32>
    %604 = arith.addf %600, %601 : vector<128x128xf32>
    %605 = arith.addf %602, %603 : vector<128x128xf32>
    %606 = arith.addf %604, %605 : vector<128x128xf32>
    %607 = vector.extract_strided_slice %357 {offsets = [15, 128], sizes = [1, 128], strides = [1, 1]} : vector<16x264xf32> to vector<1x128xf32>
    %cst_115 = arith.constant dense<0.000000e+00> : vector<1x128xf32>
    %608 = tpu.matmul %607, %606, %cst_115 {dimension_numbers = #tpu.dot_dimension_numbers<[1], [1], [0], [0], [0, 0, 1, 0], [], []>} : vector<1x128xf32>, vector<128x128xf32>, vector<1x128xf32> -> vector<1x128xf32>
    %609 = vector.extract_strided_slice %328 {offsets = [15, 0], sizes = [1, 128], strides = [1, 1]} : vector<16x128xf32> to vector<1x128xf32>
    %c0_116 = arith.constant 0 : index
    %c0_117 = arith.constant 0 : index
    %610 = vector.load %arg18[%c0_116, %c0_117] : memref<128x128xf32, #tpu.memory_space<vmem>>, vector<128x128xf32>
    %cst_118 = arith.constant dense<0.000000e+00> : vector<1x128xf32>
    %611 = tpu.matmul %609, %610, %cst_118 {dimension_numbers = #tpu.dot_dimension_numbers<[1], [0], [0], [1], [0, 0, 1, 1], [], []>} : vector<1x128xf32>, vector<128x128xf32>, vector<1x128xf32> -> vector<1x128xf32>
    %612 = vector.extract_strided_slice %355 {offsets = [15, 0], sizes = [1, 128], strides = [1, 1]} : vector<16x128xf32> to vector<1x128xf32>
    %c0_119 = arith.constant 0 : index
    %c0_120 = arith.constant 0 : index
    %613 = vector.load %arg25[%c0_119, %c0_120] : memref<1x128xf32, #tpu.memory_space<vmem>>, vector<1x128xf32>
    %614 = arith.mulf %612, %613 : vector<1x128xf32>
    %615 = arith.addf %608, %614 : vector<1x128xf32>
    %616 = arith.negf %611 : vector<1x128xf32>
    %617 = math.exp %616 : vector<1x128xf32>
    %cst_121 = arith.constant 1.000000e+00 : f32
    %618 = vector.broadcast %cst_121 : f32 to vector<1x128xf32>
    %619 = arith.addf %618, %617 : vector<1x128xf32>
    %620 = arith.divf %618, %619 : vector<1x128xf32>
    %621 = arith.mulf %611, %620 : vector<1x128xf32>
    %622 = arith.mulf %615, %621 : vector<1x128xf32>
    %c0_122 = arith.constant 0 : index
    %c0_123 = arith.constant 0 : index
    %623 = vector.load %arg26[%c0_122, %c0_123] : memref<128x128xf32, #tpu.memory_space<vmem>>, vector<128x128xf32>
    %cst_124 = arith.constant dense<0.000000e+00> : vector<1x128xf32>
    %624 = tpu.matmul %622, %623, %cst_124 {dimension_numbers = #tpu.dot_dimension_numbers<[1], [0], [0], [1], [0, 0, 1, 1], [], []>} : vector<1x128xf32>, vector<128x128xf32>, vector<1x128xf32> -> vector<1x128xf32>
    %625 = vector.extract_strided_slice %328 {offsets = [15, 0], sizes = [1, 128], strides = [1, 1]} : vector<16x128xf32> to vector<1x128xf32>
    %626 = arith.addf %625, %624 : vector<1x128xf32>
    %c0_125 = arith.constant 0 : index
    %c0_126 = arith.constant 0 : index
    %627 = vector.load %arg27[%c0_125, %c0_126] : memref<128x6xf32, #tpu.memory_space<vmem>>, vector<128x6xf32>
    %cst_127 = arith.constant dense<0.000000e+00> : vector<1x6xf32>
    %628 = tpu.matmul %626, %627, %cst_127 {dimension_numbers = #tpu.dot_dimension_numbers<[1], [0], [0], [1], [0, 0, 1, 1], [], []>} : vector<1x128xf32>, vector<128x6xf32>, vector<1x6xf32> -> vector<1x6xf32>
    %c0_128 = arith.constant 0 : index
    %c0_129 = arith.constant 0 : index
    %629 = vector.load %arg28[%c0_128, %c0_129] : memref<1x6xf32, #tpu.memory_space<vmem>>, vector<1x6xf32>
    %630 = arith.addf %628, %629 : vector<1x6xf32>
    %c0_130 = arith.constant 0 : index
    %c0_131 = arith.constant 0 : index
    %631 = vector.load %arg30[%c0_130, %c0_131] : memref<1x6xf32, #tpu.memory_space<vmem>>, vector<1x6xf32>
    %632 = arith.mulf %505, %631 : vector<1x6xf32>
    %cst_132 = arith.constant dense<0.000000e+00> : vector<1xf32>
    %633 = vector.multi_reduction <add>, %632, %cst_132 [1] : vector<1x6xf32> to vector<1xf32>
    %634 = vector.shape_cast %633 : vector<1xf32> to vector<1x1xf32>
    %635 = arith.addf %319, %634 : vector<1x1xf32>
    %636 = arith.mulf %630, %631 : vector<1x6xf32>
    %cst_133 = arith.constant dense<0.000000e+00> : vector<1xf32>
    %637 = vector.multi_reduction <add>, %636, %cst_133 [1] : vector<1x6xf32> to vector<1xf32>
    %638 = vector.shape_cast %637 : vector<1xf32> to vector<1x1xf32>
    %639 = arith.addf %323, %638 : vector<1x1xf32>
    %c0_134 = arith.constant 0 : index
    %c0_135 = arith.constant 0 : index
    %640 = vector.load %arg32[%c0_134, %c0_135] : memref<2x1xf32, #tpu.memory_space<vmem>>, vector<1x1xf32>
    tpu.vector_store %arg32[%c0_134, %c0_135], %635 {strides = array<i32>} : memref<2x1xf32, #tpu.memory_space<vmem>>, vector<1x1xf32>,
    %c1_136 = arith.constant 1 : index
    %c0_137 = arith.constant 0 : index
    %641 = vector.load %arg32[%c1_136, %c0_137] : memref<2x1xf32, #tpu.memory_space<vmem>>, vector<1x1xf32>
    tpu.vector_store %arg32[%c1_136, %c0_137], %639 {strides = array<i32>} : memref<2x1xf32, #tpu.memory_space<vmem>>, vector<1x1xf32>,
    return
  }
}

</mosaic_0001>

<llo_original>
// kernel: mamba_forward.1
$region0: #{mamba_forward.1}
  #allocation0 [shape = 'u32[]', space=smem, size = 0x4, offset = 0x4, fixed_abs, tag = 'smem constant byte address 0x4 - core index']
  #allocation1 [shape = 'u32[144,128]{1,0:T(1,128)}', space=vmem, size = 0x12000, scoped, tag = 'internal scratch']
  #allocation2 [shape = 'f32[1,1]{1,0:T(1,128)S(1)}', space=vmem, size = 0x200, scoped, tag = 'scoped memory for mamba_forward.1']
  %s0 = inlined_call_operand.smem [shape: u32[33], index: -1, kind: input, shape index: {}]
  %s1 = sld [smem:[%s0]]
  %s2 = scalar_lea.smem %s0, 1
  %s3 = sld [smem:[%s2]]
  %s4 = scalar_lea.smem %s0, 2
  %s5 = sld [smem:[%s4]]
  %s6 = scalar_lea.smem %s0, 3
  %s7 = sld [smem:[%s6]]
  %s8 = scalar_lea.smem %s0, 4
  %s9 = sld [smem:[%s8]]
  %s10 = scalar_lea.smem %s0, 5
  %s11 = sld [smem:[%s10]]
  %s12 = scalar_lea.smem %s0, 6
  %s13 = sld [smem:[%s12]]
  %s14 = scalar_lea.smem %s0, 7
  %s15 = sld [smem:[%s14]]
  %s16 = scalar_lea.smem %s0, 8
  %s17 = sld [smem:[%s16]]
  %s18 = scalar_lea.smem %s0, 9
  %s19 = sld [smem:[%s18]]
  %s20 = scalar_lea.smem %s0, 10
  %s21 = sld [smem:[%s20]]
  %s22 = scalar_lea.smem %s0, 11
  %s23 = sld [smem:[%s22]]
  %s24 = scalar_lea.smem %s0, 12
  %s25 = sld [smem:[%s24]]
  %s26 = scalar_lea.smem %s0, 13
  %s27 = sld [smem:[%s26]]
  %s28 = scalar_lea.smem %s0, 14
  %s29 = sld [smem:[%s28]]
  %s30 = scalar_lea.smem %s0, 15
  %s31 = sld [smem:[%s30]]
  %s32 = scalar_lea.smem %s0, 16
  %s33 = sld [smem:[%s32]]
  %s34 = scalar_lea.smem %s0, 17
  %s35 = sld [smem:[%s34]]
  %s36 = scalar_lea.smem %s0, 18
  %s37 = sld [smem:[%s36]]
  %s38 = scalar_lea.smem %s0, 19
  %s39 = sld [smem:[%s38]]
  %s40 = scalar_lea.smem %s0, 20
  %s41 = sld [smem:[%s40]]
  %s42 = scalar_lea.smem %s0, 21
  %s43 = sld [smem:[%s42]]
  %s44 = scalar_lea.smem %s0, 22
  %s45 = sld [smem:[%s44]]
  %s46 = scalar_lea.smem %s0, 23
  %s47 = sld [smem:[%s46]]
  %s48 = scalar_lea.smem %s0, 24
  %s49 = sld [smem:[%s48]]
  %s50 = scalar_lea.smem %s0, 25
  %s51 = sld [smem:[%s50]]
  %s52 = scalar_lea.smem %s0, 26
  %s53 = sld [smem:[%s52]]
  %s54 = scalar_lea.smem %s0, 27
  %s55 = sld [smem:[%s54]]
  %s56 = scalar_lea.smem %s0, 28
  %s57 = sld [smem:[%s56]]
  %s58 = scalar_lea.smem %s0, 29
  %s59 = sld [smem:[%s58]]
  %s60 = scalar_lea.smem %s0, 30
  %s61 = sld [smem:[%s60]]
  %s62 = scalar_lea.smem %s0, 31
  %s63 = sld [smem:[%s62]]
  %s64 = scalar_lea.smem %s0, 32
  %s65 = sld [smem:[%s64]]
  %s66 = sld [smem:[#allocation0]]
  $region206: #{mamba_forward.1} parent=0
    _
  %s68 = ssub.s32 1, %s66
  %s69 = scalar_select 0, %s68, %s66
  %v70 = vstv %s63
  %71 = vst [vmem:[#allocation2] sm:$0x1] %v70
  $region1: #{mamba_forward.1} parent=0
    #allocation3 [shape = 'u8[512]{0}', space=vmem, size = 0x400, scoped, tag = 'input window, operand 2, single buffered']
    #allocation4 [shape = 's32[1]{0}', space=sflag, size = 0x4, scoped, tag = 'scoped memory for mamba_forward.1']
    #allocation5 [shape = 'u8[32768]{0}', space=vmem, size = 0x8000, scoped, tag = 'input window, operand 4, single buffered']
    #allocation6 [shape = 's32[1]{0}', space=sflag, size = 0x4, scoped, tag = 'scoped memory for mamba_forward.1']
    #allocation7 [shape = 'u8[1024]{0}', space=vmem, size = 0x400, scoped, tag = 'input window, operand 5, single buffered']
    #allocation8 [shape = 'u8[512]{0}', space=vmem, size = 0x400, scoped, tag = 'input window, operand 6, single buffered']
    #allocation9 [shape = 's32[1]{0}', space=sflag, size = 0x4, scoped, tag = 'scoped memory for mamba_forward.1']
    #allocation10 [shape = 'u8[2048]{0}', space=vmem, size = 0x800, scoped, tag = 'input window, operand 8, single buffered']
    #allocation11 [shape = 'u8[512]{0}', space=vmem, size = 0x400, scoped, tag = 'input window, operand 9, single buffered']
    #allocation12 [shape = 's32[1]{0}', space=sflag, size = 0x4, scoped, tag = 'scoped memory for mamba_forward.1']
    #allocation13 [shape = 'u8[512]{0}', space=vmem, size = 0x400, scoped, tag = 'input window, operand 10, single buffered']
    #allocation14 [shape = 'u8[512]{0}', space=vmem, size = 0x400, scoped, tag = 'input window, operand 11, single buffered']
    #allocation15 [shape = 's32[1]{0}', space=sflag, size = 0x4, scoped, tag = 'scoped memory for mamba_forward.1']
    #allocation16 [shape = 'u8[32768]{0}', space=vmem, size = 0x8000, scoped, tag = 'input window, operand 12, single buffered']
    #allocation17 [shape = 'u8[512]{0}', space=vmem, size = 0x400, scoped, tag = 'input window, operand 14, single buffered']
    #allocation18 [shape = 's32[1]{0}', space=sflag, size = 0x4, scoped, tag = 'scoped memory for mamba_forward.1']
    #allocation19 [shape = 'u8[512]{0}', space=vmem, size = 0x400, scoped, tag = 'input window, operand 16, single buffered']
    #allocation20 [shape = 'u8[1024]{0}', space=vmem, size = 0x400, scoped, tag = 'input window, operand 19, single buffered']
    #allocation21 [shape = 's32[1]{0}', space=sflag, size = 0x4, scoped, tag = 'scoped memory for mamba_forward.1']
    #allocation22 [shape = 'u8[512]{0}', space=vmem, size = 0x400, scoped, tag = 'input window, operand 20, single buffered']
    #allocation23 [shape = 'u8[4096]{0}', space=vmem, size = 0x1000, scoped, tag = 'input window, operand 22, single buffered']
    #allocation24 [shape = 's32[1]{0}', space=sflag, size = 0x4, scoped, tag = 'scoped memory for mamba_forward.1']
    #allocation25 [shape = 'u8[512]{0}', space=vmem, size = 0x400, scoped, tag = 'input window, operand 23, single buffered']
    #allocation26 [shape = 'u8[512]{0}', space=vmem, size = 0x400, scoped, tag = 'input window, operand 25, single buffered']
    #allocation27 [shape = 's32[1]{0}', space=sflag, size = 0x4, scoped, tag = 'scoped memory for mamba_forward.1']
    #allocation28 [shape = 'u8[512]{0}', space=vmem, size = 0x400, scoped, tag = 'input window, operand 28, single buffered']
    %72 = vsyncpa [#allocation4], 0
    %73 = vsyncpa [#allocation6], 0
    %74 = vsyncpa [#allocation9], 0
    %75 = vsyncpa [#allocation12], 0
    %76 = vsyncpa [#allocation15], 0
    %77 = vsyncpa [#allocation18], 0
    %78 = vsyncpa [#allocation21], 0
    %79 = vsyncpa [#allocation24], 0
    %80 = vsyncpa [#allocation27], 0
    // Predicated region
    $region2: #{mamba_forward.1} parent=1 // pred_check
      _
    $region3: #{mamba_forward.1} parent=1 // pred_check_branch
      %82 = sbr.rel (0) target = $region5
    $region4: #{mamba_forward.1} parent=1 // pred_region
      _
    $region5: #{mamba_forward.1} parent=1 // pred_fallthru
      _
    // Predicated region
    $region6: #{mamba_forward.1} parent=1 // pred_check
      _
    $region7: #{mamba_forward.1} parent=1 // pred_check_branch
      %84 = sbr.rel (0) target = $region9
    $region8: #{mamba_forward.1} parent=1 // pred_region
      _
    $region9: #{mamba_forward.1} parent=1 // pred_fallthru
      _
    // Predicated region
    $region10: #{mamba_forward.1} parent=1 // pred_check
      _
    $region11: #{mamba_forward.1} parent=1 // pred_check_branch
      %86 = sbr.rel (0) target = $region13
    $region12: #{mamba_forward.1} parent=1 // pred_region
      %s88 = ssub.s32 16, 16
      %89 = vsyncadd [#allocation4], %s88
      %s91 = sshll.u32 [#allocation3], 4
      %s92 = int_to_ptr.vmem [resolvable:$true] %s91
      %94 = dma.hbm_to_vmem [thread:$0]  %s5, 16, %s92, [#allocation4]
    $region13: #{mamba_forward.1} parent=1 // pred_fallthru
      _
    // Predicated region
    $region14: #{mamba_forward.1} parent=1 // pred_check
      _
    $region15: #{mamba_forward.1} parent=1 // pred_check_branch
      %96 = sbr.rel (0) target = $region17
    $region16: #{mamba_forward.1} parent=1 // pred_region
      _
    $region17: #{mamba_forward.1} parent=1 // pred_fallthru
      _
    // Predicated region
    $region18: #{mamba_forward.1} parent=1 // pred_check
      _
    $region19: #{mamba_forward.1} parent=1 // pred_check_branch
      %98 = sbr.rel (0) target = $region21
    $region20: #{mamba_forward.1} parent=1 // pred_region
      %s100 = ssub.s32 1024, 1024
      %101 = vsyncadd [#allocation6], %s100
      %s102 = sshll.u32 [#allocation5], 4
      %s103 = int_to_ptr.vmem [resolvable:$true] %s102
      %108 = dma.hbm_to_vmem [thread:$0]  %s9, 1024, %s103, [#allocation6], 128, 128, 8
    $region21: #{mamba_forward.1} parent=1 // pred_fallthru
      _
    // Predicated region
    $region22: #{mamba_forward.1} parent=1 // pred_check
      _
    $region23: #{mamba_forward.1} parent=1 // pred_check_branch
      %110 = sbr.rel (0) target = $region25
    $region24: #{mamba_forward.1} parent=1 // pred_region
      %s112 = ssub.s32 32, 32
      %113 = vsyncadd [#allocation6], %s112
      %s115 = sshll.u32 [#allocation7], 4
      %s116 = int_to_ptr.vmem [resolvable:$true] %s115
      %118 = dma.hbm_to_vmem [thread:$0]  %s11, 32, %s116, [#allocation6]
    $region25: #{mamba_forward.1} parent=1 // pred_fallthru
      _
    // Predicated region
    $region26: #{mamba_forward.1} parent=1 // pred_check
      _
    $region27: #{mamba_forward.1} parent=1 // pred_check_branch
      %120 = sbr.rel (0) target = $region29
    $region28: #{mamba_forward.1} parent=1 // pred_region
      %s122 = ssub.s32 16, 16
      %123 = vsyncadd [#allocation9], %s122
      %s125 = sshll.u32 [#allocation8], 4
      %s126 = int_to_ptr.vmem [resolvable:$true] %s125
      %128 = dma.hbm_to_vmem [thread:$0]  %s13, 16, %s126, [#allocation9]
    $region29: #{mamba_forward.1} parent=1 // pred_fallthru
      _
    // Predicated region
    $region30: #{mamba_forward.1} parent=1 // pred_check
      _
    $region31: #{mamba_forward.1} parent=1 // pred_check_branch
      %130 = sbr.rel (0) target = $region33
    $region32: #{mamba_forward.1} parent=1 // pred_region
      _
    $region33: #{mamba_forward.1} parent=1 // pred_fallthru
      _
    // Predicated region
    $region34: #{mamba_forward.1} parent=1 // pred_check
      _
    $region35: #{mamba_forward.1} parent=1 // pred_check_branch
      %132 = sbr.rel (0) target = $region37
    $region36: #{mamba_forward.1} parent=1 // pred_region
      %s134 = ssub.s32 64, 64
      %135 = vsyncadd [#allocation9], %s134
      %s137 = sshll.u32 [#allocation10], 4
      %s138 = int_to_ptr.vmem [resolvable:$true] %s137
      %140 = dma.hbm_to_vmem [thread:$0]  %s17, 64, %s138, [#allocation9]
    $region37: #{mamba_forward.1} parent=1 // pred_fallthru
      _
    // Predicated region
    $region38: #{mamba_forward.1} parent=1 // pred_check
      _
    $region39: #{mamba_forward.1} parent=1 // pred_check_branch
      %142 = sbr.rel (0) target = $region41
    $region40: #{mamba_forward.1} parent=1 // pred_region
      %s144 = ssub.s32 16, 16
      %145 = vsyncadd [#allocation12], %s144
      %s147 = sshll.u32 [#allocation11], 4
      %s148 = int_to_ptr.vmem [resolvable:$true] %s147
      %150 = dma.hbm_to_vmem [thread:$0]  %s19, 16, %s148, [#allocation12]
    $region41: #{mamba_forward.1} parent=1 // pred_fallthru
      _
    // Predicated region
    $region42: #{mamba_forward.1} parent=1 // pred_check
      _
    $region43: #{mamba_forward.1} parent=1 // pred_check_branch
      %152 = sbr.rel (0) target = $region45
    $region44: #{mamba_forward.1} parent=1 // pred_region
      %s154 = ssub.s32 16, 16
      %155 = vsyncadd [#allocation12], %s154
      %s157 = sshll.u32 [#allocation13], 4
      %s158 = int_to_ptr.vmem [resolvable:$true] %s157
      %160 = dma.hbm_to_vmem [thread:$0]  %s21, 16, %s158, [#allocation12]
    $region45: #{mamba_forward.1} parent=1 // pred_fallthru
      _
    // Predicated region
    $region46: #{mamba_forward.1} parent=1 // pred_check
      _
    $region47: #{mamba_forward.1} parent=1 // pred_check_branch
      %162 = sbr.rel (0) target = $region49
    $region48: #{mamba_forward.1} parent=1 // pred_region
      %s164 = ssub.s32 16, 16
      %165 = vsyncadd [#allocation15], %s164
      %s167 = sshll.u32 [#allocation14], 4
      %s168 = int_to_ptr.vmem [resolvable:$true] %s167
      %170 = dma.hbm_to_vmem [thread:$0]  %s23, 16, %s168, [#allocation15]
    $region49: #{mamba_forward.1} parent=1 // pred_fallthru
      _
    // Predicated region
    $region50: #{mamba_forward.1} parent=1 // pred_check
      _
    $region51: #{mamba_forward.1} parent=1 // pred_check_branch
      %172 = sbr.rel (0) target = $region53
    $region52: #{mamba_forward.1} parent=1 // pred_region
      %s174 = ssub.s32 1024, 1024
      %175 = vsyncadd [#allocation15], %s174
      %s176 = sshll.u32 [#allocation16], 4
      %s177 = int_to_ptr.vmem [resolvable:$true] %s176
      %182 = dma.hbm_to_vmem [thread:$0]  %s25, 1024, %s177, [#allocation15], 128, 128, 8
    $region53: #{mamba_forward.1} parent=1 // pred_fallthru
      _
    // Predicated region
    $region54: #{mamba_forward.1} parent=1 // pred_check
      _
    $region55: #{mamba_forward.1} parent=1 // pred_check_branch
      %184 = sbr.rel (0) target = $region57
    $region56: #{mamba_forward.1} parent=1 // pred_region
      _
    $region57: #{mamba_forward.1} parent=1 // pred_fallthru
      _
    // Predicated region
    $region58: #{mamba_forward.1} parent=1 // pred_check
      _
    $region59: #{mamba_forward.1} parent=1 // pred_check_branch
      %186 = sbr.rel (0) target = $region61
    $region60: #{mamba_forward.1} parent=1 // pred_region
      %s188 = ssub.s32 16, 16
      %189 = vsyncadd [#allocation18], %s188
      %s191 = sshll.u32 [#allocation17], 4
      %s192 = int_to_ptr.vmem [resolvable:$true] %s191
      %194 = dma.hbm_to_vmem [thread:$0]  %s29, 16, %s192, [#allocation18]
    $region61: #{mamba_forward.1} parent=1 // pred_fallthru
      _
    // Predicated region
    $region62: #{mamba_forward.1} parent=1 // pred_check
      _
    $region63: #{mamba_forward.1} parent=1 // pred_check_branch
      %196 = sbr.rel (0) target = $region65
    $region64: #{mamba_forward.1} parent=1 // pred_region
      _
    $region65: #{mamba_forward.1} parent=1 // pred_fallthru
      _
    // Predicated region
    $region66: #{mamba_forward.1} parent=1 // pred_check
      _
    $region67: #{mamba_forward.1} parent=1 // pred_check_branch
      %198 = sbr.rel (0) target = $region69
    $region68: #{mamba_forward.1} parent=1 // pred_region
      %s200 = ssub.s32 16, 16
      %201 = vsyncadd [#allocation18], %s200
      %s203 = sshll.u32 [#allocation19], 4
      %s204 = int_to_ptr.vmem [resolvable:$true] %s203
      %206 = dma.hbm_to_vmem [thread:$0]  %s33, 16, %s204, [#allocation18]
    $region69: #{mamba_forward.1} parent=1 // pred_fallthru
      _
    // Predicated region
    $region70: #{mamba_forward.1} parent=1 // pred_check
      _
    $region71: #{mamba_forward.1} parent=1 // pred_check_branch
      %208 = sbr.rel (0) target = $region73
    $region72: #{mamba_forward.1} parent=1 // pred_region
      _
    $region73: #{mamba_forward.1} parent=1 // pred_fallthru
      _
    // Predicated region
    $region74: #{mamba_forward.1} parent=1 // pred_check
      _
    $region75: #{mamba_forward.1} parent=1 // pred_check_branch
      %210 = sbr.rel (0) target = $region77
    $region76: #{mamba_forward.1} parent=1 // pred_region
      _
    $region77: #{mamba_forward.1} parent=1 // pred_fallthru
      _
    // Predicated region
    $region78: #{mamba_forward.1} parent=1 // pred_check
      _
    $region79: #{mamba_forward.1} parent=1 // pred_check_branch
      %212 = sbr.rel (0) target = $region81
    $region80: #{mamba_forward.1} parent=1 // pred_region
      %s214 = ssub.s32 32, 32
      %215 = vsyncadd [#allocation21], %s214
      %s217 = sshll.u32 [#allocation20], 4
      %s218 = int_to_ptr.vmem [resolvable:$true] %s217
      %220 = dma.hbm_to_vmem [thread:$0]  %s39, 32, %s218, [#allocation21]
    $region81: #{mamba_forward.1} parent=1 // pred_fallthru
      _
    // Predicated region
    $region82: #{mamba_forward.1} parent=1 // pred_check
      _
    $region83: #{mamba_forward.1} parent=1 // pred_check_branch
      %222 = sbr.rel (0) target = $region85
    $region84: #{mamba_forward.1} parent=1 // pred_region
      %s224 = ssub.s32 16, 16
      %225 = vsyncadd [#allocation21], %s224
      %s227 = sshll.u32 [#allocation22], 4
      %s228 = int_to_ptr.vmem [resolvable:$true] %s227
      %230 = dma.hbm_to_vmem [thread:$0]  %s41, 16, %s228, [#allocation21]
    $region85: #{mamba_forward.1} parent=1 // pred_fallthru
      _
    // Predicated region
    $region86: #{mamba_forward.1} parent=1 // pred_check
      _
    $region87: #{mamba_forward.1} parent=1 // pred_check_branch
      %232 = sbr.rel (0) target = $region89
    $region88: #{mamba_forward.1} parent=1 // pred_region
      _
    $region89: #{mamba_forward.1} parent=1 // pred_fallthru
      _
    // Predicated region
    $region90: #{mamba_forward.1} parent=1 // pred_check
      _
    $region91: #{mamba_forward.1} parent=1 // pred_check_branch
      %234 = sbr.rel (0) target = $region93
    $region92: #{mamba_forward.1} parent=1 // pred_region
      %s236 = ssub.s32 128, 128
      %237 = vsyncadd [#allocation24], %s236
      %s239 = sshll.u32 [#allocation23], 4
      %s240 = int_to_ptr.vmem [resolvable:$true] %s239
      %242 = dma.hbm_to_vmem [thread:$0]  %s45, 128, %s240, [#allocation24]
    $region93: #{mamba_forward.1} parent=1 // pred_fallthru
      _
    // Predicated region
    $region94: #{mamba_forward.1} parent=1 // pred_check
      _
    $region95: #{mamba_forward.1} parent=1 // pred_check_branch
      %244 = sbr.rel (0) target = $region97
    $region96: #{mamba_forward.1} parent=1 // pred_region
      %s246 = ssub.s32 16, 16
      %247 = vsyncadd [#allocation24], %s246
      %s249 = sshll.u32 [#allocation25], 4
      %s250 = int_to_ptr.vmem [resolvable:$true] %s249
      %252 = dma.hbm_to_vmem [thread:$0]  %s47, 16, %s250, [#allocation24]
    $region97: #{mamba_forward.1} parent=1 // pred_fallthru
      _
    // Predicated region
    $region98: #{mamba_forward.1} parent=1 // pred_check
      _
    $region99: #{mamba_forward.1} parent=1 // pred_check_branch
      %254 = sbr.rel (0) target = $region101
    $region100: #{mamba_forward.1} parent=1 // pred_region
      _
    $region101: #{mamba_forward.1} parent=1 // pred_fallthru
      _
    // Predicated region
    $region102: #{mamba_forward.1} parent=1 // pred_check
      _
    $region103: #{mamba_forward.1} parent=1 // pred_check_branch
      %256 = sbr.rel (0) target = $region105
    $region104: #{mamba_forward.1} parent=1 // pred_region
      %s258 = ssub.s32 16, 16
      %259 = vsyncadd [#allocation27], %s258
      %s261 = sshll.u32 [#allocation26], 4
      %s262 = int_to_ptr.vmem [resolvable:$true] %s261
      %264 = dma.hbm_to_vmem [thread:$0]  %s51, 16, %s262, [#allocation27]
    $region105: #{mamba_forward.1} parent=1 // pred_fallthru
      _
    // Predicated region
    $region106: #{mamba_forward.1} parent=1 // pred_check
      _
    $region107: #{mamba_forward.1} parent=1 // pred_check_branch
      %266 = sbr.rel (0) target = $region109
    $region108: #{mamba_forward.1} parent=1 // pred_region
      _
    $region109: #{mamba_forward.1} parent=1 // pred_fallthru
      _
    // Predicated region
    $region110: #{mamba_forward.1} parent=1 // pred_check
      _
    $region111: #{mamba_forward.1} parent=1 // pred_check_branch
      %268 = sbr.rel (0) target = $region113
    $region112: #{mamba_forward.1} parent=1 // pred_region
      _
    $region113: #{mamba_forward.1} parent=1 // pred_fallthru
      _
    // Predicated region
    $region114: #{mamba_forward.1} parent=1 // pred_check
      _
    $region115: #{mamba_forward.1} parent=1 // pred_check_branch
      %270 = sbr.rel (0) target = $region117
    $region116: #{mamba_forward.1} parent=1 // pred_region
      %s272 = ssub.s32 16, 16
      %273 = vsyncadd [#allocation27], %s272
      %s275 = sshll.u32 [#allocation28], 4
      %s276 = int_to_ptr.vmem [resolvable:$true] %s275
      %278 = dma.hbm_to_vmem [thread:$0]  %s57, 16, %s276, [#allocation27]
    $region117: #{mamba_forward.1} parent=1 // pred_fallthru
      _
    // Predicated region
    $region118: #{mamba_forward.1} parent=1 // pred_check
      _
    $region119: #{mamba_forward.1} parent=1 // pred_check_branch
      %280 = sbr.rel (0) target = $region121
    $region120: #{mamba_forward.1} parent=1 // pred_region
      _
    $region121: #{mamba_forward.1} parent=1 // pred_fallthru
      _
    // Predicated region
    $region122: #{mamba_forward.1} parent=1 // pred_check
      _
    $region123: #{mamba_forward.1} parent=1 // pred_check_branch
      %282 = sbr.rel (0) target = $region125
    $region124: #{mamba_forward.1} parent=1 // pred_region
      _
    $region125: #{mamba_forward.1} parent=1 // pred_fallthru
      _
    // Predicated region
    $region126: #{mamba_forward.1} parent=1 // pred_check
      _
    $region127: #{mamba_forward.1} parent=1 // pred_check_branch
      %284 = sbr.rel (0) target = $region129
    $region128: #{mamba_forward.1} parent=1 // pred_region
      _
    $region129: #{mamba_forward.1} parent=1 // pred_fallthru
      _
    // Predicated region
    $region130: #{mamba_forward.1} parent=1 // pred_check
      _
    $region131: #{mamba_forward.1} parent=1 // pred_check_branch
      %286 = sbr.rel (0) target = $region133
    $region132: #{mamba_forward.1} parent=1 // pred_region
      %287 = dma.done [#allocation4], 16
    $region133: #{mamba_forward.1} parent=1 // pred_fallthru
      _
    // Predicated region
    $region134: #{mamba_forward.1} parent=1 // pred_check
      _
    $region135: #{mamba_forward.1} parent=1 // pred_check_branch
      %289 = sbr.rel (0) target = $region137
    $region136: #{mamba_forward.1} parent=1 // pred_region
      %290 = dma.done [#allocation6], 1024
    $region137: #{mamba_forward.1} parent=1 // pred_fallthru
      _
    // Predicated region
    $region138: #{mamba_forward.1} parent=1 // pred_check
      _
    $region139: #{mamba_forward.1} parent=1 // pred_check_branch
      %292 = sbr.rel (0) target = $region141
    $region140: #{mamba_forward.1} parent=1 // pred_region
      %293 = dma.done [#allocation6], 32
    $region141: #{mamba_forward.1} parent=1 // pred_fallthru
      _
    // Predicated region
    $region142: #{mamba_forward.1} parent=1 // pred_check
      _
    $region143: #{mamba_forward.1} parent=1 // pred_check_branch
      %295 = sbr.rel (0) target = $region145
    $region144: #{mamba_forward.1} parent=1 // pred_region
      %296 = dma.done [#allocation9], 16
    $region145: #{mamba_forward.1} parent=1 // pred_fallthru
      _
    // Predicated region
    $region146: #{mamba_forward.1} parent=1 // pred_check
      _
    $region147: #{mamba_forward.1} parent=1 // pred_check_branch
      %298 = sbr.rel (0) target = $region149
    $region148: #{mamba_forward.1} parent=1 // pred_region
      %299 = dma.done [#allocation9], 64
    $region149: #{mamba_forward.1} parent=1 // pred_fallthru
      _
    // Predicated region
    $region150: #{mamba_forward.1} parent=1 // pred_check
      _
    $region151: #{mamba_forward.1} parent=1 // pred_check_branch
      %301 = sbr.rel (0) target = $region153
    $region152: #{mamba_forward.1} parent=1 // pred_region
      %302 = dma.done [#allocation12], 16
    $region153: #{mamba_forward.1} parent=1 // pred_fallthru
      _
    // Predicated region
    $region154: #{mamba_forward.1} parent=1 // pred_check
      _
    $region155: #{mamba_forward.1} parent=1 // pred_check_branch
      %304 = sbr.rel (0) target = $region157
    $region156: #{mamba_forward.1} parent=1 // pred_region
      %305 = dma.done [#allocation12], 16
    $region157: #{mamba_forward.1} parent=1 // pred_fallthru
      _
    // Predicated region
    $region158: #{mamba_forward.1} parent=1 // pred_check
      _
    $region159: #{mamba_forward.1} parent=1 // pred_check_branch
      %307 = sbr.rel (0) target = $region161
    $region160: #{mamba_forward.1} parent=1 // pred_region
      %308 = dma.done [#allocation15], 16
    $region161: #{mamba_forward.1} parent=1 // pred_fallthru
      _
    // Predicated region
    $region162: #{mamba_forward.1} parent=1 // pred_check
      _
    $region163: #{mamba_forward.1} parent=1 // pred_check_branch
      %310 = sbr.rel (0) target = $region165
    $region164: #{mamba_forward.1} parent=1 // pred_region
      %311 = dma.done [#allocation15], 1024
    $region165: #{mamba_forward.1} parent=1 // pred_fallthru
      _
    // Predicated region
    $region166: #{mamba_forward.1} parent=1 // pred_check
      _
    $region167: #{mamba_forward.1} parent=1 // pred_check_branch
      %313 = sbr.rel (0) target = $region169
    $region168: #{mamba_forward.1} parent=1 // pred_region
      %314 = dma.done [#allocation18], 16
    $region169: #{mamba_forward.1} parent=1 // pred_fallthru
      _
    // Predicated region
    $region170: #{mamba_forward.1} parent=1 // pred_check
      _
    $region171: #{mamba_forward.1} parent=1 // pred_check_branch
      %316 = sbr.rel (0) target = $region173
    $region172: #{mamba_forward.1} parent=1 // pred_region
      %317 = dma.done [#allocation18], 16
    $region173: #{mamba_forward.1} parent=1 // pred_fallthru
      _
    // Predicated region
    $region174: #{mamba_forward.1} parent=1 // pred_check
      _
    $region175: #{mamba_forward.1} parent=1 // pred_check_branch
      %319 = sbr.rel (0) target = $region177
    $region176: #{mamba_forward.1} parent=1 // pred_region
      %320 = dma.done [#allocation21], 32
    $region177: #{mamba_forward.1} parent=1 // pred_fallthru
      _
    // Predicated region
    $region178: #{mamba_forward.1} parent=1 // pred_check
      _
    $region179: #{mamba_forward.1} parent=1 // pred_check_branch
      %322 = sbr.rel (0) target = $region181
    $region180: #{mamba_forward.1} parent=1 // pred_region
      %323 = dma.done [#allocation21], 16
    $region181: #{mamba_forward.1} parent=1 // pred_fallthru
      _
    // Predicated region
    $region182: #{mamba_forward.1} parent=1 // pred_check
      _
    $region183: #{mamba_forward.1} parent=1 // pred_check_branch
      %325 = sbr.rel (0) target = $region185
    $region184: #{mamba_forward.1} parent=1 // pred_region
      %326 = dma.done [#allocation24], 128
    $region185: #{mamba_forward.1} parent=1 // pred_fallthru
      _
    // Predicated region
    $region186: #{mamba_forward.1} parent=1 // pred_check
      _
    $region187: #{mamba_forward.1} parent=1 // pred_check_branch
      %328 = sbr.rel (0) target = $region189
    $region188: #{mamba_forward.1} parent=1 // pred_region
      %329 = dma.done [#allocation24], 16
    $region189: #{mamba_forward.1} parent=1 // pred_fallthru
      _
    // Predicated region
    $region190: #{mamba_forward.1} parent=1 // pred_check
      _
    $region191: #{mamba_forward.1} parent=1 // pred_check_branch
      %331 = sbr.rel (0) target = $region193
    $region192: #{mamba_forward.1} parent=1 // pred_region
      %332 = dma.done [#allocation27], 16
    $region193: #{mamba_forward.1} parent=1 // pred_fallthru
      _
    // Predicated region
    $region194: #{mamba_forward.1} parent=1 // pred_check
      _
    $region195: #{mamba_forward.1} parent=1 // pred_check_branch
      %334 = sbr.rel (0) target = $region197
    $region196: #{mamba_forward.1} parent=1 // pred_region
      %335 = dma.done [#allocation27], 16
    $region197: #{mamba_forward.1} parent=1 // pred_fallthru
      _
    %v336 = vld [vmem:[%s1] sm:$0xff]
    %v337 = vld [vmem:[%s1 + $0x8] sm:$0xff]
    %v338 = vlaneseq
    %v339 = vshrl.u32 %v338, 7
    %v340 = vlaneseq
    %v341 = vand.u32 %v340, 127
    %vm342 = vcmp.gt.s32.totalorder %v341, %v339
    %v343 = vsel %vm342, 1, 0
    %v344 = vcvt.s32.f32 %v343
    %v345 = vld [vmem:[#allocation2] sm:$0x1]
    %v346 = vld [vmem:[%s3] sm:$0x3f]
    %v347 = vld [vmem:[#allocation3] sm:$0x1]
    %v349 = vlaneseq
    %v350 = vshrl.u32 %v349, 7
    %v351 = vsub.s32 0, %v350
    %v352 = vrot.slane %v347, %v351
    %vm354 = vcmask 48128
    %v356 = vsel %vm354, %v336, 0
    %v359 = vsel %vm354, %v337, 0
    %vm361 = vcmask 1045504
    %v363 = vsel %vm361, %v346, 0
    %365 = vmatprep.subr.mxu0 0.0
    %366 = vmatpush1.msra.mxu0 0.0
    %367 = vmatprep.subr.mxu0 0.0
    %368 = vmatpush1.msra.mxu0 0.0
    %369 = vmatprep.subr.mxu0 0.0
    %370 = vmatpush1.msra.mxu0 0.0
    %371 = vmatprep.subr.mxu0 0.0
    %372 = vmatpush1.msra.mxu0 0.0
    %373 = vmatprep.subr.mxu0 0.0
    %374 = vmatpush1.msra.mxu0 0.0
    %375 = vmatprep.subr.mxu0 0.0
    %376 = vmatpush1.msra.mxu0 0.0
    %377 = vmatprep.subr.mxu0 0.0
    %378 = vmatpush1.msra.mxu0 0.0
    %379 = vmatprep.subr.mxu0 0.0
    %380 = vmatpush1.msra.mxu0 0.0
    %381 = vmatprep.subr.mxu0 0.0
    %382 = vmatpush1.msra.mxu0 0.0
    %383 = vmatprep.subr.mxu0 0.0
    %384 = vmatpush1.msra.mxu0 0.0
    %385 = vmatprep.subr.mxu0 0.0
    %386 = vmatpush1.msra.mxu0 0.0
    %387 = vmatprep.subr.mxu0 0.0
    %388 = vmatpush1.msra.mxu0 0.0
    %389 = vmatprep.subr.mxu0 0.0
    %390 = vmatpush1.msra.mxu0 0.0
    %391 = vmatprep.subr.mxu0 0.0
    %392 = vmatpush1.msra.mxu0 0.0
    %393 = vmatprep.subr.mxu0 0.0
    %394 = vmatpush1.msra.mxu0 0.0
    %395 = vmatprep.subr.mxu0 0.0
    %396 = vmatpush1.msra.mxu0 %v363
    %397 = vmatprep.subr.mxu0 0.0
    %398 = vmatpush2.msra.mxu0 0.0
    %399 = vmatprep.subr.mxu0 0.0
    %400 = vmatpush2.msra.mxu0 0.0
    %401 = vmatprep.subr.mxu0 0.0
    %402 = vmatpush2.msra.mxu0 0.0
    %403 = vmatprep.subr.mxu0 0.0
    %404 = vmatpush2.msra.mxu0 0.0
    %405 = vmatprep.subr.mxu0 0.0
    %406 = vmatpush2.msra.mxu0 0.0
    %407 = vmatprep.subr.mxu0 0.0
    %408 = vmatpush2.msra.mxu0 0.0
    %409 = vmatprep.subr.mxu0 0.0
    %410 = vmatpush2.msra.mxu0 0.0
    %411 = vmatprep.subr.mxu0 0.0
    %412 = vmatpush2.msra.mxu0 0.0
    %413 = vmatprep.subr.mxu0 0.0
    %414 = vmatpush2.msra.mxu0 0.0
    %415 = vmatprep.subr.mxu0 0.0
    %416 = vmatpush2.msra.mxu0 0.0
    %417 = vmatprep.subr.mxu0 0.0
    %418 = vmatpush2.msra.mxu0 0.0
    %419 = vmatprep.subr.mxu0 0.0
    %420 = vmatpush2.msra.mxu0 0.0
    %421 = vmatprep.subr.mxu0 0.0
    %422 = vmatpush2.msra.mxu0 0.0
    %423 = vmatprep.subr.mxu0 0.0
    %424 = vmatpush2.msra.mxu0 0.0
    %425 = vmatprep.subr.mxu0 0.0
    %426 = vmatpush2.msra.mxu0 0.0
    %427 = vmatprep.subr.mxu0 0.0
    %428 = vmatpush2.msra.mxu0 0.0
    %429 = vmatprep.mubr.f32.mxu0 0.0
    %430 = vmatmul.mubr.f32.gmra.mxu0 %v356
    %v431 = vpop.f32.mrf.mxu0
    %v432 = vadd.f32 %v352, %v431
    %v433 = vpop.f32.mrf.mxu0
    %434 = vmatprep.mubr.f32.mxu0 0.0
    %435 = vmatmul.mubr.f32.gmra.mxu0 %v359
    %v436 = vpop.f32.mrf.mxu0
    %v437 = vadd.f32 %v352, %v436
    %v438 = vpop.f32.mrf.mxu0
    %439 = vdwg.mxu0
    %v440 = vld [vmem:[%s7] sm:$0xff]
    %v441 = vld [vmem:[%s7 + $0x8] sm:$0xff]
    %v442 = vld [vmem:[%s7 + $0x10] sm:$0xff]
    %v443 = vld [vmem:[%s7 + $0x18] sm:$0xff]
    %v444 = vld [vmem:[%s7 + $0x20] sm:$0xff]
    %v445 = vld [vmem:[%s7 + $0x28] sm:$0xff]
    %v446 = vld [vmem:[%s7 + $0x30] sm:$0xff]
    %v447 = vld [vmem:[%s7 + $0x38] sm:$0xff]
    %vm448 = vcmask 523264
    %v450 = vsel %vm448, %v432, 0
    %v453 = vsel %vm448, %v437, 0
    %455 = vmatprep.subr.mxu0 0.0
    %456 = vmatpush1.msra.mxu0 0.0
    %457 = vmatprep.subr.mxu0 0.0
    %458 = vmatpush1.msra.mxu0 0.0
    %459 = vmatprep.subr.mxu0 0.0
    %460 = vmatpush1.msra.mxu0 0.0
    %461 = vmatprep.subr.mxu0 0.0
    %462 = vmatpush1.msra.mxu0 0.0
    %463 = vmatprep.subr.mxu0 0.0
    %464 = vmatpush1.msra.mxu0 0.0
    %465 = vmatprep.subr.mxu0 0.0
    %466 = vmatpush1.msra.mxu0 0.0
    %467 = vmatprep.subr.mxu0 0.0
    %468 = vmatpush1.msra.mxu0 0.0
    %469 = vmatprep.subr.mxu0 0.0
    %470 = vmatpush1.msra.mxu0 0.0
    %471 = vmatprep.subr.mxu0 0.0
    %472 = vmatpush1.msra.mxu0 %v447
    %473 = vmatprep.subr.mxu0 0.0
    %474 = vmatpush1.msra.mxu0 %v446
    %475 = vmatprep.subr.mxu0 0.0
    %476 = vmatpush1.msra.mxu0 %v445
    %477 = vmatprep.subr.mxu0 0.0
    %478 = vmatpush1.msra.mxu0 %v444
    %479 = vmatprep.subr.mxu0 0.0
    %480 = vmatpush1.msra.mxu0 %v443
    %481 = vmatprep.subr.mxu0 0.0
    %482 = vmatpush1.msra.mxu0 %v442
    %483 = vmatprep.subr.mxu0 0.0
    %484 = vmatpush1.msra.mxu0 %v441
    %485 = vmatprep.subr.mxu0 0.0
    %486 = vmatpush1.msra.mxu0 %v440
    %487 = vmatprep.subr.mxu0 0.0
    %488 = vmatpush2.msra.mxu0 0.0
    %489 = vmatprep.subr.mxu0 0.0
    %490 = vmatpush2.msra.mxu0 0.0
    %491 = vmatprep.subr.mxu0 0.0
    %492 = vmatpush2.msra.mxu0 0.0
    %493 = vmatprep.subr.mxu0 0.0
    %494 = vmatpush2.msra.mxu0 0.0
    %495 = vmatprep.subr.mxu0 0.0
    %496 = vmatpush2.msra.mxu0 0.0
    %497 = vmatprep.subr.mxu0 0.0
    %498 = vmatpush2.msra.mxu0 0.0
    %499 = vmatprep.subr.mxu0 0.0
    %500 = vmatpush2.msra.mxu0 0.0
    %501 = vmatprep.subr.mxu0 0.0
    %502 = vmatpush2.msra.mxu0 0.0
    %503 = vmatprep.subr.mxu0 0.0
    %504 = vmatpush2.msra.mxu0 0.0
    %505 = vmatprep.subr.mxu0 0.0
    %506 = vmatpush2.msra.mxu0 0.0
    %507 = vmatprep.subr.mxu0 0.0
    %508 = vmatpush2.msra.mxu0 0.0
    %509 = vmatprep.subr.mxu0 0.0
    %510 = vmatpush2.msra.mxu0 0.0
    %511 = vmatprep.subr.mxu0 0.0
    %512 = vmatpush2.msra.mxu0 0.0
    %513 = vmatprep.subr.mxu0 0.0
    %514 = vmatpush2.msra.mxu0 0.0
    %515 = vmatprep.subr.mxu0 0.0
    %516 = vmatpush2.msra.mxu0 0.0
    %517 = vmatprep.subr.mxu0 0.0
    %518 = vmatpush2.msra.mxu0 0.0
    %519 = vmatprep.mubr.f32.mxu0 0.0
    %520 = vmatmul.mubr.f32.gmra.mxu0 %v450
    %v521 = vpop.f32.mrf.mxu0
    %v522 = vadd.f32 0.0, %v521
    %v523 = vpop.f32.mrf.mxu0
    %524 = vmatprep.mubr.f32.mxu0 0.0
    %525 = vmatmul.mubr.f32.gmra.mxu0 %v453
    %v526 = vpop.f32.mrf.mxu0
    %v527 = vadd.f32 0.0, %v526
    %v528 = vpop.f32.mrf.mxu0
    %529 = vdwg.mxu0
    %v530 = vrot.slane %v522, 7
    %v531 = vrot.slane %v527, 7
    %vm532 = vcmp.lt.s32.totalorder %v339, 1
    %v533 = vsel %vm532, %v530, %v531
    %v534 = vsel %vm532, %v531, %v530
    %v535 = vadd.s32 %v339, 8
    %vm536 = vcmp.eq.s32.totalorder %v339, 0
    %vm537 = vcmp.eq.s32.totalorder %v535, 0
    %vm538 = vcmp.eq.s32.totalorder %v339, 8
    %vm539 = vcmp.eq.s32.totalorder %v535, 8
    %vm540 = vmor %vm536, %vm538
    %vm541 = vmor %vm537, %vm539
    %v542 = vsel %vm540, 0.0, %v534
    %v543 = vsel %vm541, 0.0, %v533
    %v544 = vld [vmem:[#allocation7] sm:$0x1]
    %v545 = vlaneseq
    %v546 = vshrl.u32 %v545, 7
    %v547 = vsub.s32 0, %v546
    %v548 = vrot.slane %v544, %v547
    %v549 = vmul.f32 %v542, %v548
    %v550 = vmul.f32 %v543, %v548
    %v551 = vld [vmem:[#allocation7 + $0x1] sm:$0x1]
    %v552 = vlaneseq
    %v553 = vshrl.u32 %v552, 7
    %v554 = vsub.s32 0, %v553
    %v555 = vrot.slane %v551, %v554
    %v556 = vmul.f32 %v522, %v555
    %v557 = vmul.f32 %v527, %v555
    %v558 = vadd.f32 %v549, %v556
    %v559 = vadd.f32 %v550, %v557
    %v560 = vld [vmem:[#allocation8] sm:$0x1]
    %v562 = vlaneseq
    %v563 = vshrl.u32 %v562, 7
    %v564 = vsub.s32 0, %v563
    %v565 = vrot.slane %v560, %v564
    %v567 = vadd.f32 %v558, %v565
    %v568 = vadd.f32 %v559, %v565
    %v569 = vxor.u32 %v567, 2147483648
    %v570 = vxor.u32 %v568, 2147483648
    %v571 = vmul.f32 %v569, 1.442695
    %v572 = vpow.pop %v571
    %v573 = vmul.f32 %v570, 1.442695
    %v574 = vpow.pop %v573
    %v575 = vadd.f32 %v572, 1.0
    %v576 = vadd.f32 %v574, 1.0
    %v577 = vrcp.pop %v575
    %v578 = vmul.f32 1.0, %v577
    %v579 = vrcp.pop %v576
    %v580 = vmul.f32 1.0, %v579
    %v581 = vmul.f32 %v567, %v578
    %v582 = vmul.f32 %v568, %v580
    %v583 = vld [vmem:[%s15] sm:$0xff]
    %v584 = vld [vmem:[%s15 + $0x8] sm:$0xff]
    %v585 = vld [vmem:[%s15 + $0x10] sm:$0xff]
    %v586 = vld [vmem:[%s15 + $0x18] sm:$0xff]
    %v587 = vld [vmem:[%s15 + $0x20] sm:$0xff]
    %v588 = vld [vmem:[%s15 + $0x28] sm:$0xff]
    %v589 = vld [vmem:[%s15 + $0x30] sm:$0xff]
    %v590 = vld [vmem:[%s15 + $0x38] sm:$0xff]
    %v591 = vld [vmem:[%s15 + $0x40] sm:$0xff]
    %v592 = vld [vmem:[%s15 + $0x48] sm:$0xff]
    %v593 = vld [vmem:[%s15 + $0x50] sm:$0xff]
    %v594 = vld [vmem:[%s15 + $0x58] sm:$0xff]
    %v595 = vld [vmem:[%s15 + $0x60] sm:$0xff]
    %v596 = vld [vmem:[%s15 + $0x68] sm:$0xff]
    %v597 = vld [vmem:[%s15 + $0x70] sm:$0xff]
    %v598 = vld [vmem:[%s15 + $0x78] sm:$0xff]
    %v599 = vld [vmem:[%s15 + $0x80] sm:$0xff]
    %v600 = vld [vmem:[%s15 + $0x88] sm:$0xff]
    %v601 = vld [vmem:[%s15 + $0x90] sm:$0xff]
    %v602 = vld [vmem:[%s15 + $0x98] sm:$0xff]
    %v603 = vld [vmem:[%s15 + $0xa0] sm:$0xff]
    %v604 = vld [vmem:[%s15 + $0xa8] sm:$0xff]
    %v605 = vld [vmem:[%s15 + $0xb0] sm:$0xff]
    %v606 = vld [vmem:[%s15 + $0xb8] sm:$0xff]
    %v608 = vsel %vm448, %v581, 0
    %v611 = vsel %vm448, %v582, 0
    %613 = vmatprep.subr.mxu0 0.0
    %614 = vmatpush1.msra.mxu0 0.0
    %615 = vmatprep.subr.mxu0 0.0
    %616 = vmatpush1.msra.mxu0 0.0
    %617 = vmatprep.subr.mxu0 0.0
    %618 = vmatpush1.msra.mxu0 0.0
    %619 = vmatprep.subr.mxu0 0.0
    %620 = vmatpush1.msra.mxu0 0.0
    %621 = vmatprep.subr.mxu0 0.0
    %622 = vmatpush1.msra.mxu0 0.0
    %623 = vmatprep.subr.mxu0 0.0
    %624 = vmatpush1.msra.mxu0 0.0
    %625 = vmatprep.subr.mxu0 0.0
    %626 = vmatpush1.msra.mxu0 0.0
    %627 = vmatprep.subr.mxu0 0.0
    %628 = vmatpush1.msra.mxu0 0.0
    %629 = vmatprep.subr.mxu0 %v605
    %630 = vmatpush1.msra.mxu0 %v604
    %631 = vmatprep.subr.mxu0 %v602
    %632 = vmatpush1.msra.mxu0 %v601
    %633 = vmatprep.subr.mxu0 %v599
    %634 = vmatpush1.msra.mxu0 %v598
    %635 = vmatprep.subr.mxu0 %v596
    %636 = vmatpush1.msra.mxu0 %v595
    %637 = vmatprep.subr.mxu0 %v593
    %638 = vmatpush1.msra.mxu0 %v592
    %639 = vmatprep.subr.mxu0 %v590
    %640 = vmatpush1.msra.mxu0 %v589
    %641 = vmatprep.subr.mxu0 %v587
    %642 = vmatpush1.msra.mxu0 %v586
    %643 = vmatprep.subr.mxu0 %v584
    %644 = vmatpush1.msra.mxu0 %v583
    %645 = vmatprep.subr.mxu0 0.0
    %646 = vmatpush2.msra.mxu0 0.0
    %647 = vmatprep.subr.mxu0 0.0
    %648 = vmatpush2.msra.mxu0 0.0
    %649 = vmatprep.subr.mxu0 0.0
    %650 = vmatpush2.msra.mxu0 0.0
    %651 = vmatprep.subr.mxu0 0.0
    %652 = vmatpush2.msra.mxu0 0.0
    %653 = vmatprep.subr.mxu0 0.0
    %654 = vmatpush2.msra.mxu0 0.0
    %655 = vmatprep.subr.mxu0 0.0
    %656 = vmatpush2.msra.mxu0 0.0
    %657 = vmatprep.subr.mxu0 0.0
    %658 = vmatpush2.msra.mxu0 0.0
    %659 = vmatprep.subr.mxu0 0.0
    %660 = vmatpush2.msra.mxu0 0.0
    %661 = vmatprep.subr.mxu0 0.0
    %662 = vmatpush2.msra.mxu0 0.0
    %663 = vmatprep.subr.mxu0 0.0
    %664 = vmatpush2.msra.mxu0 0.0
    %665 = vmatprep.subr.mxu0 0.0
    %666 = vmatpush2.msra.mxu0 0.0
    %667 = vmatprep.subr.mxu0 0.0
    %668 = vmatpush2.msra.mxu0 0.0
    %669 = vmatprep.subr.mxu0 0.0
    %670 = vmatpush2.msra.mxu0 0.0
    %671 = vmatprep.subr.mxu0 0.0
    %672 = vmatpush2.msra.mxu0 0.0
    %673 = vmatprep.subr.mxu0 0.0
    %674 = vmatpush2.msra.mxu0 0.0
    %675 = vmatprep.subr.mxu0 0.0
    %676 = vmatpush2.msra.mxu0 0.0
    %677 = vmatprep.mubr.f32.mxu0 0.0
    %678 = vmatmul.mubr.f32.gmra.mxu0 %v608
    %v679 = vpop.f32.mrf.mxu0
    %v680 = vadd.f32 0.0, %v679
    %v681 = vpop.f32.mrf.mxu0
    %v682 = vadd.f32 0.0, %v681
    %683 = vmatprep.mubr.f32.mxu0 0.0
    %684 = vmatmul.mubr.f32.gmra.mxu0 %v611
    %v685 = vpop.f32.mrf.mxu0
    %v686 = vadd.f32 0.0, %v685
    %v687 = vpop.f32.mrf.mxu0
    %v688 = vadd.f32 0.0, %v687
    %689 = vdwg.mxu0
    %690 = vmatprep.subr.mxu0 0.0
    %691 = vmatpush1.msra.mxu0 0.0
    %692 = vmatprep.subr.mxu0 0.0
    %693 = vmatpush1.msra.mxu0 0.0
    %694 = vmatprep.subr.mxu0 0.0
    %695 = vmatpush1.msra.mxu0 0.0
    %696 = vmatprep.subr.mxu0 0.0
    %697 = vmatpush1.msra.mxu0 0.0
    %698 = vmatprep.subr.mxu0 0.0
    %699 = vmatpush1.msra.mxu0 0.0
    %700 = vmatprep.subr.mxu0 0.0
    %701 = vmatpush1.msra.mxu0 0.0
    %702 = vmatprep.subr.mxu0 0.0
    %703 = vmatpush1.msra.mxu0 0.0
    %704 = vmatprep.subr.mxu0 0.0
    %705 = vmatpush1.msra.mxu0 0.0
    %706 = vmatprep.subr.mxu0 0.0
    %707 = vmatpush1.msra.mxu0 %v606
    %708 = vmatprep.subr.mxu0 0.0
    %709 = vmatpush1.msra.mxu0 %v603
    %710 = vmatprep.subr.mxu0 0.0
    %711 = vmatpush1.msra.mxu0 %v600
    %712 = vmatprep.subr.mxu0 0.0
    %713 = vmatpush1.msra.mxu0 %v597
    %714 = vmatprep.subr.mxu0 0.0
    %715 = vmatpush1.msra.mxu0 %v594
    %716 = vmatprep.subr.mxu0 0.0
    %717 = vmatpush1.msra.mxu0 %v591
    %718 = vmatprep.subr.mxu0 0.0
    %719 = vmatpush1.msra.mxu0 %v588
    %720 = vmatprep.subr.mxu0 0.0
    %721 = vmatpush1.msra.mxu0 %v585
    %722 = vmatprep.subr.mxu0 0.0
    %723 = vmatpush2.msra.mxu0 0.0
    %724 = vmatprep.subr.mxu0 0.0
    %725 = vmatpush2.msra.mxu0 0.0
    %726 = vmatprep.subr.mxu0 0.0
    %727 = vmatpush2.msra.mxu0 0.0
    %728 = vmatprep.subr.mxu0 0.0
    %729 = vmatpush2.msra.mxu0 0.0
    %730 = vmatprep.subr.mxu0 0.0
    %731 = vmatpush2.msra.mxu0 0.0
    %732 = vmatprep.subr.mxu0 0.0
    %733 = vmatpush2.msra.mxu0 0.0
    %734 = vmatprep.subr.mxu0 0.0
    %735 = vmatpush2.msra.mxu0 0.0
    %736 = vmatprep.subr.mxu0 0.0
    %737 = vmatpush2.msra.mxu0 0.0
    %738 = vmatprep.subr.mxu0 0.0
    %739 = vmatpush2.msra.mxu0 0.0
    %740 = vmatprep.subr.mxu0 0.0
    %741 = vmatpush2.msra.mxu0 0.0
    %742 = vmatprep.subr.mxu0 0.0
    %743 = vmatpush2.msra.mxu0 0.0
    %744 = vmatprep.subr.mxu0 0.0
    %745 = vmatpush2.msra.mxu0 0.0
    %746 = vmatprep.subr.mxu0 0.0
    %747 = vmatpush2.msra.mxu0 0.0
    %748 = vmatprep.subr.mxu0 0.0
    %749 = vmatpush2.msra.mxu0 0.0
    %750 = vmatprep.subr.mxu0 0.0
    %751 = vmatpush2.msra.mxu0 0.0
    %752 = vmatprep.subr.mxu0 0.0
    %753 = vmatpush2.msra.mxu0 0.0
    %754 = vmatprep.mubr.f32.mxu0 0.0
    %755 = vmatmul.mubr.f32.gmra.mxu0 %v608
    %v756 = vpop.f32.mrf.mxu0
    %v757 = vadd.f32 0.0, %v756
    %v758 = vpop.f32.mrf.mxu0
    %759 = vmatprep.mubr.f32.mxu0 0.0
    %760 = vmatmul.mubr.f32.gmra.mxu0 %v611
    %v761 = vpop.f32.mrf.mxu0
    %v762 = vadd.f32 0.0, %v761
    %v763 = vpop.f32.mrf.mxu0
    %764 = vdwg.mxu0
    %v765 = vld [vmem:[#allocation10] sm:$0xf]
    %v766 = vld [vmem:[#allocation11] sm:$0x1]
    %v768 = vlaneseq
    %v769 = vshrl.u32 %v768, 7
    %v770 = vsub.s32 0, %v769
    %v771 = vrot.slane %v766, %v770
    %vm773 = vcmask 31744
    %v775 = vsel %vm773, %v757, 0
    %v778 = vsel %vm773, %v762, 0
    %vm780 = vcmask 1043456
    %v782 = vsel %vm780, %v765, 0
    %784 = vmatprep.subr.mxu0 0.0
    %785 = vmatpush1.msra.mxu0 0.0
    %786 = vmatprep.subr.mxu0 0.0
    %787 = vmatpush1.msra.mxu0 0.0
    %788 = vmatprep.subr.mxu0 0.0
    %789 = vmatpush1.msra.mxu0 0.0
    %790 = vmatprep.subr.mxu0 0.0
    %791 = vmatpush1.msra.mxu0 0.0
    %792 = vmatprep.subr.mxu0 0.0
    %793 = vmatpush1.msra.mxu0 0.0
    %794 = vmatprep.subr.mxu0 0.0
    %795 = vmatpush1.msra.mxu0 0.0
    %796 = vmatprep.subr.mxu0 0.0
    %797 = vmatpush1.msra.mxu0 0.0
    %798 = vmatprep.subr.mxu0 0.0
    %799 = vmatpush1.msra.mxu0 0.0
    %800 = vmatprep.subr.mxu0 0.0
    %801 = vmatpush1.msra.mxu0 0.0
    %802 = vmatprep.subr.mxu0 0.0
    %803 = vmatpush1.msra.mxu0 0.0
    %804 = vmatprep.subr.mxu0 0.0
    %805 = vmatpush1.msra.mxu0 0.0
    %806 = vmatprep.subr.mxu0 0.0
    %807 = vmatpush1.msra.mxu0 0.0
    %808 = vmatprep.subr.mxu0 0.0
    %809 = vmatpush1.msra.mxu0 0.0
    %810 = vmatprep.subr.mxu0 0.0
    %811 = vmatpush1.msra.mxu0 0.0
    %812 = vmatprep.subr.mxu0 0.0
    %813 = vmatpush1.msra.mxu0 0.0
    %814 = vmatprep.subr.mxu0 0.0
    %815 = vmatpush1.msra.mxu0 %v782
    %816 = vmatprep.subr.mxu0 0.0
    %817 = vmatpush2.msra.mxu0 0.0
    %818 = vmatprep.subr.mxu0 0.0
    %819 = vmatpush2.msra.mxu0 0.0
    %820 = vmatprep.subr.mxu0 0.0
    %821 = vmatpush2.msra.mxu0 0.0
    %822 = vmatprep.subr.mxu0 0.0
    %823 = vmatpush2.msra.mxu0 0.0
    %824 = vmatprep.subr.mxu0 0.0
    %825 = vmatpush2.msra.mxu0 0.0
    %826 = vmatprep.subr.mxu0 0.0
    %827 = vmatpush2.msra.mxu0 0.0
    %828 = vmatprep.subr.mxu0 0.0
    %829 = vmatpush2.msra.mxu0 0.0
    %830 = vmatprep.subr.mxu0 0.0
    %831 = vmatpush2.msra.mxu0 0.0
    %832 = vmatprep.subr.mxu0 0.0
    %833 = vmatpush2.msra.mxu0 0.0
    %834 = vmatprep.subr.mxu0 0.0
    %835 = vmatpush2.msra.mxu0 0.0
    %836 = vmatprep.subr.mxu0 0.0
    %837 = vmatpush2.msra.mxu0 0.0
    %838 = vmatprep.subr.mxu0 0.0
    %839 = vmatpush2.msra.mxu0 0.0
    %840 = vmatprep.subr.mxu0 0.0
    %841 = vmatpush2.msra.mxu0 0.0
    %842 = vmatprep.subr.mxu0 0.0
    %843 = vmatpush2.msra.mxu0 0.0
    %844 = vmatprep.subr.mxu0 0.0
    %845 = vmatpush2.msra.mxu0 0.0
    %846 = vmatprep.subr.mxu0 0.0
    %847 = vmatpush2.msra.mxu0 0.0
    %848 = vmatprep.mubr.f32.mxu0 0.0
    %849 = vmatmul.mubr.f32.gmra.mxu0 %v775
    %v850 = vpop.f32.mrf.mxu0
    %v851 = vadd.f32 %v771, %v850
    %v852 = vpop.f32.mrf.mxu0
    %853 = vmatprep.mubr.f32.mxu0 0.0
    %854 = vmatmul.mubr.f32.gmra.mxu0 %v778
    %v855 = vpop.f32.mrf.mxu0
    %v856 = vadd.f32 %v771, %v855
    %v857 = vpop.f32.mrf.mxu0
    %858 = vdwg.mxu0
    %v859 = vmax.f32 %v851, 0.0
    %v860 = vmax.f32 %v856, 0.0
    %vm861 = vcmp.ne.f32.partialorder %v851, %v851
    %vm862 = vcmp.ne.f32.partialorder %v856, %v856
    %v863 = vadd.f32 %v851, 0.0
    %v864 = vadd.f32 %v856, 0.0
    %v865 = vand.u32 2147483647, %v851
    %v866 = vand.u32 2147483647, %v856
    %v867 = vsub.f32 0.0, %v865
    %v868 = vsub.f32 0.0, %v866
    %v869 = vmul.f32 %v867, 1.442695
    %v870 = vpow.pop %v869
    %v871 = vmul.f32 %v868, 1.442695
    %v872 = vpow.pop %v871
    %v873 = vadd.f32 %v870, 1.0
    %v874 = vlog2.pop %v873
    %v875 = vmul.f32 %v874, 0.6931472
    %v876 = vmul.f32 -0.5, %v870
    %v877 = vadd.f32 %v876, 1.0
    %v878 = vmul.f32 %v877, %v870
    %v879 = vand.u32 2147483647, %v870
    %vm880 = vcmp.lt.f32.partialorder %v879, 0.0004427343
    %v881 = vsel %vm880, %v878, %v875
    %v882 = vadd.f32 %v872, 1.0
    %v883 = vlog2.pop %v882
    %v884 = vmul.f32 %v883, 0.6931472
    %v885 = vmul.f32 -0.5, %v872
    %v886 = vadd.f32 %v885, 1.0
    %v887 = vmul.f32 %v886, %v872
    %v888 = vand.u32 2147483647, %v872
    %vm889 = vcmp.lt.f32.partialorder %v888, 0.0004427343
    %v890 = vsel %vm889, %v887, %v884
    %v891 = vadd.f32 %v859, %v881
    %v892 = vadd.f32 %v860, %v890
    %v893 = vsel %vm861, %v863, %v891
    %v894 = vsel %vm862, %v864, %v892
    %v895 = vmul.f32 %v893, %v581
    %v896 = vmul.f32 %v894, %v582
    %v897 = vld [vmem:[#allocation13] sm:$0x1]
    %vm898 = vcmask 64512
    %v900 = vsel %vm898, %v344, 0
    %902 = vmatprep.subr.mxu0 0.0
    %903 = vmatpush1.msra.mxu0 0.0
    %904 = vmatprep.subr.mxu0 0.0
    %905 = vmatpush1.msra.mxu0 0.0
    %906 = vmatprep.subr.mxu0 0.0
    %907 = vmatpush1.msra.mxu0 0.0
    %908 = vmatprep.subr.mxu0 0.0
    %909 = vmatpush1.msra.mxu0 0.0
    %910 = vmatprep.subr.mxu0 0.0
    %911 = vmatpush1.msra.mxu0 0.0
    %912 = vmatprep.subr.mxu0 0.0
    %913 = vmatpush1.msra.mxu0 0.0
    %914 = vmatprep.subr.mxu0 0.0
    %915 = vmatpush1.msra.mxu0 0.0
    %916 = vmatprep.subr.mxu0 0.0
    %917 = vmatpush1.msra.mxu0 0.0
    %918 = vmatprep.subr.mxu0 0.0
    %919 = vmatpush1.msra.mxu0 0.0
    %920 = vmatprep.subr.mxu0 0.0
    %921 = vmatpush1.msra.mxu0 0.0
    %922 = vmatprep.subr.mxu0 0.0
    %923 = vmatpush1.msra.mxu0 0.0
    %924 = vmatprep.subr.mxu0 0.0
    %925 = vmatpush1.msra.mxu0 0.0
    %926 = vmatprep.subr.mxu0 0.0
    %927 = vmatpush1.msra.mxu0 0.0
    %928 = vmatprep.subr.mxu0 0.0
    %929 = vmatpush1.msra.mxu0 0.0
    %930 = vmatprep.subr.mxu0 0.0
    %931 = vmatpush1.msra.mxu0 0.0
    %932 = vmatprep.subr.mxu0 0.0
    %933 = vmatpush1.msra.mxu0 %v893
    %934 = vmatprep.subr.mxu0 0.0
    %935 = vmatpush2.msra.mxu0 0.0
    %936 = vmatprep.subr.mxu0 0.0
    %937 = vmatpush2.msra.mxu0 0.0
    %938 = vmatprep.subr.mxu0 0.0
    %939 = vmatpush2.msra.mxu0 0.0
    %940 = vmatprep.subr.mxu0 0.0
    %941 = vmatpush2.msra.mxu0 0.0
    %942 = vmatprep.subr.mxu0 0.0
    %943 = vmatpush2.msra.mxu0 0.0
    %944 = vmatprep.subr.mxu0 0.0
    %945 = vmatpush2.msra.mxu0 0.0
    %946 = vmatprep.subr.mxu0 0.0
    %947 = vmatpush2.msra.mxu0 0.0
    %948 = vmatprep.subr.mxu0 0.0
    %949 = vmatpush2.msra.mxu0 0.0
    %950 = vmatprep.subr.mxu0 0.0
    %951 = vmatpush2.msra.mxu0 0.0
    %952 = vmatprep.subr.mxu0 0.0
    %953 = vmatpush2.msra.mxu0 0.0
    %954 = vmatprep.subr.mxu0 0.0
    %955 = vmatpush2.msra.mxu0 0.0
    %956 = vmatprep.subr.mxu0 0.0
    %957 = vmatpush2.msra.mxu0 0.0
    %958 = vmatprep.subr.mxu0 0.0
    %959 = vmatpush2.msra.mxu0 0.0
    %960 = vmatprep.subr.mxu0 0.0
    %961 = vmatpush2.msra.mxu0 0.0
    %962 = vmatprep.subr.mxu0 0.0
    %963 = vmatpush2.msra.mxu0 0.0
    %964 = vmatprep.subr.mxu0 0.0
    %965 = vmatpush2.msra.mxu0 0.0
    %966 = vmatprep.mubr.f32.mxu0 0.0
    %967 = vmatmul.mubr.f32.gmra.mxu0 %v900
    %v968 = vpop.f32.mrf.mxu0
    %v969 = vadd.f32 0.0, %v968
    %v970 = vpop.f32.mrf.mxu0
    %971 = vdwg.mxu0
    %972 = vxpose.xlu0.b32.start [1/16] %v969, 128
    %973 = vxpose.xlu0.b32.cont [2/16] 0.0, 128
    %974 = vxpose.xlu0.b32.cont [3/16] 0.0, 128
    %975 = vxpose.xlu0.b32.cont [4/16] 0.0, 128
    %976 = vxpose.xlu0.b32.cont [5/16] 0.0, 128
    %977 = vxpose.xlu0.b32.cont [6/16] 0.0, 128
    %978 = vxpose.xlu0.b32.cont [7/16] 0.0, 128
    %979 = vxpose.xlu0.b32.cont [8/16] 0.0, 128
    %980 = vxpose.xlu0.b32.cont [9/16] 0.0, 128
    %981 = vxpose.xlu0.b32.cont [10/16] 0.0, 128
    %982 = vxpose.xlu0.b32.cont [11/16] 0.0, 128
    %983 = vxpose.xlu0.b32.cont [12/16] 0.0, 128
    %984 = vxpose.xlu0.b32.cont [13/16] 0.0, 128
    %985 = vxpose.xlu0.b32.cont [14/16] 0.0, 128
    %986 = vxpose.xlu0.b32.cont [15/16] 0.0, 128
    %987 = vxpose.xlu0.b32.end [16/16] 0.0, 128
    %v988 = vpop.trf.xlu0
    %v989 = vpop.trf.xlu0
    %v990 = vpop.trf.xlu0
    %v991 = vpop.trf.xlu0
    %v992 = vpop.trf.xlu0
    %v993 = vpop.trf.xlu0
    %v994 = vpop.trf.xlu0
    %v995 = vpop.trf.xlu0
    %v996 = vpop.trf.xlu0
    %v997 = vpop.trf.xlu0
    %v998 = vpop.trf.xlu0
    %v999 = vpop.trf.xlu0
    %v1000 = vpop.trf.xlu0
    %v1001 = vpop.trf.xlu0
    %v1002 = vpop.trf.xlu0
    %v1003 = vpop.trf.xlu0
    %1004 = vxpose.xlu0.b32.start [1/16] %v895, 128
    %1005 = vxpose.xlu0.b32.cont [2/16] 0.0, 128
    %1006 = vxpose.xlu0.b32.cont [3/16] 0.0, 128
    %1007 = vxpose.xlu0.b32.cont [4/16] 0.0, 128
    %1008 = vxpose.xlu0.b32.cont [5/16] 0.0, 128
    %1009 = vxpose.xlu0.b32.cont [6/16] 0.0, 128
    %1010 = vxpose.xlu0.b32.cont [7/16] 0.0, 128
    %1011 = vxpose.xlu0.b32.cont [8/16] 0.0, 128
    %1012 = vxpose.xlu0.b32.cont [9/16] 0.0, 128
    %1013 = vxpose.xlu0.b32.cont [10/16] 0.0, 128
    %1014 = vxpose.xlu0.b32.cont [11/16] 0.0, 128
    %1015 = vxpose.xlu0.b32.cont [12/16] 0.0, 128
    %1016 = vxpose.xlu0.b32.cont [13/16] 0.0, 128
    %1017 = vxpose.xlu0.b32.cont [14/16] 0.0, 128
    %1018 = vxpose.xlu0.b32.cont [15/16] 0.0, 128
    %1019 = vxpose.xlu0.b32.end [16/16] 0.0, 128
    %v1020 = vpop.trf.xlu0
    %v1021 = vpop.trf.xlu0
    %v1022 = vpop.trf.xlu0
    %v1023 = vpop.trf.xlu0
    %v1024 = vpop.trf.xlu0
    %v1025 = vpop.trf.xlu0
    %v1026 = vpop.trf.xlu0
    %v1027 = vpop.trf.xlu0
    %v1028 = vpop.trf.xlu0
    %v1029 = vpop.trf.xlu0
    %v1030 = vpop.trf.xlu0
    %v1031 = vpop.trf.xlu0
    %v1032 = vpop.trf.xlu0
    %v1033 = vpop.trf.xlu0
    %v1034 = vpop.trf.xlu0
    %v1035 = vpop.trf.xlu0
    %1037 = vset.pattern.permute.xlu0 0
    %1038 = vperm.xlu0 %1037, %v988
    %v1039 = vpop.permute.xlu0 %1038
    %1042 = vset.pattern.permute.xlu0 0
    %1043 = vperm.xlu0 %1042, %v989
    %v1044 = vpop.permute.xlu0 %1043
    %1047 = vset.pattern.permute.xlu0 0
    %1048 = vperm.xlu0 %1047, %v990
    %v1049 = vpop.permute.xlu0 %1048
    %1052 = vset.pattern.permute.xlu0 0
    %1053 = vperm.xlu0 %1052, %v991
    %v1054 = vpop.permute.xlu0 %1053
    %1057 = vset.pattern.permute.xlu0 0
    %1058 = vperm.xlu0 %1057, %v992
    %v1059 = vpop.permute.xlu0 %1058
    %1062 = vset.pattern.permute.xlu0 0
    %1063 = vperm.xlu0 %1062, %v993
    %v1064 = vpop.permute.xlu0 %1063
    %1067 = vset.pattern.permute.xlu0 0
    %1068 = vperm.xlu0 %1067, %v994
    %v1069 = vpop.permute.xlu0 %1068
    %1072 = vset.pattern.permute.xlu0 0
    %1073 = vperm.xlu0 %1072, %v995
    %v1074 = vpop.permute.xlu0 %1073
    %v1077 = vlaneseq
    %v1078 = vshrl.u32 %v1077, 7
    %v1079 = vsub.s32 0, %v1078
    %v1080 = vrot.slane %v897, %v1079
    %v1082 = vmul.f32 %v1039, %v1080
    %v1083 = vmul.f32 %v1044, %v1080
    %v1084 = vmul.f32 %v1049, %v1080
    %v1085 = vmul.f32 %v1054, %v1080
    %v1086 = vmul.f32 %v1059, %v1080
    %v1087 = vmul.f32 %v1064, %v1080
    %v1088 = vmul.f32 %v1069, %v1080
    %v1089 = vmul.f32 %v1074, %v1080
    %v1090 = vmul.f32 %v1082, 1.442695
    %v1091 = vpow.pop %v1090
    %v1092 = vmul.f32 %v1083, 1.442695
    %v1093 = vpow.pop %v1092
    %v1094 = vmul.f32 %v1084, 1.442695
    %v1095 = vpow.pop %v1094
    %v1096 = vmul.f32 %v1085, 1.442695
    %v1097 = vpow.pop %v1096
    %v1098 = vmul.f32 %v1086, 1.442695
    %v1099 = vpow.pop %v1098
    %v1100 = vmul.f32 %v1087, 1.442695
    %v1101 = vpow.pop %v1100
    %v1102 = vmul.f32 %v1088, 1.442695
    %v1103 = vpow.pop %v1102
    %v1104 = vmul.f32 %v1089, 1.442695
    %v1105 = vpow.pop %v1104
    %1107 = vset.pattern.permute.xlu0 0
    %1108 = vperm.xlu0 %1107, %v1020
    %v1109 = vpop.permute.xlu0 %1108
    %1112 = vset.pattern.permute.xlu0 0
    %1113 = vperm.xlu0 %1112, %v1021
    %v1114 = vpop.permute.xlu0 %1113
    %1117 = vset.pattern.permute.xlu0 0
    %1118 = vperm.xlu0 %1117, %v1022
    %v1119 = vpop.permute.xlu0 %1118
    %1122 = vset.pattern.permute.xlu0 0
    %1123 = vperm.xlu0 %1122, %v1023
    %v1124 = vpop.permute.xlu0 %1123
    %1127 = vset.pattern.permute.xlu0 0
    %1128 = vperm.xlu0 %1127, %v1024
    %v1129 = vpop.permute.xlu0 %1128
    %1132 = vset.pattern.permute.xlu0 0
    %1133 = vperm.xlu0 %1132, %v1025
    %v1134 = vpop.permute.xlu0 %1133
    %1137 = vset.pattern.permute.xlu0 0
    %1138 = vperm.xlu0 %1137, %v1026
    %v1139 = vpop.permute.xlu0 %1138
    %1142 = vset.pattern.permute.xlu0 0
    %1143 = vperm.xlu0 %1142, %v1027
    %v1144 = vpop.permute.xlu0 %1143
    %v1146 = vlaneseq
    %v1147 = vshrl.u32 %v1146, 7
    %v1148 = vsub.s32 0, %v1147
    %v1149 = vrot.slane %v680, %v1148
    %v1150 = vmul.f32 %v1109, %v1149
    %v1151 = vmul.f32 %v1114, %v1149
    %v1152 = vmul.f32 %v1119, %v1149
    %v1153 = vmul.f32 %v1124, %v1149
    %v1154 = vmul.f32 %v1129, %v1149
    %v1155 = vmul.f32 %v1134, %v1149
    %v1156 = vmul.f32 %v1139, %v1149
    %v1157 = vmul.f32 %v1144, %v1149
    %v1158 = vmul.f32 %v1091, %v1150
    %v1159 = vmul.f32 %v1093, %v1151
    %v1160 = vmul.f32 %v1095, %v1152
    %v1161 = vmul.f32 %v1097, %v1153
    %v1162 = vmul.f32 %v1099, %v1154
    %v1163 = vmul.f32 %v1101, %v1155
    %v1164 = vmul.f32 %v1103, %v1156
    %v1165 = vmul.f32 %v1105, %v1157
    %1166 = vset.pattern.permute.xlu0 1
    %1167 = vperm.xlu0 %1166, %v988
    %v1168 = vpop.permute.xlu0 %1167
    %1170 = vset.pattern.permute.xlu0 1
    %1171 = vperm.xlu0 %1170, %v989
    %v1172 = vpop.permute.xlu0 %1171
    %1174 = vset.pattern.permute.xlu0 1
    %1175 = vperm.xlu0 %1174, %v990
    %v1176 = vpop.permute.xlu0 %1175
    %1178 = vset.pattern.permute.xlu0 1
    %1179 = vperm.xlu0 %1178, %v991
    %v1180 = vpop.permute.xlu0 %1179
    %1182 = vset.pattern.permute.xlu0 1
    %1183 = vperm.xlu0 %1182, %v992
    %v1184 = vpop.permute.xlu0 %1183
    %1186 = vset.pattern.permute.xlu0 1
    %1187 = vperm.xlu0 %1186, %v993
    %v1188 = vpop.permute.xlu0 %1187
    %1190 = vset.pattern.permute.xlu0 1
    %1191 = vperm.xlu0 %1190, %v994
    %v1192 = vpop.permute.xlu0 %1191
    %1194 = vset.pattern.permute.xlu0 1
    %1195 = vperm.xlu0 %1194, %v995
    %v1196 = vpop.permute.xlu0 %1195
    %v1198 = vmul.f32 %v1168, %v1080
    %v1199 = vmul.f32 %v1172, %v1080
    %v1200 = vmul.f32 %v1176, %v1080
    %v1201 = vmul.f32 %v1180, %v1080
    %v1202 = vmul.f32 %v1184, %v1080
    %v1203 = vmul.f32 %v1188, %v1080
    %v1204 = vmul.f32 %v1192, %v1080
    %v1205 = vmul.f32 %v1196, %v1080
    %v1206 = vmul.f32 %v1198, 1.442695
    %v1207 = vpow.pop %v1206
    %v1208 = vmul.f32 %v1199, 1.442695
    %v1209 = vpow.pop %v1208
    %v1210 = vmul.f32 %v1200, 1.442695
    %v1211 = vpow.pop %v1210
    %v1212 = vmul.f32 %v1201, 1.442695
    %v1213 = vpow.pop %v1212
    %v1214 = vmul.f32 %v1202, 1.442695
    %v1215 = vpow.pop %v1214
    %v1216 = vmul.f32 %v1203, 1.442695
    %v1217 = vpow.pop %v1216
    %v1218 = vmul.f32 %v1204, 1.442695
    %v1219 = vpow.pop %v1218
    %v1220 = vmul.f32 %v1205, 1.442695
    %v1221 = vpow.pop %v1220
    %1222 = vset.pattern.permute.xlu0 1
    %1223 = vperm.xlu0 %1222, %v1020
    %v1224 = vpop.permute.xlu0 %1223
    %1226 = vset.pattern.permute.xlu0 1
    %1227 = vperm.xlu0 %1226, %v1021
    %v1228 = vpop.permute.xlu0 %1227
    %1230 = vset.pattern.permute.xlu0 1
    %1231 = vperm.xlu0 %1230, %v1022
    %v1232 = vpop.permute.xlu0 %1231
    %1234 = vset.pattern.permute.xlu0 1
    %1235 = vperm.xlu0 %1234, %v1023
    %v1236 = vpop.permute.xlu0 %1235
    %1238 = vset.pattern.permute.xlu0 1
    %1239 = vperm.xlu0 %1238, %v1024
    %v1240 = vpop.permute.xlu0 %1239
    %1242 = vset.pattern.permute.xlu0 1
    %1243 = vperm.xlu0 %1242, %v1025
    %v1244 = vpop.permute.xlu0 %1243
    %1246 = vset.pattern.permute.xlu0 1
    %1247 = vperm.xlu0 %1246, %v1026
    %v1248 = vpop.permute.xlu0 %1247
    %1250 = vset.pattern.permute.xlu0 1
    %1251 = vperm.xlu0 %1250, %v1027
    %v1252 = vpop.permute.xlu0 %1251
    %v1254 = vlaneseq
    %v1255 = vshrl.u32 %v1254, 7
    %v1256 = vsub.s32 1, %v1255
    %v1257 = vrot.slane %v680, %v1256
    %v1258 = vmul.f32 %v1224, %v1257
    %v1259 = vmul.f32 %v1228, %v1257
    %v1260 = vmul.f32 %v1232, %v1257
    %v1261 = vmul.f32 %v1236, %v1257
    %v1262 = vmul.f32 %v1240, %v1257
    %v1263 = vmul.f32 %v1244, %v1257
    %v1264 = vmul.f32 %v1248, %v1257
    %v1265 = vmul.f32 %v1252, %v1257
    %v1266 = vmul.f32 %v1207, %v1258
    %v1267 = vmul.f32 %v1209, %v1259
    %v1268 = vmul.f32 %v1211, %v1260
    %v1269 = vmul.f32 %v1213, %v1261
    %v1270 = vmul.f32 %v1215, %v1262
    %v1271 = vmul.f32 %v1217, %v1263
    %v1272 = vmul.f32 %v1219, %v1264
    %v1273 = vmul.f32 %v1221, %v1265
    %1274 = vset.pattern.permute.xlu0 2
    %1275 = vperm.xlu0 %1274, %v988
    %v1276 = vpop.permute.xlu0 %1275
    %1278 = vset.pattern.permute.xlu0 2
    %1279 = vperm.xlu0 %1278, %v989
    %v1280 = vpop.permute.xlu0 %1279
    %1282 = vset.pattern.permute.xlu0 2
    %1283 = vperm.xlu0 %1282, %v990
    %v1284 = vpop.permute.xlu0 %1283
    %1286 = vset.pattern.permute.xlu0 2
    %1287 = vperm.xlu0 %1286, %v991
    %v1288 = vpop.permute.xlu0 %1287
    %1290 = vset.pattern.permute.xlu0 2
    %1291 = vperm.xlu0 %1290, %v992
    %v1292 = vpop.permute.xlu0 %1291
    %1294 = vset.pattern.permute.xlu0 2
    %1295 = vperm.xlu0 %1294, %v993
    %v1296 = vpop.permute.xlu0 %1295
    %1298 = vset.pattern.permute.xlu0 2
    %1299 = vperm.xlu0 %1298, %v994
    %v1300 = vpop.permute.xlu0 %1299
    %1302 = vset.pattern.permute.xlu0 2
    %1303 = vperm.xlu0 %1302, %v995
    %v1304 = vpop.permute.xlu0 %1303
    %v1306 = vmul.f32 %v1276, %v1080
    %v1307 = vmul.f32 %v1280, %v1080
    %v1308 = vmul.f32 %v1284, %v1080
    %v1309 = vmul.f32 %v1288, %v1080
    %v1310 = vmul.f32 %v1292, %v1080
    %v1311 = vmul.f32 %v1296, %v1080
    %v1312 = vmul.f32 %v1300, %v1080
    %v1313 = vmul.f32 %v1304, %v1080
    %v1314 = vmul.f32 %v1306, 1.442695
    %v1315 = vpow.pop %v1314
    %v1316 = vmul.f32 %v1307, 1.442695
    %v1317 = vpow.pop %v1316
    %v1318 = vmul.f32 %v1308, 1.442695
    %v1319 = vpow.pop %v1318
    %v1320 = vmul.f32 %v1309, 1.442695
    %v1321 = vpow.pop %v1320
    %v1322 = vmul.f32 %v1310, 1.442695
    %v1323 = vpow.pop %v1322
    %v1324 = vmul.f32 %v1311, 1.442695
    %v1325 = vpow.pop %v1324
    %v1326 = vmul.f32 %v1312, 1.442695
    %v1327 = vpow.pop %v1326
    %v1328 = vmul.f32 %v1313, 1.442695
    %v1329 = vpow.pop %v1328
    %1330 = vset.pattern.permute.xlu0 2
    %1331 = vperm.xlu0 %1330, %v1020
    %v1332 = vpop.permute.xlu0 %1331
    %1334 = vset.pattern.permute.xlu0 2
    %1335 = vperm.xlu0 %1334, %v1021
    %v1336 = vpop.permute.xlu0 %1335
    %1338 = vset.pattern.permute.xlu0 2
    %1339 = vperm.xlu0 %1338, %v1022
    %v1340 = vpop.permute.xlu0 %1339
    %1342 = vset.pattern.permute.xlu0 2
    %1343 = vperm.xlu0 %1342, %v1023
    %v1344 = vpop.permute.xlu0 %1343
    %1346 = vset.pattern.permute.xlu0 2
    %1347 = vperm.xlu0 %1346, %v1024
    %v1348 = vpop.permute.xlu0 %1347
    %1350 = vset.pattern.permute.xlu0 2
    %1351 = vperm.xlu0 %1350, %v1025
    %v1352 = vpop.permute.xlu0 %1351
    %1354 = vset.pattern.permute.xlu0 2
    %1355 = vperm.xlu0 %1354, %v1026
    %v1356 = vpop.permute.xlu0 %1355
    %1358 = vset.pattern.permute.xlu0 2
    %1359 = vperm.xlu0 %1358, %v1027
    %v1360 = vpop.permute.xlu0 %1359
    %v1362 = vlaneseq
    %v1363 = vshrl.u32 %v1362, 7
    %v1364 = vsub.s32 2, %v1363
    %v1365 = vrot.slane %v680, %v1364
    %v1366 = vmul.f32 %v1332, %v1365
    %v1367 = vmul.f32 %v1336, %v1365
    %v1368 = vmul.f32 %v1340, %v1365
    %v1369 = vmul.f32 %v1344, %v1365
    %v1370 = vmul.f32 %v1348, %v1365
    %v1371 = vmul.f32 %v1352, %v1365
    %v1372 = vmul.f32 %v1356, %v1365
    %v1373 = vmul.f32 %v1360, %v1365
    %v1374 = vmul.f32 %v1315, %v1366
    %v1375 = vmul.f32 %v1317, %v1367
    %v1376 = vmul.f32 %v1319, %v1368
    %v1377 = vmul.f32 %v1321, %v1369
    %v1378 = vmul.f32 %v1323, %v1370
    %v1379 = vmul.f32 %v1325, %v1371
    %v1380 = vmul.f32 %v1327, %v1372
    %v1381 = vmul.f32 %v1329, %v1373
    %1382 = vset.pattern.permute.xlu0 3
    %1383 = vperm.xlu0 %1382, %v988
    %v1384 = vpop.permute.xlu0 %1383
    %1386 = vset.pattern.permute.xlu0 3
    %1387 = vperm.xlu0 %1386, %v989
    %v1388 = vpop.permute.xlu0 %1387
    %1390 = vset.pattern.permute.xlu0 3
    %1391 = vperm.xlu0 %1390, %v990
    %v1392 = vpop.permute.xlu0 %1391
    %1394 = vset.pattern.permute.xlu0 3
    %1395 = vperm.xlu0 %1394, %v991
    %v1396 = vpop.permute.xlu0 %1395
    %1398 = vset.pattern.permute.xlu0 3
    %1399 = vperm.xlu0 %1398, %v992
    %v1400 = vpop.permute.xlu0 %1399
    %1402 = vset.pattern.permute.xlu0 3
    %1403 = vperm.xlu0 %1402, %v993
    %v1404 = vpop.permute.xlu0 %1403
    %1406 = vset.pattern.permute.xlu0 3
    %1407 = vperm.xlu0 %1406, %v994
    %v1408 = vpop.permute.xlu0 %1407
    %1410 = vset.pattern.permute.xlu0 3
    %1411 = vperm.xlu0 %1410, %v995
    %v1412 = vpop.permute.xlu0 %1411
    %v1414 = vmul.f32 %v1384, %v1080
    %v1415 = vmul.f32 %v1388, %v1080
    %v1416 = vmul.f32 %v1392, %v1080
    %v1417 = vmul.f32 %v1396, %v1080
    %v1418 = vmul.f32 %v1400, %v1080
    %v1419 = vmul.f32 %v1404, %v1080
    %v1420 = vmul.f32 %v1408, %v1080
    %v1421 = vmul.f32 %v1412, %v1080
    %v1422 = vmul.f32 %v1414, 1.442695
    %v1423 = vpow.pop %v1422
    %v1424 = vmul.f32 %v1415, 1.442695
    %v1425 = vpow.pop %v1424
    %v1426 = vmul.f32 %v1416, 1.442695
    %v1427 = vpow.pop %v1426
    %v1428 = vmul.f32 %v1417, 1.442695
    %v1429 = vpow.pop %v1428
    %v1430 = vmul.f32 %v1418, 1.442695
    %v1431 = vpow.pop %v1430
    %v1432 = vmul.f32 %v1419, 1.442695
    %v1433 = vpow.pop %v1432
    %v1434 = vmul.f32 %v1420, 1.442695
    %v1435 = vpow.pop %v1434
    %v1436 = vmul.f32 %v1421, 1.442695
    %v1437 = vpow.pop %v1436
    %1438 = vset.pattern.permute.xlu0 3
    %1439 = vperm.xlu0 %1438, %v1020
    %v1440 = vpop.permute.xlu0 %1439
    %1442 = vset.pattern.permute.xlu0 3
    %1443 = vperm.xlu0 %1442, %v1021
    %v1444 = vpop.permute.xlu0 %1443
    %1446 = vset.pattern.permute.xlu0 3
    %1447 = vperm.xlu0 %1446, %v1022
    %v1448 = vpop.permute.xlu0 %1447
    %1450 = vset.pattern.permute.xlu0 3
    %1451 = vperm.xlu0 %1450, %v1023
    %v1452 = vpop.permute.xlu0 %1451
    %1454 = vset.pattern.permute.xlu0 3
    %1455 = vperm.xlu0 %1454, %v1024
    %v1456 = vpop.permute.xlu0 %1455
    %1458 = vset.pattern.permute.xlu0 3
    %1459 = vperm.xlu0 %1458, %v1025
    %v1460 = vpop.permute.xlu0 %1459
    %1462 = vset.pattern.permute.xlu0 3
    %1463 = vperm.xlu0 %1462, %v1026
    %v1464 = vpop.permute.xlu0 %1463
    %1466 = vset.pattern.permute.xlu0 3
    %1467 = vperm.xlu0 %1466, %v1027
    %v1468 = vpop.permute.xlu0 %1467
    %v1470 = vlaneseq
    %v1471 = vshrl.u32 %v1470, 7
    %v1472 = vsub.s32 3, %v1471
    %v1473 = vrot.slane %v680, %v1472
    %v1474 = vmul.f32 %v1440, %v1473
    %v1475 = vmul.f32 %v1444, %v1473
    %v1476 = vmul.f32 %v1448, %v1473
    %v1477 = vmul.f32 %v1452, %v1473
    %v1478 = vmul.f32 %v1456, %v1473
    %v1479 = vmul.f32 %v1460, %v1473
    %v1480 = vmul.f32 %v1464, %v1473
    %v1481 = vmul.f32 %v1468, %v1473
    %v1482 = vmul.f32 %v1423, %v1474
    %v1483 = vmul.f32 %v1425, %v1475
    %v1484 = vmul.f32 %v1427, %v1476
    %v1485 = vmul.f32 %v1429, %v1477
    %v1486 = vmul.f32 %v1431, %v1478
    %v1487 = vmul.f32 %v1433, %v1479
    %v1488 = vmul.f32 %v1435, %v1480
    %v1489 = vmul.f32 %v1437, %v1481
    %1490 = vset.pattern.permute.xlu0 4
    %1491 = vperm.xlu0 %1490, %v988
    %v1492 = vpop.permute.xlu0 %1491
    %1494 = vset.pattern.permute.xlu0 4
    %1495 = vperm.xlu0 %1494, %v989
    %v1496 = vpop.permute.xlu0 %1495
    %1498 = vset.pattern.permute.xlu0 4
    %1499 = vperm.xlu0 %1498, %v990
    %v1500 = vpop.permute.xlu0 %1499
    %1502 = vset.pattern.permute.xlu0 4
    %1503 = vperm.xlu0 %1502, %v991
    %v1504 = vpop.permute.xlu0 %1503
    %1506 = vset.pattern.permute.xlu0 4
    %1507 = vperm.xlu0 %1506, %v992
    %v1508 = vpop.permute.xlu0 %1507
    %1510 = vset.pattern.permute.xlu0 4
    %1511 = vperm.xlu0 %1510, %v993
    %v1512 = vpop.permute.xlu0 %1511
    %1514 = vset.pattern.permute.xlu0 4
    %1515 = vperm.xlu0 %1514, %v994
    %v1516 = vpop.permute.xlu0 %1515
    %1518 = vset.pattern.permute.xlu0 4
    %1519 = vperm.xlu0 %1518, %v995
    %v1520 = vpop.permute.xlu0 %1519
    %v1522 = vmul.f32 %v1492, %v1080
    %v1523 = vmul.f32 %v1496, %v1080
    %v1524 = vmul.f32 %v1500, %v1080
    %v1525 = vmul.f32 %v1504, %v1080
    %v1526 = vmul.f32 %v1508, %v1080
    %v1527 = vmul.f32 %v1512, %v1080
    %v1528 = vmul.f32 %v1516, %v1080
    %v1529 = vmul.f32 %v1520, %v1080
    %v1530 = vmul.f32 %v1522, 1.442695
    %v1531 = vpow.pop %v1530
    %v1532 = vmul.f32 %v1523, 1.442695
    %v1533 = vpow.pop %v1532
    %v1534 = vmul.f32 %v1524, 1.442695
    %v1535 = vpow.pop %v1534
    %v1536 = vmul.f32 %v1525, 1.442695
    %v1537 = vpow.pop %v1536
    %v1538 = vmul.f32 %v1526, 1.442695
    %v1539 = vpow.pop %v1538
    %v1540 = vmul.f32 %v1527, 1.442695
    %v1541 = vpow.pop %v1540
    %v1542 = vmul.f32 %v1528, 1.442695
    %v1543 = vpow.pop %v1542
    %v1544 = vmul.f32 %v1529, 1.442695
    %v1545 = vpow.pop %v1544
    %1546 = vset.pattern.permute.xlu0 4
    %1547 = vperm.xlu0 %1546, %v1020
    %v1548 = vpop.permute.xlu0 %1547
    %1550 = vset.pattern.permute.xlu0 4
    %1551 = vperm.xlu0 %1550, %v1021
    %v1552 = vpop.permute.xlu0 %1551
    %1554 = vset.pattern.permute.xlu0 4
    %1555 = vperm.xlu0 %1554, %v1022
    %v1556 = vpop.permute.xlu0 %1555
    %1558 = vset.pattern.permute.xlu0 4
    %1559 = vperm.xlu0 %1558, %v1023
    %v1560 = vpop.permute.xlu0 %1559
    %1562 = vset.pattern.permute.xlu0 4
    %1563 = vperm.xlu0 %1562, %v1024
    %v1564 = vpop.permute.xlu0 %1563
    %1566 = vset.pattern.permute.xlu0 4
    %1567 = vperm.xlu0 %1566, %v1025
    %v1568 = vpop.permute.xlu0 %1567
    %1570 = vset.pattern.permute.xlu0 4
    %1571 = vperm.xlu0 %1570, %v1026
    %v1572 = vpop.permute.xlu0 %1571
    %1574 = vset.pattern.permute.xlu0 4
    %1575 = vperm.xlu0 %1574, %v1027
    %v1576 = vpop.permute.xlu0 %1575
    %v1578 = vlaneseq
    %v1579 = vshrl.u32 %v1578, 7
    %v1580 = vsub.s32 4, %v1579
    %v1581 = vrot.slane %v680, %v1580
    %v1582 = vmul.f32 %v1548, %v1581
    %v1583 = vmul.f32 %v1552, %v1581
    %v1584 = vmul.f32 %v1556, %v1581
    %v1585 = vmul.f32 %v1560, %v1581
    %v1586 = vmul.f32 %v1564, %v1581
    %v1587 = vmul.f32 %v1568, %v1581
    %v1588 = vmul.f32 %v1572, %v1581
    %v1589 = vmul.f32 %v1576, %v1581
    %v1590 = vmul.f32 %v1531, %v1582
    %v1591 = vmul.f32 %v1533, %v1583
    %v1592 = vmul.f32 %v1535, %v1584
    %v1593 = vmul.f32 %v1537, %v1585
    %v1594 = vmul.f32 %v1539, %v1586
    %v1595 = vmul.f32 %v1541, %v1587
    %v1596 = vmul.f32 %v1543, %v1588
    %v1597 = vmul.f32 %v1545, %v1589
    %1598 = vset.pattern.permute.xlu0 5
    %1599 = vperm.xlu0 %1598, %v988
    %v1600 = vpop.permute.xlu0 %1599
    %1602 = vset.pattern.permute.xlu0 5
    %1603 = vperm.xlu0 %1602, %v989
    %v1604 = vpop.permute.xlu0 %1603
    %1606 = vset.pattern.permute.xlu0 5
    %1607 = vperm.xlu0 %1606, %v990
    %v1608 = vpop.permute.xlu0 %1607
    %1610 = vset.pattern.permute.xlu0 5
    %1611 = vperm.xlu0 %1610, %v991
    %v1612 = vpop.permute.xlu0 %1611
    %1614 = vset.pattern.permute.xlu0 5
    %1615 = vperm.xlu0 %1614, %v992
    %v1616 = vpop.permute.xlu0 %1615
    %1618 = vset.pattern.permute.xlu0 5
    %1619 = vperm.xlu0 %1618, %v993
    %v1620 = vpop.permute.xlu0 %1619
    %1622 = vset.pattern.permute.xlu0 5
    %1623 = vperm.xlu0 %1622, %v994
    %v1624 = vpop.permute.xlu0 %1623
    %1626 = vset.pattern.permute.xlu0 5
    %1627 = vperm.xlu0 %1626, %v995
    %v1628 = vpop.permute.xlu0 %1627
    %v1630 = vmul.f32 %v1600, %v1080
    %v1631 = vmul.f32 %v1604, %v1080
    %v1632 = vmul.f32 %v1608, %v1080
    %v1633 = vmul.f32 %v1612, %v1080
    %v1634 = vmul.f32 %v1616, %v1080
    %v1635 = vmul.f32 %v1620, %v1080
    %v1636 = vmul.f32 %v1624, %v1080
    %v1637 = vmul.f32 %v1628, %v1080
    %v1638 = vmul.f32 %v1630, 1.442695
    %v1639 = vpow.pop %v1638
    %v1640 = vmul.f32 %v1631, 1.442695
    %v1641 = vpow.pop %v1640
    %v1642 = vmul.f32 %v1632, 1.442695
    %v1643 = vpow.pop %v1642
    %v1644 = vmul.f32 %v1633, 1.442695
    %v1645 = vpow.pop %v1644
    %v1646 = vmul.f32 %v1634, 1.442695
    %v1647 = vpow.pop %v1646
    %v1648 = vmul.f32 %v1635, 1.442695
    %v1649 = vpow.pop %v1648
    %v1650 = vmul.f32 %v1636, 1.442695
    %v1651 = vpow.pop %v1650
    %v1652 = vmul.f32 %v1637, 1.442695
    %v1653 = vpow.pop %v1652
    %1654 = vset.pattern.permute.xlu0 5
    %1655 = vperm.xlu0 %1654, %v1020
    %v1656 = vpop.permute.xlu0 %1655
    %1658 = vset.pattern.permute.xlu0 5
    %1659 = vperm.xlu0 %1658, %v1021
    %v1660 = vpop.permute.xlu0 %1659
    %1662 = vset.pattern.permute.xlu0 5
    %1663 = vperm.xlu0 %1662, %v1022
    %v1664 = vpop.permute.xlu0 %1663
    %1666 = vset.pattern.permute.xlu0 5
    %1667 = vperm.xlu0 %1666, %v1023
    %v1668 = vpop.permute.xlu0 %1667
    %1670 = vset.pattern.permute.xlu0 5
    %1671 = vperm.xlu0 %1670, %v1024
    %v1672 = vpop.permute.xlu0 %1671
    %1674 = vset.pattern.permute.xlu0 5
    %1675 = vperm.xlu0 %1674, %v1025
    %v1676 = vpop.permute.xlu0 %1675
    %1678 = vset.pattern.permute.xlu0 5
    %1679 = vperm.xlu0 %1678, %v1026
    %v1680 = vpop.permute.xlu0 %1679
    %1682 = vset.pattern.permute.xlu0 5
    %1683 = vperm.xlu0 %1682, %v1027
    %v1684 = vpop.permute.xlu0 %1683
    %v1686 = vlaneseq
    %v1687 = vshrl.u32 %v1686, 7
    %v1688 = vsub.s32 5, %v1687
    %v1689 = vrot.slane %v680, %v1688
    %v1690 = vmul.f32 %v1656, %v1689
    %v1691 = vmul.f32 %v1660, %v1689
    %v1692 = vmul.f32 %v1664, %v1689
    %v1693 = vmul.f32 %v1668, %v1689
    %v1694 = vmul.f32 %v1672, %v1689
    %v1695 = vmul.f32 %v1676, %v1689
    %v1696 = vmul.f32 %v1680, %v1689
    %v1697 = vmul.f32 %v1684, %v1689
    %v1698 = vmul.f32 %v1639, %v1690
    %v1699 = vmul.f32 %v1641, %v1691
    %v1700 = vmul.f32 %v1643, %v1692
    %v1701 = vmul.f32 %v1645, %v1693
    %v1702 = vmul.f32 %v1647, %v1694
    %v1703 = vmul.f32 %v1649, %v1695
    %v1704 = vmul.f32 %v1651, %v1696
    %v1705 = vmul.f32 %v1653, %v1697
    %1706 = vset.pattern.permute.xlu0 6
    %1707 = vperm.xlu0 %1706, %v988
    %v1708 = vpop.permute.xlu0 %1707
    %1710 = vset.pattern.permute.xlu0 6
    %1711 = vperm.xlu0 %1710, %v989
    %v1712 = vpop.permute.xlu0 %1711
    %1714 = vset.pattern.permute.xlu0 6
    %1715 = vperm.xlu0 %1714, %v990
    %v1716 = vpop.permute.xlu0 %1715
    %1718 = vset.pattern.permute.xlu0 6
    %1719 = vperm.xlu0 %1718, %v991
    %v1720 = vpop.permute.xlu0 %1719
    %1722 = vset.pattern.permute.xlu0 6
    %1723 = vperm.xlu0 %1722, %v992
    %v1724 = vpop.permute.xlu0 %1723
    %1726 = vset.pattern.permute.xlu0 6
    %1727 = vperm.xlu0 %1726, %v993
    %v1728 = vpop.permute.xlu0 %1727
    %1730 = vset.pattern.permute.xlu0 6
    %1731 = vperm.xlu0 %1730, %v994
    %v1732 = vpop.permute.xlu0 %1731
    %1734 = vset.pattern.permute.xlu0 6
    %1735 = vperm.xlu0 %1734, %v995
    %v1736 = vpop.permute.xlu0 %1735
    %v1738 = vmul.f32 %v1708, %v1080
    %v1739 = vmul.f32 %v1712, %v1080
    %v1740 = vmul.f32 %v1716, %v1080
    %v1741 = vmul.f32 %v1720, %v1080
    %v1742 = vmul.f32 %v1724, %v1080
    %v1743 = vmul.f32 %v1728, %v1080
    %v1744 = vmul.f32 %v1732, %v1080
    %v1745 = vmul.f32 %v1736, %v1080
    %v1746 = vmul.f32 %v1738, 1.442695
    %v1747 = vpow.pop %v1746
    %v1748 = vmul.f32 %v1739, 1.442695
    %v1749 = vpow.pop %v1748
    %v1750 = vmul.f32 %v1740, 1.442695
    %v1751 = vpow.pop %v1750
    %v1752 = vmul.f32 %v1741, 1.442695
    %v1753 = vpow.pop %v1752
    %v1754 = vmul.f32 %v1742, 1.442695
    %v1755 = vpow.pop %v1754
    %v1756 = vmul.f32 %v1743, 1.442695
    %v1757 = vpow.pop %v1756
    %v1758 = vmul.f32 %v1744, 1.442695
    %v1759 = vpow.pop %v1758
    %v1760 = vmul.f32 %v1745, 1.442695
    %v1761 = vpow.pop %v1760
    %1762 = vset.pattern.permute.xlu0 6
    %1763 = vperm.xlu0 %1762, %v1020
    %v1764 = vpop.permute.xlu0 %1763
    %1766 = vset.pattern.permute.xlu0 6
    %1767 = vperm.xlu0 %1766, %v1021
    %v1768 = vpop.permute.xlu0 %1767
    %1770 = vset.pattern.permute.xlu0 6
    %1771 = vperm.xlu0 %1770, %v1022
    %v1772 = vpop.permute.xlu0 %1771
    %1774 = vset.pattern.permute.xlu0 6
    %1775 = vperm.xlu0 %1774, %v1023
    %v1776 = vpop.permute.xlu0 %1775
    %1778 = vset.pattern.permute.xlu0 6
    %1779 = vperm.xlu0 %1778, %v1024
    %v1780 = vpop.permute.xlu0 %1779
    %1782 = vset.pattern.permute.xlu0 6
    %1783 = vperm.xlu0 %1782, %v1025
    %v1784 = vpop.permute.xlu0 %1783
    %1786 = vset.pattern.permute.xlu0 6
    %1787 = vperm.xlu0 %1786, %v1026
    %v1788 = vpop.permute.xlu0 %1787
    %1790 = vset.pattern.permute.xlu0 6
    %1791 = vperm.xlu0 %1790, %v1027
    %v1792 = vpop.permute.xlu0 %1791
    %v1794 = vlaneseq
    %v1795 = vshrl.u32 %v1794, 7
    %v1796 = vsub.s32 6, %v1795
    %v1797 = vrot.slane %v680, %v1796
    %v1798 = vmul.f32 %v1764, %v1797
    %v1799 = vmul.f32 %v1768, %v1797
    %v1800 = vmul.f32 %v1772, %v1797
    %v1801 = vmul.f32 %v1776, %v1797
    %v1802 = vmul.f32 %v1780, %v1797
    %v1803 = vmul.f32 %v1784, %v1797
    %v1804 = vmul.f32 %v1788, %v1797
    %v1805 = vmul.f32 %v1792, %v1797
    %v1806 = vmul.f32 %v1747, %v1798
    %v1807 = vmul.f32 %v1749, %v1799
    %v1808 = vmul.f32 %v1751, %v1800
    %v1809 = vmul.f32 %v1753, %v1801
    %v1810 = vmul.f32 %v1755, %v1802
    %v1811 = vmul.f32 %v1757, %v1803
    %v1812 = vmul.f32 %v1759, %v1804
    %v1813 = vmul.f32 %v1761, %v1805
    %1814 = vset.pattern.permute.xlu0 7
    %1815 = vperm.xlu0 %1814, %v988
    %v1816 = vpop.permute.xlu0 %1815
    %1818 = vset.pattern.permute.xlu0 7
    %1819 = vperm.xlu0 %1818, %v989
    %v1820 = vpop.permute.xlu0 %1819
    %1822 = vset.pattern.permute.xlu0 7
    %1823 = vperm.xlu0 %1822, %v990
    %v1824 = vpop.permute.xlu0 %1823
    %1826 = vset.pattern.permute.xlu0 7
    %1827 = vperm.xlu0 %1826, %v991
    %v1828 = vpop.permute.xlu0 %1827
    %1830 = vset.pattern.permute.xlu0 7
    %1831 = vperm.xlu0 %1830, %v992
    %v1832 = vpop.permute.xlu0 %1831
    %1834 = vset.pattern.permute.xlu0 7
    %1835 = vperm.xlu0 %1834, %v993
    %v1836 = vpop.permute.xlu0 %1835
    %1838 = vset.pattern.permute.xlu0 7
    %1839 = vperm.xlu0 %1838, %v994
    %v1840 = vpop.permute.xlu0 %1839
    %1842 = vset.pattern.permute.xlu0 7
    %1843 = vperm.xlu0 %1842, %v995
    %v1844 = vpop.permute.xlu0 %1843
    %v1846 = vmul.f32 %v1816, %v1080
    %v1847 = vmul.f32 %v1820, %v1080
    %v1848 = vmul.f32 %v1824, %v1080
    %v1849 = vmul.f32 %v1828, %v1080
    %v1850 = vmul.f32 %v1832, %v1080
    %v1851 = vmul.f32 %v1836, %v1080
    %v1852 = vmul.f32 %v1840, %v1080
    %v1853 = vmul.f32 %v1844, %v1080
    %v1854 = vmul.f32 %v1846, 1.442695
    %v1855 = vpow.pop %v1854
    %v1856 = vmul.f32 %v1847, 1.442695
    %v1857 = vpow.pop %v1856
    %v1858 = vmul.f32 %v1848, 1.442695
    %v1859 = vpow.pop %v1858
    %v1860 = vmul.f32 %v1849, 1.442695
    %v1861 = vpow.pop %v1860
    %v1862 = vmul.f32 %v1850, 1.442695
    %v1863 = vpow.pop %v1862
    %v1864 = vmul.f32 %v1851, 1.442695
    %v1865 = vpow.pop %v1864
    %v1866 = vmul.f32 %v1852, 1.442695
    %v1867 = vpow.pop %v1866
    %v1868 = vmul.f32 %v1853, 1.442695
    %v1869 = vpow.pop %v1868
    %1870 = vset.pattern.permute.xlu0 7
    %1871 = vperm.xlu0 %1870, %v1020
    %v1872 = vpop.permute.xlu0 %1871
    %1874 = vset.pattern.permute.xlu0 7
    %1875 = vperm.xlu0 %1874, %v1021
    %v1876 = vpop.permute.xlu0 %1875
    %1878 = vset.pattern.permute.xlu0 7
    %1879 = vperm.xlu0 %1878, %v1022
    %v1880 = vpop.permute.xlu0 %1879
    %1882 = vset.pattern.permute.xlu0 7
    %1883 = vperm.xlu0 %1882, %v1023
    %v1884 = vpop.permute.xlu0 %1883
    %1886 = vset.pattern.permute.xlu0 7
    %1887 = vperm.xlu0 %1886, %v1024
    %v1888 = vpop.permute.xlu0 %1887
    %1890 = vset.pattern.permute.xlu0 7
    %1891 = vperm.xlu0 %1890, %v1025
    %v1892 = vpop.permute.xlu0 %1891
    %1894 = vset.pattern.permute.xlu0 7
    %1895 = vperm.xlu0 %1894, %v1026
    %v1896 = vpop.permute.xlu0 %1895
    %1898 = vset.pattern.permute.xlu0 7
    %1899 = vperm.xlu0 %1898, %v1027
    %v1900 = vpop.permute.xlu0 %1899
    %v1902 = vlaneseq
    %v1903 = vshrl.u32 %v1902, 7
    %v1904 = vsub.s32 7, %v1903
    %v1905 = vrot.slane %v680, %v1904
    %v1906 = vmul.f32 %v1872, %v1905
    %v1907 = vmul.f32 %v1876, %v1905
    %v1908 = vmul.f32 %v1880, %v1905
    %v1909 = vmul.f32 %v1884, %v1905
    %v1910 = vmul.f32 %v1888, %v1905
    %v1911 = vmul.f32 %v1892, %v1905
    %v1912 = vmul.f32 %v1896, %v1905
    %v1913 = vmul.f32 %v1900, %v1905
    %v1914 = vmul.f32 %v1855, %v1906
    %v1915 = vmul.f32 %v1857, %v1907
    %v1916 = vmul.f32 %v1859, %v1908
    %v1917 = vmul.f32 %v1861, %v1909
    %v1918 = vmul.f32 %v1863, %v1910
    %v1919 = vmul.f32 %v1865, %v1911
    %v1920 = vmul.f32 %v1867, %v1912
    %v1921 = vmul.f32 %v1869, %v1913
    %v1922 = vadd.f32 %v1158, %v1266
    %v1923 = vadd.f32 %v1159, %v1267
    %v1924 = vadd.f32 %v1160, %v1268
    %v1925 = vadd.f32 %v1161, %v1269
    %v1926 = vadd.f32 %v1162, %v1270
    %v1927 = vadd.f32 %v1163, %v1271
    %v1928 = vadd.f32 %v1164, %v1272
    %v1929 = vadd.f32 %v1165, %v1273
    %v1930 = vadd.f32 %v1374, %v1482
    %v1931 = vadd.f32 %v1375, %v1483
    %v1932 = vadd.f32 %v1376, %v1484
    %v1933 = vadd.f32 %v1377, %v1485
    %v1934 = vadd.f32 %v1378, %v1486
    %v1935 = vadd.f32 %v1379, %v1487
    %v1936 = vadd.f32 %v1380, %v1488
    %v1937 = vadd.f32 %v1381, %v1489
    %v1938 = vadd.f32 %v1590, %v1698
    %v1939 = vadd.f32 %v1591, %v1699
    %v1940 = vadd.f32 %v1592, %v1700
    %v1941 = vadd.f32 %v1593, %v1701
    %v1942 = vadd.f32 %v1594, %v1702
    %v1943 = vadd.f32 %v1595, %v1703
    %v1944 = vadd.f32 %v1596, %v1704
    %v1945 = vadd.f32 %v1597, %v1705
    %v1946 = vadd.f32 %v1806, %v1914
    %v1947 = vadd.f32 %v1807, %v1915
    %v1948 = vadd.f32 %v1808, %v1916
    %v1949 = vadd.f32 %v1809, %v1917
    %v1950 = vadd.f32 %v1810, %v1918
    %v1951 = vadd.f32 %v1811, %v1919
    %v1952 = vadd.f32 %v1812, %v1920
    %v1953 = vadd.f32 %v1813, %v1921
    %v1954 = vadd.f32 %v1922, %v1930
    %v1955 = vadd.f32 %v1923, %v1931
    %v1956 = vadd.f32 %v1924, %v1932
    %v1957 = vadd.f32 %v1925, %v1933
    %v1958 = vadd.f32 %v1926, %v1934
    %v1959 = vadd.f32 %v1927, %v1935
    %v1960 = vadd.f32 %v1928, %v1936
    %v1961 = vadd.f32 %v1929, %v1937
    %v1962 = vadd.f32 %v1938, %v1946
    %v1963 = vadd.f32 %v1939, %v1947
    %v1964 = vadd.f32 %v1940, %v1948
    %v1965 = vadd.f32 %v1941, %v1949
    %v1966 = vadd.f32 %v1942, %v1950
    %v1967 = vadd.f32 %v1943, %v1951
    %v1968 = vadd.f32 %v1944, %v1952
    %v1969 = vadd.f32 %v1945, %v1953
    %v1970 = vadd.f32 %v1954, %v1962
    %v1971 = vadd.f32 %v1955, %v1963
    %v1972 = vadd.f32 %v1956, %v1964
    %v1973 = vadd.f32 %v1957, %v1965
    %v1974 = vadd.f32 %v1958, %v1966
    %v1975 = vadd.f32 %v1959, %v1967
    %v1976 = vadd.f32 %v1960, %v1968
    %v1977 = vadd.f32 %v1961, %v1969
    %v1978 = vld [vmem:[#allocation5] sm:$0xff]
    %v1979 = vld [vmem:[#allocation5 + $0x8] sm:$0xff]
    %v1980 = vld [vmem:[#allocation5 + $0x10] sm:$0xff]
    %v1981 = vld [vmem:[#allocation5 + $0x18] sm:$0xff]
    %v1982 = vld [vmem:[#allocation5 + $0x20] sm:$0xff]
    %v1983 = vld [vmem:[#allocation5 + $0x28] sm:$0xff]
    %v1984 = vld [vmem:[#allocation5 + $0x30] sm:$0xff]
    %v1985 = vld [vmem:[#allocation5 + $0x38] sm:$0xff]
    %v1986 = vrot.slane %v432, 7
    %v1987 = vsel %vm448, %v1986, 0
    %1989 = vmatprep.subr.mxu0 0.0
    %1990 = vmatpush1.msra.mxu0 0.0
    %1991 = vmatprep.subr.mxu0 0.0
    %1992 = vmatpush1.msra.mxu0 0.0
    %1993 = vmatprep.subr.mxu0 0.0
    %1994 = vmatpush1.msra.mxu0 0.0
    %1995 = vmatprep.subr.mxu0 0.0
    %1996 = vmatpush1.msra.mxu0 0.0
    %1997 = vmatprep.subr.mxu0 0.0
    %1998 = vmatpush1.msra.mxu0 0.0
    %1999 = vmatprep.subr.mxu0 0.0
    %2000 = vmatpush1.msra.mxu0 0.0
    %2001 = vmatprep.subr.mxu0 0.0
    %2002 = vmatpush1.msra.mxu0 0.0
    %2003 = vmatprep.subr.mxu0 0.0
    %2004 = vmatpush1.msra.mxu0 0.0
    %2005 = vmatprep.subr.mxu0 0.0
    %2006 = vmatpush1.msra.mxu0 %v1985
    %2007 = vmatprep.subr.mxu0 0.0
    %2008 = vmatpush1.msra.mxu0 %v1984
    %2009 = vmatprep.subr.mxu0 0.0
    %2010 = vmatpush1.msra.mxu0 %v1983
    %2011 = vmatprep.subr.mxu0 0.0
    %2012 = vmatpush1.msra.mxu0 %v1982
    %2013 = vmatprep.subr.mxu0 0.0
    %2014 = vmatpush1.msra.mxu0 %v1981
    %2015 = vmatprep.subr.mxu0 0.0
    %2016 = vmatpush1.msra.mxu0 %v1980
    %2017 = vmatprep.subr.mxu0 0.0
    %2018 = vmatpush1.msra.mxu0 %v1979
    %2019 = vmatprep.subr.mxu0 0.0
    %2020 = vmatpush1.msra.mxu0 %v1978
    %2021 = vmatprep.subr.mxu0 0.0
    %2022 = vmatpush2.msra.mxu0 0.0
    %2023 = vmatprep.subr.mxu0 0.0
    %2024 = vmatpush2.msra.mxu0 0.0
    %2025 = vmatprep.subr.mxu0 0.0
    %2026 = vmatpush2.msra.mxu0 0.0
    %2027 = vmatprep.subr.mxu0 0.0
    %2028 = vmatpush2.msra.mxu0 0.0
    %2029 = vmatprep.subr.mxu0 0.0
    %2030 = vmatpush2.msra.mxu0 0.0
    %2031 = vmatprep.subr.mxu0 0.0
    %2032 = vmatpush2.msra.mxu0 0.0
    %2033 = vmatprep.subr.mxu0 0.0
    %2034 = vmatpush2.msra.mxu0 0.0
    %2035 = vmatprep.subr.mxu0 0.0
    %2036 = vmatpush2.msra.mxu0 0.0
    %2037 = vmatprep.subr.mxu0 0.0
    %2038 = vmatpush2.msra.mxu0 0.0
    %2039 = vmatprep.subr.mxu0 0.0
    %2040 = vmatpush2.msra.mxu0 0.0
    %2041 = vmatprep.subr.mxu0 0.0
    %2042 = vmatpush2.msra.mxu0 0.0
    %2043 = vmatprep.subr.mxu0 0.0
    %2044 = vmatpush2.msra.mxu0 0.0
    %2045 = vmatprep.subr.mxu0 0.0
    %2046 = vmatpush2.msra.mxu0 0.0
    %2047 = vmatprep.subr.mxu0 0.0
    %2048 = vmatpush2.msra.mxu0 0.0
    %2049 = vmatprep.subr.mxu0 0.0
    %2050 = vmatpush2.msra.mxu0 0.0
    %2051 = vmatprep.subr.mxu0 0.0
    %2052 = vmatpush2.msra.mxu0 0.0
    %2053 = vmatprep.mubr.f32.mxu0 0.0
    %2054 = vmatmul.mubr.f32.gmra.mxu0 %v1987
    %v2055 = vpop.f32.mrf.mxu0
    %v2056 = vadd.f32 0.0, %v2055
    %v2057 = vpop.f32.mrf.mxu0
    %2058 = vdwg.mxu0
    %v2059 = vld [vmem:[#allocation14] sm:$0x1]
    %v2061 = vlaneseq
    %v2062 = vshrl.u32 %v2061, 7
    %v2063 = vsub.s32 0, %v2062
    %v2064 = vrot.slane %v2059, %v2063
    %v2066 = vmul.f32 %v581, %v2064
    %v2068 = vrot.slane %v682, 7
    %v2071 = vrot.slane %v2066, 7
    %2073 = vmatprep.subr.mxu0 0.0
    %2074 = vmatpush1.xpose.msra.mxu0 0.0
    %2075 = vmatprep.subr.mxu0 0.0
    %2076 = vmatpush1.xpose.msra.mxu0 0.0
    %2077 = vmatprep.subr.mxu0 0.0
    %2078 = vmatpush1.xpose.msra.mxu0 0.0
    %2079 = vmatprep.subr.mxu0 0.0
    %2080 = vmatpush1.xpose.msra.mxu0 0.0
    %2081 = vmatprep.subr.mxu0 0.0
    %2082 = vmatpush1.xpose.msra.mxu0 0.0
    %2083 = vmatprep.subr.mxu0 0.0
    %2084 = vmatpush1.xpose.msra.mxu0 0.0
    %2085 = vmatprep.subr.mxu0 0.0
    %2086 = vmatpush1.xpose.msra.mxu0 0.0
    %2087 = vmatprep.subr.mxu0 0.0
    %2088 = vmatpush1.xpose.msra.mxu0 0.0
    %2089 = vmatprep.subr.mxu0 0.0
    %2090 = vmatpush1.xpose.msra.mxu0 %v1977
    %2091 = vmatprep.subr.mxu0 0.0
    %2092 = vmatpush1.xpose.msra.mxu0 %v1976
    %2093 = vmatprep.subr.mxu0 0.0
    %2094 = vmatpush1.xpose.msra.mxu0 %v1975
    %2095 = vmatprep.subr.mxu0 0.0
    %2096 = vmatpush1.xpose.msra.mxu0 %v1974
    %2097 = vmatprep.subr.mxu0 0.0
    %2098 = vmatpush1.xpose.msra.mxu0 %v1973
    %2099 = vmatprep.subr.mxu0 0.0
    %2100 = vmatpush1.xpose.msra.mxu0 %v1972
    %2101 = vmatprep.subr.mxu0 0.0
    %2102 = vmatpush1.xpose.msra.mxu0 %v1971
    %2103 = vmatprep.subr.mxu0 0.0
    %2104 = vmatpush1.xpose.msra.mxu0 %v1970
    %2105 = vmatprep.subr.mxu0 0.0
    %2106 = vmatpush2.xpose.msra.mxu0 0.0
    %2107 = vmatprep.subr.mxu0 0.0
    %2108 = vmatpush2.xpose.msra.mxu0 0.0
    %2109 = vmatprep.subr.mxu0 0.0
    %2110 = vmatpush2.xpose.msra.mxu0 0.0
    %2111 = vmatprep.subr.mxu0 0.0
    %2112 = vmatpush2.xpose.msra.mxu0 0.0
    %2113 = vmatprep.subr.mxu0 0.0
    %2114 = vmatpush2.xpose.msra.mxu0 0.0
    %2115 = vmatprep.subr.mxu0 0.0
    %2116 = vmatpush2.xpose.msra.mxu0 0.0
    %2117 = vmatprep.subr.mxu0 0.0
    %2118 = vmatpush2.xpose.msra.mxu0 0.0
    %2119 = vmatprep.subr.mxu0 0.0
    %2120 = vmatpush2.xpose.msra.mxu0 0.0
    %2121 = vmatprep.subr.mxu0 0.0
    %2122 = vmatpush2.xpose.msra.mxu0 0.0
    %2123 = vmatprep.subr.mxu0 0.0
    %2124 = vmatpush2.xpose.msra.mxu0 0.0
    %2125 = vmatprep.subr.mxu0 0.0
    %2126 = vmatpush2.xpose.msra.mxu0 0.0
    %2127 = vmatprep.subr.mxu0 0.0
    %2128 = vmatpush2.xpose.msra.mxu0 0.0
    %2129 = vmatprep.subr.mxu0 0.0
    %2130 = vmatpush2.xpose.msra.mxu0 0.0
    %2131 = vmatprep.subr.mxu0 0.0
    %2132 = vmatpush2.xpose.msra.mxu0 0.0
    %2133 = vmatprep.subr.mxu0 0.0
    %2134 = vmatpush2.xpose.msra.mxu0 0.0
    %2135 = vmatprep.subr.mxu0 0.0
    %2136 = vmatpush2.xpose.msra.mxu0 0.0
    %2137 = vmatprep.mubr.f32.mxu0 0.0
    %2138 = vmatmul.mubr.f32.gmra.mxu0 %v2068
    %v2139 = vpop.f32.mrf.mxu0
    %v2140 = vadd.f32 %v2071, %v2139
    %v2141 = vpop.f32.mrf.mxu0
    %2142 = vdwg.mxu0
    %v2143 = vxor.u32 %v2056, 2147483648
    %v2144 = vmul.f32 %v2143, 1.442695
    %v2145 = vpow.pop %v2144
    %v2146 = vadd.f32 %v2145, 1.0
    %v2147 = vrcp.pop %v2146
    %v2148 = vmul.f32 1.0, %v2147
    %v2149 = vmul.f32 %v2056, %v2148
    %v2150 = vmul.f32 %v2140, %v2149
    %v2151 = vld [vmem:[#allocation16] sm:$0xff]
    %v2152 = vld [vmem:[#allocation16 + $0x8] sm:$0xff]
    %v2153 = vld [vmem:[#allocation16 + $0x10] sm:$0xff]
    %v2154 = vld [vmem:[#allocation16 + $0x18] sm:$0xff]
    %v2155 = vld [vmem:[#allocation16 + $0x20] sm:$0xff]
    %v2156 = vld [vmem:[#allocation16 + $0x28] sm:$0xff]
    %v2157 = vld [vmem:[#allocation16 + $0x30] sm:$0xff]
    %v2158 = vld [vmem:[#allocation16 + $0x38] sm:$0xff]
    %v2160 = vsel %vm448, %v2150, 0
    %2162 = vmatprep.subr.mxu0 0.0
    %2163 = vmatpush1.msra.mxu0 0.0
    %2164 = vmatprep.subr.mxu0 0.0
    %2165 = vmatpush1.msra.mxu0 0.0
    %2166 = vmatprep.subr.mxu0 0.0
    %2167 = vmatpush1.msra.mxu0 0.0
    %2168 = vmatprep.subr.mxu0 0.0
    %2169 = vmatpush1.msra.mxu0 0.0
    %2170 = vmatprep.subr.mxu0 0.0
    %2171 = vmatpush1.msra.mxu0 0.0
    %2172 = vmatprep.subr.mxu0 0.0
    %2173 = vmatpush1.msra.mxu0 0.0
    %2174 = vmatprep.subr.mxu0 0.0
    %2175 = vmatpush1.msra.mxu0 0.0
    %2176 = vmatprep.subr.mxu0 0.0
    %2177 = vmatpush1.msra.mxu0 0.0
    %2178 = vmatprep.subr.mxu0 0.0
    %2179 = vmatpush1.msra.mxu0 %v2158
    %2180 = vmatprep.subr.mxu0 0.0
    %2181 = vmatpush1.msra.mxu0 %v2157
    %2182 = vmatprep.subr.mxu0 0.0
    %2183 = vmatpush1.msra.mxu0 %v2156
    %2184 = vmatprep.subr.mxu0 0.0
    %2185 = vmatpush1.msra.mxu0 %v2155
    %2186 = vmatprep.subr.mxu0 0.0
    %2187 = vmatpush1.msra.mxu0 %v2154
    %2188 = vmatprep.subr.mxu0 0.0
    %2189 = vmatpush1.msra.mxu0 %v2153
    %2190 = vmatprep.subr.mxu0 0.0
    %2191 = vmatpush1.msra.mxu0 %v2152
    %2192 = vmatprep.subr.mxu0 0.0
    %2193 = vmatpush1.msra.mxu0 %v2151
    %2194 = vmatprep.subr.mxu0 0.0
    %2195 = vmatpush2.msra.mxu0 0.0
    %2196 = vmatprep.subr.mxu0 0.0
    %2197 = vmatpush2.msra.mxu0 0.0
    %2198 = vmatprep.subr.mxu0 0.0
    %2199 = vmatpush2.msra.mxu0 0.0
    %2200 = vmatprep.subr.mxu0 0.0
    %2201 = vmatpush2.msra.mxu0 0.0
    %2202 = vmatprep.subr.mxu0 0.0
    %2203 = vmatpush2.msra.mxu0 0.0
    %2204 = vmatprep.subr.mxu0 0.0
    %2205 = vmatpush2.msra.mxu0 0.0
    %2206 = vmatprep.subr.mxu0 0.0
    %2207 = vmatpush2.msra.mxu0 0.0
    %2208 = vmatprep.subr.mxu0 0.0
    %2209 = vmatpush2.msra.mxu0 0.0
    %2210 = vmatprep.subr.mxu0 0.0
    %2211 = vmatpush2.msra.mxu0 0.0
    %2212 = vmatprep.subr.mxu0 0.0
    %2213 = vmatpush2.msra.mxu0 0.0
    %2214 = vmatprep.subr.mxu0 0.0
    %2215 = vmatpush2.msra.mxu0 0.0
    %2216 = vmatprep.subr.mxu0 0.0
    %2217 = vmatpush2.msra.mxu0 0.0
    %2218 = vmatprep.subr.mxu0 0.0
    %2219 = vmatpush2.msra.mxu0 0.0
    %2220 = vmatprep.subr.mxu0 0.0
    %2221 = vmatpush2.msra.mxu0 0.0
    %2222 = vmatprep.subr.mxu0 0.0
    %2223 = vmatpush2.msra.mxu0 0.0
    %2224 = vmatprep.subr.mxu0 0.0
    %2225 = vmatpush2.msra.mxu0 0.0
    %2226 = vmatprep.mubr.f32.mxu0 0.0
    %2227 = vmatmul.mubr.f32.gmra.mxu0 %v2160
    %v2228 = vpop.f32.mrf.mxu0
    %v2229 = vadd.f32 0.0, %v2228
    %v2230 = vpop.f32.mrf.mxu0
    %2231 = vdwg.mxu0
    %v2233 = vrot.slane %v2229, 1
    %v2235 = vadd.f32 %v432, %v2233
    %v2236 = vld [vmem:[%s27] sm:$0xff]
    %v2237 = vld [vmem:[%s27 + $0x8] sm:$0xff]
    %v2238 = vld [vmem:[%s27 + $0x10] sm:$0xff]
    %v2239 = vld [vmem:[%s27 + $0x18] sm:$0xff]
    %v2240 = vld [vmem:[%s27 + $0x20] sm:$0xff]
    %v2241 = vld [vmem:[%s27 + $0x28] sm:$0xff]
    %v2242 = vld [vmem:[%s27 + $0x30] sm:$0xff]
    %v2243 = vld [vmem:[%s27 + $0x38] sm:$0xff]
    %v2244 = vld [vmem:[#allocation17] sm:$0x1]
    %v2246 = vrot.slane %v2235, 7
    %v2247 = vsel %vm448, %v2246, 0
    %2249 = vmatprep.subr.mxu0 0.0
    %2250 = vmatpush1.msra.mxu0 0.0
    %2251 = vmatprep.subr.mxu0 0.0
    %2252 = vmatpush1.msra.mxu0 0.0
    %2253 = vmatprep.subr.mxu0 0.0
    %2254 = vmatpush1.msra.mxu0 0.0
    %2255 = vmatprep.subr.mxu0 0.0
    %2256 = vmatpush1.msra.mxu0 0.0
    %2257 = vmatprep.subr.mxu0 0.0
    %2258 = vmatpush1.msra.mxu0 0.0
    %2259 = vmatprep.subr.mxu0 0.0
    %2260 = vmatpush1.msra.mxu0 0.0
    %2261 = vmatprep.subr.mxu0 0.0
    %2262 = vmatpush1.msra.mxu0 0.0
    %2263 = vmatprep.subr.mxu0 0.0
    %2264 = vmatpush1.msra.mxu0 0.0
    %2265 = vmatprep.subr.mxu0 0.0
    %2266 = vmatpush1.msra.mxu0 %v2243
    %2267 = vmatprep.subr.mxu0 0.0
    %2268 = vmatpush1.msra.mxu0 %v2242
    %2269 = vmatprep.subr.mxu0 0.0
    %2270 = vmatpush1.msra.mxu0 %v2241
    %2271 = vmatprep.subr.mxu0 0.0
    %2272 = vmatpush1.msra.mxu0 %v2240
    %2273 = vmatprep.subr.mxu0 0.0
    %2274 = vmatpush1.msra.mxu0 %v2239
    %2275 = vmatprep.subr.mxu0 0.0
    %2276 = vmatpush1.msra.mxu0 %v2238
    %2277 = vmatprep.subr.mxu0 0.0
    %2278 = vmatpush1.msra.mxu0 %v2237
    %2279 = vmatprep.subr.mxu0 0.0
    %2280 = vmatpush1.msra.mxu0 %v2236
    %2281 = vmatprep.subr.mxu0 0.0
    %2282 = vmatpush2.msra.mxu0 0.0
    %2283 = vmatprep.subr.mxu0 0.0
    %2284 = vmatpush2.msra.mxu0 0.0
    %2285 = vmatprep.subr.mxu0 0.0
    %2286 = vmatpush2.msra.mxu0 0.0
    %2287 = vmatprep.subr.mxu0 0.0
    %2288 = vmatpush2.msra.mxu0 0.0
    %2289 = vmatprep.subr.mxu0 0.0
    %2290 = vmatpush2.msra.mxu0 0.0
    %2291 = vmatprep.subr.mxu0 0.0
    %2292 = vmatpush2.msra.mxu0 0.0
    %2293 = vmatprep.subr.mxu0 0.0
    %2294 = vmatpush2.msra.mxu0 0.0
    %2295 = vmatprep.subr.mxu0 0.0
    %2296 = vmatpush2.msra.mxu0 0.0
    %2297 = vmatprep.subr.mxu0 0.0
    %2298 = vmatpush2.msra.mxu0 0.0
    %2299 = vmatprep.subr.mxu0 0.0
    %2300 = vmatpush2.msra.mxu0 0.0
    %2301 = vmatprep.subr.mxu0 0.0
    %2302 = vmatpush2.msra.mxu0 0.0
    %2303 = vmatprep.subr.mxu0 0.0
    %2304 = vmatpush2.msra.mxu0 0.0
    %2305 = vmatprep.subr.mxu0 0.0
    %2306 = vmatpush2.msra.mxu0 0.0
    %2307 = vmatprep.subr.mxu0 0.0
    %2308 = vmatpush2.msra.mxu0 0.0
    %2309 = vmatprep.subr.mxu0 0.0
    %2310 = vmatpush2.msra.mxu0 0.0
    %2311 = vmatprep.subr.mxu0 0.0
    %2312 = vmatpush2.msra.mxu0 0.0
    %2313 = vmatprep.mubr.f32.mxu0 0.0
    %2314 = vmatmul.mubr.f32.gmra.mxu0 %v2247
    %v2315 = vpop.f32.mrf.mxu0
    %v2316 = vadd.f32 %v2244, %v2315
    %v2317 = vpop.f32.mrf.mxu0
    %2318 = vdwg.mxu0
    %2319 = vmatprep.subr.mxu0 0.0
    %2320 = vmatpush1.msra.mxu0 0.0
    %2321 = vmatprep.subr.mxu0 0.0
    %2322 = vmatpush1.msra.mxu0 0.0
    %2323 = vmatprep.subr.mxu0 0.0
    %2324 = vmatpush1.msra.mxu0 0.0
    %2325 = vmatprep.subr.mxu0 0.0
    %2326 = vmatpush1.msra.mxu0 0.0
    %2327 = vmatprep.subr.mxu0 0.0
    %2328 = vmatpush1.msra.mxu0 0.0
    %2329 = vmatprep.subr.mxu0 0.0
    %2330 = vmatpush1.msra.mxu0 0.0
    %2331 = vmatprep.subr.mxu0 0.0
    %2332 = vmatpush1.msra.mxu0 0.0
    %2333 = vmatprep.subr.mxu0 0.0
    %2334 = vmatpush1.msra.mxu0 0.0
    %2335 = vmatprep.subr.mxu0 0.0
    %2336 = vmatpush1.msra.mxu0 0.0
    %2337 = vmatprep.subr.mxu0 0.0
    %2338 = vmatpush1.msra.mxu0 0.0
    %2339 = vmatprep.subr.mxu0 0.0
    %2340 = vmatpush1.msra.mxu0 0.0
    %2341 = vmatprep.subr.mxu0 0.0
    %2342 = vmatpush1.msra.mxu0 0.0
    %2343 = vmatprep.subr.mxu0 0.0
    %2344 = vmatpush1.msra.mxu0 0.0
    %2345 = vmatprep.subr.mxu0 0.0
    %2346 = vmatpush1.msra.mxu0 0.0
    %2347 = vmatprep.subr.mxu0 0.0
    %2348 = vmatpush1.msra.mxu0 0.0
    %2349 = vmatprep.subr.mxu0 0.0
    %2350 = vmatpush1.msra.mxu0 %v894
    %2351 = vmatprep.subr.mxu0 0.0
    %2352 = vmatpush2.msra.mxu0 0.0
    %2353 = vmatprep.subr.mxu0 0.0
    %2354 = vmatpush2.msra.mxu0 0.0
    %2355 = vmatprep.subr.mxu0 0.0
    %2356 = vmatpush2.msra.mxu0 0.0
    %2357 = vmatprep.subr.mxu0 0.0
    %2358 = vmatpush2.msra.mxu0 0.0
    %2359 = vmatprep.subr.mxu0 0.0
    %2360 = vmatpush2.msra.mxu0 0.0
    %2361 = vmatprep.subr.mxu0 0.0
    %2362 = vmatpush2.msra.mxu0 0.0
    %2363 = vmatprep.subr.mxu0 0.0
    %2364 = vmatpush2.msra.mxu0 0.0
    %2365 = vmatprep.subr.mxu0 0.0
    %2366 = vmatpush2.msra.mxu0 0.0
    %2367 = vmatprep.subr.mxu0 0.0
    %2368 = vmatpush2.msra.mxu0 0.0
    %2369 = vmatprep.subr.mxu0 0.0
    %2370 = vmatpush2.msra.mxu0 0.0
    %2371 = vmatprep.subr.mxu0 0.0
    %2372 = vmatpush2.msra.mxu0 0.0
    %2373 = vmatprep.subr.mxu0 0.0
    %2374 = vmatpush2.msra.mxu0 0.0
    %2375 = vmatprep.subr.mxu0 0.0
    %2376 = vmatpush2.msra.mxu0 0.0
    %2377 = vmatprep.subr.mxu0 0.0
    %2378 = vmatpush2.msra.mxu0 0.0
    %2379 = vmatprep.subr.mxu0 0.0
    %2380 = vmatpush2.msra.mxu0 0.0
    %2381 = vmatprep.subr.mxu0 0.0
    %2382 = vmatpush2.msra.mxu0 0.0
    %2383 = vmatprep.mubr.f32.mxu0 0.0
    %2384 = vmatmul.mubr.f32.gmra.mxu0 %v900
    %v2385 = vpop.f32.mrf.mxu0
    %v2386 = vadd.f32 0.0, %v2385
    %v2387 = vpop.f32.mrf.mxu0
    %2388 = vdwg.mxu0
    %2389 = vxpose.xlu0.b32.start [1/16] %v2386, 128
    %2390 = vxpose.xlu0.b32.cont [2/16] 0.0, 128
    %2391 = vxpose.xlu0.b32.cont [3/16] 0.0, 128
    %2392 = vxpose.xlu0.b32.cont [4/16] 0.0, 128
    %2393 = vxpose.xlu0.b32.cont [5/16] 0.0, 128
    %2394 = vxpose.xlu0.b32.cont [6/16] 0.0, 128
    %2395 = vxpose.xlu0.b32.cont [7/16] 0.0, 128
    %2396 = vxpose.xlu0.b32.cont [8/16] 0.0, 128
    %2397 = vxpose.xlu0.b32.cont [9/16] 0.0, 128
    %2398 = vxpose.xlu0.b32.cont [10/16] 0.0, 128
    %2399 = vxpose.xlu0.b32.cont [11/16] 0.0, 128
    %2400 = vxpose.xlu0.b32.cont [12/16] 0.0, 128
    %2401 = vxpose.xlu0.b32.cont [13/16] 0.0, 128
    %2402 = vxpose.xlu0.b32.cont [14/16] 0.0, 128
    %2403 = vxpose.xlu0.b32.cont [15/16] 0.0, 128
    %2404 = vxpose.xlu0.b32.end [16/16] 0.0, 128
    %v2405 = vpop.trf.xlu0
    %v2406 = vpop.trf.xlu0
    %v2407 = vpop.trf.xlu0
    %v2408 = vpop.trf.xlu0
    %v2409 = vpop.trf.xlu0
    %v2410 = vpop.trf.xlu0
    %v2411 = vpop.trf.xlu0
    %v2412 = vpop.trf.xlu0
    %v2413 = vpop.trf.xlu0
    %v2414 = vpop.trf.xlu0
    %v2415 = vpop.trf.xlu0
    %v2416 = vpop.trf.xlu0
    %v2417 = vpop.trf.xlu0
    %v2418 = vpop.trf.xlu0
    %v2419 = vpop.trf.xlu0
    %v2420 = vpop.trf.xlu0
    %2421 = vxpose.xlu0.b32.start [1/16] %v896, 128
    %2422 = vxpose.xlu0.b32.cont [2/16] 0.0, 128
    %2423 = vxpose.xlu0.b32.cont [3/16] 0.0, 128
    %2424 = vxpose.xlu0.b32.cont [4/16] 0.0, 128
    %2425 = vxpose.xlu0.b32.cont [5/16] 0.0, 128
    %2426 = vxpose.xlu0.b32.cont [6/16] 0.0, 128
    %2427 = vxpose.xlu0.b32.cont [7/16] 0.0, 128
    %2428 = vxpose.xlu0.b32.cont [8/16] 0.0, 128
    %2429 = vxpose.xlu0.b32.cont [9/16] 0.0, 128
    %2430 = vxpose.xlu0.b32.cont [10/16] 0.0, 128
    %2431 = vxpose.xlu0.b32.cont [11/16] 0.0, 128
    %2432 = vxpose.xlu0.b32.cont [12/16] 0.0, 128
    %2433 = vxpose.xlu0.b32.cont [13/16] 0.0, 128
    %2434 = vxpose.xlu0.b32.cont [14/16] 0.0, 128
    %2435 = vxpose.xlu0.b32.cont [15/16] 0.0, 128
    %2436 = vxpose.xlu0.b32.end [16/16] 0.0, 128
    %v2437 = vpop.trf.xlu0
    %v2438 = vpop.trf.xlu0
    %v2439 = vpop.trf.xlu0
    %v2440 = vpop.trf.xlu0
    %v2441 = vpop.trf.xlu0
    %v2442 = vpop.trf.xlu0
    %v2443 = vpop.trf.xlu0
    %v2444 = vpop.trf.xlu0
    %v2445 = vpop.trf.xlu0
    %v2446 = vpop.trf.xlu0
    %v2447 = vpop.trf.xlu0
    %v2448 = vpop.trf.xlu0
    %v2449 = vpop.trf.xlu0
    %v2450 = vpop.trf.xlu0
    %v2451 = vpop.trf.xlu0
    %v2452 = vpop.trf.xlu0
    %2454 = vset.pattern.permute.xlu0 0
    %2455 = vperm.xlu0 %2454, %v2405
    %v2456 = vpop.permute.xlu0 %2455
    %2459 = vset.pattern.permute.xlu0 0
    %2460 = vperm.xlu0 %2459, %v2406
    %v2461 = vpop.permute.xlu0 %2460
    %2464 = vset.pattern.permute.xlu0 0
    %2465 = vperm.xlu0 %2464, %v2407
    %v2466 = vpop.permute.xlu0 %2465
    %2469 = vset.pattern.permute.xlu0 0
    %2470 = vperm.xlu0 %2469, %v2408
    %v2471 = vpop.permute.xlu0 %2470
    %2474 = vset.pattern.permute.xlu0 0
    %2475 = vperm.xlu0 %2474, %v2409
    %v2476 = vpop.permute.xlu0 %2475
    %2479 = vset.pattern.permute.xlu0 0
    %2480 = vperm.xlu0 %2479, %v2410
    %v2481 = vpop.permute.xlu0 %2480
    %2484 = vset.pattern.permute.xlu0 0
    %2485 = vperm.xlu0 %2484, %v2411
    %v2486 = vpop.permute.xlu0 %2485
    %2489 = vset.pattern.permute.xlu0 0
    %2490 = vperm.xlu0 %2489, %v2412
    %v2491 = vpop.permute.xlu0 %2490
    %v2493 = vmul.f32 %v2456, %v1080
    %v2494 = vmul.f32 %v2461, %v1080
    %v2495 = vmul.f32 %v2466, %v1080
    %v2496 = vmul.f32 %v2471, %v1080
    %v2497 = vmul.f32 %v2476, %v1080
    %v2498 = vmul.f32 %v2481, %v1080
    %v2499 = vmul.f32 %v2486, %v1080
    %v2500 = vmul.f32 %v2491, %v1080
    %v2501 = vmul.f32 %v2493, 1.442695
    %v2502 = vpow.pop %v2501
    %v2503 = vmul.f32 %v2494, 1.442695
    %v2504 = vpow.pop %v2503
    %v2505 = vmul.f32 %v2495, 1.442695
    %v2506 = vpow.pop %v2505
    %v2507 = vmul.f32 %v2496, 1.442695
    %v2508 = vpow.pop %v2507
    %v2509 = vmul.f32 %v2497, 1.442695
    %v2510 = vpow.pop %v2509
    %v2511 = vmul.f32 %v2498, 1.442695
    %v2512 = vpow.pop %v2511
    %v2513 = vmul.f32 %v2499, 1.442695
    %v2514 = vpow.pop %v2513
    %v2515 = vmul.f32 %v2500, 1.442695
    %v2516 = vpow.pop %v2515
    %2518 = vset.pattern.permute.xlu0 0
    %2519 = vperm.xlu0 %2518, %v2437
    %v2520 = vpop.permute.xlu0 %2519
    %2523 = vset.pattern.permute.xlu0 0
    %2524 = vperm.xlu0 %2523, %v2438
    %v2525 = vpop.permute.xlu0 %2524
    %2528 = vset.pattern.permute.xlu0 0
    %2529 = vperm.xlu0 %2528, %v2439
    %v2530 = vpop.permute.xlu0 %2529
    %2533 = vset.pattern.permute.xlu0 0
    %2534 = vperm.xlu0 %2533, %v2440
    %v2535 = vpop.permute.xlu0 %2534
    %2538 = vset.pattern.permute.xlu0 0
    %2539 = vperm.xlu0 %2538, %v2441
    %v2540 = vpop.permute.xlu0 %2539
    %2543 = vset.pattern.permute.xlu0 0
    %2544 = vperm.xlu0 %2543, %v2442
    %v2545 = vpop.permute.xlu0 %2544
    %2548 = vset.pattern.permute.xlu0 0
    %2549 = vperm.xlu0 %2548, %v2443
    %v2550 = vpop.permute.xlu0 %2549
    %2553 = vset.pattern.permute.xlu0 0
    %2554 = vperm.xlu0 %2553, %v2444
    %v2555 = vpop.permute.xlu0 %2554
    %v2557 = vlaneseq
    %v2558 = vshrl.u32 %v2557, 7
    %v2559 = vsub.s32 0, %v2558
    %v2560 = vrot.slane %v686, %v2559
    %v2561 = vmul.f32 %v2520, %v2560
    %v2562 = vmul.f32 %v2525, %v2560
    %v2563 = vmul.f32 %v2530, %v2560
    %v2564 = vmul.f32 %v2535, %v2560
    %v2565 = vmul.f32 %v2540, %v2560
    %v2566 = vmul.f32 %v2545, %v2560
    %v2567 = vmul.f32 %v2550, %v2560
    %v2568 = vmul.f32 %v2555, %v2560
    %v2569 = vmul.f32 %v2502, %v2561
    %v2570 = vmul.f32 %v2504, %v2562
    %v2571 = vmul.f32 %v2506, %v2563
    %v2572 = vmul.f32 %v2508, %v2564
    %v2573 = vmul.f32 %v2510, %v2565
    %v2574 = vmul.f32 %v2512, %v2566
    %v2575 = vmul.f32 %v2514, %v2567
    %v2576 = vmul.f32 %v2516, %v2568
    %2577 = vset.pattern.permute.xlu0 1
    %2578 = vperm.xlu0 %2577, %v2405
    %v2579 = vpop.permute.xlu0 %2578
    %2581 = vset.pattern.permute.xlu0 1
    %2582 = vperm.xlu0 %2581, %v2406
    %v2583 = vpop.permute.xlu0 %2582
    %2585 = vset.pattern.permute.xlu0 1
    %2586 = vperm.xlu0 %2585, %v2407
    %v2587 = vpop.permute.xlu0 %2586
    %2589 = vset.pattern.permute.xlu0 1
    %2590 = vperm.xlu0 %2589, %v2408
    %v2591 = vpop.permute.xlu0 %2590
    %2593 = vset.pattern.permute.xlu0 1
    %2594 = vperm.xlu0 %2593, %v2409
    %v2595 = vpop.permute.xlu0 %2594
    %2597 = vset.pattern.permute.xlu0 1
    %2598 = vperm.xlu0 %2597, %v2410
    %v2599 = vpop.permute.xlu0 %2598
    %2601 = vset.pattern.permute.xlu0 1
    %2602 = vperm.xlu0 %2601, %v2411
    %v2603 = vpop.permute.xlu0 %2602
    %2605 = vset.pattern.permute.xlu0 1
    %2606 = vperm.xlu0 %2605, %v2412
    %v2607 = vpop.permute.xlu0 %2606
    %v2609 = vmul.f32 %v2579, %v1080
    %v2610 = vmul.f32 %v2583, %v1080
    %v2611 = vmul.f32 %v2587, %v1080
    %v2612 = vmul.f32 %v2591, %v1080
    %v2613 = vmul.f32 %v2595, %v1080
    %v2614 = vmul.f32 %v2599, %v1080
    %v2615 = vmul.f32 %v2603, %v1080
    %v2616 = vmul.f32 %v2607, %v1080
    %v2617 = vmul.f32 %v2609, 1.442695
    %v2618 = vpow.pop %v2617
    %v2619 = vmul.f32 %v2610, 1.442695
    %v2620 = vpow.pop %v2619
    %v2621 = vmul.f32 %v2611, 1.442695
    %v2622 = vpow.pop %v2621
    %v2623 = vmul.f32 %v2612, 1.442695
    %v2624 = vpow.pop %v2623
    %v2625 = vmul.f32 %v2613, 1.442695
    %v2626 = vpow.pop %v2625
    %v2627 = vmul.f32 %v2614, 1.442695
    %v2628 = vpow.pop %v2627
    %v2629 = vmul.f32 %v2615, 1.442695
    %v2630 = vpow.pop %v2629
    %v2631 = vmul.f32 %v2616, 1.442695
    %v2632 = vpow.pop %v2631
    %2633 = vset.pattern.permute.xlu0 1
    %2634 = vperm.xlu0 %2633, %v2437
    %v2635 = vpop.permute.xlu0 %2634
    %2637 = vset.pattern.permute.xlu0 1
    %2638 = vperm.xlu0 %2637, %v2438
    %v2639 = vpop.permute.xlu0 %2638
    %2641 = vset.pattern.permute.xlu0 1
    %2642 = vperm.xlu0 %2641, %v2439
    %v2643 = vpop.permute.xlu0 %2642
    %2645 = vset.pattern.permute.xlu0 1
    %2646 = vperm.xlu0 %2645, %v2440
    %v2647 = vpop.permute.xlu0 %2646
    %2649 = vset.pattern.permute.xlu0 1
    %2650 = vperm.xlu0 %2649, %v2441
    %v2651 = vpop.permute.xlu0 %2650
    %2653 = vset.pattern.permute.xlu0 1
    %2654 = vperm.xlu0 %2653, %v2442
    %v2655 = vpop.permute.xlu0 %2654
    %2657 = vset.pattern.permute.xlu0 1
    %2658 = vperm.xlu0 %2657, %v2443
    %v2659 = vpop.permute.xlu0 %2658
    %2661 = vset.pattern.permute.xlu0 1
    %2662 = vperm.xlu0 %2661, %v2444
    %v2663 = vpop.permute.xlu0 %2662
    %v2665 = vlaneseq
    %v2666 = vshrl.u32 %v2665, 7
    %v2667 = vsub.s32 1, %v2666
    %v2668 = vrot.slane %v686, %v2667
    %v2669 = vmul.f32 %v2635, %v2668
    %v2670 = vmul.f32 %v2639, %v2668
    %v2671 = vmul.f32 %v2643, %v2668
    %v2672 = vmul.f32 %v2647, %v2668
    %v2673 = vmul.f32 %v2651, %v2668
    %v2674 = vmul.f32 %v2655, %v2668
    %v2675 = vmul.f32 %v2659, %v2668
    %v2676 = vmul.f32 %v2663, %v2668
    %v2677 = vmul.f32 %v2618, %v2669
    %v2678 = vmul.f32 %v2620, %v2670
    %v2679 = vmul.f32 %v2622, %v2671
    %v2680 = vmul.f32 %v2624, %v2672
    %v2681 = vmul.f32 %v2626, %v2673
    %v2682 = vmul.f32 %v2628, %v2674
    %v2683 = vmul.f32 %v2630, %v2675
    %v2684 = vmul.f32 %v2632, %v2676
    %2685 = vset.pattern.permute.xlu0 2
    %2686 = vperm.xlu0 %2685, %v2405
    %v2687 = vpop.permute.xlu0 %2686
    %2689 = vset.pattern.permute.xlu0 2
    %2690 = vperm.xlu0 %2689, %v2406
    %v2691 = vpop.permute.xlu0 %2690
    %2693 = vset.pattern.permute.xlu0 2
    %2694 = vperm.xlu0 %2693, %v2407
    %v2695 = vpop.permute.xlu0 %2694
    %2697 = vset.pattern.permute.xlu0 2
    %2698 = vperm.xlu0 %2697, %v2408
    %v2699 = vpop.permute.xlu0 %2698
    %2701 = vset.pattern.permute.xlu0 2
    %2702 = vperm.xlu0 %2701, %v2409
    %v2703 = vpop.permute.xlu0 %2702
    %2705 = vset.pattern.permute.xlu0 2
    %2706 = vperm.xlu0 %2705, %v2410
    %v2707 = vpop.permute.xlu0 %2706
    %2709 = vset.pattern.permute.xlu0 2
    %2710 = vperm.xlu0 %2709, %v2411
    %v2711 = vpop.permute.xlu0 %2710
    %2713 = vset.pattern.permute.xlu0 2
    %2714 = vperm.xlu0 %2713, %v2412
    %v2715 = vpop.permute.xlu0 %2714
    %v2717 = vmul.f32 %v2687, %v1080
    %v2718 = vmul.f32 %v2691, %v1080
    %v2719 = vmul.f32 %v2695, %v1080
    %v2720 = vmul.f32 %v2699, %v1080
    %v2721 = vmul.f32 %v2703, %v1080
    %v2722 = vmul.f32 %v2707, %v1080
    %v2723 = vmul.f32 %v2711, %v1080
    %v2724 = vmul.f32 %v2715, %v1080
    %v2725 = vmul.f32 %v2717, 1.442695
    %v2726 = vpow.pop %v2725
    %v2727 = vmul.f32 %v2718, 1.442695
    %v2728 = vpow.pop %v2727
    %v2729 = vmul.f32 %v2719, 1.442695
    %v2730 = vpow.pop %v2729
    %v2731 = vmul.f32 %v2720, 1.442695
    %v2732 = vpow.pop %v2731
    %v2733 = vmul.f32 %v2721, 1.442695
    %v2734 = vpow.pop %v2733
    %v2735 = vmul.f32 %v2722, 1.442695
    %v2736 = vpow.pop %v2735
    %v2737 = vmul.f32 %v2723, 1.442695
    %v2738 = vpow.pop %v2737
    %v2739 = vmul.f32 %v2724, 1.442695
    %v2740 = vpow.pop %v2739
    %2741 = vset.pattern.permute.xlu0 2
    %2742 = vperm.xlu0 %2741, %v2437
    %v2743 = vpop.permute.xlu0 %2742
    %2745 = vset.pattern.permute.xlu0 2
    %2746 = vperm.xlu0 %2745, %v2438
    %v2747 = vpop.permute.xlu0 %2746
    %2749 = vset.pattern.permute.xlu0 2
    %2750 = vperm.xlu0 %2749, %v2439
    %v2751 = vpop.permute.xlu0 %2750
    %2753 = vset.pattern.permute.xlu0 2
    %2754 = vperm.xlu0 %2753, %v2440
    %v2755 = vpop.permute.xlu0 %2754
    %2757 = vset.pattern.permute.xlu0 2
    %2758 = vperm.xlu0 %2757, %v2441
    %v2759 = vpop.permute.xlu0 %2758
    %2761 = vset.pattern.permute.xlu0 2
    %2762 = vperm.xlu0 %2761, %v2442
    %v2763 = vpop.permute.xlu0 %2762
    %2765 = vset.pattern.permute.xlu0 2
    %2766 = vperm.xlu0 %2765, %v2443
    %v2767 = vpop.permute.xlu0 %2766
    %2769 = vset.pattern.permute.xlu0 2
    %2770 = vperm.xlu0 %2769, %v2444
    %v2771 = vpop.permute.xlu0 %2770
    %v2773 = vlaneseq
    %v2774 = vshrl.u32 %v2773, 7
    %v2775 = vsub.s32 2, %v2774
    %v2776 = vrot.slane %v686, %v2775
    %v2777 = vmul.f32 %v2743, %v2776
    %v2778 = vmul.f32 %v2747, %v2776
    %v2779 = vmul.f32 %v2751, %v2776
    %v2780 = vmul.f32 %v2755, %v2776
    %v2781 = vmul.f32 %v2759, %v2776
    %v2782 = vmul.f32 %v2763, %v2776
    %v2783 = vmul.f32 %v2767, %v2776
    %v2784 = vmul.f32 %v2771, %v2776
    %v2785 = vmul.f32 %v2726, %v2777
    %v2786 = vmul.f32 %v2728, %v2778
    %v2787 = vmul.f32 %v2730, %v2779
    %v2788 = vmul.f32 %v2732, %v2780
    %v2789 = vmul.f32 %v2734, %v2781
    %v2790 = vmul.f32 %v2736, %v2782
    %v2791 = vmul.f32 %v2738, %v2783
    %v2792 = vmul.f32 %v2740, %v2784
    %2793 = vset.pattern.permute.xlu0 3
    %2794 = vperm.xlu0 %2793, %v2405
    %v2795 = vpop.permute.xlu0 %2794
    %2797 = vset.pattern.permute.xlu0 3
    %2798 = vperm.xlu0 %2797, %v2406
    %v2799 = vpop.permute.xlu0 %2798
    %2801 = vset.pattern.permute.xlu0 3
    %2802 = vperm.xlu0 %2801, %v2407
    %v2803 = vpop.permute.xlu0 %2802
    %2805 = vset.pattern.permute.xlu0 3
    %2806 = vperm.xlu0 %2805, %v2408
    %v2807 = vpop.permute.xlu0 %2806
    %2809 = vset.pattern.permute.xlu0 3
    %2810 = vperm.xlu0 %2809, %v2409
    %v2811 = vpop.permute.xlu0 %2810
    %2813 = vset.pattern.permute.xlu0 3
    %2814 = vperm.xlu0 %2813, %v2410
    %v2815 = vpop.permute.xlu0 %2814
    %2817 = vset.pattern.permute.xlu0 3
    %2818 = vperm.xlu0 %2817, %v2411
    %v2819 = vpop.permute.xlu0 %2818
    %2821 = vset.pattern.permute.xlu0 3
    %2822 = vperm.xlu0 %2821, %v2412
    %v2823 = vpop.permute.xlu0 %2822
    %v2825 = vmul.f32 %v2795, %v1080
    %v2826 = vmul.f32 %v2799, %v1080
    %v2827 = vmul.f32 %v2803, %v1080
    %v2828 = vmul.f32 %v2807, %v1080
    %v2829 = vmul.f32 %v2811, %v1080
    %v2830 = vmul.f32 %v2815, %v1080
    %v2831 = vmul.f32 %v2819, %v1080
    %v2832 = vmul.f32 %v2823, %v1080
    %v2833 = vmul.f32 %v2825, 1.442695
    %v2834 = vpow.pop %v2833
    %v2835 = vmul.f32 %v2826, 1.442695
    %v2836 = vpow.pop %v2835
    %v2837 = vmul.f32 %v2827, 1.442695
    %v2838 = vpow.pop %v2837
    %v2839 = vmul.f32 %v2828, 1.442695
    %v2840 = vpow.pop %v2839
    %v2841 = vmul.f32 %v2829, 1.442695
    %v2842 = vpow.pop %v2841
    %v2843 = vmul.f32 %v2830, 1.442695
    %v2844 = vpow.pop %v2843
    %v2845 = vmul.f32 %v2831, 1.442695
    %v2846 = vpow.pop %v2845
    %v2847 = vmul.f32 %v2832, 1.442695
    %v2848 = vpow.pop %v2847
    %2849 = vset.pattern.permute.xlu0 3
    %2850 = vperm.xlu0 %2849, %v2437
    %v2851 = vpop.permute.xlu0 %2850
    %2853 = vset.pattern.permute.xlu0 3
    %2854 = vperm.xlu0 %2853, %v2438
    %v2855 = vpop.permute.xlu0 %2854
    %2857 = vset.pattern.permute.xlu0 3
    %2858 = vperm.xlu0 %2857, %v2439
    %v2859 = vpop.permute.xlu0 %2858
    %2861 = vset.pattern.permute.xlu0 3
    %2862 = vperm.xlu0 %2861, %v2440
    %v2863 = vpop.permute.xlu0 %2862
    %2865 = vset.pattern.permute.xlu0 3
    %2866 = vperm.xlu0 %2865, %v2441
    %v2867 = vpop.permute.xlu0 %2866
    %2869 = vset.pattern.permute.xlu0 3
    %2870 = vperm.xlu0 %2869, %v2442
    %v2871 = vpop.permute.xlu0 %2870
    %2873 = vset.pattern.permute.xlu0 3
    %2874 = vperm.xlu0 %2873, %v2443
    %v2875 = vpop.permute.xlu0 %2874
    %2877 = vset.pattern.permute.xlu0 3
    %2878 = vperm.xlu0 %2877, %v2444
    %v2879 = vpop.permute.xlu0 %2878
    %v2881 = vlaneseq
    %v2882 = vshrl.u32 %v2881, 7
    %v2883 = vsub.s32 3, %v2882
    %v2884 = vrot.slane %v686, %v2883
    %v2885 = vmul.f32 %v2851, %v2884
    %v2886 = vmul.f32 %v2855, %v2884
    %v2887 = vmul.f32 %v2859, %v2884
    %v2888 = vmul.f32 %v2863, %v2884
    %v2889 = vmul.f32 %v2867, %v2884
    %v2890 = vmul.f32 %v2871, %v2884
    %v2891 = vmul.f32 %v2875, %v2884
    %v2892 = vmul.f32 %v2879, %v2884
    %v2893 = vmul.f32 %v2834, %v2885
    %v2894 = vmul.f32 %v2836, %v2886
    %v2895 = vmul.f32 %v2838, %v2887
    %v2896 = vmul.f32 %v2840, %v2888
    %v2897 = vmul.f32 %v2842, %v2889
    %v2898 = vmul.f32 %v2844, %v2890
    %v2899 = vmul.f32 %v2846, %v2891
    %v2900 = vmul.f32 %v2848, %v2892
    %2901 = vset.pattern.permute.xlu0 4
    %2902 = vperm.xlu0 %2901, %v2405
    %v2903 = vpop.permute.xlu0 %2902
    %2905 = vset.pattern.permute.xlu0 4
    %2906 = vperm.xlu0 %2905, %v2406
    %v2907 = vpop.permute.xlu0 %2906
    %2909 = vset.pattern.permute.xlu0 4
    %2910 = vperm.xlu0 %2909, %v2407
    %v2911 = vpop.permute.xlu0 %2910
    %2913 = vset.pattern.permute.xlu0 4
    %2914 = vperm.xlu0 %2913, %v2408
    %v2915 = vpop.permute.xlu0 %2914
    %2917 = vset.pattern.permute.xlu0 4
    %2918 = vperm.xlu0 %2917, %v2409
    %v2919 = vpop.permute.xlu0 %2918
    %2921 = vset.pattern.permute.xlu0 4
    %2922 = vperm.xlu0 %2921, %v2410
    %v2923 = vpop.permute.xlu0 %2922
    %2925 = vset.pattern.permute.xlu0 4
    %2926 = vperm.xlu0 %2925, %v2411
    %v2927 = vpop.permute.xlu0 %2926
    %2929 = vset.pattern.permute.xlu0 4
    %2930 = vperm.xlu0 %2929, %v2412
    %v2931 = vpop.permute.xlu0 %2930
    %v2933 = vmul.f32 %v2903, %v1080
    %v2934 = vmul.f32 %v2907, %v1080
    %v2935 = vmul.f32 %v2911, %v1080
    %v2936 = vmul.f32 %v2915, %v1080
    %v2937 = vmul.f32 %v2919, %v1080
    %v2938 = vmul.f32 %v2923, %v1080
    %v2939 = vmul.f32 %v2927, %v1080
    %v2940 = vmul.f32 %v2931, %v1080
    %v2941 = vmul.f32 %v2933, 1.442695
    %v2942 = vpow.pop %v2941
    %v2943 = vmul.f32 %v2934, 1.442695
    %v2944 = vpow.pop %v2943
    %v2945 = vmul.f32 %v2935, 1.442695
    %v2946 = vpow.pop %v2945
    %v2947 = vmul.f32 %v2936, 1.442695
    %v2948 = vpow.pop %v2947
    %v2949 = vmul.f32 %v2937, 1.442695
    %v2950 = vpow.pop %v2949
    %v2951 = vmul.f32 %v2938, 1.442695
    %v2952 = vpow.pop %v2951
    %v2953 = vmul.f32 %v2939, 1.442695
    %v2954 = vpow.pop %v2953
    %v2955 = vmul.f32 %v2940, 1.442695
    %v2956 = vpow.pop %v2955
    %2957 = vset.pattern.permute.xlu0 4
    %2958 = vperm.xlu0 %2957, %v2437
    %v2959 = vpop.permute.xlu0 %2958
    %2961 = vset.pattern.permute.xlu0 4
    %2962 = vperm.xlu0 %2961, %v2438
    %v2963 = vpop.permute.xlu0 %2962
    %2965 = vset.pattern.permute.xlu0 4
    %2966 = vperm.xlu0 %2965, %v2439
    %v2967 = vpop.permute.xlu0 %2966
    %2969 = vset.pattern.permute.xlu0 4
    %2970 = vperm.xlu0 %2969, %v2440
    %v2971 = vpop.permute.xlu0 %2970
    %2973 = vset.pattern.permute.xlu0 4
    %2974 = vperm.xlu0 %2973, %v2441
    %v2975 = vpop.permute.xlu0 %2974
    %2977 = vset.pattern.permute.xlu0 4
    %2978 = vperm.xlu0 %2977, %v2442
    %v2979 = vpop.permute.xlu0 %2978
    %2981 = vset.pattern.permute.xlu0 4
    %2982 = vperm.xlu0 %2981, %v2443
    %v2983 = vpop.permute.xlu0 %2982
    %2985 = vset.pattern.permute.xlu0 4
    %2986 = vperm.xlu0 %2985, %v2444
    %v2987 = vpop.permute.xlu0 %2986
    %v2989 = vlaneseq
    %v2990 = vshrl.u32 %v2989, 7
    %v2991 = vsub.s32 4, %v2990
    %v2992 = vrot.slane %v686, %v2991
    %v2993 = vmul.f32 %v2959, %v2992
    %v2994 = vmul.f32 %v2963, %v2992
    %v2995 = vmul.f32 %v2967, %v2992
    %v2996 = vmul.f32 %v2971, %v2992
    %v2997 = vmul.f32 %v2975, %v2992
    %v2998 = vmul.f32 %v2979, %v2992
    %v2999 = vmul.f32 %v2983, %v2992
    %v3000 = vmul.f32 %v2987, %v2992
    %v3001 = vmul.f32 %v2942, %v2993
    %v3002 = vmul.f32 %v2944, %v2994
    %v3003 = vmul.f32 %v2946, %v2995
    %v3004 = vmul.f32 %v2948, %v2996
    %v3005 = vmul.f32 %v2950, %v2997
    %v3006 = vmul.f32 %v2952, %v2998
    %v3007 = vmul.f32 %v2954, %v2999
    %v3008 = vmul.f32 %v2956, %v3000
    %3009 = vset.pattern.permute.xlu0 5
    %3010 = vperm.xlu0 %3009, %v2405
    %v3011 = vpop.permute.xlu0 %3010
    %3013 = vset.pattern.permute.xlu0 5
    %3014 = vperm.xlu0 %3013, %v2406
    %v3015 = vpop.permute.xlu0 %3014
    %3017 = vset.pattern.permute.xlu0 5
    %3018 = vperm.xlu0 %3017, %v2407
    %v3019 = vpop.permute.xlu0 %3018
    %3021 = vset.pattern.permute.xlu0 5
    %3022 = vperm.xlu0 %3021, %v2408
    %v3023 = vpop.permute.xlu0 %3022
    %3025 = vset.pattern.permute.xlu0 5
    %3026 = vperm.xlu0 %3025, %v2409
    %v3027 = vpop.permute.xlu0 %3026
    %3029 = vset.pattern.permute.xlu0 5
    %3030 = vperm.xlu0 %3029, %v2410
    %v3031 = vpop.permute.xlu0 %3030
    %3033 = vset.pattern.permute.xlu0 5
    %3034 = vperm.xlu0 %3033, %v2411
    %v3035 = vpop.permute.xlu0 %3034
    %3037 = vset.pattern.permute.xlu0 5
    %3038 = vperm.xlu0 %3037, %v2412
    %v3039 = vpop.permute.xlu0 %3038
    %v3041 = vmul.f32 %v3011, %v1080
    %v3042 = vmul.f32 %v3015, %v1080
    %v3043 = vmul.f32 %v3019, %v1080
    %v3044 = vmul.f32 %v3023, %v1080
    %v3045 = vmul.f32 %v3027, %v1080
    %v3046 = vmul.f32 %v3031, %v1080
    %v3047 = vmul.f32 %v3035, %v1080
    %v3048 = vmul.f32 %v3039, %v1080
    %v3049 = vmul.f32 %v3041, 1.442695
    %v3050 = vpow.pop %v3049
    %v3051 = vmul.f32 %v3042, 1.442695
    %v3052 = vpow.pop %v3051
    %v3053 = vmul.f32 %v3043, 1.442695
    %v3054 = vpow.pop %v3053
    %v3055 = vmul.f32 %v3044, 1.442695
    %v3056 = vpow.pop %v3055
    %v3057 = vmul.f32 %v3045, 1.442695
    %v3058 = vpow.pop %v3057
    %v3059 = vmul.f32 %v3046, 1.442695
    %v3060 = vpow.pop %v3059
    %v3061 = vmul.f32 %v3047, 1.442695
    %v3062 = vpow.pop %v3061
    %v3063 = vmul.f32 %v3048, 1.442695
    %v3064 = vpow.pop %v3063
    %3065 = vset.pattern.permute.xlu0 5
    %3066 = vperm.xlu0 %3065, %v2437
    %v3067 = vpop.permute.xlu0 %3066
    %3069 = vset.pattern.permute.xlu0 5
    %3070 = vperm.xlu0 %3069, %v2438
    %v3071 = vpop.permute.xlu0 %3070
    %3073 = vset.pattern.permute.xlu0 5
    %3074 = vperm.xlu0 %3073, %v2439
    %v3075 = vpop.permute.xlu0 %3074
    %3077 = vset.pattern.permute.xlu0 5
    %3078 = vperm.xlu0 %3077, %v2440
    %v3079 = vpop.permute.xlu0 %3078
    %3081 = vset.pattern.permute.xlu0 5
    %3082 = vperm.xlu0 %3081, %v2441
    %v3083 = vpop.permute.xlu0 %3082
    %3085 = vset.pattern.permute.xlu0 5
    %3086 = vperm.xlu0 %3085, %v2442
    %v3087 = vpop.permute.xlu0 %3086
    %3089 = vset.pattern.permute.xlu0 5
    %3090 = vperm.xlu0 %3089, %v2443
    %v3091 = vpop.permute.xlu0 %3090
    %3093 = vset.pattern.permute.xlu0 5
    %3094 = vperm.xlu0 %3093, %v2444
    %v3095 = vpop.permute.xlu0 %3094
    %v3097 = vlaneseq
    %v3098 = vshrl.u32 %v3097, 7
    %v3099 = vsub.s32 5, %v3098
    %v3100 = vrot.slane %v686, %v3099
    %v3101 = vmul.f32 %v3067, %v3100
    %v3102 = vmul.f32 %v3071, %v3100
    %v3103 = vmul.f32 %v3075, %v3100
    %v3104 = vmul.f32 %v3079, %v3100
    %v3105 = vmul.f32 %v3083, %v3100
    %v3106 = vmul.f32 %v3087, %v3100
    %v3107 = vmul.f32 %v3091, %v3100
    %v3108 = vmul.f32 %v3095, %v3100
    %v3109 = vmul.f32 %v3050, %v3101
    %v3110 = vmul.f32 %v3052, %v3102
    %v3111 = vmul.f32 %v3054, %v3103
    %v3112 = vmul.f32 %v3056, %v3104
    %v3113 = vmul.f32 %v3058, %v3105
    %v3114 = vmul.f32 %v3060, %v3106
    %v3115 = vmul.f32 %v3062, %v3107
    %v3116 = vmul.f32 %v3064, %v3108
    %3117 = vset.pattern.permute.xlu0 6
    %3118 = vperm.xlu0 %3117, %v2405
    %v3119 = vpop.permute.xlu0 %3118
    %3121 = vset.pattern.permute.xlu0 6
    %3122 = vperm.xlu0 %3121, %v2406
    %v3123 = vpop.permute.xlu0 %3122
    %3125 = vset.pattern.permute.xlu0 6
    %3126 = vperm.xlu0 %3125, %v2407
    %v3127 = vpop.permute.xlu0 %3126
    %3129 = vset.pattern.permute.xlu0 6
    %3130 = vperm.xlu0 %3129, %v2408
    %v3131 = vpop.permute.xlu0 %3130
    %3133 = vset.pattern.permute.xlu0 6
    %3134 = vperm.xlu0 %3133, %v2409
    %v3135 = vpop.permute.xlu0 %3134
    %3137 = vset.pattern.permute.xlu0 6
    %3138 = vperm.xlu0 %3137, %v2410
    %v3139 = vpop.permute.xlu0 %3138
    %3141 = vset.pattern.permute.xlu0 6
    %3142 = vperm.xlu0 %3141, %v2411
    %v3143 = vpop.permute.xlu0 %3142
    %3145 = vset.pattern.permute.xlu0 6
    %3146 = vperm.xlu0 %3145, %v2412
    %v3147 = vpop.permute.xlu0 %3146
    %v3149 = vmul.f32 %v3119, %v1080
    %v3150 = vmul.f32 %v3123, %v1080
    %v3151 = vmul.f32 %v3127, %v1080
    %v3152 = vmul.f32 %v3131, %v1080
    %v3153 = vmul.f32 %v3135, %v1080
    %v3154 = vmul.f32 %v3139, %v1080
    %v3155 = vmul.f32 %v3143, %v1080
    %v3156 = vmul.f32 %v3147, %v1080
    %v3157 = vmul.f32 %v3149, 1.442695
    %v3158 = vpow.pop %v3157
    %v3159 = vmul.f32 %v3150, 1.442695
    %v3160 = vpow.pop %v3159
    %v3161 = vmul.f32 %v3151, 1.442695
    %v3162 = vpow.pop %v3161
    %v3163 = vmul.f32 %v3152, 1.442695
    %v3164 = vpow.pop %v3163
    %v3165 = vmul.f32 %v3153, 1.442695
    %v3166 = vpow.pop %v3165
    %v3167 = vmul.f32 %v3154, 1.442695
    %v3168 = vpow.pop %v3167
    %v3169 = vmul.f32 %v3155, 1.442695
    %v3170 = vpow.pop %v3169
    %v3171 = vmul.f32 %v3156, 1.442695
    %v3172 = vpow.pop %v3171
    %3173 = vset.pattern.permute.xlu0 6
    %3174 = vperm.xlu0 %3173, %v2437
    %v3175 = vpop.permute.xlu0 %3174
    %3177 = vset.pattern.permute.xlu0 6
    %3178 = vperm.xlu0 %3177, %v2438
    %v3179 = vpop.permute.xlu0 %3178
    %3181 = vset.pattern.permute.xlu0 6
    %3182 = vperm.xlu0 %3181, %v2439
    %v3183 = vpop.permute.xlu0 %3182
    %3185 = vset.pattern.permute.xlu0 6
    %3186 = vperm.xlu0 %3185, %v2440
    %v3187 = vpop.permute.xlu0 %3186
    %3189 = vset.pattern.permute.xlu0 6
    %3190 = vperm.xlu0 %3189, %v2441
    %v3191 = vpop.permute.xlu0 %3190
    %3193 = vset.pattern.permute.xlu0 6
    %3194 = vperm.xlu0 %3193, %v2442
    %v3195 = vpop.permute.xlu0 %3194
    %3197 = vset.pattern.permute.xlu0 6
    %3198 = vperm.xlu0 %3197, %v2443
    %v3199 = vpop.permute.xlu0 %3198
    %3201 = vset.pattern.permute.xlu0 6
    %3202 = vperm.xlu0 %3201, %v2444
    %v3203 = vpop.permute.xlu0 %3202
    %v3205 = vlaneseq
    %v3206 = vshrl.u32 %v3205, 7
    %v3207 = vsub.s32 6, %v3206
    %v3208 = vrot.slane %v686, %v3207
    %v3209 = vmul.f32 %v3175, %v3208
    %v3210 = vmul.f32 %v3179, %v3208
    %v3211 = vmul.f32 %v3183, %v3208
    %v3212 = vmul.f32 %v3187, %v3208
    %v3213 = vmul.f32 %v3191, %v3208
    %v3214 = vmul.f32 %v3195, %v3208
    %v3215 = vmul.f32 %v3199, %v3208
    %v3216 = vmul.f32 %v3203, %v3208
    %v3217 = vmul.f32 %v3158, %v3209
    %v3218 = vmul.f32 %v3160, %v3210
    %v3219 = vmul.f32 %v3162, %v3211
    %v3220 = vmul.f32 %v3164, %v3212
    %v3221 = vmul.f32 %v3166, %v3213
    %v3222 = vmul.f32 %v3168, %v3214
    %v3223 = vmul.f32 %v3170, %v3215
    %v3224 = vmul.f32 %v3172, %v3216
    %3225 = vset.pattern.permute.xlu0 7
    %3226 = vperm.xlu0 %3225, %v2405
    %v3227 = vpop.permute.xlu0 %3226
    %3229 = vset.pattern.permute.xlu0 7
    %3230 = vperm.xlu0 %3229, %v2406
    %v3231 = vpop.permute.xlu0 %3230
    %3233 = vset.pattern.permute.xlu0 7
    %3234 = vperm.xlu0 %3233, %v2407
    %v3235 = vpop.permute.xlu0 %3234
    %3237 = vset.pattern.permute.xlu0 7
    %3238 = vperm.xlu0 %3237, %v2408
    %v3239 = vpop.permute.xlu0 %3238
    %3241 = vset.pattern.permute.xlu0 7
    %3242 = vperm.xlu0 %3241, %v2409
    %v3243 = vpop.permute.xlu0 %3242
    %3245 = vset.pattern.permute.xlu0 7
    %3246 = vperm.xlu0 %3245, %v2410
    %v3247 = vpop.permute.xlu0 %3246
    %3249 = vset.pattern.permute.xlu0 7
    %3250 = vperm.xlu0 %3249, %v2411
    %v3251 = vpop.permute.xlu0 %3250
    %3253 = vset.pattern.permute.xlu0 7
    %3254 = vperm.xlu0 %3253, %v2412
    %v3255 = vpop.permute.xlu0 %3254
    %v3257 = vmul.f32 %v3227, %v1080
    %v3258 = vmul.f32 %v3231, %v1080
    %v3259 = vmul.f32 %v3235, %v1080
    %v3260 = vmul.f32 %v3239, %v1080
    %v3261 = vmul.f32 %v3243, %v1080
    %v3262 = vmul.f32 %v3247, %v1080
    %v3263 = vmul.f32 %v3251, %v1080
    %v3264 = vmul.f32 %v3255, %v1080
    %v3265 = vmul.f32 %v3257, 1.442695
    %v3266 = vpow.pop %v3265
    %v3267 = vmul.f32 %v3258, 1.442695
    %v3268 = vpow.pop %v3267
    %v3269 = vmul.f32 %v3259, 1.442695
    %v3270 = vpow.pop %v3269
    %v3271 = vmul.f32 %v3260, 1.442695
    %v3272 = vpow.pop %v3271
    %v3273 = vmul.f32 %v3261, 1.442695
    %v3274 = vpow.pop %v3273
    %v3275 = vmul.f32 %v3262, 1.442695
    %v3276 = vpow.pop %v3275
    %v3277 = vmul.f32 %v3263, 1.442695
    %v3278 = vpow.pop %v3277
    %v3279 = vmul.f32 %v3264, 1.442695
    %v3280 = vpow.pop %v3279
    %3281 = vset.pattern.permute.xlu0 7
    %3282 = vperm.xlu0 %3281, %v2437
    %v3283 = vpop.permute.xlu0 %3282
    %3285 = vset.pattern.permute.xlu0 7
    %3286 = vperm.xlu0 %3285, %v2438
    %v3287 = vpop.permute.xlu0 %3286
    %3289 = vset.pattern.permute.xlu0 7
    %3290 = vperm.xlu0 %3289, %v2439
    %v3291 = vpop.permute.xlu0 %3290
    %3293 = vset.pattern.permute.xlu0 7
    %3294 = vperm.xlu0 %3293, %v2440
    %v3295 = vpop.permute.xlu0 %3294
    %3297 = vset.pattern.permute.xlu0 7
    %3298 = vperm.xlu0 %3297, %v2441
    %v3299 = vpop.permute.xlu0 %3298
    %3301 = vset.pattern.permute.xlu0 7
    %3302 = vperm.xlu0 %3301, %v2442
    %v3303 = vpop.permute.xlu0 %3302
    %3305 = vset.pattern.permute.xlu0 7
    %3306 = vperm.xlu0 %3305, %v2443
    %v3307 = vpop.permute.xlu0 %3306
    %3309 = vset.pattern.permute.xlu0 7
    %3310 = vperm.xlu0 %3309, %v2444
    %v3311 = vpop.permute.xlu0 %3310
    %v3313 = vlaneseq
    %v3314 = vshrl.u32 %v3313, 7
    %v3315 = vsub.s32 7, %v3314
    %v3316 = vrot.slane %v686, %v3315
    %v3317 = vmul.f32 %v3283, %v3316
    %v3318 = vmul.f32 %v3287, %v3316
    %v3319 = vmul.f32 %v3291, %v3316
    %v3320 = vmul.f32 %v3295, %v3316
    %v3321 = vmul.f32 %v3299, %v3316
    %v3322 = vmul.f32 %v3303, %v3316
    %v3323 = vmul.f32 %v3307, %v3316
    %v3324 = vmul.f32 %v3311, %v3316
    %v3325 = vmul.f32 %v3266, %v3317
    %v3326 = vmul.f32 %v3268, %v3318
    %v3327 = vmul.f32 %v3270, %v3319
    %v3328 = vmul.f32 %v3272, %v3320
    %v3329 = vmul.f32 %v3274, %v3321
    %v3330 = vmul.f32 %v3276, %v3322
    %v3331 = vmul.f32 %v3278, %v3323
    %v3332 = vmul.f32 %v3280, %v3324
    %v3333 = vadd.f32 %v2569, %v2677
    %v3334 = vadd.f32 %v2570, %v2678
    %v3335 = vadd.f32 %v2571, %v2679
    %v3336 = vadd.f32 %v2572, %v2680
    %v3337 = vadd.f32 %v2573, %v2681
    %v3338 = vadd.f32 %v2574, %v2682
    %v3339 = vadd.f32 %v2575, %v2683
    %v3340 = vadd.f32 %v2576, %v2684
    %v3341 = vadd.f32 %v2785, %v2893
    %v3342 = vadd.f32 %v2786, %v2894
    %v3343 = vadd.f32 %v2787, %v2895
    %v3344 = vadd.f32 %v2788, %v2896
    %v3345 = vadd.f32 %v2789, %v2897
    %v3346 = vadd.f32 %v2790, %v2898
    %v3347 = vadd.f32 %v2791, %v2899
    %v3348 = vadd.f32 %v2792, %v2900
    %v3349 = vadd.f32 %v3001, %v3109
    %v3350 = vadd.f32 %v3002, %v3110
    %v3351 = vadd.f32 %v3003, %v3111
    %v3352 = vadd.f32 %v3004, %v3112
    %v3353 = vadd.f32 %v3005, %v3113
    %v3354 = vadd.f32 %v3006, %v3114
    %v3355 = vadd.f32 %v3007, %v3115
    %v3356 = vadd.f32 %v3008, %v3116
    %v3357 = vadd.f32 %v3217, %v3325
    %v3358 = vadd.f32 %v3218, %v3326
    %v3359 = vadd.f32 %v3219, %v3327
    %v3360 = vadd.f32 %v3220, %v3328
    %v3361 = vadd.f32 %v3221, %v3329
    %v3362 = vadd.f32 %v3222, %v3330
    %v3363 = vadd.f32 %v3223, %v3331
    %v3364 = vadd.f32 %v3224, %v3332
    %v3365 = vadd.f32 %v3333, %v3341
    %v3366 = vadd.f32 %v3334, %v3342
    %v3367 = vadd.f32 %v3335, %v3343
    %v3368 = vadd.f32 %v3336, %v3344
    %v3369 = vadd.f32 %v3337, %v3345
    %v3370 = vadd.f32 %v3338, %v3346
    %v3371 = vadd.f32 %v3339, %v3347
    %v3372 = vadd.f32 %v3340, %v3348
    %v3373 = vadd.f32 %v3349, %v3357
    %v3374 = vadd.f32 %v3350, %v3358
    %v3375 = vadd.f32 %v3351, %v3359
    %v3376 = vadd.f32 %v3352, %v3360
    %v3377 = vadd.f32 %v3353, %v3361
    %v3378 = vadd.f32 %v3354, %v3362
    %v3379 = vadd.f32 %v3355, %v3363
    %v3380 = vadd.f32 %v3356, %v3364
    %v3381 = vadd.f32 %v3365, %v3373
    %v3382 = vadd.f32 %v3366, %v3374
    %v3383 = vadd.f32 %v3367, %v3375
    %v3384 = vadd.f32 %v3368, %v3376
    %v3385 = vadd.f32 %v3369, %v3377
    %v3386 = vadd.f32 %v3370, %v3378
    %v3387 = vadd.f32 %v3371, %v3379
    %v3388 = vadd.f32 %v3372, %v3380
    %v3389 = vrot.slane %v437, 7
    %v3390 = vsel %vm448, %v3389, 0
    %3392 = vmatprep.subr.mxu0 0.0
    %3393 = vmatpush1.msra.mxu0 0.0
    %3394 = vmatprep.subr.mxu0 0.0
    %3395 = vmatpush1.msra.mxu0 0.0
    %3396 = vmatprep.subr.mxu0 0.0
    %3397 = vmatpush1.msra.mxu0 0.0
    %3398 = vmatprep.subr.mxu0 0.0
    %3399 = vmatpush1.msra.mxu0 0.0
    %3400 = vmatprep.subr.mxu0 0.0
    %3401 = vmatpush1.msra.mxu0 0.0
    %3402 = vmatprep.subr.mxu0 0.0
    %3403 = vmatpush1.msra.mxu0 0.0
    %3404 = vmatprep.subr.mxu0 0.0
    %3405 = vmatpush1.msra.mxu0 0.0
    %3406 = vmatprep.subr.mxu0 0.0
    %3407 = vmatpush1.msra.mxu0 0.0
    %3408 = vmatprep.subr.mxu0 0.0
    %3409 = vmatpush1.msra.mxu0 %v1985
    %3410 = vmatprep.subr.mxu0 0.0
    %3411 = vmatpush1.msra.mxu0 %v1984
    %3412 = vmatprep.subr.mxu0 0.0
    %3413 = vmatpush1.msra.mxu0 %v1983
    %3414 = vmatprep.subr.mxu0 0.0
    %3415 = vmatpush1.msra.mxu0 %v1982
    %3416 = vmatprep.subr.mxu0 0.0
    %3417 = vmatpush1.msra.mxu0 %v1981
    %3418 = vmatprep.subr.mxu0 0.0
    %3419 = vmatpush1.msra.mxu0 %v1980
    %3420 = vmatprep.subr.mxu0 0.0
    %3421 = vmatpush1.msra.mxu0 %v1979
    %3422 = vmatprep.subr.mxu0 0.0
    %3423 = vmatpush1.msra.mxu0 %v1978
    %3424 = vmatprep.subr.mxu0 0.0
    %3425 = vmatpush2.msra.mxu0 0.0
    %3426 = vmatprep.subr.mxu0 0.0
    %3427 = vmatpush2.msra.mxu0 0.0
    %3428 = vmatprep.subr.mxu0 0.0
    %3429 = vmatpush2.msra.mxu0 0.0
    %3430 = vmatprep.subr.mxu0 0.0
    %3431 = vmatpush2.msra.mxu0 0.0
    %3432 = vmatprep.subr.mxu0 0.0
    %3433 = vmatpush2.msra.mxu0 0.0
    %3434 = vmatprep.subr.mxu0 0.0
    %3435 = vmatpush2.msra.mxu0 0.0
    %3436 = vmatprep.subr.mxu0 0.0
    %3437 = vmatpush2.msra.mxu0 0.0
    %3438 = vmatprep.subr.mxu0 0.0
    %3439 = vmatpush2.msra.mxu0 0.0
    %3440 = vmatprep.subr.mxu0 0.0
    %3441 = vmatpush2.msra.mxu0 0.0
    %3442 = vmatprep.subr.mxu0 0.0
    %3443 = vmatpush2.msra.mxu0 0.0
    %3444 = vmatprep.subr.mxu0 0.0
    %3445 = vmatpush2.msra.mxu0 0.0
    %3446 = vmatprep.subr.mxu0 0.0
    %3447 = vmatpush2.msra.mxu0 0.0
    %3448 = vmatprep.subr.mxu0 0.0
    %3449 = vmatpush2.msra.mxu0 0.0
    %3450 = vmatprep.subr.mxu0 0.0
    %3451 = vmatpush2.msra.mxu0 0.0
    %3452 = vmatprep.subr.mxu0 0.0
    %3453 = vmatpush2.msra.mxu0 0.0
    %3454 = vmatprep.subr.mxu0 0.0
    %3455 = vmatpush2.msra.mxu0 0.0
    %3456 = vmatprep.mubr.f32.mxu0 0.0
    %3457 = vmatmul.mubr.f32.gmra.mxu0 %v3390
    %v3458 = vpop.f32.mrf.mxu0
    %v3459 = vadd.f32 0.0, %v3458
    %v3460 = vpop.f32.mrf.mxu0
    %3461 = vdwg.mxu0
    %v3462 = vmul.f32 %v582, %v2064
    %v3464 = vrot.slane %v688, 7
    %v3467 = vrot.slane %v3462, 7
    %3469 = vmatprep.subr.mxu0 0.0
    %3470 = vmatpush1.xpose.msra.mxu0 0.0
    %3471 = vmatprep.subr.mxu0 0.0
    %3472 = vmatpush1.xpose.msra.mxu0 0.0
    %3473 = vmatprep.subr.mxu0 0.0
    %3474 = vmatpush1.xpose.msra.mxu0 0.0
    %3475 = vmatprep.subr.mxu0 0.0
    %3476 = vmatpush1.xpose.msra.mxu0 0.0
    %3477 = vmatprep.subr.mxu0 0.0
    %3478 = vmatpush1.xpose.msra.mxu0 0.0
    %3479 = vmatprep.subr.mxu0 0.0
    %3480 = vmatpush1.xpose.msra.mxu0 0.0
    %3481 = vmatprep.subr.mxu0 0.0
    %3482 = vmatpush1.xpose.msra.mxu0 0.0
    %3483 = vmatprep.subr.mxu0 0.0
    %3484 = vmatpush1.xpose.msra.mxu0 0.0
    %3485 = vmatprep.subr.mxu0 0.0
    %3486 = vmatpush1.xpose.msra.mxu0 %v3388
    %3487 = vmatprep.subr.mxu0 0.0
    %3488 = vmatpush1.xpose.msra.mxu0 %v3387
    %3489 = vmatprep.subr.mxu0 0.0
    %3490 = vmatpush1.xpose.msra.mxu0 %v3386
    %3491 = vmatprep.subr.mxu0 0.0
    %3492 = vmatpush1.xpose.msra.mxu0 %v3385
    %3493 = vmatprep.subr.mxu0 0.0
    %3494 = vmatpush1.xpose.msra.mxu0 %v3384
    %3495 = vmatprep.subr.mxu0 0.0
    %3496 = vmatpush1.xpose.msra.mxu0 %v3383
    %3497 = vmatprep.subr.mxu0 0.0
    %3498 = vmatpush1.xpose.msra.mxu0 %v3382
    %3499 = vmatprep.subr.mxu0 0.0
    %3500 = vmatpush1.xpose.msra.mxu0 %v3381
    %3501 = vmatprep.subr.mxu0 0.0
    %3502 = vmatpush2.xpose.msra.mxu0 0.0
    %3503 = vmatprep.subr.mxu0 0.0
    %3504 = vmatpush2.xpose.msra.mxu0 0.0
    %3505 = vmatprep.subr.mxu0 0.0
    %3506 = vmatpush2.xpose.msra.mxu0 0.0
    %3507 = vmatprep.subr.mxu0 0.0
    %3508 = vmatpush2.xpose.msra.mxu0 0.0
    %3509 = vmatprep.subr.mxu0 0.0
    %3510 = vmatpush2.xpose.msra.mxu0 0.0
    %3511 = vmatprep.subr.mxu0 0.0
    %3512 = vmatpush2.xpose.msra.mxu0 0.0
    %3513 = vmatprep.subr.mxu0 0.0
    %3514 = vmatpush2.xpose.msra.mxu0 0.0
    %3515 = vmatprep.subr.mxu0 0.0
    %3516 = vmatpush2.xpose.msra.mxu0 0.0
    %3517 = vmatprep.subr.mxu0 0.0
    %3518 = vmatpush2.xpose.msra.mxu0 0.0
    %3519 = vmatprep.subr.mxu0 0.0
    %3520 = vmatpush2.xpose.msra.mxu0 0.0
    %3521 = vmatprep.subr.mxu0 0.0
    %3522 = vmatpush2.xpose.msra.mxu0 0.0
    %3523 = vmatprep.subr.mxu0 0.0
    %3524 = vmatpush2.xpose.msra.mxu0 0.0
    %3525 = vmatprep.subr.mxu0 0.0
    %3526 = vmatpush2.xpose.msra.mxu0 0.0
    %3527 = vmatprep.subr.mxu0 0.0
    %3528 = vmatpush2.xpose.msra.mxu0 0.0
    %3529 = vmatprep.subr.mxu0 0.0
    %3530 = vmatpush2.xpose.msra.mxu0 0.0
    %3531 = vmatprep.subr.mxu0 0.0
    %3532 = vmatpush2.xpose.msra.mxu0 0.0
    %3533 = vmatprep.mubr.f32.mxu0 0.0
    %3534 = vmatmul.mubr.f32.gmra.mxu0 %v3464
    %v3535 = vpop.f32.mrf.mxu0
    %v3536 = vadd.f32 %v3467, %v3535
    %v3537 = vpop.f32.mrf.mxu0
    %3538 = vdwg.mxu0
    %v3539 = vxor.u32 %v3459, 2147483648
    %v3540 = vmul.f32 %v3539, 1.442695
    %v3541 = vpow.pop %v3540
    %v3542 = vadd.f32 %v3541, 1.0
    %v3543 = vrcp.pop %v3542
    %v3544 = vmul.f32 1.0, %v3543
    %v3545 = vmul.f32 %v3459, %v3544
    %v3546 = vmul.f32 %v3536, %v3545
    %v3548 = vsel %vm448, %v3546, 0
    %3550 = vmatprep.subr.mxu0 0.0
    %3551 = vmatpush1.msra.mxu0 0.0
    %3552 = vmatprep.subr.mxu0 0.0
    %3553 = vmatpush1.msra.mxu0 0.0
    %3554 = vmatprep.subr.mxu0 0.0
    %3555 = vmatpush1.msra.mxu0 0.0
    %3556 = vmatprep.subr.mxu0 0.0
    %3557 = vmatpush1.msra.mxu0 0.0
    %3558 = vmatprep.subr.mxu0 0.0
    %3559 = vmatpush1.msra.mxu0 0.0
    %3560 = vmatprep.subr.mxu0 0.0
    %3561 = vmatpush1.msra.mxu0 0.0
    %3562 = vmatprep.subr.mxu0 0.0
    %3563 = vmatpush1.msra.mxu0 0.0
    %3564 = vmatprep.subr.mxu0 0.0
    %3565 = vmatpush1.msra.mxu0 0.0
    %3566 = vmatprep.subr.mxu0 0.0
    %3567 = vmatpush1.msra.mxu0 %v2158
    %3568 = vmatprep.subr.mxu0 0.0
    %3569 = vmatpush1.msra.mxu0 %v2157
    %3570 = vmatprep.subr.mxu0 0.0
    %3571 = vmatpush1.msra.mxu0 %v2156
    %3572 = vmatprep.subr.mxu0 0.0
    %3573 = vmatpush1.msra.mxu0 %v2155
    %3574 = vmatprep.subr.mxu0 0.0
    %3575 = vmatpush1.msra.mxu0 %v2154
    %3576 = vmatprep.subr.mxu0 0.0
    %3577 = vmatpush1.msra.mxu0 %v2153
    %3578 = vmatprep.subr.mxu0 0.0
    %3579 = vmatpush1.msra.mxu0 %v2152
    %3580 = vmatprep.subr.mxu0 0.0
    %3581 = vmatpush1.msra.mxu0 %v2151
    %3582 = vmatprep.subr.mxu0 0.0
    %3583 = vmatpush2.msra.mxu0 0.0
    %3584 = vmatprep.subr.mxu0 0.0
    %3585 = vmatpush2.msra.mxu0 0.0
    %3586 = vmatprep.subr.mxu0 0.0
    %3587 = vmatpush2.msra.mxu0 0.0
    %3588 = vmatprep.subr.mxu0 0.0
    %3589 = vmatpush2.msra.mxu0 0.0
    %3590 = vmatprep.subr.mxu0 0.0
    %3591 = vmatpush2.msra.mxu0 0.0
    %3592 = vmatprep.subr.mxu0 0.0
    %3593 = vmatpush2.msra.mxu0 0.0
    %3594 = vmatprep.subr.mxu0 0.0
    %3595 = vmatpush2.msra.mxu0 0.0
    %3596 = vmatprep.subr.mxu0 0.0
    %3597 = vmatpush2.msra.mxu0 0.0
    %3598 = vmatprep.subr.mxu0 0.0
    %3599 = vmatpush2.msra.mxu0 0.0
    %3600 = vmatprep.subr.mxu0 0.0
    %3601 = vmatpush2.msra.mxu0 0.0
    %3602 = vmatprep.subr.mxu0 0.0
    %3603 = vmatpush2.msra.mxu0 0.0
    %3604 = vmatprep.subr.mxu0 0.0
    %3605 = vmatpush2.msra.mxu0 0.0
    %3606 = vmatprep.subr.mxu0 0.0
    %3607 = vmatpush2.msra.mxu0 0.0
    %3608 = vmatprep.subr.mxu0 0.0
    %3609 = vmatpush2.msra.mxu0 0.0
    %3610 = vmatprep.subr.mxu0 0.0
    %3611 = vmatpush2.msra.mxu0 0.0
    %3612 = vmatprep.subr.mxu0 0.0
    %3613 = vmatpush2.msra.mxu0 0.0
    %3614 = vmatprep.mubr.f32.mxu0 0.0
    %3615 = vmatmul.mubr.f32.gmra.mxu0 %v3548
    %v3616 = vpop.f32.mrf.mxu0
    %v3617 = vadd.f32 0.0, %v3616
    %v3618 = vpop.f32.mrf.mxu0
    %3619 = vdwg.mxu0
    %v3621 = vrot.slane %v3617, 1
    %v3623 = vadd.f32 %v437, %v3621
    %v3625 = vrot.slane %v3623, 7
    %v3626 = vsel %vm448, %v3625, 0
    %3628 = vmatprep.subr.mxu0 0.0
    %3629 = vmatpush1.msra.mxu0 0.0
    %3630 = vmatprep.subr.mxu0 0.0
    %3631 = vmatpush1.msra.mxu0 0.0
    %3632 = vmatprep.subr.mxu0 0.0
    %3633 = vmatpush1.msra.mxu0 0.0
    %3634 = vmatprep.subr.mxu0 0.0
    %3635 = vmatpush1.msra.mxu0 0.0
    %3636 = vmatprep.subr.mxu0 0.0
    %3637 = vmatpush1.msra.mxu0 0.0
    %3638 = vmatprep.subr.mxu0 0.0
    %3639 = vmatpush1.msra.mxu0 0.0
    %3640 = vmatprep.subr.mxu0 0.0
    %3641 = vmatpush1.msra.mxu0 0.0
    %3642 = vmatprep.subr.mxu0 0.0
    %3643 = vmatpush1.msra.mxu0 0.0
    %3644 = vmatprep.subr.mxu0 0.0
    %3645 = vmatpush1.msra.mxu0 %v2243
    %3646 = vmatprep.subr.mxu0 0.0
    %3647 = vmatpush1.msra.mxu0 %v2242
    %3648 = vmatprep.subr.mxu0 0.0
    %3649 = vmatpush1.msra.mxu0 %v2241
    %3650 = vmatprep.subr.mxu0 0.0
    %3651 = vmatpush1.msra.mxu0 %v2240
    %3652 = vmatprep.subr.mxu0 0.0
    %3653 = vmatpush1.msra.mxu0 %v2239
    %3654 = vmatprep.subr.mxu0 0.0
    %3655 = vmatpush1.msra.mxu0 %v2238
    %3656 = vmatprep.subr.mxu0 0.0
    %3657 = vmatpush1.msra.mxu0 %v2237
    %3658 = vmatprep.subr.mxu0 0.0
    %3659 = vmatpush1.msra.mxu0 %v2236
    %3660 = vmatprep.subr.mxu0 0.0
    %3661 = vmatpush2.msra.mxu0 0.0
    %3662 = vmatprep.subr.mxu0 0.0
    %3663 = vmatpush2.msra.mxu0 0.0
    %3664 = vmatprep.subr.mxu0 0.0
    %3665 = vmatpush2.msra.mxu0 0.0
    %3666 = vmatprep.subr.mxu0 0.0
    %3667 = vmatpush2.msra.mxu0 0.0
    %3668 = vmatprep.subr.mxu0 0.0
    %3669 = vmatpush2.msra.mxu0 0.0
    %3670 = vmatprep.subr.mxu0 0.0
    %3671 = vmatpush2.msra.mxu0 0.0
    %3672 = vmatprep.subr.mxu0 0.0
    %3673 = vmatpush2.msra.mxu0 0.0
    %3674 = vmatprep.subr.mxu0 0.0
    %3675 = vmatpush2.msra.mxu0 0.0
    %3676 = vmatprep.subr.mxu0 0.0
    %3677 = vmatpush2.msra.mxu0 0.0
    %3678 = vmatprep.subr.mxu0 0.0
    %3679 = vmatpush2.msra.mxu0 0.0
    %3680 = vmatprep.subr.mxu0 0.0
    %3681 = vmatpush2.msra.mxu0 0.0
    %3682 = vmatprep.subr.mxu0 0.0
    %3683 = vmatpush2.msra.mxu0 0.0
    %3684 = vmatprep.subr.mxu0 0.0
    %3685 = vmatpush2.msra.mxu0 0.0
    %3686 = vmatprep.subr.mxu0 0.0
    %3687 = vmatpush2.msra.mxu0 0.0
    %3688 = vmatprep.subr.mxu0 0.0
    %3689 = vmatpush2.msra.mxu0 0.0
    %3690 = vmatprep.subr.mxu0 0.0
    %3691 = vmatpush2.msra.mxu0 0.0
    %3692 = vmatprep.mubr.f32.mxu0 0.0
    %3693 = vmatmul.mubr.f32.gmra.mxu0 %v3626
    %v3694 = vpop.f32.mrf.mxu0
    %v3695 = vadd.f32 %v2244, %v3694
    %v3696 = vpop.f32.mrf.mxu0
    %3697 = vdwg.mxu0
    %v3698 = vld [vmem:[%s59] sm:$0x1]
    %v3699 = vmul.f32 %v2316, %v3698
    %vm3700 = vcmask 40960
    %v3701 = vsel %vm3700, %v3699, 0.0
    %3702 = vadd.xlane.f32.xlu0 %v3701
    %v3703 = vpop.xlane.xlu0 %3702
    %v3704 = vadd.f32 %v345, %v3703
    %v3705 = vmul.f32 %v3695, %v3698
    %v3706 = vsel %vm3700, %v3705, 0.0
    %3707 = vadd.xlane.f32.xlu0 %v3706
    %v3708 = vpop.xlane.xlu0 %3707
    %v3709 = vadd.f32 %v345, %v3708
    %v3710 = vld [vmem:[%s31] sm:$0x3f]
    %v3711 = vld [vmem:[#allocation19] sm:$0x1]
    %v3713 = vlaneseq
    %v3714 = vshrl.u32 %v3713, 7
    %v3715 = vsub.s32 0, %v3714
    %v3716 = vrot.slane %v3711, %v3715
    %v3719 = vsel %vm361, %v3710, 0
    %3721 = vmatprep.subr.mxu0 0.0
    %3722 = vmatpush1.msra.mxu0 0.0
    %3723 = vmatprep.subr.mxu0 0.0
    %3724 = vmatpush1.msra.mxu0 0.0
    %3725 = vmatprep.subr.mxu0 0.0
    %3726 = vmatpush1.msra.mxu0 0.0
    %3727 = vmatprep.subr.mxu0 0.0
    %3728 = vmatpush1.msra.mxu0 0.0
    %3729 = vmatprep.subr.mxu0 0.0
    %3730 = vmatpush1.msra.mxu0 0.0
    %3731 = vmatprep.subr.mxu0 0.0
    %3732 = vmatpush1.msra.mxu0 0.0
    %3733 = vmatprep.subr.mxu0 0.0
    %3734 = vmatpush1.msra.mxu0 0.0
    %3735 = vmatprep.subr.mxu0 0.0
    %3736 = vmatpush1.msra.mxu0 0.0
    %3737 = vmatprep.subr.mxu0 0.0
    %3738 = vmatpush1.msra.mxu0 0.0
    %3739 = vmatprep.subr.mxu0 0.0
    %3740 = vmatpush1.msra.mxu0 0.0
    %3741 = vmatprep.subr.mxu0 0.0
    %3742 = vmatpush1.msra.mxu0 0.0
    %3743 = vmatprep.subr.mxu0 0.0
    %3744 = vmatpush1.msra.mxu0 0.0
    %3745 = vmatprep.subr.mxu0 0.0
    %3746 = vmatpush1.msra.mxu0 0.0
    %3747 = vmatprep.subr.mxu0 0.0
    %3748 = vmatpush1.msra.mxu0 0.0
    %3749 = vmatprep.subr.mxu0 0.0
    %3750 = vmatpush1.msra.mxu0 0.0
    %3751 = vmatprep.subr.mxu0 0.0
    %3752 = vmatpush1.msra.mxu0 %v3719
    %3753 = vmatprep.subr.mxu0 0.0
    %3754 = vmatpush2.msra.mxu0 0.0
    %3755 = vmatprep.subr.mxu0 0.0
    %3756 = vmatpush2.msra.mxu0 0.0
    %3757 = vmatprep.subr.mxu0 0.0
    %3758 = vmatpush2.msra.mxu0 0.0
    %3759 = vmatprep.subr.mxu0 0.0
    %3760 = vmatpush2.msra.mxu0 0.0
    %3761 = vmatprep.subr.mxu0 0.0
    %3762 = vmatpush2.msra.mxu0 0.0
    %3763 = vmatprep.subr.mxu0 0.0
    %3764 = vmatpush2.msra.mxu0 0.0
    %3765 = vmatprep.subr.mxu0 0.0
    %3766 = vmatpush2.msra.mxu0 0.0
    %3767 = vmatprep.subr.mxu0 0.0
    %3768 = vmatpush2.msra.mxu0 0.0
    %3769 = vmatprep.subr.mxu0 0.0
    %3770 = vmatpush2.msra.mxu0 0.0
    %3771 = vmatprep.subr.mxu0 0.0
    %3772 = vmatpush2.msra.mxu0 0.0
    %3773 = vmatprep.subr.mxu0 0.0
    %3774 = vmatpush2.msra.mxu0 0.0
    %3775 = vmatprep.subr.mxu0 0.0
    %3776 = vmatpush2.msra.mxu0 0.0
    %3777 = vmatprep.subr.mxu0 0.0
    %3778 = vmatpush2.msra.mxu0 0.0
    %3779 = vmatprep.subr.mxu0 0.0
    %3780 = vmatpush2.msra.mxu0 0.0
    %3781 = vmatprep.subr.mxu0 0.0
    %3782 = vmatpush2.msra.mxu0 0.0
    %3783 = vmatprep.subr.mxu0 0.0
    %3784 = vmatpush2.msra.mxu0 0.0
    %3785 = vmatprep.mubr.f32.mxu0 0.0
    %3786 = vmatmul.mubr.f32.gmra.mxu0 %v356
    %v3787 = vpop.f32.mrf.mxu0
    %v3788 = vadd.f32 %v3716, %v3787
    %v3789 = vpop.f32.mrf.mxu0
    %3790 = vmatprep.mubr.f32.mxu0 0.0
    %3791 = vmatmul.mubr.f32.gmra.mxu0 %v359
    %v3792 = vpop.f32.mrf.mxu0
    %v3793 = vadd.f32 %v3716, %v3792
    %v3794 = vpop.f32.mrf.mxu0
    %3795 = vdwg.mxu0
    %v3796 = vld [vmem:[%s35] sm:$0xff]
    %v3797 = vld [vmem:[%s35 + $0x8] sm:$0xff]
    %v3798 = vld [vmem:[%s35 + $0x10] sm:$0xff]
    %v3799 = vld [vmem:[%s35 + $0x18] sm:$0xff]
    %v3800 = vld [vmem:[%s35 + $0x20] sm:$0xff]
    %v3801 = vld [vmem:[%s35 + $0x28] sm:$0xff]
    %v3802 = vld [vmem:[%s35 + $0x30] sm:$0xff]
    %v3803 = vld [vmem:[%s35 + $0x38] sm:$0xff]
    %v3804 = vld [vmem:[%s35 + $0x40] sm:$0xff]
    %v3805 = vld [vmem:[%s35 + $0x48] sm:$0xff]
    %v3806 = vld [vmem:[%s35 + $0x50] sm:$0xff]
    %v3807 = vld [vmem:[%s35 + $0x58] sm:$0xff]
    %v3808 = vld [vmem:[%s35 + $0x60] sm:$0xff]
    %v3809 = vld [vmem:[%s35 + $0x68] sm:$0xff]
    %v3810 = vld [vmem:[%s35 + $0x70] sm:$0xff]
    %v3811 = vld [vmem:[%s35 + $0x78] sm:$0xff]
    %3812 = vmatprep.subr.mxu0 0.0
    %3813 = vmatpush1.msra.mxu0 %v3811
    %3814 = vmatprep.subr.mxu0 0.0
    %3815 = vmatpush1.msra.mxu0 %v3810
    %3816 = vmatprep.subr.mxu0 0.0
    %3817 = vmatpush1.msra.mxu0 %v3809
    %3818 = vmatprep.subr.mxu0 0.0
    %3819 = vmatpush1.msra.mxu0 %v3808
    %3820 = vmatprep.subr.mxu0 0.0
    %3821 = vmatpush1.msra.mxu0 %v3807
    %3822 = vmatprep.subr.mxu0 0.0
    %3823 = vmatpush1.msra.mxu0 %v3806
    %3824 = vmatprep.subr.mxu0 0.0
    %3825 = vmatpush1.msra.mxu0 %v3805
    %3826 = vmatprep.subr.mxu0 0.0
    %3827 = vmatpush1.msra.mxu0 %v3804
    %3828 = vmatprep.subr.mxu0 0.0
    %3829 = vmatpush1.msra.mxu0 %v3803
    %3830 = vmatprep.subr.mxu0 0.0
    %3831 = vmatpush1.msra.mxu0 %v3802
    %3832 = vmatprep.subr.mxu0 0.0
    %3833 = vmatpush1.msra.mxu0 %v3801
    %3834 = vmatprep.subr.mxu0 0.0
    %3835 = vmatpush1.msra.mxu0 %v3800
    %3836 = vmatprep.subr.mxu0 0.0
    %3837 = vmatpush1.msra.mxu0 %v3799
    %3838 = vmatprep.subr.mxu0 0.0
    %3839 = vmatpush1.msra.mxu0 %v3798
    %3840 = vmatprep.subr.mxu0 0.0
    %3841 = vmatpush1.msra.mxu0 %v3797
    %3842 = vmatprep.subr.mxu0 0.0
    %3843 = vmatpush1.msra.mxu0 %v3796
    %3844 = vmatprep.subr.mxu0 0.0
    %3845 = vmatpush2.msra.mxu0 0.0
    %3846 = vmatprep.subr.mxu0 0.0
    %3847 = vmatpush2.msra.mxu0 0.0
    %3848 = vmatprep.subr.mxu0 0.0
    %3849 = vmatpush2.msra.mxu0 0.0
    %3850 = vmatprep.subr.mxu0 0.0
    %3851 = vmatpush2.msra.mxu0 0.0
    %3852 = vmatprep.subr.mxu0 0.0
    %3853 = vmatpush2.msra.mxu0 0.0
    %3854 = vmatprep.subr.mxu0 0.0
    %3855 = vmatpush2.msra.mxu0 0.0
    %3856 = vmatprep.subr.mxu0 0.0
    %3857 = vmatpush2.msra.mxu0 0.0
    %3858 = vmatprep.subr.mxu0 0.0
    %3859 = vmatpush2.msra.mxu0 0.0
    %3860 = vmatprep.subr.mxu0 0.0
    %3861 = vmatpush2.msra.mxu0 0.0
    %3862 = vmatprep.subr.mxu0 0.0
    %3863 = vmatpush2.msra.mxu0 0.0
    %3864 = vmatprep.subr.mxu0 0.0
    %3865 = vmatpush2.msra.mxu0 0.0
    %3866 = vmatprep.subr.mxu0 0.0
    %3867 = vmatpush2.msra.mxu0 0.0
    %3868 = vmatprep.subr.mxu0 0.0
    %3869 = vmatpush2.msra.mxu0 0.0
    %3870 = vmatprep.subr.mxu0 0.0
    %3871 = vmatpush2.msra.mxu0 0.0
    %3872 = vmatprep.subr.mxu0 0.0
    %3873 = vmatpush2.msra.mxu0 0.0
    %3874 = vmatprep.subr.mxu0 0.0
    %3875 = vmatpush2.msra.mxu0 0.0
    %3876 = vmatprep.mubr.f32.mxu0 0.0
    %3877 = vmatmul.mubr.f32.gmra.mxu0 %v3788
    %v3878 = vpop.f32.mrf.mxu0
    %v3879 = vadd.f32 0.0, %v3878
    %v3880 = vpop.f32.mrf.mxu0
    %3881 = vmatprep.mubr.f32.mxu0 0.0
    %3882 = vmatmul.mubr.f32.gmra.mxu0 %v3793
    %v3883 = vpop.f32.mrf.mxu0
    %v3884 = vadd.f32 0.0, %v3883
    %v3885 = vpop.f32.mrf.mxu0
    %3886 = vdwg.mxu0
    %v3887 = vrot.slane %v3879, 7
    %v3888 = vrot.slane %v3884, 7
    %v3889 = vsel %vm532, %v3887, %v3888
    %v3890 = vsel %vm532, %v3888, %v3887
    %v3891 = vsel %vm540, 0.0, %v3890
    %v3892 = vsel %vm541, 0.0, %v3889
    %v3893 = vld [vmem:[#allocation20] sm:$0x1]
    %v3894 = vlaneseq
    %v3895 = vshrl.u32 %v3894, 7
    %v3896 = vsub.s32 0, %v3895
    %v3897 = vrot.slane %v3893, %v3896
    %v3898 = vmul.f32 %v3891, %v3897
    %v3899 = vmul.f32 %v3892, %v3897
    %v3900 = vld [vmem:[#allocation20 + $0x1] sm:$0x1]
    %v3901 = vlaneseq
    %v3902 = vshrl.u32 %v3901, 7
    %v3903 = vsub.s32 0, %v3902
    %v3904 = vrot.slane %v3900, %v3903
    %v3905 = vmul.f32 %v3879, %v3904
    %v3906 = vmul.f32 %v3884, %v3904
    %v3907 = vadd.f32 %v3898, %v3905
    %v3908 = vadd.f32 %v3899, %v3906
    %v3909 = vld [vmem:[#allocation22] sm:$0x1]
    %v3911 = vlaneseq
    %v3912 = vshrl.u32 %v3911, 7
    %v3913 = vsub.s32 0, %v3912
    %v3914 = vrot.slane %v3909, %v3913
    %v3916 = vadd.f32 %v3907, %v3914
    %v3917 = vadd.f32 %v3908, %v3914
    %v3918 = vxor.u32 %v3916, 2147483648
    %v3919 = vxor.u32 %v3917, 2147483648
    %v3920 = vmul.f32 %v3918, 1.442695
    %v3921 = vpow.pop %v3920
    %v3922 = vmul.f32 %v3919, 1.442695
    %v3923 = vpow.pop %v3922
    %v3924 = vadd.f32 %v3921, 1.0
    %v3925 = vadd.f32 %v3923, 1.0
    %v3926 = vrcp.pop %v3924
    %v3927 = vmul.f32 1.0, %v3926
    %v3928 = vrcp.pop %v3925
    %v3929 = vmul.f32 1.0, %v3928
    %v3930 = vmul.f32 %v3916, %v3927
    %v3931 = vmul.f32 %v3917, %v3929
    %v3932 = vld [vmem:[%s43] sm:$0xff]
    %v3933 = vld [vmem:[%s43 + $0x8] sm:$0xff]
    %v3934 = vld [vmem:[%s43 + $0x10] sm:$0xff]
    %v3935 = vld [vmem:[%s43 + $0x18] sm:$0xff]
    %v3936 = vld [vmem:[%s43 + $0x20] sm:$0xff]
    %v3937 = vld [vmem:[%s43 + $0x28] sm:$0xff]
    %v3938 = vld [vmem:[%s43 + $0x30] sm:$0xff]
    %v3939 = vld [vmem:[%s43 + $0x38] sm:$0xff]
    %v3940 = vld [vmem:[%s43 + $0x40] sm:$0xff]
    %v3941 = vld [vmem:[%s43 + $0x48] sm:$0xff]
    %v3942 = vld [vmem:[%s43 + $0x50] sm:$0xff]
    %v3943 = vld [vmem:[%s43 + $0x58] sm:$0xff]
    %v3944 = vld [vmem:[%s43 + $0x60] sm:$0xff]
    %v3945 = vld [vmem:[%s43 + $0x68] sm:$0xff]
    %v3946 = vld [vmem:[%s43 + $0x70] sm:$0xff]
    %v3947 = vld [vmem:[%s43 + $0x78] sm:$0xff]
    %v3948 = vld [vmem:[%s43 + $0x80] sm:$0xff]
    %v3949 = vld [vmem:[%s43 + $0x88] sm:$0xff]
    %v3950 = vld [vmem:[%s43 + $0x90] sm:$0xff]
    %v3951 = vld [vmem:[%s43 + $0x98] sm:$0xff]
    %v3952 = vld [vmem:[%s43 + $0xa0] sm:$0xff]
    %v3953 = vld [vmem:[%s43 + $0xa8] sm:$0xff]
    %v3954 = vld [vmem:[%s43 + $0xb0] sm:$0xff]
    %v3955 = vld [vmem:[%s43 + $0xb8] sm:$0xff]
    %v3956 = vld [vmem:[%s43 + $0xc0] sm:$0xff]
    %v3957 = vld [vmem:[%s43 + $0xc8] sm:$0xff]
    %v3958 = vld [vmem:[%s43 + $0xd0] sm:$0xff]
    %v3959 = vld [vmem:[%s43 + $0xd8] sm:$0xff]
    %v3960 = vld [vmem:[%s43 + $0xe0] sm:$0xff]
    %v3961 = vld [vmem:[%s43 + $0xe8] sm:$0xff]
    %v3962 = vld [vmem:[%s43 + $0xf0] sm:$0xff]
    %v3963 = vld [vmem:[%s43 + $0xf8] sm:$0xff]
    %v3964 = vld [vmem:[%s43 + $0x100] sm:$0xff]
    %v3965 = vld [vmem:[%s43 + $0x108] sm:$0xff]
    %v3966 = vld [vmem:[%s43 + $0x110] sm:$0xff]
    %v3967 = vld [vmem:[%s43 + $0x118] sm:$0xff]
    %v3968 = vld [vmem:[%s43 + $0x120] sm:$0xff]
    %v3969 = vld [vmem:[%s43 + $0x128] sm:$0xff]
    %v3970 = vld [vmem:[%s43 + $0x130] sm:$0xff]
    %v3971 = vld [vmem:[%s43 + $0x138] sm:$0xff]
    %v3972 = vld [vmem:[%s43 + $0x140] sm:$0xff]
    %v3973 = vld [vmem:[%s43 + $0x148] sm:$0xff]
    %v3974 = vld [vmem:[%s43 + $0x150] sm:$0xff]
    %v3975 = vld [vmem:[%s43 + $0x158] sm:$0xff]
    %v3976 = vld [vmem:[%s43 + $0x160] sm:$0xff]
    %v3977 = vld [vmem:[%s43 + $0x168] sm:$0xff]
    %v3978 = vld [vmem:[%s43 + $0x170] sm:$0xff]
    %v3979 = vld [vmem:[%s43 + $0x178] sm:$0xff]
    %3980 = vmatprep.subr.mxu0 %v3978
    %3981 = vmatpush1.msra.mxu0 %v3977
    %3982 = vmatprep.subr.mxu0 %v3975
    %3983 = vmatpush1.msra.mxu0 %v3974
    %3984 = vmatprep.subr.mxu0 %v3972
    %3985 = vmatpush1.msra.mxu0 %v3971
    %3986 = vmatprep.subr.mxu0 %v3969
    %3987 = vmatpush1.msra.mxu0 %v3968
    %3988 = vmatprep.subr.mxu0 %v3966
    %3989 = vmatpush1.msra.mxu0 %v3965
    %3990 = vmatprep.subr.mxu0 %v3963
    %3991 = vmatpush1.msra.mxu0 %v3962
    %3992 = vmatprep.subr.mxu0 %v3960
    %3993 = vmatpush1.msra.mxu0 %v3959
    %3994 = vmatprep.subr.mxu0 %v3957
    %3995 = vmatpush1.msra.mxu0 %v3956
    %3996 = vmatprep.subr.mxu0 %v3954
    %3997 = vmatpush1.msra.mxu0 %v3953
    %3998 = vmatprep.subr.mxu0 %v3951
    %3999 = vmatpush1.msra.mxu0 %v3950
    %4000 = vmatprep.subr.mxu0 %v3948
    %4001 = vmatpush1.msra.mxu0 %v3947
    %4002 = vmatprep.subr.mxu0 %v3945
    %4003 = vmatpush1.msra.mxu0 %v3944
    %4004 = vmatprep.subr.mxu0 %v3942
    %4005 = vmatpush1.msra.mxu0 %v3941
    %4006 = vmatprep.subr.mxu0 %v3939
    %4007 = vmatpush1.msra.mxu0 %v3938
    %4008 = vmatprep.subr.mxu0 %v3936
    %4009 = vmatpush1.msra.mxu0 %v3935
    %4010 = vmatprep.subr.mxu0 %v3933
    %4011 = vmatpush1.msra.mxu0 %v3932
    %4012 = vmatprep.subr.mxu0 0.0
    %4013 = vmatpush2.msra.mxu0 0.0
    %4014 = vmatprep.subr.mxu0 0.0
    %4015 = vmatpush2.msra.mxu0 0.0
    %4016 = vmatprep.subr.mxu0 0.0
    %4017 = vmatpush2.msra.mxu0 0.0
    %4018 = vmatprep.subr.mxu0 0.0
    %4019 = vmatpush2.msra.mxu0 0.0
    %4020 = vmatprep.subr.mxu0 0.0
    %4021 = vmatpush2.msra.mxu0 0.0
    %4022 = vmatprep.subr.mxu0 0.0
    %4023 = vmatpush2.msra.mxu0 0.0
    %4024 = vmatprep.subr.mxu0 0.0
    %4025 = vmatpush2.msra.mxu0 0.0
    %4026 = vmatprep.subr.mxu0 0.0
    %4027 = vmatpush2.msra.mxu0 0.0
    %4028 = vmatprep.subr.mxu0 0.0
    %4029 = vmatpush2.msra.mxu0 0.0
    %4030 = vmatprep.subr.mxu0 0.0
    %4031 = vmatpush2.msra.mxu0 0.0
    %4032 = vmatprep.subr.mxu0 0.0
    %4033 = vmatpush2.msra.mxu0 0.0
    %4034 = vmatprep.subr.mxu0 0.0
    %4035 = vmatpush2.msra.mxu0 0.0
    %4036 = vmatprep.subr.mxu0 0.0
    %4037 = vmatpush2.msra.mxu0 0.0
    %4038 = vmatprep.subr.mxu0 0.0
    %4039 = vmatpush2.msra.mxu0 0.0
    %4040 = vmatprep.subr.mxu0 0.0
    %4041 = vmatpush2.msra.mxu0 0.0
    %4042 = vmatprep.subr.mxu0 0.0
    %4043 = vmatpush2.msra.mxu0 0.0
    %4044 = vmatprep.mubr.f32.mxu0 0.0
    %4045 = vmatmul.mubr.f32.gmra.mxu0 %v3930
    %v4046 = vpop.f32.mrf.mxu0
    %v4047 = vadd.f32 0.0, %v4046
    %v4048 = vpop.f32.mrf.mxu0
    %v4049 = vadd.f32 0.0, %v4048
    %4050 = vmatprep.mubr.f32.mxu0 0.0
    %4051 = vmatmul.mubr.f32.gmra.mxu0 %v3931
    %v4052 = vpop.f32.mrf.mxu0
    %v4053 = vadd.f32 0.0, %v4052
    %v4054 = vpop.f32.mrf.mxu0
    %v4055 = vadd.f32 0.0, %v4054
    %4056 = vdwg.mxu0
    %4057 = vmatprep.subr.mxu0 0.0
    %4058 = vmatpush1.msra.mxu0 %v3979
    %4059 = vmatprep.subr.mxu0 0.0
    %4060 = vmatpush1.msra.mxu0 %v3976
    %4061 = vmatprep.subr.mxu0 0.0
    %4062 = vmatpush1.msra.mxu0 %v3973
    %4063 = vmatprep.subr.mxu0 0.0
    %4064 = vmatpush1.msra.mxu0 %v3970
    %4065 = vmatprep.subr.mxu0 0.0
    %4066 = vmatpush1.msra.mxu0 %v3967
    %4067 = vmatprep.subr.mxu0 0.0
    %4068 = vmatpush1.msra.mxu0 %v3964
    %4069 = vmatprep.subr.mxu0 0.0
    %4070 = vmatpush1.msra.mxu0 %v3961
    %4071 = vmatprep.subr.mxu0 0.0
    %4072 = vmatpush1.msra.mxu0 %v3958
    %4073 = vmatprep.subr.mxu0 0.0
    %4074 = vmatpush1.msra.mxu0 %v3955
    %4075 = vmatprep.subr.mxu0 0.0
    %4076 = vmatpush1.msra.mxu0 %v3952
    %4077 = vmatprep.subr.mxu0 0.0
    %4078 = vmatpush1.msra.mxu0 %v3949
    %4079 = vmatprep.subr.mxu0 0.0
    %4080 = vmatpush1.msra.mxu0 %v3946
    %4081 = vmatprep.subr.mxu0 0.0
    %4082 = vmatpush1.msra.mxu0 %v3943
    %4083 = vmatprep.subr.mxu0 0.0
    %4084 = vmatpush1.msra.mxu0 %v3940
    %4085 = vmatprep.subr.mxu0 0.0
    %4086 = vmatpush1.msra.mxu0 %v3937
    %4087 = vmatprep.subr.mxu0 0.0
    %4088 = vmatpush1.msra.mxu0 %v3934
    %4089 = vmatprep.subr.mxu0 0.0
    %4090 = vmatpush2.msra.mxu0 0.0
    %4091 = vmatprep.subr.mxu0 0.0
    %4092 = vmatpush2.msra.mxu0 0.0
    %4093 = vmatprep.subr.mxu0 0.0
    %4094 = vmatpush2.msra.mxu0 0.0
    %4095 = vmatprep.subr.mxu0 0.0
    %4096 = vmatpush2.msra.mxu0 0.0
    %4097 = vmatprep.subr.mxu0 0.0
    %4098 = vmatpush2.msra.mxu0 0.0
    %4099 = vmatprep.subr.mxu0 0.0
    %4100 = vmatpush2.msra.mxu0 0.0
    %4101 = vmatprep.subr.mxu0 0.0
    %4102 = vmatpush2.msra.mxu0 0.0
    %4103 = vmatprep.subr.mxu0 0.0
    %4104 = vmatpush2.msra.mxu0 0.0
    %4105 = vmatprep.subr.mxu0 0.0
    %4106 = vmatpush2.msra.mxu0 0.0
    %4107 = vmatprep.subr.mxu0 0.0
    %4108 = vmatpush2.msra.mxu0 0.0
    %4109 = vmatprep.subr.mxu0 0.0
    %4110 = vmatpush2.msra.mxu0 0.0
    %4111 = vmatprep.subr.mxu0 0.0
    %4112 = vmatpush2.msra.mxu0 0.0
    %4113 = vmatprep.subr.mxu0 0.0
    %4114 = vmatpush2.msra.mxu0 0.0
    %4115 = vmatprep.subr.mxu0 0.0
    %4116 = vmatpush2.msra.mxu0 0.0
    %4117 = vmatprep.subr.mxu0 0.0
    %4118 = vmatpush2.msra.mxu0 0.0
    %4119 = vmatprep.subr.mxu0 0.0
    %4120 = vmatpush2.msra.mxu0 0.0
    %4121 = vmatprep.mubr.f32.mxu0 0.0
    %4122 = vmatmul.mubr.f32.gmra.mxu0 %v3930
    %v4123 = vpop.f32.mrf.mxu0
    %v4124 = vadd.f32 0.0, %v4123
    %v4125 = vpop.f32.mrf.mxu0
    %4126 = vmatprep.mubr.f32.mxu0 0.0
    %4127 = vmatmul.mubr.f32.gmra.mxu0 %v3931
    %v4128 = vpop.f32.mrf.mxu0
    %v4129 = vadd.f32 0.0, %v4128
    %v4130 = vpop.f32.mrf.mxu0
    %4131 = vdwg.mxu0
    %v4132 = vld [vmem:[#allocation23] sm:$0xff]
    %v4133 = vld [vmem:[#allocation25] sm:$0x1]
    %v4135 = vlaneseq
    %v4136 = vshrl.u32 %v4135, 7
    %v4137 = vsub.s32 0, %v4136
    %v4138 = vrot.slane %v4133, %v4137
    %v4141 = vsel %vm898, %v4124, 0
    %v4144 = vsel %vm898, %v4129, 0
    %4146 = vmatprep.subr.mxu0 0.0
    %4147 = vmatpush1.msra.mxu0 0.0
    %4148 = vmatprep.subr.mxu0 0.0
    %4149 = vmatpush1.msra.mxu0 0.0
    %4150 = vmatprep.subr.mxu0 0.0
    %4151 = vmatpush1.msra.mxu0 0.0
    %4152 = vmatprep.subr.mxu0 0.0
    %4153 = vmatpush1.msra.mxu0 0.0
    %4154 = vmatprep.subr.mxu0 0.0
    %4155 = vmatpush1.msra.mxu0 0.0
    %4156 = vmatprep.subr.mxu0 0.0
    %4157 = vmatpush1.msra.mxu0 0.0
    %4158 = vmatprep.subr.mxu0 0.0
    %4159 = vmatpush1.msra.mxu0 0.0
    %4160 = vmatprep.subr.mxu0 0.0
    %4161 = vmatpush1.msra.mxu0 0.0
    %4162 = vmatprep.subr.mxu0 0.0
    %4163 = vmatpush1.msra.mxu0 0.0
    %4164 = vmatprep.subr.mxu0 0.0
    %4165 = vmatpush1.msra.mxu0 0.0
    %4166 = vmatprep.subr.mxu0 0.0
    %4167 = vmatpush1.msra.mxu0 0.0
    %4168 = vmatprep.subr.mxu0 0.0
    %4169 = vmatpush1.msra.mxu0 0.0
    %4170 = vmatprep.subr.mxu0 0.0
    %4171 = vmatpush1.msra.mxu0 0.0
    %4172 = vmatprep.subr.mxu0 0.0
    %4173 = vmatpush1.msra.mxu0 0.0
    %4174 = vmatprep.subr.mxu0 0.0
    %4175 = vmatpush1.msra.mxu0 0.0
    %4176 = vmatprep.subr.mxu0 0.0
    %4177 = vmatpush1.msra.mxu0 %v4132
    %4178 = vmatprep.subr.mxu0 0.0
    %4179 = vmatpush2.msra.mxu0 0.0
    %4180 = vmatprep.subr.mxu0 0.0
    %4181 = vmatpush2.msra.mxu0 0.0
    %4182 = vmatprep.subr.mxu0 0.0
    %4183 = vmatpush2.msra.mxu0 0.0
    %4184 = vmatprep.subr.mxu0 0.0
    %4185 = vmatpush2.msra.mxu0 0.0
    %4186 = vmatprep.subr.mxu0 0.0
    %4187 = vmatpush2.msra.mxu0 0.0
    %4188 = vmatprep.subr.mxu0 0.0
    %4189 = vmatpush2.msra.mxu0 0.0
    %4190 = vmatprep.subr.mxu0 0.0
    %4191 = vmatpush2.msra.mxu0 0.0
    %4192 = vmatprep.subr.mxu0 0.0
    %4193 = vmatpush2.msra.mxu0 0.0
    %4194 = vmatprep.subr.mxu0 0.0
    %4195 = vmatpush2.msra.mxu0 0.0
    %4196 = vmatprep.subr.mxu0 0.0
    %4197 = vmatpush2.msra.mxu0 0.0
    %4198 = vmatprep.subr.mxu0 0.0
    %4199 = vmatpush2.msra.mxu0 0.0
    %4200 = vmatprep.subr.mxu0 0.0
    %4201 = vmatpush2.msra.mxu0 0.0
    %4202 = vmatprep.subr.mxu0 0.0
    %4203 = vmatpush2.msra.mxu0 0.0
    %4204 = vmatprep.subr.mxu0 0.0
    %4205 = vmatpush2.msra.mxu0 0.0
    %4206 = vmatprep.subr.mxu0 0.0
    %4207 = vmatpush2.msra.mxu0 0.0
    %4208 = vmatprep.subr.mxu0 0.0
    %4209 = vmatpush2.msra.mxu0 0.0
    %4210 = vmatprep.mubr.f32.mxu0 0.0
    %4211 = vmatmul.mubr.f32.gmra.mxu0 %v4141
    %v4212 = vpop.f32.mrf.mxu0
    %v4213 = vadd.f32 %v4138, %v4212
    %v4214 = vpop.f32.mrf.mxu0
    %4215 = vmatprep.mubr.f32.mxu0 0.0
    %4216 = vmatmul.mubr.f32.gmra.mxu0 %v4144
    %v4217 = vpop.f32.mrf.mxu0
    %v4218 = vadd.f32 %v4138, %v4217
    %v4219 = vpop.f32.mrf.mxu0
    %4220 = vdwg.mxu0
    %v4221 = vmax.f32 %v4213, 0.0
    %v4222 = vmax.f32 %v4218, 0.0
    %vm4223 = vcmp.ne.f32.partialorder %v4213, %v4213
    %vm4224 = vcmp.ne.f32.partialorder %v4218, %v4218
    %v4225 = vadd.f32 %v4213, 0.0
    %v4226 = vadd.f32 %v4218, 0.0
    %v4227 = vand.u32 2147483647, %v4213
    %v4228 = vand.u32 2147483647, %v4218
    %v4229 = vsub.f32 0.0, %v4227
    %v4230 = vsub.f32 0.0, %v4228
    %v4231 = vmul.f32 %v4229, 1.442695
    %v4232 = vpow.pop %v4231
    %v4233 = vmul.f32 %v4230, 1.442695
    %v4234 = vpow.pop %v4233
    %v4235 = vadd.f32 %v4232, 1.0
    %v4236 = vlog2.pop %v4235
    %v4237 = vmul.f32 %v4236, 0.6931472
    %v4238 = vmul.f32 -0.5, %v4232
    %v4239 = vadd.f32 %v4238, 1.0
    %v4240 = vmul.f32 %v4239, %v4232
    %v4241 = vand.u32 2147483647, %v4232
    %vm4242 = vcmp.lt.f32.partialorder %v4241, 0.0004427343
    %v4243 = vsel %vm4242, %v4240, %v4237
    %v4244 = vadd.f32 %v4234, 1.0
    %v4245 = vlog2.pop %v4244
    %v4246 = vmul.f32 %v4245, 0.6931472
    %v4247 = vmul.f32 -0.5, %v4234
    %v4248 = vadd.f32 %v4247, 1.0
    %v4249 = vmul.f32 %v4248, %v4234
    %v4250 = vand.u32 2147483647, %v4234
    %vm4251 = vcmp.lt.f32.partialorder %v4250, 0.0004427343
    %v4252 = vsel %vm4251, %v4249, %v4246
    %v4253 = vadd.f32 %v4221, %v4243
    %v4254 = vadd.f32 %v4222, %v4252
    %v4255 = vsel %vm4223, %v4225, %v4253
    %v4256 = vsel %vm4224, %v4226, %v4254
    %v4257 = vmul.f32 %v4255, %v3930
    %v4258 = vmul.f32 %v4256, %v3931
    %v4259 = vld [vmem:[%s49] sm:$0x1]
    %4260 = vmatprep.subr.mxu0 0.0
    %4261 = vmatpush1.msra.mxu0 0.0
    %4262 = vmatprep.subr.mxu0 0.0
    %4263 = vmatpush1.msra.mxu0 0.0
    %4264 = vmatprep.subr.mxu0 0.0
    %4265 = vmatpush1.msra.mxu0 0.0
    %4266 = vmatprep.subr.mxu0 0.0
    %4267 = vmatpush1.msra.mxu0 0.0
    %4268 = vmatprep.subr.mxu0 0.0
    %4269 = vmatpush1.msra.mxu0 0.0
    %4270 = vmatprep.subr.mxu0 0.0
    %4271 = vmatpush1.msra.mxu0 0.0
    %4272 = vmatprep.subr.mxu0 0.0
    %4273 = vmatpush1.msra.mxu0 0.0
    %4274 = vmatprep.subr.mxu0 0.0
    %4275 = vmatpush1.msra.mxu0 0.0
    %4276 = vmatprep.subr.mxu0 0.0
    %4277 = vmatpush1.msra.mxu0 0.0
    %4278 = vmatprep.subr.mxu0 0.0
    %4279 = vmatpush1.msra.mxu0 0.0
    %4280 = vmatprep.subr.mxu0 0.0
    %4281 = vmatpush1.msra.mxu0 0.0
    %4282 = vmatprep.subr.mxu0 0.0
    %4283 = vmatpush1.msra.mxu0 0.0
    %4284 = vmatprep.subr.mxu0 0.0
    %4285 = vmatpush1.msra.mxu0 0.0
    %4286 = vmatprep.subr.mxu0 0.0
    %4287 = vmatpush1.msra.mxu0 0.0
    %4288 = vmatprep.subr.mxu0 0.0
    %4289 = vmatpush1.msra.mxu0 0.0
    %4290 = vmatprep.subr.mxu0 0.0
    %4291 = vmatpush1.msra.mxu0 %v4255
    %4292 = vmatprep.subr.mxu0 0.0
    %4293 = vmatpush2.msra.mxu0 0.0
    %4294 = vmatprep.subr.mxu0 0.0
    %4295 = vmatpush2.msra.mxu0 0.0
    %4296 = vmatprep.subr.mxu0 0.0
    %4297 = vmatpush2.msra.mxu0 0.0
    %4298 = vmatprep.subr.mxu0 0.0
    %4299 = vmatpush2.msra.mxu0 0.0
    %4300 = vmatprep.subr.mxu0 0.0
    %4301 = vmatpush2.msra.mxu0 0.0
    %4302 = vmatprep.subr.mxu0 0.0
    %4303 = vmatpush2.msra.mxu0 0.0
    %4304 = vmatprep.subr.mxu0 0.0
    %4305 = vmatpush2.msra.mxu0 0.0
    %4306 = vmatprep.subr.mxu0 0.0
    %4307 = vmatpush2.msra.mxu0 0.0
    %4308 = vmatprep.subr.mxu0 0.0
    %4309 = vmatpush2.msra.mxu0 0.0
    %4310 = vmatprep.subr.mxu0 0.0
    %4311 = vmatpush2.msra.mxu0 0.0
    %4312 = vmatprep.subr.mxu0 0.0
    %4313 = vmatpush2.msra.mxu0 0.0
    %4314 = vmatprep.subr.mxu0 0.0
    %4315 = vmatpush2.msra.mxu0 0.0
    %4316 = vmatprep.subr.mxu0 0.0
    %4317 = vmatpush2.msra.mxu0 0.0
    %4318 = vmatprep.subr.mxu0 0.0
    %4319 = vmatpush2.msra.mxu0 0.0
    %4320 = vmatprep.subr.mxu0 0.0
    %4321 = vmatpush2.msra.mxu0 0.0
    %4322 = vmatprep.subr.mxu0 0.0
    %4323 = vmatpush2.msra.mxu0 0.0
    %4324 = vmatprep.mubr.f32.mxu0 0.0
    %4325 = vmatmul.mubr.f32.gmra.mxu0 %v900
    %v4326 = vpop.f32.mrf.mxu0
    %v4327 = vadd.f32 0.0, %v4326
    %v4328 = vpop.f32.mrf.mxu0
    %4329 = vdwg.mxu0
    %4330 = vxpose.xlu0.b32.start [1/16] %v4327, 128
    %4331 = vxpose.xlu0.b32.cont [2/16] 0.0, 128
    %4332 = vxpose.xlu0.b32.cont [3/16] 0.0, 128
    %4333 = vxpose.xlu0.b32.cont [4/16] 0.0, 128
    %4334 = vxpose.xlu0.b32.cont [5/16] 0.0, 128
    %4335 = vxpose.xlu0.b32.cont [6/16] 0.0, 128
    %4336 = vxpose.xlu0.b32.cont [7/16] 0.0, 128
    %4337 = vxpose.xlu0.b32.cont [8/16] 0.0, 128
    %4338 = vxpose.xlu0.b32.cont [9/16] 0.0, 128
    %4339 = vxpose.xlu0.b32.cont [10/16] 0.0, 128
    %4340 = vxpose.xlu0.b32.cont [11/16] 0.0, 128
    %4341 = vxpose.xlu0.b32.cont [12/16] 0.0, 128
    %4342 = vxpose.xlu0.b32.cont [13/16] 0.0, 128
    %4343 = vxpose.xlu0.b32.cont [14/16] 0.0, 128
    %4344 = vxpose.xlu0.b32.cont [15/16] 0.0, 128
    %4345 = vxpose.xlu0.b32.end [16/16] 0.0, 128
    %v4346 = vpop.trf.xlu0
    %v4347 = vpop.trf.xlu0
    %v4348 = vpop.trf.xlu0
    %v4349 = vpop.trf.xlu0
    %v4350 = vpop.trf.xlu0
    %v4351 = vpop.trf.xlu0
    %v4352 = vpop.trf.xlu0
    %v4353 = vpop.trf.xlu0
    %v4354 = vpop.trf.xlu0
    %v4355 = vpop.trf.xlu0
    %v4356 = vpop.trf.xlu0
    %v4357 = vpop.trf.xlu0
    %v4358 = vpop.trf.xlu0
    %v4359 = vpop.trf.xlu0
    %v4360 = vpop.trf.xlu0
    %v4361 = vpop.trf.xlu0
    %4362 = vxpose.xlu0.b32.start [1/16] %v4257, 128
    %4363 = vxpose.xlu0.b32.cont [2/16] 0.0, 128
    %4364 = vxpose.xlu0.b32.cont [3/16] 0.0, 128
    %4365 = vxpose.xlu0.b32.cont [4/16] 0.0, 128
    %4366 = vxpose.xlu0.b32.cont [5/16] 0.0, 128
    %4367 = vxpose.xlu0.b32.cont [6/16] 0.0, 128
    %4368 = vxpose.xlu0.b32.cont [7/16] 0.0, 128
    %4369 = vxpose.xlu0.b32.cont [8/16] 0.0, 128
    %4370 = vxpose.xlu0.b32.cont [9/16] 0.0, 128
    %4371 = vxpose.xlu0.b32.cont [10/16] 0.0, 128
    %4372 = vxpose.xlu0.b32.cont [11/16] 0.0, 128
    %4373 = vxpose.xlu0.b32.cont [12/16] 0.0, 128
    %4374 = vxpose.xlu0.b32.cont [13/16] 0.0, 128
    %4375 = vxpose.xlu0.b32.cont [14/16] 0.0, 128
    %4376 = vxpose.xlu0.b32.cont [15/16] 0.0, 128
    %4377 = vxpose.xlu0.b32.end [16/16] 0.0, 128
    %v4378 = vpop.trf.xlu0
    %v4379 = vpop.trf.xlu0
    %v4380 = vpop.trf.xlu0
    %v4381 = vpop.trf.xlu0
    %v4382 = vpop.trf.xlu0
    %v4383 = vpop.trf.xlu0
    %v4384 = vpop.trf.xlu0
    %v4385 = vpop.trf.xlu0
    %v4386 = vpop.trf.xlu0
    %v4387 = vpop.trf.xlu0
    %v4388 = vpop.trf.xlu0
    %v4389 = vpop.trf.xlu0
    %v4390 = vpop.trf.xlu0
    %v4391 = vpop.trf.xlu0
    %v4392 = vpop.trf.xlu0
    %v4393 = vpop.trf.xlu0
    %4395 = vset.pattern.permute.xlu0 0
    %4396 = vperm.xlu0 %4395, %v4346
    %v4397 = vpop.permute.xlu0 %4396
    %4400 = vset.pattern.permute.xlu0 0
    %4401 = vperm.xlu0 %4400, %v4347
    %v4402 = vpop.permute.xlu0 %4401
    %4405 = vset.pattern.permute.xlu0 0
    %4406 = vperm.xlu0 %4405, %v4348
    %v4407 = vpop.permute.xlu0 %4406
    %4410 = vset.pattern.permute.xlu0 0
    %4411 = vperm.xlu0 %4410, %v4349
    %v4412 = vpop.permute.xlu0 %4411
    %4415 = vset.pattern.permute.xlu0 0
    %4416 = vperm.xlu0 %4415, %v4350
    %v4417 = vpop.permute.xlu0 %4416
    %4420 = vset.pattern.permute.xlu0 0
    %4421 = vperm.xlu0 %4420, %v4351
    %v4422 = vpop.permute.xlu0 %4421
    %4425 = vset.pattern.permute.xlu0 0
    %4426 = vperm.xlu0 %4425, %v4352
    %v4427 = vpop.permute.xlu0 %4426
    %4430 = vset.pattern.permute.xlu0 0
    %4431 = vperm.xlu0 %4430, %v4353
    %v4432 = vpop.permute.xlu0 %4431
    %4435 = vset.pattern.permute.xlu0 0
    %4436 = vperm.xlu0 %4435, %v4354
    %v4437 = vpop.permute.xlu0 %4436
    %4440 = vset.pattern.permute.xlu0 0
    %4441 = vperm.xlu0 %4440, %v4355
    %v4442 = vpop.permute.xlu0 %4441
    %4445 = vset.pattern.permute.xlu0 0
    %4446 = vperm.xlu0 %4445, %v4356
    %v4447 = vpop.permute.xlu0 %4446
    %4450 = vset.pattern.permute.xlu0 0
    %4451 = vperm.xlu0 %4450, %v4357
    %v4452 = vpop.permute.xlu0 %4451
    %4455 = vset.pattern.permute.xlu0 0
    %4456 = vperm.xlu0 %4455, %v4358
    %v4457 = vpop.permute.xlu0 %4456
    %4460 = vset.pattern.permute.xlu0 0
    %4461 = vperm.xlu0 %4460, %v4359
    %v4462 = vpop.permute.xlu0 %4461
    %4465 = vset.pattern.permute.xlu0 0
    %4466 = vperm.xlu0 %4465, %v4360
    %v4467 = vpop.permute.xlu0 %4466
    %4470 = vset.pattern.permute.xlu0 0
    %4471 = vperm.xlu0 %4470, %v4361
    %v4472 = vpop.permute.xlu0 %4471
    %v4475 = vlaneseq
    %v4476 = vshrl.u32 %v4475, 7
    %v4477 = vsub.s32 0, %v4476
    %v4478 = vrot.slane %v4259, %v4477
    %v4480 = vmul.f32 %v4397, %v4478
    %v4481 = vmul.f32 %v4402, %v4478
    %v4482 = vmul.f32 %v4407, %v4478
    %v4483 = vmul.f32 %v4412, %v4478
    %v4484 = vmul.f32 %v4417, %v4478
    %v4485 = vmul.f32 %v4422, %v4478
    %v4486 = vmul.f32 %v4427, %v4478
    %v4487 = vmul.f32 %v4432, %v4478
    %v4488 = vmul.f32 %v4437, %v4478
    %v4489 = vmul.f32 %v4442, %v4478
    %v4490 = vmul.f32 %v4447, %v4478
    %v4491 = vmul.f32 %v4452, %v4478
    %v4492 = vmul.f32 %v4457, %v4478
    %v4493 = vmul.f32 %v4462, %v4478
    %v4494 = vmul.f32 %v4467, %v4478
    %v4495 = vmul.f32 %v4472, %v4478
    %v4496 = vmul.f32 %v4480, 1.442695
    %v4497 = vpow.pop %v4496
    %v4498 = vmul.f32 %v4481, 1.442695
    %v4499 = vpow.pop %v4498
    %v4500 = vmul.f32 %v4482, 1.442695
    %v4501 = vpow.pop %v4500
    %v4502 = vmul.f32 %v4483, 1.442695
    %v4503 = vpow.pop %v4502
    %v4504 = vmul.f32 %v4484, 1.442695
    %v4505 = vpow.pop %v4504
    %v4506 = vmul.f32 %v4485, 1.442695
    %v4507 = vpow.pop %v4506
    %v4508 = vmul.f32 %v4486, 1.442695
    %v4509 = vpow.pop %v4508
    %v4510 = vmul.f32 %v4487, 1.442695
    %v4511 = vpow.pop %v4510
    %v4512 = vmul.f32 %v4488, 1.442695
    %v4513 = vpow.pop %v4512
    %v4514 = vmul.f32 %v4489, 1.442695
    %v4515 = vpow.pop %v4514
    %v4516 = vmul.f32 %v4490, 1.442695
    %v4517 = vpow.pop %v4516
    %v4518 = vmul.f32 %v4491, 1.442695
    %v4519 = vpow.pop %v4518
    %v4520 = vmul.f32 %v4492, 1.442695
    %v4521 = vpow.pop %v4520
    %v4522 = vmul.f32 %v4493, 1.442695
    %v4523 = vpow.pop %v4522
    %v4524 = vmul.f32 %v4494, 1.442695
    %v4525 = vpow.pop %v4524
    %v4526 = vmul.f32 %v4495, 1.442695
    %v4527 = vpow.pop %v4526
    %4529 = vset.pattern.permute.xlu0 0
    %4530 = vperm.xlu0 %4529, %v4378
    %v4531 = vpop.permute.xlu0 %4530
    %4534 = vset.pattern.permute.xlu0 0
    %4535 = vperm.xlu0 %4534, %v4379
    %v4536 = vpop.permute.xlu0 %4535
    %4539 = vset.pattern.permute.xlu0 0
    %4540 = vperm.xlu0 %4539, %v4380
    %v4541 = vpop.permute.xlu0 %4540
    %4544 = vset.pattern.permute.xlu0 0
    %4545 = vperm.xlu0 %4544, %v4381
    %v4546 = vpop.permute.xlu0 %4545
    %4549 = vset.pattern.permute.xlu0 0
    %4550 = vperm.xlu0 %4549, %v4382
    %v4551 = vpop.permute.xlu0 %4550
    %4554 = vset.pattern.permute.xlu0 0
    %4555 = vperm.xlu0 %4554, %v4383
    %v4556 = vpop.permute.xlu0 %4555
    %4559 = vset.pattern.permute.xlu0 0
    %4560 = vperm.xlu0 %4559, %v4384
    %v4561 = vpop.permute.xlu0 %4560
    %4564 = vset.pattern.permute.xlu0 0
    %4565 = vperm.xlu0 %4564, %v4385
    %v4566 = vpop.permute.xlu0 %4565
    %4569 = vset.pattern.permute.xlu0 0
    %4570 = vperm.xlu0 %4569, %v4386
    %v4571 = vpop.permute.xlu0 %4570
    %4574 = vset.pattern.permute.xlu0 0
    %4575 = vperm.xlu0 %4574, %v4387
    %v4576 = vpop.permute.xlu0 %4575
    %4579 = vset.pattern.permute.xlu0 0
    %4580 = vperm.xlu0 %4579, %v4388
    %v4581 = vpop.permute.xlu0 %4580
    %4584 = vset.pattern.permute.xlu0 0
    %4585 = vperm.xlu0 %4584, %v4389
    %v4586 = vpop.permute.xlu0 %4585
    %4589 = vset.pattern.permute.xlu0 0
    %4590 = vperm.xlu0 %4589, %v4390
    %v4591 = vpop.permute.xlu0 %4590
    %4594 = vset.pattern.permute.xlu0 0
    %4595 = vperm.xlu0 %4594, %v4391
    %v4596 = vpop.permute.xlu0 %4595
    %4599 = vset.pattern.permute.xlu0 0
    %4600 = vperm.xlu0 %4599, %v4392
    %v4601 = vpop.permute.xlu0 %4600
    %4604 = vset.pattern.permute.xlu0 0
    %4605 = vperm.xlu0 %4604, %v4393
    %v4606 = vpop.permute.xlu0 %4605
    %v4608 = vlaneseq
    %v4609 = vshrl.u32 %v4608, 7
    %v4610 = vsub.s32 0, %v4609
    %v4611 = vrot.slane %v4047, %v4610
    %v4612 = vmul.f32 %v4531, %v4611
    %v4613 = vmul.f32 %v4536, %v4611
    %v4614 = vmul.f32 %v4541, %v4611
    %v4615 = vmul.f32 %v4546, %v4611
    %v4616 = vmul.f32 %v4551, %v4611
    %v4617 = vmul.f32 %v4556, %v4611
    %v4618 = vmul.f32 %v4561, %v4611
    %v4619 = vmul.f32 %v4566, %v4611
    %v4620 = vmul.f32 %v4571, %v4611
    %v4621 = vmul.f32 %v4576, %v4611
    %v4622 = vmul.f32 %v4581, %v4611
    %v4623 = vmul.f32 %v4586, %v4611
    %v4624 = vmul.f32 %v4591, %v4611
    %v4625 = vmul.f32 %v4596, %v4611
    %v4626 = vmul.f32 %v4601, %v4611
    %v4627 = vmul.f32 %v4606, %v4611
    %v4628 = vmul.f32 %v4497, %v4612
    %v4629 = vmul.f32 %v4499, %v4613
    %v4630 = vmul.f32 %v4501, %v4614
    %v4631 = vmul.f32 %v4503, %v4615
    %v4632 = vmul.f32 %v4505, %v4616
    %v4633 = vmul.f32 %v4507, %v4617
    %v4634 = vmul.f32 %v4509, %v4618
    %v4635 = vmul.f32 %v4511, %v4619
    %v4636 = vmul.f32 %v4513, %v4620
    %v4637 = vmul.f32 %v4515, %v4621
    %v4638 = vmul.f32 %v4517, %v4622
    %v4639 = vmul.f32 %v4519, %v4623
    %v4640 = vmul.f32 %v4521, %v4624
    %v4641 = vmul.f32 %v4523, %v4625
    %v4642 = vmul.f32 %v4525, %v4626
    %v4643 = vmul.f32 %v4527, %v4627
    %4644 = vset.pattern.permute.xlu0 1
    %4645 = vperm.xlu0 %4644, %v4346
    %v4646 = vpop.permute.xlu0 %4645
    %4648 = vset.pattern.permute.xlu0 1
    %4649 = vperm.xlu0 %4648, %v4347
    %v4650 = vpop.permute.xlu0 %4649
    %4652 = vset.pattern.permute.xlu0 1
    %4653 = vperm.xlu0 %4652, %v4348
    %v4654 = vpop.permute.xlu0 %4653
    %4656 = vset.pattern.permute.xlu0 1
    %4657 = vperm.xlu0 %4656, %v4349
    %v4658 = vpop.permute.xlu0 %4657
    %4660 = vset.pattern.permute.xlu0 1
    %4661 = vperm.xlu0 %4660, %v4350
    %v4662 = vpop.permute.xlu0 %4661
    %4664 = vset.pattern.permute.xlu0 1
    %4665 = vperm.xlu0 %4664, %v4351
    %v4666 = vpop.permute.xlu0 %4665
    %4668 = vset.pattern.permute.xlu0 1
    %4669 = vperm.xlu0 %4668, %v4352
    %v4670 = vpop.permute.xlu0 %4669
    %4672 = vset.pattern.permute.xlu0 1
    %4673 = vperm.xlu0 %4672, %v4353
    %v4674 = vpop.permute.xlu0 %4673
    %4676 = vset.pattern.permute.xlu0 1
    %4677 = vperm.xlu0 %4676, %v4354
    %v4678 = vpop.permute.xlu0 %4677
    %4680 = vset.pattern.permute.xlu0 1
    %4681 = vperm.xlu0 %4680, %v4355
    %v4682 = vpop.permute.xlu0 %4681
    %4684 = vset.pattern.permute.xlu0 1
    %4685 = vperm.xlu0 %4684, %v4356
    %v4686 = vpop.permute.xlu0 %4685
    %4688 = vset.pattern.permute.xlu0 1
    %4689 = vperm.xlu0 %4688, %v4357
    %v4690 = vpop.permute.xlu0 %4689
    %4692 = vset.pattern.permute.xlu0 1
    %4693 = vperm.xlu0 %4692, %v4358
    %v4694 = vpop.permute.xlu0 %4693
    %4696 = vset.pattern.permute.xlu0 1
    %4697 = vperm.xlu0 %4696, %v4359
    %v4698 = vpop.permute.xlu0 %4697
    %4700 = vset.pattern.permute.xlu0 1
    %4701 = vperm.xlu0 %4700, %v4360
    %v4702 = vpop.permute.xlu0 %4701
    %4704 = vset.pattern.permute.xlu0 1
    %4705 = vperm.xlu0 %4704, %v4361
    %v4706 = vpop.permute.xlu0 %4705
    %v4708 = vmul.f32 %v4646, %v4478
    %v4709 = vmul.f32 %v4650, %v4478
    %v4710 = vmul.f32 %v4654, %v4478
    %v4711 = vmul.f32 %v4658, %v4478
    %v4712 = vmul.f32 %v4662, %v4478
    %v4713 = vmul.f32 %v4666, %v4478
    %v4714 = vmul.f32 %v4670, %v4478
    %v4715 = vmul.f32 %v4674, %v4478
    %v4716 = vmul.f32 %v4678, %v4478
    %v4717 = vmul.f32 %v4682, %v4478
    %v4718 = vmul.f32 %v4686, %v4478
    %v4719 = vmul.f32 %v4690, %v4478
    %v4720 = vmul.f32 %v4694, %v4478
    %v4721 = vmul.f32 %v4698, %v4478
    %v4722 = vmul.f32 %v4702, %v4478
    %v4723 = vmul.f32 %v4706, %v4478
    %v4724 = vmul.f32 %v4708, 1.442695
    %v4725 = vpow.pop %v4724
    %v4726 = vmul.f32 %v4709, 1.442695
    %v4727 = vpow.pop %v4726
    %v4728 = vmul.f32 %v4710, 1.442695
    %v4729 = vpow.pop %v4728
    %v4730 = vmul.f32 %v4711, 1.442695
    %v4731 = vpow.pop %v4730
    %v4732 = vmul.f32 %v4712, 1.442695
    %v4733 = vpow.pop %v4732
    %v4734 = vmul.f32 %v4713, 1.442695
    %v4735 = vpow.pop %v4734
    %v4736 = vmul.f32 %v4714, 1.442695
    %v4737 = vpow.pop %v4736
    %v4738 = vmul.f32 %v4715, 1.442695
    %v4739 = vpow.pop %v4738
    %v4740 = vmul.f32 %v4716, 1.442695
    %v4741 = vpow.pop %v4740
    %v4742 = vmul.f32 %v4717, 1.442695
    %v4743 = vpow.pop %v4742
    %v4744 = vmul.f32 %v4718, 1.442695
    %v4745 = vpow.pop %v4744
    %v4746 = vmul.f32 %v4719, 1.442695
    %v4747 = vpow.pop %v4746
    %v4748 = vmul.f32 %v4720, 1.442695
    %v4749 = vpow.pop %v4748
    %v4750 = vmul.f32 %v4721, 1.442695
    %v4751 = vpow.pop %v4750
    %v4752 = vmul.f32 %v4722, 1.442695
    %v4753 = vpow.pop %v4752
    %v4754 = vmul.f32 %v4723, 1.442695
    %v4755 = vpow.pop %v4754
    %4756 = vset.pattern.permute.xlu0 1
    %4757 = vperm.xlu0 %4756, %v4378
    %v4758 = vpop.permute.xlu0 %4757
    %4760 = vset.pattern.permute.xlu0 1
    %4761 = vperm.xlu0 %4760, %v4379
    %v4762 = vpop.permute.xlu0 %4761
    %4764 = vset.pattern.permute.xlu0 1
    %4765 = vperm.xlu0 %4764, %v4380
    %v4766 = vpop.permute.xlu0 %4765
    %4768 = vset.pattern.permute.xlu0 1
    %4769 = vperm.xlu0 %4768, %v4381
    %v4770 = vpop.permute.xlu0 %4769
    %4772 = vset.pattern.permute.xlu0 1
    %4773 = vperm.xlu0 %4772, %v4382
    %v4774 = vpop.permute.xlu0 %4773
    %4776 = vset.pattern.permute.xlu0 1
    %4777 = vperm.xlu0 %4776, %v4383
    %v4778 = vpop.permute.xlu0 %4777
    %4780 = vset.pattern.permute.xlu0 1
    %4781 = vperm.xlu0 %4780, %v4384
    %v4782 = vpop.permute.xlu0 %4781
    %4784 = vset.pattern.permute.xlu0 1
    %4785 = vperm.xlu0 %4784, %v4385
    %v4786 = vpop.permute.xlu0 %4785
    %4788 = vset.pattern.permute.xlu0 1
    %4789 = vperm.xlu0 %4788, %v4386
    %v4790 = vpop.permute.xlu0 %4789
    %4792 = vset.pattern.permute.xlu0 1
    %4793 = vperm.xlu0 %4792, %v4387
    %v4794 = vpop.permute.xlu0 %4793
    %4796 = vset.pattern.permute.xlu0 1
    %4797 = vperm.xlu0 %4796, %v4388
    %v4798 = vpop.permute.xlu0 %4797
    %4800 = vset.pattern.permute.xlu0 1
    %4801 = vperm.xlu0 %4800, %v4389
    %v4802 = vpop.permute.xlu0 %4801
    %4804 = vset.pattern.permute.xlu0 1
    %4805 = vperm.xlu0 %4804, %v4390
    %v4806 = vpop.permute.xlu0 %4805
    %4808 = vset.pattern.permute.xlu0 1
    %4809 = vperm.xlu0 %4808, %v4391
    %v4810 = vpop.permute.xlu0 %4809
    %4812 = vset.pattern.permute.xlu0 1
    %4813 = vperm.xlu0 %4812, %v4392
    %v4814 = vpop.permute.xlu0 %4813
    %4816 = vset.pattern.permute.xlu0 1
    %4817 = vperm.xlu0 %4816, %v4393
    %v4818 = vpop.permute.xlu0 %4817
    %v4820 = vlaneseq
    %v4821 = vshrl.u32 %v4820, 7
    %v4822 = vsub.s32 1, %v4821
    %v4823 = vrot.slane %v4047, %v4822
    %v4824 = vmul.f32 %v4758, %v4823
    %v4825 = vmul.f32 %v4762, %v4823
    %v4826 = vmul.f32 %v4766, %v4823
    %v4827 = vmul.f32 %v4770, %v4823
    %v4828 = vmul.f32 %v4774, %v4823
    %v4829 = vmul.f32 %v4778, %v4823
    %v4830 = vmul.f32 %v4782, %v4823
    %v4831 = vmul.f32 %v4786, %v4823
    %v4832 = vmul.f32 %v4790, %v4823
    %v4833 = vmul.f32 %v4794, %v4823
    %v4834 = vmul.f32 %v4798, %v4823
    %v4835 = vmul.f32 %v4802, %v4823
    %v4836 = vmul.f32 %v4806, %v4823
    %v4837 = vmul.f32 %v4810, %v4823
    %v4838 = vmul.f32 %v4814, %v4823
    %v4839 = vmul.f32 %v4818, %v4823
    %v4840 = vmul.f32 %v4725, %v4824
    %v4841 = vmul.f32 %v4727, %v4825
    %v4842 = vmul.f32 %v4729, %v4826
    %v4843 = vmul.f32 %v4731, %v4827
    %v4844 = vmul.f32 %v4733, %v4828
    %v4845 = vmul.f32 %v4735, %v4829
    %v4846 = vmul.f32 %v4737, %v4830
    %v4847 = vmul.f32 %v4739, %v4831
    %v4848 = vmul.f32 %v4741, %v4832
    %v4849 = vmul.f32 %v4743, %v4833
    %v4850 = vmul.f32 %v4745, %v4834
    %v4851 = vmul.f32 %v4747, %v4835
    %v4852 = vmul.f32 %v4749, %v4836
    %v4853 = vmul.f32 %v4751, %v4837
    %v4854 = vmul.f32 %v4753, %v4838
    %v4855 = vmul.f32 %v4755, %v4839
    %4856 = vset.pattern.permute.xlu0 2
    %4857 = vperm.xlu0 %4856, %v4346
    %v4858 = vpop.permute.xlu0 %4857
    %4860 = vset.pattern.permute.xlu0 2
    %4861 = vperm.xlu0 %4860, %v4347
    %v4862 = vpop.permute.xlu0 %4861
    %4864 = vset.pattern.permute.xlu0 2
    %4865 = vperm.xlu0 %4864, %v4348
    %v4866 = vpop.permute.xlu0 %4865
    %4868 = vset.pattern.permute.xlu0 2
    %4869 = vperm.xlu0 %4868, %v4349
    %v4870 = vpop.permute.xlu0 %4869
    %4872 = vset.pattern.permute.xlu0 2
    %4873 = vperm.xlu0 %4872, %v4350
    %v4874 = vpop.permute.xlu0 %4873
    %4876 = vset.pattern.permute.xlu0 2
    %4877 = vperm.xlu0 %4876, %v4351
    %v4878 = vpop.permute.xlu0 %4877
    %4880 = vset.pattern.permute.xlu0 2
    %4881 = vperm.xlu0 %4880, %v4352
    %v4882 = vpop.permute.xlu0 %4881
    %4884 = vset.pattern.permute.xlu0 2
    %4885 = vperm.xlu0 %4884, %v4353
    %v4886 = vpop.permute.xlu0 %4885
    %4888 = vset.pattern.permute.xlu0 2
    %4889 = vperm.xlu0 %4888, %v4354
    %v4890 = vpop.permute.xlu0 %4889
    %4892 = vset.pattern.permute.xlu0 2
    %4893 = vperm.xlu0 %4892, %v4355
    %v4894 = vpop.permute.xlu0 %4893
    %4896 = vset.pattern.permute.xlu0 2
    %4897 = vperm.xlu0 %4896, %v4356
    %v4898 = vpop.permute.xlu0 %4897
    %4900 = vset.pattern.permute.xlu0 2
    %4901 = vperm.xlu0 %4900, %v4357
    %v4902 = vpop.permute.xlu0 %4901
    %4904 = vset.pattern.permute.xlu0 2
    %4905 = vperm.xlu0 %4904, %v4358
    %v4906 = vpop.permute.xlu0 %4905
    %4908 = vset.pattern.permute.xlu0 2
    %4909 = vperm.xlu0 %4908, %v4359
    %v4910 = vpop.permute.xlu0 %4909
    %4912 = vset.pattern.permute.xlu0 2
    %4913 = vperm.xlu0 %4912, %v4360
    %v4914 = vpop.permute.xlu0 %4913
    %4916 = vset.pattern.permute.xlu0 2
    %4917 = vperm.xlu0 %4916, %v4361
    %v4918 = vpop.permute.xlu0 %4917
    %v4920 = vmul.f32 %v4858, %v4478
    %v4921 = vmul.f32 %v4862, %v4478
    %v4922 = vmul.f32 %v4866, %v4478
    %v4923 = vmul.f32 %v4870, %v4478
    %v4924 = vmul.f32 %v4874, %v4478
    %v4925 = vmul.f32 %v4878, %v4478
    %v4926 = vmul.f32 %v4882, %v4478
    %v4927 = vmul.f32 %v4886, %v4478
    %v4928 = vmul.f32 %v4890, %v4478
    %v4929 = vmul.f32 %v4894, %v4478
    %v4930 = vmul.f32 %v4898, %v4478
    %v4931 = vmul.f32 %v4902, %v4478
    %v4932 = vmul.f32 %v4906, %v4478
    %v4933 = vmul.f32 %v4910, %v4478
    %v4934 = vmul.f32 %v4914, %v4478
    %v4935 = vmul.f32 %v4918, %v4478
    %v4936 = vmul.f32 %v4920, 1.442695
    %v4937 = vpow.pop %v4936
    %v4938 = vmul.f32 %v4921, 1.442695
    %v4939 = vpow.pop %v4938
    %v4940 = vmul.f32 %v4922, 1.442695
    %v4941 = vpow.pop %v4940
    %v4942 = vmul.f32 %v4923, 1.442695
    %v4943 = vpow.pop %v4942
    %v4944 = vmul.f32 %v4924, 1.442695
    %v4945 = vpow.pop %v4944
    %v4946 = vmul.f32 %v4925, 1.442695
    %v4947 = vpow.pop %v4946
    %v4948 = vmul.f32 %v4926, 1.442695
    %v4949 = vpow.pop %v4948
    %v4950 = vmul.f32 %v4927, 1.442695
    %v4951 = vpow.pop %v4950
    %v4952 = vmul.f32 %v4928, 1.442695
    %v4953 = vpow.pop %v4952
    %v4954 = vmul.f32 %v4929, 1.442695
    %v4955 = vpow.pop %v4954
    %v4956 = vmul.f32 %v4930, 1.442695
    %v4957 = vpow.pop %v4956
    %v4958 = vmul.f32 %v4931, 1.442695
    %v4959 = vpow.pop %v4958
    %v4960 = vmul.f32 %v4932, 1.442695
    %v4961 = vpow.pop %v4960
    %v4962 = vmul.f32 %v4933, 1.442695
    %v4963 = vpow.pop %v4962
    %v4964 = vmul.f32 %v4934, 1.442695
    %v4965 = vpow.pop %v4964
    %v4966 = vmul.f32 %v4935, 1.442695
    %v4967 = vpow.pop %v4966
    %4968 = vset.pattern.permute.xlu0 2
    %4969 = vperm.xlu0 %4968, %v4378
    %v4970 = vpop.permute.xlu0 %4969
    %4972 = vset.pattern.permute.xlu0 2
    %4973 = vperm.xlu0 %4972, %v4379
    %v4974 = vpop.permute.xlu0 %4973
    %4976 = vset.pattern.permute.xlu0 2
    %4977 = vperm.xlu0 %4976, %v4380
    %v4978 = vpop.permute.xlu0 %4977
    %4980 = vset.pattern.permute.xlu0 2
    %4981 = vperm.xlu0 %4980, %v4381
    %v4982 = vpop.permute.xlu0 %4981
    %4984 = vset.pattern.permute.xlu0 2
    %4985 = vperm.xlu0 %4984, %v4382
    %v4986 = vpop.permute.xlu0 %4985
    %4988 = vset.pattern.permute.xlu0 2
    %4989 = vperm.xlu0 %4988, %v4383
    %v4990 = vpop.permute.xlu0 %4989
    %4992 = vset.pattern.permute.xlu0 2
    %4993 = vperm.xlu0 %4992, %v4384
    %v4994 = vpop.permute.xlu0 %4993
    %4996 = vset.pattern.permute.xlu0 2
    %4997 = vperm.xlu0 %4996, %v4385
    %v4998 = vpop.permute.xlu0 %4997
    %5000 = vset.pattern.permute.xlu0 2
    %5001 = vperm.xlu0 %5000, %v4386
    %v5002 = vpop.permute.xlu0 %5001
    %5004 = vset.pattern.permute.xlu0 2
    %5005 = vperm.xlu0 %5004, %v4387
    %v5006 = vpop.permute.xlu0 %5005
    %5008 = vset.pattern.permute.xlu0 2
    %5009 = vperm.xlu0 %5008, %v4388
    %v5010 = vpop.permute.xlu0 %5009
    %5012 = vset.pattern.permute.xlu0 2
    %5013 = vperm.xlu0 %5012, %v4389
    %v5014 = vpop.permute.xlu0 %5013
    %5016 = vset.pattern.permute.xlu0 2
    %5017 = vperm.xlu0 %5016, %v4390
    %v5018 = vpop.permute.xlu0 %5017
    %5020 = vset.pattern.permute.xlu0 2
    %5021 = vperm.xlu0 %5020, %v4391
    %v5022 = vpop.permute.xlu0 %5021
    %5024 = vset.pattern.permute.xlu0 2
    %5025 = vperm.xlu0 %5024, %v4392
    %v5026 = vpop.permute.xlu0 %5025
    %5028 = vset.pattern.permute.xlu0 2
    %5029 = vperm.xlu0 %5028, %v4393
    %v5030 = vpop.permute.xlu0 %5029
    %v5032 = vlaneseq
    %v5033 = vshrl.u32 %v5032, 7
    %v5034 = vsub.s32 2, %v5033
    %v5035 = vrot.slane %v4047, %v5034
    %v5036 = vmul.f32 %v4970, %v5035
    %v5037 = vmul.f32 %v4974, %v5035
    %v5038 = vmul.f32 %v4978, %v5035
    %v5039 = vmul.f32 %v4982, %v5035
    %v5040 = vmul.f32 %v4986, %v5035
    %v5041 = vmul.f32 %v4990, %v5035
    %v5042 = vmul.f32 %v4994, %v5035
    %v5043 = vmul.f32 %v4998, %v5035
    %v5044 = vmul.f32 %v5002, %v5035
    %v5045 = vmul.f32 %v5006, %v5035
    %v5046 = vmul.f32 %v5010, %v5035
    %v5047 = vmul.f32 %v5014, %v5035
    %v5048 = vmul.f32 %v5018, %v5035
    %v5049 = vmul.f32 %v5022, %v5035
    %v5050 = vmul.f32 %v5026, %v5035
    %v5051 = vmul.f32 %v5030, %v5035
    %v5052 = vmul.f32 %v4937, %v5036
    %v5053 = vmul.f32 %v4939, %v5037
    %v5054 = vmul.f32 %v4941, %v5038
    %v5055 = vmul.f32 %v4943, %v5039
    %v5056 = vmul.f32 %v4945, %v5040
    %v5057 = vmul.f32 %v4947, %v5041
    %v5058 = vmul.f32 %v4949, %v5042
    %v5059 = vmul.f32 %v4951, %v5043
    %v5060 = vmul.f32 %v4953, %v5044
    %v5061 = vmul.f32 %v4955, %v5045
    %v5062 = vmul.f32 %v4957, %v5046
    %v5063 = vmul.f32 %v4959, %v5047
    %v5064 = vmul.f32 %v4961, %v5048
    %v5065 = vmul.f32 %v4963, %v5049
    %v5066 = vmul.f32 %v4965, %v5050
    %v5067 = vmul.f32 %v4967, %v5051
    %5068 = vset.pattern.permute.xlu0 3
    %5069 = vperm.xlu0 %5068, %v4346
    %v5070 = vpop.permute.xlu0 %5069
    %5072 = vset.pattern.permute.xlu0 3
    %5073 = vperm.xlu0 %5072, %v4347
    %v5074 = vpop.permute.xlu0 %5073
    %5076 = vset.pattern.permute.xlu0 3
    %5077 = vperm.xlu0 %5076, %v4348
    %v5078 = vpop.permute.xlu0 %5077
    %5080 = vset.pattern.permute.xlu0 3
    %5081 = vperm.xlu0 %5080, %v4349
    %v5082 = vpop.permute.xlu0 %5081
    %5084 = vset.pattern.permute.xlu0 3
    %5085 = vperm.xlu0 %5084, %v4350
    %v5086 = vpop.permute.xlu0 %5085
    %5088 = vset.pattern.permute.xlu0 3
    %5089 = vperm.xlu0 %5088, %v4351
    %v5090 = vpop.permute.xlu0 %5089
    %5092 = vset.pattern.permute.xlu0 3
    %5093 = vperm.xlu0 %5092, %v4352
    %v5094 = vpop.permute.xlu0 %5093
    %5096 = vset.pattern.permute.xlu0 3
    %5097 = vperm.xlu0 %5096, %v4353
    %v5098 = vpop.permute.xlu0 %5097
    %5100 = vset.pattern.permute.xlu0 3
    %5101 = vperm.xlu0 %5100, %v4354
    %v5102 = vpop.permute.xlu0 %5101
    %5104 = vset.pattern.permute.xlu0 3
    %5105 = vperm.xlu0 %5104, %v4355
    %v5106 = vpop.permute.xlu0 %5105
    %5108 = vset.pattern.permute.xlu0 3
    %5109 = vperm.xlu0 %5108, %v4356
    %v5110 = vpop.permute.xlu0 %5109
    %5112 = vset.pattern.permute.xlu0 3
    %5113 = vperm.xlu0 %5112, %v4357
    %v5114 = vpop.permute.xlu0 %5113
    %5116 = vset.pattern.permute.xlu0 3
    %5117 = vperm.xlu0 %5116, %v4358
    %v5118 = vpop.permute.xlu0 %5117
    %5120 = vset.pattern.permute.xlu0 3
    %5121 = vperm.xlu0 %5120, %v4359
    %v5122 = vpop.permute.xlu0 %5121
    %5124 = vset.pattern.permute.xlu0 3
    %5125 = vperm.xlu0 %5124, %v4360
    %v5126 = vpop.permute.xlu0 %5125
    %5128 = vset.pattern.permute.xlu0 3
    %5129 = vperm.xlu0 %5128, %v4361
    %v5130 = vpop.permute.xlu0 %5129
    %v5132 = vmul.f32 %v5070, %v4478
    %v5133 = vmul.f32 %v5074, %v4478
    %v5134 = vmul.f32 %v5078, %v4478
    %v5135 = vmul.f32 %v5082, %v4478
    %v5136 = vmul.f32 %v5086, %v4478
    %v5137 = vmul.f32 %v5090, %v4478
    %v5138 = vmul.f32 %v5094, %v4478
    %v5139 = vmul.f32 %v5098, %v4478
    %v5140 = vmul.f32 %v5102, %v4478
    %v5141 = vmul.f32 %v5106, %v4478
    %v5142 = vmul.f32 %v5110, %v4478
    %v5143 = vmul.f32 %v5114, %v4478
    %v5144 = vmul.f32 %v5118, %v4478
    %v5145 = vmul.f32 %v5122, %v4478
    %v5146 = vmul.f32 %v5126, %v4478
    %v5147 = vmul.f32 %v5130, %v4478
    %v5148 = vmul.f32 %v5132, 1.442695
    %v5149 = vpow.pop %v5148
    %v5150 = vmul.f32 %v5133, 1.442695
    %v5151 = vpow.pop %v5150
    %v5152 = vmul.f32 %v5134, 1.442695
    %v5153 = vpow.pop %v5152
    %v5154 = vmul.f32 %v5135, 1.442695
    %v5155 = vpow.pop %v5154
    %v5156 = vmul.f32 %v5136, 1.442695
    %v5157 = vpow.pop %v5156
    %v5158 = vmul.f32 %v5137, 1.442695
    %v5159 = vpow.pop %v5158
    %v5160 = vmul.f32 %v5138, 1.442695
    %v5161 = vpow.pop %v5160
    %v5162 = vmul.f32 %v5139, 1.442695
    %v5163 = vpow.pop %v5162
    %v5164 = vmul.f32 %v5140, 1.442695
    %v5165 = vpow.pop %v5164
    %v5166 = vmul.f32 %v5141, 1.442695
    %v5167 = vpow.pop %v5166
    %v5168 = vmul.f32 %v5142, 1.442695
    %v5169 = vpow.pop %v5168
    %v5170 = vmul.f32 %v5143, 1.442695
    %v5171 = vpow.pop %v5170
    %v5172 = vmul.f32 %v5144, 1.442695
    %v5173 = vpow.pop %v5172
    %v5174 = vmul.f32 %v5145, 1.442695
    %v5175 = vpow.pop %v5174
    %v5176 = vmul.f32 %v5146, 1.442695
    %v5177 = vpow.pop %v5176
    %v5178 = vmul.f32 %v5147, 1.442695
    %v5179 = vpow.pop %v5178
    %5180 = vset.pattern.permute.xlu0 3
    %5181 = vperm.xlu0 %5180, %v4378
    %v5182 = vpop.permute.xlu0 %5181
    %5184 = vset.pattern.permute.xlu0 3
    %5185 = vperm.xlu0 %5184, %v4379
    %v5186 = vpop.permute.xlu0 %5185
    %5188 = vset.pattern.permute.xlu0 3
    %5189 = vperm.xlu0 %5188, %v4380
    %v5190 = vpop.permute.xlu0 %5189
    %5192 = vset.pattern.permute.xlu0 3
    %5193 = vperm.xlu0 %5192, %v4381
    %v5194 = vpop.permute.xlu0 %5193
    %5196 = vset.pattern.permute.xlu0 3
    %5197 = vperm.xlu0 %5196, %v4382
    %v5198 = vpop.permute.xlu0 %5197
    %5200 = vset.pattern.permute.xlu0 3
    %5201 = vperm.xlu0 %5200, %v4383
    %v5202 = vpop.permute.xlu0 %5201
    %5204 = vset.pattern.permute.xlu0 3
    %5205 = vperm.xlu0 %5204, %v4384
    %v5206 = vpop.permute.xlu0 %5205
    %5208 = vset.pattern.permute.xlu0 3
    %5209 = vperm.xlu0 %5208, %v4385
    %v5210 = vpop.permute.xlu0 %5209
    %5212 = vset.pattern.permute.xlu0 3
    %5213 = vperm.xlu0 %5212, %v4386
    %v5214 = vpop.permute.xlu0 %5213
    %5216 = vset.pattern.permute.xlu0 3
    %5217 = vperm.xlu0 %5216, %v4387
    %v5218 = vpop.permute.xlu0 %5217
    %5220 = vset.pattern.permute.xlu0 3
    %5221 = vperm.xlu0 %5220, %v4388
    %v5222 = vpop.permute.xlu0 %5221
    %5224 = vset.pattern.permute.xlu0 3
    %5225 = vperm.xlu0 %5224, %v4389
    %v5226 = vpop.permute.xlu0 %5225
    %5228 = vset.pattern.permute.xlu0 3
    %5229 = vperm.xlu0 %5228, %v4390
    %v5230 = vpop.permute.xlu0 %5229
    %5232 = vset.pattern.permute.xlu0 3
    %5233 = vperm.xlu0 %5232, %v4391
    %v5234 = vpop.permute.xlu0 %5233
    %5236 = vset.pattern.permute.xlu0 3
    %5237 = vperm.xlu0 %5236, %v4392
    %v5238 = vpop.permute.xlu0 %5237
    %5240 = vset.pattern.permute.xlu0 3
    %5241 = vperm.xlu0 %5240, %v4393
    %v5242 = vpop.permute.xlu0 %5241
    %v5244 = vlaneseq
    %v5245 = vshrl.u32 %v5244, 7
    %v5246 = vsub.s32 3, %v5245
    %v5247 = vrot.slane %v4047, %v5246
    %v5248 = vmul.f32 %v5182, %v5247
    %v5249 = vmul.f32 %v5186, %v5247
    %v5250 = vmul.f32 %v5190, %v5247
    %v5251 = vmul.f32 %v5194, %v5247
    %v5252 = vmul.f32 %v5198, %v5247
    %v5253 = vmul.f32 %v5202, %v5247
    %v5254 = vmul.f32 %v5206, %v5247
    %v5255 = vmul.f32 %v5210, %v5247
    %v5256 = vmul.f32 %v5214, %v5247
    %v5257 = vmul.f32 %v5218, %v5247
    %v5258 = vmul.f32 %v5222, %v5247
    %v5259 = vmul.f32 %v5226, %v5247
    %v5260 = vmul.f32 %v5230, %v5247
    %v5261 = vmul.f32 %v5234, %v5247
    %v5262 = vmul.f32 %v5238, %v5247
    %v5263 = vmul.f32 %v5242, %v5247
    %v5264 = vmul.f32 %v5149, %v5248
    %v5265 = vmul.f32 %v5151, %v5249
    %v5266 = vmul.f32 %v5153, %v5250
    %v5267 = vmul.f32 %v5155, %v5251
    %v5268 = vmul.f32 %v5157, %v5252
    %v5269 = vmul.f32 %v5159, %v5253
    %v5270 = vmul.f32 %v5161, %v5254
    %v5271 = vmul.f32 %v5163, %v5255
    %v5272 = vmul.f32 %v5165, %v5256
    %v5273 = vmul.f32 %v5167, %v5257
    %v5274 = vmul.f32 %v5169, %v5258
    %v5275 = vmul.f32 %v5171, %v5259
    %v5276 = vmul.f32 %v5173, %v5260
    %v5277 = vmul.f32 %v5175, %v5261
    %v5278 = vmul.f32 %v5177, %v5262
    %v5279 = vmul.f32 %v5179, %v5263
    %5280 = vset.pattern.permute.xlu0 4
    %5281 = vperm.xlu0 %5280, %v4346
    %v5282 = vpop.permute.xlu0 %5281
    %5284 = vset.pattern.permute.xlu0 4
    %5285 = vperm.xlu0 %5284, %v4347
    %v5286 = vpop.permute.xlu0 %5285
    %5288 = vset.pattern.permute.xlu0 4
    %5289 = vperm.xlu0 %5288, %v4348
    %v5290 = vpop.permute.xlu0 %5289
    %5292 = vset.pattern.permute.xlu0 4
    %5293 = vperm.xlu0 %5292, %v4349
    %v5294 = vpop.permute.xlu0 %5293
    %5296 = vset.pattern.permute.xlu0 4
    %5297 = vperm.xlu0 %5296, %v4350
    %v5298 = vpop.permute.xlu0 %5297
    %5300 = vset.pattern.permute.xlu0 4
    %5301 = vperm.xlu0 %5300, %v4351
    %v5302 = vpop.permute.xlu0 %5301
    %5304 = vset.pattern.permute.xlu0 4
    %5305 = vperm.xlu0 %5304, %v4352
    %v5306 = vpop.permute.xlu0 %5305
    %5308 = vset.pattern.permute.xlu0 4
    %5309 = vperm.xlu0 %5308, %v4353
    %v5310 = vpop.permute.xlu0 %5309
    %5312 = vset.pattern.permute.xlu0 4
    %5313 = vperm.xlu0 %5312, %v4354
    %v5314 = vpop.permute.xlu0 %5313
    %5316 = vset.pattern.permute.xlu0 4
    %5317 = vperm.xlu0 %5316, %v4355
    %v5318 = vpop.permute.xlu0 %5317
    %5320 = vset.pattern.permute.xlu0 4
    %5321 = vperm.xlu0 %5320, %v4356
    %v5322 = vpop.permute.xlu0 %5321
    %5324 = vset.pattern.permute.xlu0 4
    %5325 = vperm.xlu0 %5324, %v4357
    %v5326 = vpop.permute.xlu0 %5325
    %5328 = vset.pattern.permute.xlu0 4
    %5329 = vperm.xlu0 %5328, %v4358
    %v5330 = vpop.permute.xlu0 %5329
    %5332 = vset.pattern.permute.xlu0 4
    %5333 = vperm.xlu0 %5332, %v4359
    %v5334 = vpop.permute.xlu0 %5333
    %5336 = vset.pattern.permute.xlu0 4
    %5337 = vperm.xlu0 %5336, %v4360
    %v5338 = vpop.permute.xlu0 %5337
    %5340 = vset.pattern.permute.xlu0 4
    %5341 = vperm.xlu0 %5340, %v4361
    %v5342 = vpop.permute.xlu0 %5341
    %v5344 = vmul.f32 %v5282, %v4478
    %v5345 = vmul.f32 %v5286, %v4478
    %v5346 = vmul.f32 %v5290, %v4478
    %v5347 = vmul.f32 %v5294, %v4478
    %v5348 = vmul.f32 %v5298, %v4478
    %v5349 = vmul.f32 %v5302, %v4478
    %v5350 = vmul.f32 %v5306, %v4478
    %v5351 = vmul.f32 %v5310, %v4478
    %v5352 = vmul.f32 %v5314, %v4478
    %v5353 = vmul.f32 %v5318, %v4478
    %v5354 = vmul.f32 %v5322, %v4478
    %v5355 = vmul.f32 %v5326, %v4478
    %v5356 = vmul.f32 %v5330, %v4478
    %v5357 = vmul.f32 %v5334, %v4478
    %v5358 = vmul.f32 %v5338, %v4478
    %v5359 = vmul.f32 %v5342, %v4478
    %v5360 = vmul.f32 %v5344, 1.442695
    %v5361 = vpow.pop %v5360
    %v5362 = vmul.f32 %v5345, 1.442695
    %v5363 = vpow.pop %v5362
    %v5364 = vmul.f32 %v5346, 1.442695
    %v5365 = vpow.pop %v5364
    %v5366 = vmul.f32 %v5347, 1.442695
    %v5367 = vpow.pop %v5366
    %v5368 = vmul.f32 %v5348, 1.442695
    %v5369 = vpow.pop %v5368
    %v5370 = vmul.f32 %v5349, 1.442695
    %v5371 = vpow.pop %v5370
    %v5372 = vmul.f32 %v5350, 1.442695
    %v5373 = vpow.pop %v5372
    %v5374 = vmul.f32 %v5351, 1.442695
    %v5375 = vpow.pop %v5374
    %v5376 = vmul.f32 %v5352, 1.442695
    %v5377 = vpow.pop %v5376
    %v5378 = vmul.f32 %v5353, 1.442695
    %v5379 = vpow.pop %v5378
    %v5380 = vmul.f32 %v5354, 1.442695
    %v5381 = vpow.pop %v5380
    %v5382 = vmul.f32 %v5355, 1.442695
    %v5383 = vpow.pop %v5382
    %v5384 = vmul.f32 %v5356, 1.442695
    %v5385 = vpow.pop %v5384
    %v5386 = vmul.f32 %v5357, 1.442695
    %v5387 = vpow.pop %v5386
    %v5388 = vmul.f32 %v5358, 1.442695
    %v5389 = vpow.pop %v5388
    %v5390 = vmul.f32 %v5359, 1.442695
    %v5391 = vpow.pop %v5390
    %5392 = vset.pattern.permute.xlu0 4
    %5393 = vperm.xlu0 %5392, %v4378
    %v5394 = vpop.permute.xlu0 %5393
    %5396 = vset.pattern.permute.xlu0 4
    %5397 = vperm.xlu0 %5396, %v4379
    %v5398 = vpop.permute.xlu0 %5397
    %5400 = vset.pattern.permute.xlu0 4
    %5401 = vperm.xlu0 %5400, %v4380
    %v5402 = vpop.permute.xlu0 %5401
    %5404 = vset.pattern.permute.xlu0 4
    %5405 = vperm.xlu0 %5404, %v4381
    %v5406 = vpop.permute.xlu0 %5405
    %5408 = vset.pattern.permute.xlu0 4
    %5409 = vperm.xlu0 %5408, %v4382
    %v5410 = vpop.permute.xlu0 %5409
    %5412 = vset.pattern.permute.xlu0 4
    %5413 = vperm.xlu0 %5412, %v4383
    %v5414 = vpop.permute.xlu0 %5413
    %5416 = vset.pattern.permute.xlu0 4
    %5417 = vperm.xlu0 %5416, %v4384
    %v5418 = vpop.permute.xlu0 %5417
    %5420 = vset.pattern.permute.xlu0 4
    %5421 = vperm.xlu0 %5420, %v4385
    %v5422 = vpop.permute.xlu0 %5421
    %5424 = vset.pattern.permute.xlu0 4
    %5425 = vperm.xlu0 %5424, %v4386
    %v5426 = vpop.permute.xlu0 %5425
    %5428 = vset.pattern.permute.xlu0 4
    %5429 = vperm.xlu0 %5428, %v4387
    %v5430 = vpop.permute.xlu0 %5429
    %5432 = vset.pattern.permute.xlu0 4
    %5433 = vperm.xlu0 %5432, %v4388
    %v5434 = vpop.permute.xlu0 %5433
    %5436 = vset.pattern.permute.xlu0 4
    %5437 = vperm.xlu0 %5436, %v4389
    %v5438 = vpop.permute.xlu0 %5437
    %5440 = vset.pattern.permute.xlu0 4
    %5441 = vperm.xlu0 %5440, %v4390
    %v5442 = vpop.permute.xlu0 %5441
    %5444 = vset.pattern.permute.xlu0 4
    %5445 = vperm.xlu0 %5444, %v4391
    %v5446 = vpop.permute.xlu0 %5445
    %5448 = vset.pattern.permute.xlu0 4
    %5449 = vperm.xlu0 %5448, %v4392
    %v5450 = vpop.permute.xlu0 %5449
    %5452 = vset.pattern.permute.xlu0 4
    %5453 = vperm.xlu0 %5452, %v4393
    %v5454 = vpop.permute.xlu0 %5453
    %v5456 = vlaneseq
    %v5457 = vshrl.u32 %v5456, 7
    %v5458 = vsub.s32 4, %v5457
    %v5459 = vrot.slane %v4047, %v5458
    %v5460 = vmul.f32 %v5394, %v5459
    %v5461 = vmul.f32 %v5398, %v5459
    %v5462 = vmul.f32 %v5402, %v5459
    %v5463 = vmul.f32 %v5406, %v5459
    %v5464 = vmul.f32 %v5410, %v5459
    %v5465 = vmul.f32 %v5414, %v5459
    %v5466 = vmul.f32 %v5418, %v5459
    %v5467 = vmul.f32 %v5422, %v5459
    %v5468 = vmul.f32 %v5426, %v5459
    %v5469 = vmul.f32 %v5430, %v5459
    %v5470 = vmul.f32 %v5434, %v5459
    %v5471 = vmul.f32 %v5438, %v5459
    %v5472 = vmul.f32 %v5442, %v5459
    %v5473 = vmul.f32 %v5446, %v5459
    %v5474 = vmul.f32 %v5450, %v5459
    %v5475 = vmul.f32 %v5454, %v5459
    %v5476 = vmul.f32 %v5361, %v5460
    %v5477 = vmul.f32 %v5363, %v5461
    %v5478 = vmul.f32 %v5365, %v5462
    %v5479 = vmul.f32 %v5367, %v5463
    %v5480 = vmul.f32 %v5369, %v5464
    %v5481 = vmul.f32 %v5371, %v5465
    %v5482 = vmul.f32 %v5373, %v5466
    %v5483 = vmul.f32 %v5375, %v5467
    %v5484 = vmul.f32 %v5377, %v5468
    %v5485 = vmul.f32 %v5379, %v5469
    %v5486 = vmul.f32 %v5381, %v5470
    %v5487 = vmul.f32 %v5383, %v5471
    %v5488 = vmul.f32 %v5385, %v5472
    %v5489 = vmul.f32 %v5387, %v5473
    %v5490 = vmul.f32 %v5389, %v5474
    %v5491 = vmul.f32 %v5391, %v5475
    %5492 = vset.pattern.permute.xlu0 5
    %5493 = vperm.xlu0 %5492, %v4346
    %v5494 = vpop.permute.xlu0 %5493
    %5496 = vset.pattern.permute.xlu0 5
    %5497 = vperm.xlu0 %5496, %v4347
    %v5498 = vpop.permute.xlu0 %5497
    %5500 = vset.pattern.permute.xlu0 5
    %5501 = vperm.xlu0 %5500, %v4348
    %v5502 = vpop.permute.xlu0 %5501
    %5504 = vset.pattern.permute.xlu0 5
    %5505 = vperm.xlu0 %5504, %v4349
    %v5506 = vpop.permute.xlu0 %5505
    %5508 = vset.pattern.permute.xlu0 5
    %5509 = vperm.xlu0 %5508, %v4350
    %v5510 = vpop.permute.xlu0 %5509
    %5512 = vset.pattern.permute.xlu0 5
    %5513 = vperm.xlu0 %5512, %v4351
    %v5514 = vpop.permute.xlu0 %5513
    %5516 = vset.pattern.permute.xlu0 5
    %5517 = vperm.xlu0 %5516, %v4352
    %v5518 = vpop.permute.xlu0 %5517
    %5520 = vset.pattern.permute.xlu0 5
    %5521 = vperm.xlu0 %5520, %v4353
    %v5522 = vpop.permute.xlu0 %5521
    %5524 = vset.pattern.permute.xlu0 5
    %5525 = vperm.xlu0 %5524, %v4354
    %v5526 = vpop.permute.xlu0 %5525
    %5528 = vset.pattern.permute.xlu0 5
    %5529 = vperm.xlu0 %5528, %v4355
    %v5530 = vpop.permute.xlu0 %5529
    %5532 = vset.pattern.permute.xlu0 5
    %5533 = vperm.xlu0 %5532, %v4356
    %v5534 = vpop.permute.xlu0 %5533
    %5536 = vset.pattern.permute.xlu0 5
    %5537 = vperm.xlu0 %5536, %v4357
    %v5538 = vpop.permute.xlu0 %5537
    %5540 = vset.pattern.permute.xlu0 5
    %5541 = vperm.xlu0 %5540, %v4358
    %v5542 = vpop.permute.xlu0 %5541
    %5544 = vset.pattern.permute.xlu0 5
    %5545 = vperm.xlu0 %5544, %v4359
    %v5546 = vpop.permute.xlu0 %5545
    %5548 = vset.pattern.permute.xlu0 5
    %5549 = vperm.xlu0 %5548, %v4360
    %v5550 = vpop.permute.xlu0 %5549
    %5552 = vset.pattern.permute.xlu0 5
    %5553 = vperm.xlu0 %5552, %v4361
    %v5554 = vpop.permute.xlu0 %5553
    %v5556 = vmul.f32 %v5494, %v4478
    %v5557 = vmul.f32 %v5498, %v4478
    %v5558 = vmul.f32 %v5502, %v4478
    %v5559 = vmul.f32 %v5506, %v4478
    %v5560 = vmul.f32 %v5510, %v4478
    %v5561 = vmul.f32 %v5514, %v4478
    %v5562 = vmul.f32 %v5518, %v4478
    %v5563 = vmul.f32 %v5522, %v4478
    %v5564 = vmul.f32 %v5526, %v4478
    %v5565 = vmul.f32 %v5530, %v4478
    %v5566 = vmul.f32 %v5534, %v4478
    %v5567 = vmul.f32 %v5538, %v4478
    %v5568 = vmul.f32 %v5542, %v4478
    %v5569 = vmul.f32 %v5546, %v4478
    %v5570 = vmul.f32 %v5550, %v4478
    %v5571 = vmul.f32 %v5554, %v4478
    %v5572 = vmul.f32 %v5556, 1.442695
    %v5573 = vpow.pop %v5572
    %v5574 = vmul.f32 %v5557, 1.442695
    %v5575 = vpow.pop %v5574
    %v5576 = vmul.f32 %v5558, 1.442695
    %v5577 = vpow.pop %v5576
    %v5578 = vmul.f32 %v5559, 1.442695
    %v5579 = vpow.pop %v5578
    %v5580 = vmul.f32 %v5560, 1.442695
    %v5581 = vpow.pop %v5580
    %v5582 = vmul.f32 %v5561, 1.442695
    %v5583 = vpow.pop %v5582
    %v5584 = vmul.f32 %v5562, 1.442695
    %v5585 = vpow.pop %v5584
    %v5586 = vmul.f32 %v5563, 1.442695
    %v5587 = vpow.pop %v5586
    %v5588 = vmul.f32 %v5564, 1.442695
    %v5589 = vpow.pop %v5588
    %v5590 = vmul.f32 %v5565, 1.442695
    %v5591 = vpow.pop %v5590
    %v5592 = vmul.f32 %v5566, 1.442695
    %v5593 = vpow.pop %v5592
    %v5594 = vmul.f32 %v5567, 1.442695
    %v5595 = vpow.pop %v5594
    %v5596 = vmul.f32 %v5568, 1.442695
    %v5597 = vpow.pop %v5596
    %v5598 = vmul.f32 %v5569, 1.442695
    %v5599 = vpow.pop %v5598
    %v5600 = vmul.f32 %v5570, 1.442695
    %v5601 = vpow.pop %v5600
    %v5602 = vmul.f32 %v5571, 1.442695
    %v5603 = vpow.pop %v5602
    %5604 = vset.pattern.permute.xlu0 5
    %5605 = vperm.xlu0 %5604, %v4378
    %v5606 = vpop.permute.xlu0 %5605
    %5608 = vset.pattern.permute.xlu0 5
    %5609 = vperm.xlu0 %5608, %v4379
    %v5610 = vpop.permute.xlu0 %5609
    %5612 = vset.pattern.permute.xlu0 5
    %5613 = vperm.xlu0 %5612, %v4380
    %v5614 = vpop.permute.xlu0 %5613
    %5616 = vset.pattern.permute.xlu0 5
    %5617 = vperm.xlu0 %5616, %v4381
    %v5618 = vpop.permute.xlu0 %5617
    %5620 = vset.pattern.permute.xlu0 5
    %5621 = vperm.xlu0 %5620, %v4382
    %v5622 = vpop.permute.xlu0 %5621
    %5624 = vset.pattern.permute.xlu0 5
    %5625 = vperm.xlu0 %5624, %v4383
    %v5626 = vpop.permute.xlu0 %5625
    %5628 = vset.pattern.permute.xlu0 5
    %5629 = vperm.xlu0 %5628, %v4384
    %v5630 = vpop.permute.xlu0 %5629
    %5632 = vset.pattern.permute.xlu0 5
    %5633 = vperm.xlu0 %5632, %v4385
    %v5634 = vpop.permute.xlu0 %5633
    %5636 = vset.pattern.permute.xlu0 5
    %5637 = vperm.xlu0 %5636, %v4386
    %v5638 = vpop.permute.xlu0 %5637
    %5640 = vset.pattern.permute.xlu0 5
    %5641 = vperm.xlu0 %5640, %v4387
    %v5642 = vpop.permute.xlu0 %5641
    %5644 = vset.pattern.permute.xlu0 5
    %5645 = vperm.xlu0 %5644, %v4388
    %v5646 = vpop.permute.xlu0 %5645
    %5648 = vset.pattern.permute.xlu0 5
    %5649 = vperm.xlu0 %5648, %v4389
    %v5650 = vpop.permute.xlu0 %5649
    %5652 = vset.pattern.permute.xlu0 5
    %5653 = vperm.xlu0 %5652, %v4390
    %v5654 = vpop.permute.xlu0 %5653
    %5656 = vset.pattern.permute.xlu0 5
    %5657 = vperm.xlu0 %5656, %v4391
    %v5658 = vpop.permute.xlu0 %5657
    %5660 = vset.pattern.permute.xlu0 5
    %5661 = vperm.xlu0 %5660, %v4392
    %v5662 = vpop.permute.xlu0 %5661
    %5664 = vset.pattern.permute.xlu0 5
    %5665 = vperm.xlu0 %5664, %v4393
    %v5666 = vpop.permute.xlu0 %5665
    %v5668 = vlaneseq
    %v5669 = vshrl.u32 %v5668, 7
    %v5670 = vsub.s32 5, %v5669
    %v5671 = vrot.slane %v4047, %v5670
    %v5672 = vmul.f32 %v5606, %v5671
    %v5673 = vmul.f32 %v5610, %v5671
    %v5674 = vmul.f32 %v5614, %v5671
    %v5675 = vmul.f32 %v5618, %v5671
    %v5676 = vmul.f32 %v5622, %v5671
    %v5677 = vmul.f32 %v5626, %v5671
    %v5678 = vmul.f32 %v5630, %v5671
    %v5679 = vmul.f32 %v5634, %v5671
    %v5680 = vmul.f32 %v5638, %v5671
    %v5681 = vmul.f32 %v5642, %v5671
    %v5682 = vmul.f32 %v5646, %v5671
    %v5683 = vmul.f32 %v5650, %v5671
    %v5684 = vmul.f32 %v5654, %v5671
    %v5685 = vmul.f32 %v5658, %v5671
    %v5686 = vmul.f32 %v5662, %v5671
    %v5687 = vmul.f32 %v5666, %v5671
    %v5688 = vmul.f32 %v5573, %v5672
    %v5689 = vmul.f32 %v5575, %v5673
    %v5690 = vmul.f32 %v5577, %v5674
    %v5691 = vmul.f32 %v5579, %v5675
    %v5692 = vmul.f32 %v5581, %v5676
    %v5693 = vmul.f32 %v5583, %v5677
    %v5694 = vmul.f32 %v5585, %v5678
    %v5695 = vmul.f32 %v5587, %v5679
    %v5696 = vmul.f32 %v5589, %v5680
    %v5697 = vmul.f32 %v5591, %v5681
    %v5698 = vmul.f32 %v5593, %v5682
    %v5699 = vmul.f32 %v5595, %v5683
    %v5700 = vmul.f32 %v5597, %v5684
    %v5701 = vmul.f32 %v5599, %v5685
    %v5702 = vmul.f32 %v5601, %v5686
    %v5703 = vmul.f32 %v5603, %v5687
    %5704 = vset.pattern.permute.xlu0 6
    %5705 = vperm.xlu0 %5704, %v4346
    %v5706 = vpop.permute.xlu0 %5705
    %5708 = vset.pattern.permute.xlu0 6
    %5709 = vperm.xlu0 %5708, %v4347
    %v5710 = vpop.permute.xlu0 %5709
    %5712 = vset.pattern.permute.xlu0 6
    %5713 = vperm.xlu0 %5712, %v4348
    %v5714 = vpop.permute.xlu0 %5713
    %5716 = vset.pattern.permute.xlu0 6
    %5717 = vperm.xlu0 %5716, %v4349
    %v5718 = vpop.permute.xlu0 %5717
    %5720 = vset.pattern.permute.xlu0 6
    %5721 = vperm.xlu0 %5720, %v4350
    %v5722 = vpop.permute.xlu0 %5721
    %5724 = vset.pattern.permute.xlu0 6
    %5725 = vperm.xlu0 %5724, %v4351
    %v5726 = vpop.permute.xlu0 %5725
    %5728 = vset.pattern.permute.xlu0 6
    %5729 = vperm.xlu0 %5728, %v4352
    %v5730 = vpop.permute.xlu0 %5729
    %5732 = vset.pattern.permute.xlu0 6
    %5733 = vperm.xlu0 %5732, %v4353
    %v5734 = vpop.permute.xlu0 %5733
    %5736 = vset.pattern.permute.xlu0 6
    %5737 = vperm.xlu0 %5736, %v4354
    %v5738 = vpop.permute.xlu0 %5737
    %5740 = vset.pattern.permute.xlu0 6
    %5741 = vperm.xlu0 %5740, %v4355
    %v5742 = vpop.permute.xlu0 %5741
    %5744 = vset.pattern.permute.xlu0 6
    %5745 = vperm.xlu0 %5744, %v4356
    %v5746 = vpop.permute.xlu0 %5745
    %5748 = vset.pattern.permute.xlu0 6
    %5749 = vperm.xlu0 %5748, %v4357
    %v5750 = vpop.permute.xlu0 %5749
    %5752 = vset.pattern.permute.xlu0 6
    %5753 = vperm.xlu0 %5752, %v4358
    %v5754 = vpop.permute.xlu0 %5753
    %5756 = vset.pattern.permute.xlu0 6
    %5757 = vperm.xlu0 %5756, %v4359
    %v5758 = vpop.permute.xlu0 %5757
    %5760 = vset.pattern.permute.xlu0 6
    %5761 = vperm.xlu0 %5760, %v4360
    %v5762 = vpop.permute.xlu0 %5761
    %5764 = vset.pattern.permute.xlu0 6
    %5765 = vperm.xlu0 %5764, %v4361
    %v5766 = vpop.permute.xlu0 %5765
    %v5768 = vmul.f32 %v5706, %v4478
    %v5769 = vmul.f32 %v5710, %v4478
    %v5770 = vmul.f32 %v5714, %v4478
    %v5771 = vmul.f32 %v5718, %v4478
    %v5772 = vmul.f32 %v5722, %v4478
    %v5773 = vmul.f32 %v5726, %v4478
    %v5774 = vmul.f32 %v5730, %v4478
    %v5775 = vmul.f32 %v5734, %v4478
    %v5776 = vmul.f32 %v5738, %v4478
    %v5777 = vmul.f32 %v5742, %v4478
    %v5778 = vmul.f32 %v5746, %v4478
    %v5779 = vmul.f32 %v5750, %v4478
    %v5780 = vmul.f32 %v5754, %v4478
    %v5781 = vmul.f32 %v5758, %v4478
    %v5782 = vmul.f32 %v5762, %v4478
    %v5783 = vmul.f32 %v5766, %v4478
    %v5784 = vmul.f32 %v5768, 1.442695
    %v5785 = vpow.pop %v5784
    %v5786 = vmul.f32 %v5769, 1.442695
    %v5787 = vpow.pop %v5786
    %v5788 = vmul.f32 %v5770, 1.442695
    %v5789 = vpow.pop %v5788
    %v5790 = vmul.f32 %v5771, 1.442695
    %v5791 = vpow.pop %v5790
    %v5792 = vmul.f32 %v5772, 1.442695
    %v5793 = vpow.pop %v5792
    %v5794 = vmul.f32 %v5773, 1.442695
    %v5795 = vpow.pop %v5794
    %v5796 = vmul.f32 %v5774, 1.442695
    %v5797 = vpow.pop %v5796
    %v5798 = vmul.f32 %v5775, 1.442695
    %v5799 = vpow.pop %v5798
    %v5800 = vmul.f32 %v5776, 1.442695
    %v5801 = vpow.pop %v5800
    %v5802 = vmul.f32 %v5777, 1.442695
    %v5803 = vpow.pop %v5802
    %v5804 = vmul.f32 %v5778, 1.442695
    %v5805 = vpow.pop %v5804
    %v5806 = vmul.f32 %v5779, 1.442695
    %v5807 = vpow.pop %v5806
    %v5808 = vmul.f32 %v5780, 1.442695
    %v5809 = vpow.pop %v5808
    %v5810 = vmul.f32 %v5781, 1.442695
    %v5811 = vpow.pop %v5810
    %v5812 = vmul.f32 %v5782, 1.442695
    %v5813 = vpow.pop %v5812
    %v5814 = vmul.f32 %v5783, 1.442695
    %v5815 = vpow.pop %v5814
    %5816 = vset.pattern.permute.xlu0 6
    %5817 = vperm.xlu0 %5816, %v4378
    %v5818 = vpop.permute.xlu0 %5817
    %5820 = vset.pattern.permute.xlu0 6
    %5821 = vperm.xlu0 %5820, %v4379
    %v5822 = vpop.permute.xlu0 %5821
    %5824 = vset.pattern.permute.xlu0 6
    %5825 = vperm.xlu0 %5824, %v4380
    %v5826 = vpop.permute.xlu0 %5825
    %5828 = vset.pattern.permute.xlu0 6
    %5829 = vperm.xlu0 %5828, %v4381
    %v5830 = vpop.permute.xlu0 %5829
    %5832 = vset.pattern.permute.xlu0 6
    %5833 = vperm.xlu0 %5832, %v4382
    %v5834 = vpop.permute.xlu0 %5833
    %5836 = vset.pattern.permute.xlu0 6
    %5837 = vperm.xlu0 %5836, %v4383
    %v5838 = vpop.permute.xlu0 %5837
    %5840 = vset.pattern.permute.xlu0 6
    %5841 = vperm.xlu0 %5840, %v4384
    %v5842 = vpop.permute.xlu0 %5841
    %5844 = vset.pattern.permute.xlu0 6
    %5845 = vperm.xlu0 %5844, %v4385
    %v5846 = vpop.permute.xlu0 %5845
    %5848 = vset.pattern.permute.xlu0 6
    %5849 = vperm.xlu0 %5848, %v4386
    %v5850 = vpop.permute.xlu0 %5849
    %5852 = vset.pattern.permute.xlu0 6
    %5853 = vperm.xlu0 %5852, %v4387
    %v5854 = vpop.permute.xlu0 %5853
    %5856 = vset.pattern.permute.xlu0 6
    %5857 = vperm.xlu0 %5856, %v4388
    %v5858 = vpop.permute.xlu0 %5857
    %5860 = vset.pattern.permute.xlu0 6
    %5861 = vperm.xlu0 %5860, %v4389
    %v5862 = vpop.permute.xlu0 %5861
    %5864 = vset.pattern.permute.xlu0 6
    %5865 = vperm.xlu0 %5864, %v4390
    %v5866 = vpop.permute.xlu0 %5865
    %5868 = vset.pattern.permute.xlu0 6
    %5869 = vperm.xlu0 %5868, %v4391
    %v5870 = vpop.permute.xlu0 %5869
    %5872 = vset.pattern.permute.xlu0 6
    %5873 = vperm.xlu0 %5872, %v4392
    %v5874 = vpop.permute.xlu0 %5873
    %5876 = vset.pattern.permute.xlu0 6
    %5877 = vperm.xlu0 %5876, %v4393
    %v5878 = vpop.permute.xlu0 %5877
    %v5880 = vlaneseq
    %v5881 = vshrl.u32 %v5880, 7
    %v5882 = vsub.s32 6, %v5881
    %v5883 = vrot.slane %v4047, %v5882
    %v5884 = vmul.f32 %v5818, %v5883
    %v5885 = vmul.f32 %v5822, %v5883
    %v5886 = vmul.f32 %v5826, %v5883
    %v5887 = vmul.f32 %v5830, %v5883
    %v5888 = vmul.f32 %v5834, %v5883
    %v5889 = vmul.f32 %v5838, %v5883
    %v5890 = vmul.f32 %v5842, %v5883
    %v5891 = vmul.f32 %v5846, %v5883
    %v5892 = vmul.f32 %v5850, %v5883
    %v5893 = vmul.f32 %v5854, %v5883
    %v5894 = vmul.f32 %v5858, %v5883
    %v5895 = vmul.f32 %v5862, %v5883
    %v5896 = vmul.f32 %v5866, %v5883
    %v5897 = vmul.f32 %v5870, %v5883
    %v5898 = vmul.f32 %v5874, %v5883
    %v5899 = vmul.f32 %v5878, %v5883
    %v5900 = vmul.f32 %v5785, %v5884
    %v5901 = vmul.f32 %v5787, %v5885
    %v5902 = vmul.f32 %v5789, %v5886
    %v5903 = vmul.f32 %v5791, %v5887
    %v5904 = vmul.f32 %v5793, %v5888
    %v5905 = vmul.f32 %v5795, %v5889
    %v5906 = vmul.f32 %v5797, %v5890
    %v5907 = vmul.f32 %v5799, %v5891
    %v5908 = vmul.f32 %v5801, %v5892
    %v5909 = vmul.f32 %v5803, %v5893
    %v5910 = vmul.f32 %v5805, %v5894
    %v5911 = vmul.f32 %v5807, %v5895
    %v5912 = vmul.f32 %v5809, %v5896
    %v5913 = vmul.f32 %v5811, %v5897
    %v5914 = vmul.f32 %v5813, %v5898
    %v5915 = vmul.f32 %v5815, %v5899
    %5916 = vset.pattern.permute.xlu0 7
    %5917 = vperm.xlu0 %5916, %v4346
    %v5918 = vpop.permute.xlu0 %5917
    %5920 = vset.pattern.permute.xlu0 7
    %5921 = vperm.xlu0 %5920, %v4347
    %v5922 = vpop.permute.xlu0 %5921
    %5924 = vset.pattern.permute.xlu0 7
    %5925 = vperm.xlu0 %5924, %v4348
    %v5926 = vpop.permute.xlu0 %5925
    %5928 = vset.pattern.permute.xlu0 7
    %5929 = vperm.xlu0 %5928, %v4349
    %v5930 = vpop.permute.xlu0 %5929
    %5932 = vset.pattern.permute.xlu0 7
    %5933 = vperm.xlu0 %5932, %v4350
    %v5934 = vpop.permute.xlu0 %5933
    %5936 = vset.pattern.permute.xlu0 7
    %5937 = vperm.xlu0 %5936, %v4351
    %v5938 = vpop.permute.xlu0 %5937
    %5940 = vset.pattern.permute.xlu0 7
    %5941 = vperm.xlu0 %5940, %v4352
    %v5942 = vpop.permute.xlu0 %5941
    %5944 = vset.pattern.permute.xlu0 7
    %5945 = vperm.xlu0 %5944, %v4353
    %v5946 = vpop.permute.xlu0 %5945
    %5948 = vset.pattern.permute.xlu0 7
    %5949 = vperm.xlu0 %5948, %v4354
    %v5950 = vpop.permute.xlu0 %5949
    %5952 = vset.pattern.permute.xlu0 7
    %5953 = vperm.xlu0 %5952, %v4355
    %v5954 = vpop.permute.xlu0 %5953
    %5956 = vset.pattern.permute.xlu0 7
    %5957 = vperm.xlu0 %5956, %v4356
    %v5958 = vpop.permute.xlu0 %5957
    %5960 = vset.pattern.permute.xlu0 7
    %5961 = vperm.xlu0 %5960, %v4357
    %v5962 = vpop.permute.xlu0 %5961
    %5964 = vset.pattern.permute.xlu0 7
    %5965 = vperm.xlu0 %5964, %v4358
    %v5966 = vpop.permute.xlu0 %5965
    %5968 = vset.pattern.permute.xlu0 7
    %5969 = vperm.xlu0 %5968, %v4359
    %v5970 = vpop.permute.xlu0 %5969
    %5972 = vset.pattern.permute.xlu0 7
    %5973 = vperm.xlu0 %5972, %v4360
    %v5974 = vpop.permute.xlu0 %5973
    %5976 = vset.pattern.permute.xlu0 7
    %5977 = vperm.xlu0 %5976, %v4361
    %v5978 = vpop.permute.xlu0 %5977
    %v5980 = vmul.f32 %v5918, %v4478
    %v5981 = vmul.f32 %v5922, %v4478
    %v5982 = vmul.f32 %v5926, %v4478
    %v5983 = vmul.f32 %v5930, %v4478
    %v5984 = vmul.f32 %v5934, %v4478
    %v5985 = vmul.f32 %v5938, %v4478
    %v5986 = vmul.f32 %v5942, %v4478
    %v5987 = vmul.f32 %v5946, %v4478
    %v5988 = vmul.f32 %v5950, %v4478
    %v5989 = vmul.f32 %v5954, %v4478
    %v5990 = vmul.f32 %v5958, %v4478
    %v5991 = vmul.f32 %v5962, %v4478
    %v5992 = vmul.f32 %v5966, %v4478
    %v5993 = vmul.f32 %v5970, %v4478
    %v5994 = vmul.f32 %v5974, %v4478
    %v5995 = vmul.f32 %v5978, %v4478
    %v5996 = vmul.f32 %v5980, 1.442695
    %v5997 = vpow.pop %v5996
    %v5998 = vmul.f32 %v5981, 1.442695
    %v5999 = vpow.pop %v5998
    %v6000 = vmul.f32 %v5982, 1.442695
    %v6001 = vpow.pop %v6000
    %v6002 = vmul.f32 %v5983, 1.442695
    %v6003 = vpow.pop %v6002
    %v6004 = vmul.f32 %v5984, 1.442695
    %v6005 = vpow.pop %v6004
    %v6006 = vmul.f32 %v5985, 1.442695
    %v6007 = vpow.pop %v6006
    %v6008 = vmul.f32 %v5986, 1.442695
    %v6009 = vpow.pop %v6008
    %v6010 = vmul.f32 %v5987, 1.442695
    %v6011 = vpow.pop %v6010
    %v6012 = vmul.f32 %v5988, 1.442695
    %v6013 = vpow.pop %v6012
    %v6014 = vmul.f32 %v5989, 1.442695
    %v6015 = vpow.pop %v6014
    %v6016 = vmul.f32 %v5990, 1.442695
    %v6017 = vpow.pop %v6016
    %v6018 = vmul.f32 %v5991, 1.442695
    %v6019 = vpow.pop %v6018
    %v6020 = vmul.f32 %v5992, 1.442695
    %v6021 = vpow.pop %v6020
    %v6022 = vmul.f32 %v5993, 1.442695
    %v6023 = vpow.pop %v6022
    %v6024 = vmul.f32 %v5994, 1.442695
    %v6025 = vpow.pop %v6024
    %v6026 = vmul.f32 %v5995, 1.442695
    %v6027 = vpow.pop %v6026
    %6028 = vset.pattern.permute.xlu0 7
    %6029 = vperm.xlu0 %6028, %v4378
    %v6030 = vpop.permute.xlu0 %6029
    %6032 = vset.pattern.permute.xlu0 7
    %6033 = vperm.xlu0 %6032, %v4379
    %v6034 = vpop.permute.xlu0 %6033
    %6036 = vset.pattern.permute.xlu0 7
    %6037 = vperm.xlu0 %6036, %v4380
    %v6038 = vpop.permute.xlu0 %6037
    %6040 = vset.pattern.permute.xlu0 7
    %6041 = vperm.xlu0 %6040, %v4381
    %v6042 = vpop.permute.xlu0 %6041
    %6044 = vset.pattern.permute.xlu0 7
    %6045 = vperm.xlu0 %6044, %v4382
    %v6046 = vpop.permute.xlu0 %6045
    %6048 = vset.pattern.permute.xlu0 7
    %6049 = vperm.xlu0 %6048, %v4383
    %v6050 = vpop.permute.xlu0 %6049
    %6052 = vset.pattern.permute.xlu0 7
    %6053 = vperm.xlu0 %6052, %v4384
    %v6054 = vpop.permute.xlu0 %6053
    %6056 = vset.pattern.permute.xlu0 7
    %6057 = vperm.xlu0 %6056, %v4385
    %v6058 = vpop.permute.xlu0 %6057
    %6060 = vset.pattern.permute.xlu0 7
    %6061 = vperm.xlu0 %6060, %v4386
    %v6062 = vpop.permute.xlu0 %6061
    %6064 = vset.pattern.permute.xlu0 7
    %6065 = vperm.xlu0 %6064, %v4387
    %v6066 = vpop.permute.xlu0 %6065
    %6068 = vset.pattern.permute.xlu0 7
    %6069 = vperm.xlu0 %6068, %v4388
    %v6070 = vpop.permute.xlu0 %6069
    %6072 = vset.pattern.permute.xlu0 7
    %6073 = vperm.xlu0 %6072, %v4389
    %v6074 = vpop.permute.xlu0 %6073
    %6076 = vset.pattern.permute.xlu0 7
    %6077 = vperm.xlu0 %6076, %v4390
    %v6078 = vpop.permute.xlu0 %6077
    %6080 = vset.pattern.permute.xlu0 7
    %6081 = vperm.xlu0 %6080, %v4391
    %v6082 = vpop.permute.xlu0 %6081
    %6084 = vset.pattern.permute.xlu0 7
    %6085 = vperm.xlu0 %6084, %v4392
    %v6086 = vpop.permute.xlu0 %6085
    %6088 = vset.pattern.permute.xlu0 7
    %6089 = vperm.xlu0 %6088, %v4393
    %v6090 = vpop.permute.xlu0 %6089
    %v6092 = vlaneseq
    %v6093 = vshrl.u32 %v6092, 7
    %v6094 = vsub.s32 7, %v6093
    %v6095 = vrot.slane %v4047, %v6094
    %v6096 = vmul.f32 %v6030, %v6095
    %v6097 = vmul.f32 %v6034, %v6095
    %v6098 = vmul.f32 %v6038, %v6095
    %v6099 = vmul.f32 %v6042, %v6095
    %v6100 = vmul.f32 %v6046, %v6095
    %v6101 = vmul.f32 %v6050, %v6095
    %v6102 = vmul.f32 %v6054, %v6095
    %v6103 = vmul.f32 %v6058, %v6095
    %v6104 = vmul.f32 %v6062, %v6095
    %v6105 = vmul.f32 %v6066, %v6095
    %v6106 = vmul.f32 %v6070, %v6095
    %v6107 = vmul.f32 %v6074, %v6095
    %v6108 = vmul.f32 %v6078, %v6095
    %v6109 = vmul.f32 %v6082, %v6095
    %v6110 = vmul.f32 %v6086, %v6095
    %v6111 = vmul.f32 %v6090, %v6095
    %v6112 = vmul.f32 %v5997, %v6096
    %v6113 = vmul.f32 %v5999, %v6097
    %v6114 = vmul.f32 %v6001, %v6098
    %v6115 = vmul.f32 %v6003, %v6099
    %v6116 = vmul.f32 %v6005, %v6100
    %v6117 = vmul.f32 %v6007, %v6101
    %v6118 = vmul.f32 %v6009, %v6102
    %v6119 = vmul.f32 %v6011, %v6103
    %v6120 = vmul.f32 %v6013, %v6104
    %v6121 = vmul.f32 %v6015, %v6105
    %v6122 = vmul.f32 %v6017, %v6106
    %v6123 = vmul.f32 %v6019, %v6107
    %v6124 = vmul.f32 %v6021, %v6108
    %v6125 = vmul.f32 %v6023, %v6109
    %v6126 = vmul.f32 %v6025, %v6110
    %v6127 = vmul.f32 %v6027, %v6111
    %v6128 = vadd.f32 %v4628, %v4840
    %v6129 = vadd.f32 %v4629, %v4841
    %v6130 = vadd.f32 %v4630, %v4842
    %v6131 = vadd.f32 %v4631, %v4843
    %v6132 = vadd.f32 %v4632, %v4844
    %v6133 = vadd.f32 %v4633, %v4845
    %v6134 = vadd.f32 %v4634, %v4846
    %v6135 = vadd.f32 %v4635, %v4847
    %v6136 = vadd.f32 %v4636, %v4848
    %v6137 = vadd.f32 %v4637, %v4849
    %v6138 = vadd.f32 %v4638, %v4850
    %v6139 = vadd.f32 %v4639, %v4851
    %v6140 = vadd.f32 %v4640, %v4852
    %v6141 = vadd.f32 %v4641, %v4853
    %v6142 = vadd.f32 %v4642, %v4854
    %v6143 = vadd.f32 %v4643, %v4855
    %v6144 = vadd.f32 %v5052, %v5264
    %v6145 = vadd.f32 %v5053, %v5265
    %v6146 = vadd.f32 %v5054, %v5266
    %v6147 = vadd.f32 %v5055, %v5267
    %v6148 = vadd.f32 %v5056, %v5268
    %v6149 = vadd.f32 %v5057, %v5269
    %v6150 = vadd.f32 %v5058, %v5270
    %v6151 = vadd.f32 %v5059, %v5271
    %v6152 = vadd.f32 %v5060, %v5272
    %v6153 = vadd.f32 %v5061, %v5273
    %v6154 = vadd.f32 %v5062, %v5274
    %v6155 = vadd.f32 %v5063, %v5275
    %v6156 = vadd.f32 %v5064, %v5276
    %v6157 = vadd.f32 %v5065, %v5277
    %v6158 = vadd.f32 %v5066, %v5278
    %v6159 = vadd.f32 %v5067, %v5279
    %v6160 = vadd.f32 %v5476, %v5688
    %v6161 = vadd.f32 %v5477, %v5689
    %v6162 = vadd.f32 %v5478, %v5690
    %v6163 = vadd.f32 %v5479, %v5691
    %v6164 = vadd.f32 %v5480, %v5692
    %v6165 = vadd.f32 %v5481, %v5693
    %v6166 = vadd.f32 %v5482, %v5694
    %v6167 = vadd.f32 %v5483, %v5695
    %v6168 = vadd.f32 %v5484, %v5696
    %v6169 = vadd.f32 %v5485, %v5697
    %v6170 = vadd.f32 %v5486, %v5698
    %v6171 = vadd.f32 %v5487, %v5699
    %v6172 = vadd.f32 %v5488, %v5700
    %v6173 = vadd.f32 %v5489, %v5701
    %v6174 = vadd.f32 %v5490, %v5702
    %v6175 = vadd.f32 %v5491, %v5703
    %v6176 = vadd.f32 %v5900, %v6112
    %v6177 = vadd.f32 %v5901, %v6113
    %v6178 = vadd.f32 %v5902, %v6114
    %v6179 = vadd.f32 %v5903, %v6115
    %v6180 = vadd.f32 %v5904, %v6116
    %v6181 = vadd.f32 %v5905, %v6117
    %v6182 = vadd.f32 %v5906, %v6118
    %v6183 = vadd.f32 %v5907, %v6119
    %v6184 = vadd.f32 %v5908, %v6120
    %v6185 = vadd.f32 %v5909, %v6121
    %v6186 = vadd.f32 %v5910, %v6122
    %v6187 = vadd.f32 %v5911, %v6123
    %v6188 = vadd.f32 %v5912, %v6124
    %v6189 = vadd.f32 %v5913, %v6125
    %v6190 = vadd.f32 %v5914, %v6126
    %v6191 = vadd.f32 %v5915, %v6127
    %v6192 = vadd.f32 %v6128, %v6144
    %v6193 = vadd.f32 %v6129, %v6145
    %v6194 = vadd.f32 %v6130, %v6146
    %v6195 = vadd.f32 %v6131, %v6147
    %v6196 = vadd.f32 %v6132, %v6148
    %v6197 = vadd.f32 %v6133, %v6149
    %v6198 = vadd.f32 %v6134, %v6150
    %v6199 = vadd.f32 %v6135, %v6151
    %v6200 = vadd.f32 %v6136, %v6152
    %v6201 = vadd.f32 %v6137, %v6153
    %v6202 = vadd.f32 %v6138, %v6154
    %v6203 = vadd.f32 %v6139, %v6155
    %v6204 = vadd.f32 %v6140, %v6156
    %v6205 = vadd.f32 %v6141, %v6157
    %v6206 = vadd.f32 %v6142, %v6158
    %v6207 = vadd.f32 %v6143, %v6159
    %v6208 = vadd.f32 %v6160, %v6176
    %v6209 = vadd.f32 %v6161, %v6177
    %v6210 = vadd.f32 %v6162, %v6178
    %v6211 = vadd.f32 %v6163, %v6179
    %v6212 = vadd.f32 %v6164, %v6180
    %v6213 = vadd.f32 %v6165, %v6181
    %v6214 = vadd.f32 %v6166, %v6182
    %v6215 = vadd.f32 %v6167, %v6183
    %v6216 = vadd.f32 %v6168, %v6184
    %v6217 = vadd.f32 %v6169, %v6185
    %v6218 = vadd.f32 %v6170, %v6186
    %v6219 = vadd.f32 %v6171, %v6187
    %v6220 = vadd.f32 %v6172, %v6188
    %v6221 = vadd.f32 %v6173, %v6189
    %v6222 = vadd.f32 %v6174, %v6190
    %v6223 = vadd.f32 %v6175, %v6191
    %v6224 = vadd.f32 %v6192, %v6208
    %v6225 = vadd.f32 %v6193, %v6209
    %v6226 = vadd.f32 %v6194, %v6210
    %v6227 = vadd.f32 %v6195, %v6211
    %v6228 = vadd.f32 %v6196, %v6212
    %v6229 = vadd.f32 %v6197, %v6213
    %v6230 = vadd.f32 %v6198, %v6214
    %v6231 = vadd.f32 %v6199, %v6215
    %v6232 = vadd.f32 %v6200, %v6216
    %v6233 = vadd.f32 %v6201, %v6217
    %v6234 = vadd.f32 %v6202, %v6218
    %v6235 = vadd.f32 %v6203, %v6219
    %v6236 = vadd.f32 %v6204, %v6220
    %v6237 = vadd.f32 %v6205, %v6221
    %v6238 = vadd.f32 %v6206, %v6222
    %v6239 = vadd.f32 %v6207, %v6223
    %v6240 = vld [vmem:[%s37] sm:$0xff]
    %v6241 = vld [vmem:[%s37 + $0x8] sm:$0xff]
    %v6242 = vld [vmem:[%s37 + $0x10] sm:$0xff]
    %v6243 = vld [vmem:[%s37 + $0x18] sm:$0xff]
    %v6244 = vld [vmem:[%s37 + $0x20] sm:$0xff]
    %v6245 = vld [vmem:[%s37 + $0x28] sm:$0xff]
    %v6246 = vld [vmem:[%s37 + $0x30] sm:$0xff]
    %v6247 = vld [vmem:[%s37 + $0x38] sm:$0xff]
    %v6248 = vld [vmem:[%s37 + $0x40] sm:$0xff]
    %v6249 = vld [vmem:[%s37 + $0x48] sm:$0xff]
    %v6250 = vld [vmem:[%s37 + $0x50] sm:$0xff]
    %v6251 = vld [vmem:[%s37 + $0x58] sm:$0xff]
    %v6252 = vld [vmem:[%s37 + $0x60] sm:$0xff]
    %v6253 = vld [vmem:[%s37 + $0x68] sm:$0xff]
    %v6254 = vld [vmem:[%s37 + $0x70] sm:$0xff]
    %v6255 = vld [vmem:[%s37 + $0x78] sm:$0xff]
    %v6257 = vrot.slane %v3788, 7
    %6259 = vmatprep.subr.mxu0 0.0
    %6260 = vmatpush1.msra.mxu0 %v6255
    %6261 = vmatprep.subr.mxu0 0.0
    %6262 = vmatpush1.msra.mxu0 %v6254
    %6263 = vmatprep.subr.mxu0 0.0
    %6264 = vmatpush1.msra.mxu0 %v6253
    %6265 = vmatprep.subr.mxu0 0.0
    %6266 = vmatpush1.msra.mxu0 %v6252
    %6267 = vmatprep.subr.mxu0 0.0
    %6268 = vmatpush1.msra.mxu0 %v6251
    %6269 = vmatprep.subr.mxu0 0.0
    %6270 = vmatpush1.msra.mxu0 %v6250
    %6271 = vmatprep.subr.mxu0 0.0
    %6272 = vmatpush1.msra.mxu0 %v6249
    %6273 = vmatprep.subr.mxu0 0.0
    %6274 = vmatpush1.msra.mxu0 %v6248
    %6275 = vmatprep.subr.mxu0 0.0
    %6276 = vmatpush1.msra.mxu0 %v6247
    %6277 = vmatprep.subr.mxu0 0.0
    %6278 = vmatpush1.msra.mxu0 %v6246
    %6279 = vmatprep.subr.mxu0 0.0
    %6280 = vmatpush1.msra.mxu0 %v6245
    %6281 = vmatprep.subr.mxu0 0.0
    %6282 = vmatpush1.msra.mxu0 %v6244
    %6283 = vmatprep.subr.mxu0 0.0
    %6284 = vmatpush1.msra.mxu0 %v6243
    %6285 = vmatprep.subr.mxu0 0.0
    %6286 = vmatpush1.msra.mxu0 %v6242
    %6287 = vmatprep.subr.mxu0 0.0
    %6288 = vmatpush1.msra.mxu0 %v6241
    %6289 = vmatprep.subr.mxu0 0.0
    %6290 = vmatpush1.msra.mxu0 %v6240
    %6291 = vmatprep.subr.mxu0 0.0
    %6292 = vmatpush2.msra.mxu0 0.0
    %6293 = vmatprep.subr.mxu0 0.0
    %6294 = vmatpush2.msra.mxu0 0.0
    %6295 = vmatprep.subr.mxu0 0.0
    %6296 = vmatpush2.msra.mxu0 0.0
    %6297 = vmatprep.subr.mxu0 0.0
    %6298 = vmatpush2.msra.mxu0 0.0
    %6299 = vmatprep.subr.mxu0 0.0
    %6300 = vmatpush2.msra.mxu0 0.0
    %6301 = vmatprep.subr.mxu0 0.0
    %6302 = vmatpush2.msra.mxu0 0.0
    %6303 = vmatprep.subr.mxu0 0.0
    %6304 = vmatpush2.msra.mxu0 0.0
    %6305 = vmatprep.subr.mxu0 0.0
    %6306 = vmatpush2.msra.mxu0 0.0
    %6307 = vmatprep.subr.mxu0 0.0
    %6308 = vmatpush2.msra.mxu0 0.0
    %6309 = vmatprep.subr.mxu0 0.0
    %6310 = vmatpush2.msra.mxu0 0.0
    %6311 = vmatprep.subr.mxu0 0.0
    %6312 = vmatpush2.msra.mxu0 0.0
    %6313 = vmatprep.subr.mxu0 0.0
    %6314 = vmatpush2.msra.mxu0 0.0
    %6315 = vmatprep.subr.mxu0 0.0
    %6316 = vmatpush2.msra.mxu0 0.0
    %6317 = vmatprep.subr.mxu0 0.0
    %6318 = vmatpush2.msra.mxu0 0.0
    %6319 = vmatprep.subr.mxu0 0.0
    %6320 = vmatpush2.msra.mxu0 0.0
    %6321 = vmatprep.subr.mxu0 0.0
    %6322 = vmatpush2.msra.mxu0 0.0
    %6323 = vmatprep.mubr.f32.mxu0 0.0
    %6324 = vmatmul.mubr.f32.gmra.mxu0 %v6257
    %v6325 = vpop.f32.mrf.mxu0
    %v6326 = vadd.f32 0.0, %v6325
    %v6327 = vpop.f32.mrf.mxu0
    %6328 = vdwg.mxu0
    %v6329 = vld [vmem:[#allocation26] sm:$0x1]
    %v6331 = vlaneseq
    %v6332 = vshrl.u32 %v6331, 7
    %v6333 = vsub.s32 0, %v6332
    %v6334 = vrot.slane %v6329, %v6333
    %v6336 = vmul.f32 %v3930, %v6334
    %v6338 = vrot.slane %v4049, 7
    %v6341 = vrot.slane %v6336, 7
    %6343 = vmatprep.subr.mxu0 0.0
    %6344 = vmatpush1.xpose.msra.mxu0 %v6239
    %6345 = vmatprep.subr.mxu0 0.0
    %6346 = vmatpush1.xpose.msra.mxu0 %v6238
    %6347 = vmatprep.subr.mxu0 0.0
    %6348 = vmatpush1.xpose.msra.mxu0 %v6237
    %6349 = vmatprep.subr.mxu0 0.0
    %6350 = vmatpush1.xpose.msra.mxu0 %v6236
    %6351 = vmatprep.subr.mxu0 0.0
    %6352 = vmatpush1.xpose.msra.mxu0 %v6235
    %6353 = vmatprep.subr.mxu0 0.0
    %6354 = vmatpush1.xpose.msra.mxu0 %v6234
    %6355 = vmatprep.subr.mxu0 0.0
    %6356 = vmatpush1.xpose.msra.mxu0 %v6233
    %6357 = vmatprep.subr.mxu0 0.0
    %6358 = vmatpush1.xpose.msra.mxu0 %v6232
    %6359 = vmatprep.subr.mxu0 0.0
    %6360 = vmatpush1.xpose.msra.mxu0 %v6231
    %6361 = vmatprep.subr.mxu0 0.0
    %6362 = vmatpush1.xpose.msra.mxu0 %v6230
    %6363 = vmatprep.subr.mxu0 0.0
    %6364 = vmatpush1.xpose.msra.mxu0 %v6229
    %6365 = vmatprep.subr.mxu0 0.0
    %6366 = vmatpush1.xpose.msra.mxu0 %v6228
    %6367 = vmatprep.subr.mxu0 0.0
    %6368 = vmatpush1.xpose.msra.mxu0 %v6227
    %6369 = vmatprep.subr.mxu0 0.0
    %6370 = vmatpush1.xpose.msra.mxu0 %v6226
    %6371 = vmatprep.subr.mxu0 0.0
    %6372 = vmatpush1.xpose.msra.mxu0 %v6225
    %6373 = vmatprep.subr.mxu0 0.0
    %6374 = vmatpush1.xpose.msra.mxu0 %v6224
    %6375 = vmatprep.subr.mxu0 0.0
    %6376 = vmatpush2.xpose.msra.mxu0 0.0
    %6377 = vmatprep.subr.mxu0 0.0
    %6378 = vmatpush2.xpose.msra.mxu0 0.0
    %6379 = vmatprep.subr.mxu0 0.0
    %6380 = vmatpush2.xpose.msra.mxu0 0.0
    %6381 = vmatprep.subr.mxu0 0.0
    %6382 = vmatpush2.xpose.msra.mxu0 0.0
    %6383 = vmatprep.subr.mxu0 0.0
    %6384 = vmatpush2.xpose.msra.mxu0 0.0
    %6385 = vmatprep.subr.mxu0 0.0
    %6386 = vmatpush2.xpose.msra.mxu0 0.0
    %6387 = vmatprep.subr.mxu0 0.0
    %6388 = vmatpush2.xpose.msra.mxu0 0.0
    %6389 = vmatprep.subr.mxu0 0.0
    %6390 = vmatpush2.xpose.msra.mxu0 0.0
    %6391 = vmatprep.subr.mxu0 0.0
    %6392 = vmatpush2.xpose.msra.mxu0 0.0
    %6393 = vmatprep.subr.mxu0 0.0
    %6394 = vmatpush2.xpose.msra.mxu0 0.0
    %6395 = vmatprep.subr.mxu0 0.0
    %6396 = vmatpush2.xpose.msra.mxu0 0.0
    %6397 = vmatprep.subr.mxu0 0.0
    %6398 = vmatpush2.xpose.msra.mxu0 0.0
    %6399 = vmatprep.subr.mxu0 0.0
    %6400 = vmatpush2.xpose.msra.mxu0 0.0
    %6401 = vmatprep.subr.mxu0 0.0
    %6402 = vmatpush2.xpose.msra.mxu0 0.0
    %6403 = vmatprep.subr.mxu0 0.0
    %6404 = vmatpush2.xpose.msra.mxu0 0.0
    %6405 = vmatprep.subr.mxu0 0.0
    %6406 = vmatpush2.xpose.msra.mxu0 0.0
    %6407 = vmatprep.mubr.f32.mxu0 0.0
    %6408 = vmatmul.mubr.f32.gmra.mxu0 %v6338
    %v6409 = vpop.f32.mrf.mxu0
    %v6410 = vadd.f32 %v6341, %v6409
    %v6411 = vpop.f32.mrf.mxu0
    %6412 = vdwg.mxu0
    %v6413 = vxor.u32 %v6326, 2147483648
    %v6414 = vmul.f32 %v6413, 1.442695
    %v6415 = vpow.pop %v6414
    %v6416 = vadd.f32 %v6415, 1.0
    %v6417 = vrcp.pop %v6416
    %v6418 = vmul.f32 1.0, %v6417
    %v6419 = vmul.f32 %v6326, %v6418
    %v6420 = vmul.f32 %v6410, %v6419
    %v6421 = vld [vmem:[%s53] sm:$0xff]
    %v6422 = vld [vmem:[%s53 + $0x8] sm:$0xff]
    %v6423 = vld [vmem:[%s53 + $0x10] sm:$0xff]
    %v6424 = vld [vmem:[%s53 + $0x18] sm:$0xff]
    %v6425 = vld [vmem:[%s53 + $0x20] sm:$0xff]
    %v6426 = vld [vmem:[%s53 + $0x28] sm:$0xff]
    %v6427 = vld [vmem:[%s53 + $0x30] sm:$0xff]
    %v6428 = vld [vmem:[%s53 + $0x38] sm:$0xff]
    %v6429 = vld [vmem:[%s53 + $0x40] sm:$0xff]
    %v6430 = vld [vmem:[%s53 + $0x48] sm:$0xff]
    %v6431 = vld [vmem:[%s53 + $0x50] sm:$0xff]
    %v6432 = vld [vmem:[%s53 + $0x58] sm:$0xff]
    %v6433 = vld [vmem:[%s53 + $0x60] sm:$0xff]
    %v6434 = vld [vmem:[%s53 + $0x68] sm:$0xff]
    %v6435 = vld [vmem:[%s53 + $0x70] sm:$0xff]
    %v6436 = vld [vmem:[%s53 + $0x78] sm:$0xff]
    %6437 = vmatprep.subr.mxu0 0.0
    %6438 = vmatpush1.msra.mxu0 %v6436
    %6439 = vmatprep.subr.mxu0 0.0
    %6440 = vmatpush1.msra.mxu0 %v6435
    %6441 = vmatprep.subr.mxu0 0.0
    %6442 = vmatpush1.msra.mxu0 %v6434
    %6443 = vmatprep.subr.mxu0 0.0
    %6444 = vmatpush1.msra.mxu0 %v6433
    %6445 = vmatprep.subr.mxu0 0.0
    %6446 = vmatpush1.msra.mxu0 %v6432
    %6447 = vmatprep.subr.mxu0 0.0
    %6448 = vmatpush1.msra.mxu0 %v6431
    %6449 = vmatprep.subr.mxu0 0.0
    %6450 = vmatpush1.msra.mxu0 %v6430
    %6451 = vmatprep.subr.mxu0 0.0
    %6452 = vmatpush1.msra.mxu0 %v6429
    %6453 = vmatprep.subr.mxu0 0.0
    %6454 = vmatpush1.msra.mxu0 %v6428
    %6455 = vmatprep.subr.mxu0 0.0
    %6456 = vmatpush1.msra.mxu0 %v6427
    %6457 = vmatprep.subr.mxu0 0.0
    %6458 = vmatpush1.msra.mxu0 %v6426
    %6459 = vmatprep.subr.mxu0 0.0
    %6460 = vmatpush1.msra.mxu0 %v6425
    %6461 = vmatprep.subr.mxu0 0.0
    %6462 = vmatpush1.msra.mxu0 %v6424
    %6463 = vmatprep.subr.mxu0 0.0
    %6464 = vmatpush1.msra.mxu0 %v6423
    %6465 = vmatprep.subr.mxu0 0.0
    %6466 = vmatpush1.msra.mxu0 %v6422
    %6467 = vmatprep.subr.mxu0 0.0
    %6468 = vmatpush1.msra.mxu0 %v6421
    %6469 = vmatprep.subr.mxu0 0.0
    %6470 = vmatpush2.msra.mxu0 0.0
    %6471 = vmatprep.subr.mxu0 0.0
    %6472 = vmatpush2.msra.mxu0 0.0
    %6473 = vmatprep.subr.mxu0 0.0
    %6474 = vmatpush2.msra.mxu0 0.0
    %6475 = vmatprep.subr.mxu0 0.0
    %6476 = vmatpush2.msra.mxu0 0.0
    %6477 = vmatprep.subr.mxu0 0.0
    %6478 = vmatpush2.msra.mxu0 0.0
    %6479 = vmatprep.subr.mxu0 0.0
    %6480 = vmatpush2.msra.mxu0 0.0
    %6481 = vmatprep.subr.mxu0 0.0
    %6482 = vmatpush2.msra.mxu0 0.0
    %6483 = vmatprep.subr.mxu0 0.0
    %6484 = vmatpush2.msra.mxu0 0.0
    %6485 = vmatprep.subr.mxu0 0.0
    %6486 = vmatpush2.msra.mxu0 0.0
    %6487 = vmatprep.subr.mxu0 0.0
    %6488 = vmatpush2.msra.mxu0 0.0
    %6489 = vmatprep.subr.mxu0 0.0
    %6490 = vmatpush2.msra.mxu0 0.0
    %6491 = vmatprep.subr.mxu0 0.0
    %6492 = vmatpush2.msra.mxu0 0.0
    %6493 = vmatprep.subr.mxu0 0.0
    %6494 = vmatpush2.msra.mxu0 0.0
    %6495 = vmatprep.subr.mxu0 0.0
    %6496 = vmatpush2.msra.mxu0 0.0
    %6497 = vmatprep.subr.mxu0 0.0
    %6498 = vmatpush2.msra.mxu0 0.0
    %6499 = vmatprep.subr.mxu0 0.0
    %6500 = vmatpush2.msra.mxu0 0.0
    %6501 = vmatprep.mubr.f32.mxu0 0.0
    %6502 = vmatmul.mubr.f32.gmra.mxu0 %v6420
    %v6503 = vpop.f32.mrf.mxu0
    %v6504 = vadd.f32 0.0, %v6503
    %v6505 = vpop.f32.mrf.mxu0
    %6506 = vdwg.mxu0
    %v6508 = vrot.slane %v6504, 1
    %v6510 = vadd.f32 %v3788, %v6508
    %v6511 = vld [vmem:[%s55] sm:$0xff]
    %v6512 = vld [vmem:[%s55 + $0x8] sm:$0xff]
    %v6513 = vld [vmem:[%s55 + $0x10] sm:$0xff]
    %v6514 = vld [vmem:[%s55 + $0x18] sm:$0xff]
    %v6515 = vld [vmem:[%s55 + $0x20] sm:$0xff]
    %v6516 = vld [vmem:[%s55 + $0x28] sm:$0xff]
    %v6517 = vld [vmem:[%s55 + $0x30] sm:$0xff]
    %v6518 = vld [vmem:[%s55 + $0x38] sm:$0xff]
    %v6519 = vld [vmem:[%s55 + $0x40] sm:$0xff]
    %v6520 = vld [vmem:[%s55 + $0x48] sm:$0xff]
    %v6521 = vld [vmem:[%s55 + $0x50] sm:$0xff]
    %v6522 = vld [vmem:[%s55 + $0x58] sm:$0xff]
    %v6523 = vld [vmem:[%s55 + $0x60] sm:$0xff]
    %v6524 = vld [vmem:[%s55 + $0x68] sm:$0xff]
    %v6525 = vld [vmem:[%s55 + $0x70] sm:$0xff]
    %v6526 = vld [vmem:[%s55 + $0x78] sm:$0xff]
    %v6527 = vld [vmem:[#allocation28] sm:$0x1]
    %v6529 = vrot.slane %v6510, 7
    %6531 = vmatprep.subr.mxu0 0.0
    %6532 = vmatpush1.msra.mxu0 %v6526
    %6533 = vmatprep.subr.mxu0 0.0
    %6534 = vmatpush1.msra.mxu0 %v6525
    %6535 = vmatprep.subr.mxu0 0.0
    %6536 = vmatpush1.msra.mxu0 %v6524
    %6537 = vmatprep.subr.mxu0 0.0
    %6538 = vmatpush1.msra.mxu0 %v6523
    %6539 = vmatprep.subr.mxu0 0.0
    %6540 = vmatpush1.msra.mxu0 %v6522
    %6541 = vmatprep.subr.mxu0 0.0
    %6542 = vmatpush1.msra.mxu0 %v6521
    %6543 = vmatprep.subr.mxu0 0.0
    %6544 = vmatpush1.msra.mxu0 %v6520
    %6545 = vmatprep.subr.mxu0 0.0
    %6546 = vmatpush1.msra.mxu0 %v6519
    %6547 = vmatprep.subr.mxu0 0.0
    %6548 = vmatpush1.msra.mxu0 %v6518
    %6549 = vmatprep.subr.mxu0 0.0
    %6550 = vmatpush1.msra.mxu0 %v6517
    %6551 = vmatprep.subr.mxu0 0.0
    %6552 = vmatpush1.msra.mxu0 %v6516
    %6553 = vmatprep.subr.mxu0 0.0
    %6554 = vmatpush1.msra.mxu0 %v6515
    %6555 = vmatprep.subr.mxu0 0.0
    %6556 = vmatpush1.msra.mxu0 %v6514
    %6557 = vmatprep.subr.mxu0 0.0
    %6558 = vmatpush1.msra.mxu0 %v6513
    %6559 = vmatprep.subr.mxu0 0.0
    %6560 = vmatpush1.msra.mxu0 %v6512
    %6561 = vmatprep.subr.mxu0 0.0
    %6562 = vmatpush1.msra.mxu0 %v6511
    %6563 = vmatprep.subr.mxu0 0.0
    %6564 = vmatpush2.msra.mxu0 0.0
    %6565 = vmatprep.subr.mxu0 0.0
    %6566 = vmatpush2.msra.mxu0 0.0
    %6567 = vmatprep.subr.mxu0 0.0
    %6568 = vmatpush2.msra.mxu0 0.0
    %6569 = vmatprep.subr.mxu0 0.0
    %6570 = vmatpush2.msra.mxu0 0.0
    %6571 = vmatprep.subr.mxu0 0.0
    %6572 = vmatpush2.msra.mxu0 0.0
    %6573 = vmatprep.subr.mxu0 0.0
    %6574 = vmatpush2.msra.mxu0 0.0
    %6575 = vmatprep.subr.mxu0 0.0
    %6576 = vmatpush2.msra.mxu0 0.0
    %6577 = vmatprep.subr.mxu0 0.0
    %6578 = vmatpush2.msra.mxu0 0.0
    %6579 = vmatprep.subr.mxu0 0.0
    %6580 = vmatpush2.msra.mxu0 0.0
    %6581 = vmatprep.subr.mxu0 0.0
    %6582 = vmatpush2.msra.mxu0 0.0
    %6583 = vmatprep.subr.mxu0 0.0
    %6584 = vmatpush2.msra.mxu0 0.0
    %6585 = vmatprep.subr.mxu0 0.0
    %6586 = vmatpush2.msra.mxu0 0.0
    %6587 = vmatprep.subr.mxu0 0.0
    %6588 = vmatpush2.msra.mxu0 0.0
    %6589 = vmatprep.subr.mxu0 0.0
    %6590 = vmatpush2.msra.mxu0 0.0
    %6591 = vmatprep.subr.mxu0 0.0
    %6592 = vmatpush2.msra.mxu0 0.0
    %6593 = vmatprep.subr.mxu0 0.0
    %6594 = vmatpush2.msra.mxu0 0.0
    %6595 = vmatprep.mubr.f32.mxu0 0.0
    %6596 = vmatmul.mubr.f32.gmra.mxu0 %v6529
    %v6597 = vpop.f32.mrf.mxu0
    %v6598 = vadd.f32 %v6527, %v6597
    %v6599 = vpop.f32.mrf.mxu0
    %6600 = vdwg.mxu0
    %6601 = vmatprep.subr.mxu0 0.0
    %6602 = vmatpush1.msra.mxu0 0.0
    %6603 = vmatprep.subr.mxu0 0.0
    %6604 = vmatpush1.msra.mxu0 0.0
    %6605 = vmatprep.subr.mxu0 0.0
    %6606 = vmatpush1.msra.mxu0 0.0
    %6607 = vmatprep.subr.mxu0 0.0
    %6608 = vmatpush1.msra.mxu0 0.0
    %6609 = vmatprep.subr.mxu0 0.0
    %6610 = vmatpush1.msra.mxu0 0.0
    %6611 = vmatprep.subr.mxu0 0.0
    %6612 = vmatpush1.msra.mxu0 0.0
    %6613 = vmatprep.subr.mxu0 0.0
    %6614 = vmatpush1.msra.mxu0 0.0
    %6615 = vmatprep.subr.mxu0 0.0
    %6616 = vmatpush1.msra.mxu0 0.0
    %6617 = vmatprep.subr.mxu0 0.0
    %6618 = vmatpush1.msra.mxu0 0.0
    %6619 = vmatprep.subr.mxu0 0.0
    %6620 = vmatpush1.msra.mxu0 0.0
    %6621 = vmatprep.subr.mxu0 0.0
    %6622 = vmatpush1.msra.mxu0 0.0
    %6623 = vmatprep.subr.mxu0 0.0
    %6624 = vmatpush1.msra.mxu0 0.0
    %6625 = vmatprep.subr.mxu0 0.0
    %6626 = vmatpush1.msra.mxu0 0.0
    %6627 = vmatprep.subr.mxu0 0.0
    %6628 = vmatpush1.msra.mxu0 0.0
    %6629 = vmatprep.subr.mxu0 0.0
    %6630 = vmatpush1.msra.mxu0 0.0
    %6631 = vmatprep.subr.mxu0 0.0
    %6632 = vmatpush1.msra.mxu0 %v4256
    %6633 = vmatprep.subr.mxu0 0.0
    %6634 = vmatpush2.msra.mxu0 0.0
    %6635 = vmatprep.subr.mxu0 0.0
    %6636 = vmatpush2.msra.mxu0 0.0
    %6637 = vmatprep.subr.mxu0 0.0
    %6638 = vmatpush2.msra.mxu0 0.0
    %6639 = vmatprep.subr.mxu0 0.0
    %6640 = vmatpush2.msra.mxu0 0.0
    %6641 = vmatprep.subr.mxu0 0.0
    %6642 = vmatpush2.msra.mxu0 0.0
    %6643 = vmatprep.subr.mxu0 0.0
    %6644 = vmatpush2.msra.mxu0 0.0
    %6645 = vmatprep.subr.mxu0 0.0
    %6646 = vmatpush2.msra.mxu0 0.0
    %6647 = vmatprep.subr.mxu0 0.0
    %6648 = vmatpush2.msra.mxu0 0.0
    %6649 = vmatprep.subr.mxu0 0.0
    %6650 = vmatpush2.msra.mxu0 0.0
    %6651 = vmatprep.subr.mxu0 0.0
    %6652 = vmatpush2.msra.mxu0 0.0
    %6653 = vmatprep.subr.mxu0 0.0
    %6654 = vmatpush2.msra.mxu0 0.0
    %6655 = vmatprep.subr.mxu0 0.0
    %6656 = vmatpush2.msra.mxu0 0.0
    %6657 = vmatprep.subr.mxu0 0.0
    %6658 = vmatpush2.msra.mxu0 0.0
    %6659 = vmatprep.subr.mxu0 0.0
    %6660 = vmatpush2.msra.mxu0 0.0
    %6661 = vmatprep.subr.mxu0 0.0
    %6662 = vmatpush2.msra.mxu0 0.0
    %6663 = vmatprep.subr.mxu0 0.0
    %6664 = vmatpush2.msra.mxu0 0.0
    %6665 = vmatprep.mubr.f32.mxu0 0.0
    %6666 = vmatmul.mubr.f32.gmra.mxu0 %v900
    %v6667 = vpop.f32.mrf.mxu0
    %v6668 = vadd.f32 0.0, %v6667
    %v6669 = vpop.f32.mrf.mxu0
    %6670 = vdwg.mxu0
    %6671 = vxpose.xlu0.b32.start [1/16] %v6668, 128
    %6672 = vxpose.xlu0.b32.cont [2/16] 0.0, 128
    %6673 = vxpose.xlu0.b32.cont [3/16] 0.0, 128
    %6674 = vxpose.xlu0.b32.cont [4/16] 0.0, 128
    %6675 = vxpose.xlu0.b32.cont [5/16] 0.0, 128
    %6676 = vxpose.xlu0.b32.cont [6/16] 0.0, 128
    %6677 = vxpose.xlu0.b32.cont [7/16] 0.0, 128
    %6678 = vxpose.xlu0.b32.cont [8/16] 0.0, 128
    %6679 = vxpose.xlu0.b32.cont [9/16] 0.0, 128
    %6680 = vxpose.xlu0.b32.cont [10/16] 0.0, 128
    %6681 = vxpose.xlu0.b32.cont [11/16] 0.0, 128
    %6682 = vxpose.xlu0.b32.cont [12/16] 0.0, 128
    %6683 = vxpose.xlu0.b32.cont [13/16] 0.0, 128
    %6684 = vxpose.xlu0.b32.cont [14/16] 0.0, 128
    %6685 = vxpose.xlu0.b32.cont [15/16] 0.0, 128
    %6686 = vxpose.xlu0.b32.end [16/16] 0.0, 128
    %v6687 = vpop.trf.xlu0
    %v6688 = vpop.trf.xlu0
    %v6689 = vpop.trf.xlu0
    %v6690 = vpop.trf.xlu0
    %v6691 = vpop.trf.xlu0
    %v6692 = vpop.trf.xlu0
    %v6693 = vpop.trf.xlu0
    %v6694 = vpop.trf.xlu0
    %v6695 = vpop.trf.xlu0
    %v6696 = vpop.trf.xlu0
    %v6697 = vpop.trf.xlu0
    %v6698 = vpop.trf.xlu0
    %v6699 = vpop.trf.xlu0
    %v6700 = vpop.trf.xlu0
    %v6701 = vpop.trf.xlu0
    %v6702 = vpop.trf.xlu0
    %6703 = vxpose.xlu0.b32.start [1/16] %v4258, 128
    %6704 = vxpose.xlu0.b32.cont [2/16] 0.0, 128
    %6705 = vxpose.xlu0.b32.cont [3/16] 0.0, 128
    %6706 = vxpose.xlu0.b32.cont [4/16] 0.0, 128
    %6707 = vxpose.xlu0.b32.cont [5/16] 0.0, 128
    %6708 = vxpose.xlu0.b32.cont [6/16] 0.0, 128
    %6709 = vxpose.xlu0.b32.cont [7/16] 0.0, 128
    %6710 = vxpose.xlu0.b32.cont [8/16] 0.0, 128
    %6711 = vxpose.xlu0.b32.cont [9/16] 0.0, 128
    %6712 = vxpose.xlu0.b32.cont [10/16] 0.0, 128
    %6713 = vxpose.xlu0.b32.cont [11/16] 0.0, 128
    %6714 = vxpose.xlu0.b32.cont [12/16] 0.0, 128
    %6715 = vxpose.xlu0.b32.cont [13/16] 0.0, 128
    %6716 = vxpose.xlu0.b32.cont [14/16] 0.0, 128
    %6717 = vxpose.xlu0.b32.cont [15/16] 0.0, 128
    %6718 = vxpose.xlu0.b32.end [16/16] 0.0, 128
    %v6719 = vpop.trf.xlu0
    %v6720 = vpop.trf.xlu0
    %v6721 = vpop.trf.xlu0
    %v6722 = vpop.trf.xlu0
    %v6723 = vpop.trf.xlu0
    %v6724 = vpop.trf.xlu0
    %v6725 = vpop.trf.xlu0
    %v6726 = vpop.trf.xlu0
    %v6727 = vpop.trf.xlu0
    %v6728 = vpop.trf.xlu0
    %v6729 = vpop.trf.xlu0
    %v6730 = vpop.trf.xlu0
    %v6731 = vpop.trf.xlu0
    %v6732 = vpop.trf.xlu0
    %v6733 = vpop.trf.xlu0
    %v6734 = vpop.trf.xlu0
    %6736 = vset.pattern.permute.xlu0 0
    %6737 = vperm.xlu0 %6736, %v6687
    %v6738 = vpop.permute.xlu0 %6737
    %6741 = vset.pattern.permute.xlu0 0
    %6742 = vperm.xlu0 %6741, %v6688
    %v6743 = vpop.permute.xlu0 %6742
    %6746 = vset.pattern.permute.xlu0 0
    %6747 = vperm.xlu0 %6746, %v6689
    %v6748 = vpop.permute.xlu0 %6747
    %6751 = vset.pattern.permute.xlu0 0
    %6752 = vperm.xlu0 %6751, %v6690
    %v6753 = vpop.permute.xlu0 %6752
    %6756 = vset.pattern.permute.xlu0 0
    %6757 = vperm.xlu0 %6756, %v6691
    %v6758 = vpop.permute.xlu0 %6757
    %6761 = vset.pattern.permute.xlu0 0
    %6762 = vperm.xlu0 %6761, %v6692
    %v6763 = vpop.permute.xlu0 %6762
    %6766 = vset.pattern.permute.xlu0 0
    %6767 = vperm.xlu0 %6766, %v6693
    %v6768 = vpop.permute.xlu0 %6767
    %6771 = vset.pattern.permute.xlu0 0
    %6772 = vperm.xlu0 %6771, %v6694
    %v6773 = vpop.permute.xlu0 %6772
    %6776 = vset.pattern.permute.xlu0 0
    %6777 = vperm.xlu0 %6776, %v6695
    %v6778 = vpop.permute.xlu0 %6777
    %6781 = vset.pattern.permute.xlu0 0
    %6782 = vperm.xlu0 %6781, %v6696
    %v6783 = vpop.permute.xlu0 %6782
    %6786 = vset.pattern.permute.xlu0 0
    %6787 = vperm.xlu0 %6786, %v6697
    %v6788 = vpop.permute.xlu0 %6787
    %6791 = vset.pattern.permute.xlu0 0
    %6792 = vperm.xlu0 %6791, %v6698
    %v6793 = vpop.permute.xlu0 %6792
    %6796 = vset.pattern.permute.xlu0 0
    %6797 = vperm.xlu0 %6796, %v6699
    %v6798 = vpop.permute.xlu0 %6797
    %6801 = vset.pattern.permute.xlu0 0
    %6802 = vperm.xlu0 %6801, %v6700
    %v6803 = vpop.permute.xlu0 %6802
    %6806 = vset.pattern.permute.xlu0 0
    %6807 = vperm.xlu0 %6806, %v6701
    %v6808 = vpop.permute.xlu0 %6807
    %6811 = vset.pattern.permute.xlu0 0
    %6812 = vperm.xlu0 %6811, %v6702
    %v6813 = vpop.permute.xlu0 %6812
    %v6815 = vmul.f32 %v6738, %v4478
    %v6816 = vmul.f32 %v6743, %v4478
    %v6817 = vmul.f32 %v6748, %v4478
    %v6818 = vmul.f32 %v6753, %v4478
    %v6819 = vmul.f32 %v6758, %v4478
    %v6820 = vmul.f32 %v6763, %v4478
    %v6821 = vmul.f32 %v6768, %v4478
    %v6822 = vmul.f32 %v6773, %v4478
    %v6823 = vmul.f32 %v6778, %v4478
    %v6824 = vmul.f32 %v6783, %v4478
    %v6825 = vmul.f32 %v6788, %v4478
    %v6826 = vmul.f32 %v6793, %v4478
    %v6827 = vmul.f32 %v6798, %v4478
    %v6828 = vmul.f32 %v6803, %v4478
    %v6829 = vmul.f32 %v6808, %v4478
    %v6830 = vmul.f32 %v6813, %v4478
    %v6831 = vmul.f32 %v6815, 1.442695
    %v6832 = vpow.pop %v6831
    %v6833 = vmul.f32 %v6816, 1.442695
    %v6834 = vpow.pop %v6833
    %v6835 = vmul.f32 %v6817, 1.442695
    %v6836 = vpow.pop %v6835
    %v6837 = vmul.f32 %v6818, 1.442695
    %v6838 = vpow.pop %v6837
    %v6839 = vmul.f32 %v6819, 1.442695
    %v6840 = vpow.pop %v6839
    %v6841 = vmul.f32 %v6820, 1.442695
    %v6842 = vpow.pop %v6841
    %v6843 = vmul.f32 %v6821, 1.442695
    %v6844 = vpow.pop %v6843
    %v6845 = vmul.f32 %v6822, 1.442695
    %v6846 = vpow.pop %v6845
    %v6847 = vmul.f32 %v6823, 1.442695
    %v6848 = vpow.pop %v6847
    %v6849 = vmul.f32 %v6824, 1.442695
    %v6850 = vpow.pop %v6849
    %v6851 = vmul.f32 %v6825, 1.442695
    %v6852 = vpow.pop %v6851
    %v6853 = vmul.f32 %v6826, 1.442695
    %v6854 = vpow.pop %v6853
    %v6855 = vmul.f32 %v6827, 1.442695
    %v6856 = vpow.pop %v6855
    %v6857 = vmul.f32 %v6828, 1.442695
    %v6858 = vpow.pop %v6857
    %v6859 = vmul.f32 %v6829, 1.442695
    %v6860 = vpow.pop %v6859
    %v6861 = vmul.f32 %v6830, 1.442695
    %v6862 = vpow.pop %v6861
    %6864 = vset.pattern.permute.xlu0 0
    %6865 = vperm.xlu0 %6864, %v6719
    %v6866 = vpop.permute.xlu0 %6865
    %6869 = vset.pattern.permute.xlu0 0
    %6870 = vperm.xlu0 %6869, %v6720
    %v6871 = vpop.permute.xlu0 %6870
    %6874 = vset.pattern.permute.xlu0 0
    %6875 = vperm.xlu0 %6874, %v6721
    %v6876 = vpop.permute.xlu0 %6875
    %6879 = vset.pattern.permute.xlu0 0
    %6880 = vperm.xlu0 %6879, %v6722
    %v6881 = vpop.permute.xlu0 %6880
    %6884 = vset.pattern.permute.xlu0 0
    %6885 = vperm.xlu0 %6884, %v6723
    %v6886 = vpop.permute.xlu0 %6885
    %6889 = vset.pattern.permute.xlu0 0
    %6890 = vperm.xlu0 %6889, %v6724
    %v6891 = vpop.permute.xlu0 %6890
    %6894 = vset.pattern.permute.xlu0 0
    %6895 = vperm.xlu0 %6894, %v6725
    %v6896 = vpop.permute.xlu0 %6895
    %6899 = vset.pattern.permute.xlu0 0
    %6900 = vperm.xlu0 %6899, %v6726
    %v6901 = vpop.permute.xlu0 %6900
    %6904 = vset.pattern.permute.xlu0 0
    %6905 = vperm.xlu0 %6904, %v6727
    %v6906 = vpop.permute.xlu0 %6905
    %6909 = vset.pattern.permute.xlu0 0
    %6910 = vperm.xlu0 %6909, %v6728
    %v6911 = vpop.permute.xlu0 %6910
    %6914 = vset.pattern.permute.xlu0 0
    %6915 = vperm.xlu0 %6914, %v6729
    %v6916 = vpop.permute.xlu0 %6915
    %6919 = vset.pattern.permute.xlu0 0
    %6920 = vperm.xlu0 %6919, %v6730
    %v6921 = vpop.permute.xlu0 %6920
    %6924 = vset.pattern.permute.xlu0 0
    %6925 = vperm.xlu0 %6924, %v6731
    %v6926 = vpop.permute.xlu0 %6925
    %6929 = vset.pattern.permute.xlu0 0
    %6930 = vperm.xlu0 %6929, %v6732
    %v6931 = vpop.permute.xlu0 %6930
    %6934 = vset.pattern.permute.xlu0 0
    %6935 = vperm.xlu0 %6934, %v6733
    %v6936 = vpop.permute.xlu0 %6935
    %6939 = vset.pattern.permute.xlu0 0
    %6940 = vperm.xlu0 %6939, %v6734
    %v6941 = vpop.permute.xlu0 %6940
    %v6943 = vlaneseq
    %v6944 = vshrl.u32 %v6943, 7
    %v6945 = vsub.s32 0, %v6944
    %v6946 = vrot.slane %v4053, %v6945
    %v6947 = vmul.f32 %v6866, %v6946
    %v6948 = vmul.f32 %v6871, %v6946
    %v6949 = vmul.f32 %v6876, %v6946
    %v6950 = vmul.f32 %v6881, %v6946
    %v6951 = vmul.f32 %v6886, %v6946
    %v6952 = vmul.f32 %v6891, %v6946
    %v6953 = vmul.f32 %v6896, %v6946
    %v6954 = vmul.f32 %v6901, %v6946
    %v6955 = vmul.f32 %v6906, %v6946
    %v6956 = vmul.f32 %v6911, %v6946
    %v6957 = vmul.f32 %v6916, %v6946
    %v6958 = vmul.f32 %v6921, %v6946
    %v6959 = vmul.f32 %v6926, %v6946
    %v6960 = vmul.f32 %v6931, %v6946
    %v6961 = vmul.f32 %v6936, %v6946
    %v6962 = vmul.f32 %v6941, %v6946
    %v6963 = vmul.f32 %v6832, %v6947
    %v6964 = vmul.f32 %v6834, %v6948
    %v6965 = vmul.f32 %v6836, %v6949
    %v6966 = vmul.f32 %v6838, %v6950
    %v6967 = vmul.f32 %v6840, %v6951
    %v6968 = vmul.f32 %v6842, %v6952
    %v6969 = vmul.f32 %v6844, %v6953
    %v6970 = vmul.f32 %v6846, %v6954
    %v6971 = vmul.f32 %v6848, %v6955
    %v6972 = vmul.f32 %v6850, %v6956
    %v6973 = vmul.f32 %v6852, %v6957
    %v6974 = vmul.f32 %v6854, %v6958
    %v6975 = vmul.f32 %v6856, %v6959
    %v6976 = vmul.f32 %v6858, %v6960
    %v6977 = vmul.f32 %v6860, %v6961
    %v6978 = vmul.f32 %v6862, %v6962
    %6979 = vset.pattern.permute.xlu0 1
    %6980 = vperm.xlu0 %6979, %v6687
    %v6981 = vpop.permute.xlu0 %6980
    %6983 = vset.pattern.permute.xlu0 1
    %6984 = vperm.xlu0 %6983, %v6688
    %v6985 = vpop.permute.xlu0 %6984
    %6987 = vset.pattern.permute.xlu0 1
    %6988 = vperm.xlu0 %6987, %v6689
    %v6989 = vpop.permute.xlu0 %6988
    %6991 = vset.pattern.permute.xlu0 1
    %6992 = vperm.xlu0 %6991, %v6690
    %v6993 = vpop.permute.xlu0 %6992
    %6995 = vset.pattern.permute.xlu0 1
    %6996 = vperm.xlu0 %6995, %v6691
    %v6997 = vpop.permute.xlu0 %6996
    %6999 = vset.pattern.permute.xlu0 1
    %7000 = vperm.xlu0 %6999, %v6692
    %v7001 = vpop.permute.xlu0 %7000
    %7003 = vset.pattern.permute.xlu0 1
    %7004 = vperm.xlu0 %7003, %v6693
    %v7005 = vpop.permute.xlu0 %7004
    %7007 = vset.pattern.permute.xlu0 1
    %7008 = vperm.xlu0 %7007, %v6694
    %v7009 = vpop.permute.xlu0 %7008
    %7011 = vset.pattern.permute.xlu0 1
    %7012 = vperm.xlu0 %7011, %v6695
    %v7013 = vpop.permute.xlu0 %7012
    %7015 = vset.pattern.permute.xlu0 1
    %7016 = vperm.xlu0 %7015, %v6696
    %v7017 = vpop.permute.xlu0 %7016
    %7019 = vset.pattern.permute.xlu0 1
    %7020 = vperm.xlu0 %7019, %v6697
    %v7021 = vpop.permute.xlu0 %7020
    %7023 = vset.pattern.permute.xlu0 1
    %7024 = vperm.xlu0 %7023, %v6698
    %v7025 = vpop.permute.xlu0 %7024
    %7027 = vset.pattern.permute.xlu0 1
    %7028 = vperm.xlu0 %7027, %v6699
    %v7029 = vpop.permute.xlu0 %7028
    %7031 = vset.pattern.permute.xlu0 1
    %7032 = vperm.xlu0 %7031, %v6700
    %v7033 = vpop.permute.xlu0 %7032
    %7035 = vset.pattern.permute.xlu0 1
    %7036 = vperm.xlu0 %7035, %v6701
    %v7037 = vpop.permute.xlu0 %7036
    %7039 = vset.pattern.permute.xlu0 1
    %7040 = vperm.xlu0 %7039, %v6702
    %v7041 = vpop.permute.xlu0 %7040
    %v7043 = vmul.f32 %v6981, %v4478
    %v7044 = vmul.f32 %v6985, %v4478
    %v7045 = vmul.f32 %v6989, %v4478
    %v7046 = vmul.f32 %v6993, %v4478
    %v7047 = vmul.f32 %v6997, %v4478
    %v7048 = vmul.f32 %v7001, %v4478
    %v7049 = vmul.f32 %v7005, %v4478
    %v7050 = vmul.f32 %v7009, %v4478
    %v7051 = vmul.f32 %v7013, %v4478
    %v7052 = vmul.f32 %v7017, %v4478
    %v7053 = vmul.f32 %v7021, %v4478
    %v7054 = vmul.f32 %v7025, %v4478
    %v7055 = vmul.f32 %v7029, %v4478
    %v7056 = vmul.f32 %v7033, %v4478
    %v7057 = vmul.f32 %v7037, %v4478
    %v7058 = vmul.f32 %v7041, %v4478
    %v7059 = vmul.f32 %v7043, 1.442695
    %v7060 = vpow.pop %v7059
    %v7061 = vmul.f32 %v7044, 1.442695
    %v7062 = vpow.pop %v7061
    %v7063 = vmul.f32 %v7045, 1.442695
    %v7064 = vpow.pop %v7063
    %v7065 = vmul.f32 %v7046, 1.442695
    %v7066 = vpow.pop %v7065
    %v7067 = vmul.f32 %v7047, 1.442695
    %v7068 = vpow.pop %v7067
    %v7069 = vmul.f32 %v7048, 1.442695
    %v7070 = vpow.pop %v7069
    %v7071 = vmul.f32 %v7049, 1.442695
    %v7072 = vpow.pop %v7071
    %v7073 = vmul.f32 %v7050, 1.442695
    %v7074 = vpow.pop %v7073
    %v7075 = vmul.f32 %v7051, 1.442695
    %v7076 = vpow.pop %v7075
    %v7077 = vmul.f32 %v7052, 1.442695
    %v7078 = vpow.pop %v7077
    %v7079 = vmul.f32 %v7053, 1.442695
    %v7080 = vpow.pop %v7079
    %v7081 = vmul.f32 %v7054, 1.442695
    %v7082 = vpow.pop %v7081
    %v7083 = vmul.f32 %v7055, 1.442695
    %v7084 = vpow.pop %v7083
    %v7085 = vmul.f32 %v7056, 1.442695
    %v7086 = vpow.pop %v7085
    %v7087 = vmul.f32 %v7057, 1.442695
    %v7088 = vpow.pop %v7087
    %v7089 = vmul.f32 %v7058, 1.442695
    %v7090 = vpow.pop %v7089
    %7091 = vset.pattern.permute.xlu0 1
    %7092 = vperm.xlu0 %7091, %v6719
    %v7093 = vpop.permute.xlu0 %7092
    %7095 = vset.pattern.permute.xlu0 1
    %7096 = vperm.xlu0 %7095, %v6720
    %v7097 = vpop.permute.xlu0 %7096
    %7099 = vset.pattern.permute.xlu0 1
    %7100 = vperm.xlu0 %7099, %v6721
    %v7101 = vpop.permute.xlu0 %7100
    %7103 = vset.pattern.permute.xlu0 1
    %7104 = vperm.xlu0 %7103, %v6722
    %v7105 = vpop.permute.xlu0 %7104
    %7107 = vset.pattern.permute.xlu0 1
    %7108 = vperm.xlu0 %7107, %v6723
    %v7109 = vpop.permute.xlu0 %7108
    %7111 = vset.pattern.permute.xlu0 1
    %7112 = vperm.xlu0 %7111, %v6724
    %v7113 = vpop.permute.xlu0 %7112
    %7115 = vset.pattern.permute.xlu0 1
    %7116 = vperm.xlu0 %7115, %v6725
    %v7117 = vpop.permute.xlu0 %7116
    %7119 = vset.pattern.permute.xlu0 1
    %7120 = vperm.xlu0 %7119, %v6726
    %v7121 = vpop.permute.xlu0 %7120
    %7123 = vset.pattern.permute.xlu0 1
    %7124 = vperm.xlu0 %7123, %v6727
    %v7125 = vpop.permute.xlu0 %7124
    %7127 = vset.pattern.permute.xlu0 1
    %7128 = vperm.xlu0 %7127, %v6728
    %v7129 = vpop.permute.xlu0 %7128
    %7131 = vset.pattern.permute.xlu0 1
    %7132 = vperm.xlu0 %7131, %v6729
    %v7133 = vpop.permute.xlu0 %7132
    %7135 = vset.pattern.permute.xlu0 1
    %7136 = vperm.xlu0 %7135, %v6730
    %v7137 = vpop.permute.xlu0 %7136
    %7139 = vset.pattern.permute.xlu0 1
    %7140 = vperm.xlu0 %7139, %v6731
    %v7141 = vpop.permute.xlu0 %7140
    %7143 = vset.pattern.permute.xlu0 1
    %7144 = vperm.xlu0 %7143, %v6732
    %v7145 = vpop.permute.xlu0 %7144
    %7147 = vset.pattern.permute.xlu0 1
    %7148 = vperm.xlu0 %7147, %v6733
    %v7149 = vpop.permute.xlu0 %7148
    %7151 = vset.pattern.permute.xlu0 1
    %7152 = vperm.xlu0 %7151, %v6734
    %v7153 = vpop.permute.xlu0 %7152
    %v7155 = vlaneseq
    %v7156 = vshrl.u32 %v7155, 7
    %v7157 = vsub.s32 1, %v7156
    %v7158 = vrot.slane %v4053, %v7157
    %v7159 = vmul.f32 %v7093, %v7158
    %v7160 = vmul.f32 %v7097, %v7158
    %v7161 = vmul.f32 %v7101, %v7158
    %v7162 = vmul.f32 %v7105, %v7158
    %v7163 = vmul.f32 %v7109, %v7158
    %v7164 = vmul.f32 %v7113, %v7158
    %v7165 = vmul.f32 %v7117, %v7158
    %v7166 = vmul.f32 %v7121, %v7158
    %v7167 = vmul.f32 %v7125, %v7158
    %v7168 = vmul.f32 %v7129, %v7158
    %v7169 = vmul.f32 %v7133, %v7158
    %v7170 = vmul.f32 %v7137, %v7158
    %v7171 = vmul.f32 %v7141, %v7158
    %v7172 = vmul.f32 %v7145, %v7158
    %v7173 = vmul.f32 %v7149, %v7158
    %v7174 = vmul.f32 %v7153, %v7158
    %v7175 = vmul.f32 %v7060, %v7159
    %v7176 = vmul.f32 %v7062, %v7160
    %v7177 = vmul.f32 %v7064, %v7161
    %v7178 = vmul.f32 %v7066, %v7162
    %v7179 = vmul.f32 %v7068, %v7163
    %v7180 = vmul.f32 %v7070, %v7164
    %v7181 = vmul.f32 %v7072, %v7165
    %v7182 = vmul.f32 %v7074, %v7166
    %v7183 = vmul.f32 %v7076, %v7167
    %v7184 = vmul.f32 %v7078, %v7168
    %v7185 = vmul.f32 %v7080, %v7169
    %v7186 = vmul.f32 %v7082, %v7170
    %v7187 = vmul.f32 %v7084, %v7171
    %v7188 = vmul.f32 %v7086, %v7172
    %v7189 = vmul.f32 %v7088, %v7173
    %v7190 = vmul.f32 %v7090, %v7174
    %7191 = vset.pattern.permute.xlu0 2
    %7192 = vperm.xlu0 %7191, %v6687
    %v7193 = vpop.permute.xlu0 %7192
    %7195 = vset.pattern.permute.xlu0 2
    %7196 = vperm.xlu0 %7195, %v6688
    %v7197 = vpop.permute.xlu0 %7196
    %7199 = vset.pattern.permute.xlu0 2
    %7200 = vperm.xlu0 %7199, %v6689
    %v7201 = vpop.permute.xlu0 %7200
    %7203 = vset.pattern.permute.xlu0 2
    %7204 = vperm.xlu0 %7203, %v6690
    %v7205 = vpop.permute.xlu0 %7204
    %7207 = vset.pattern.permute.xlu0 2
    %7208 = vperm.xlu0 %7207, %v6691
    %v7209 = vpop.permute.xlu0 %7208
    %7211 = vset.pattern.permute.xlu0 2
    %7212 = vperm.xlu0 %7211, %v6692
    %v7213 = vpop.permute.xlu0 %7212
    %7215 = vset.pattern.permute.xlu0 2
    %7216 = vperm.xlu0 %7215, %v6693
    %v7217 = vpop.permute.xlu0 %7216
    %7219 = vset.pattern.permute.xlu0 2
    %7220 = vperm.xlu0 %7219, %v6694
    %v7221 = vpop.permute.xlu0 %7220
    %7223 = vset.pattern.permute.xlu0 2
    %7224 = vperm.xlu0 %7223, %v6695
    %v7225 = vpop.permute.xlu0 %7224
    %7227 = vset.pattern.permute.xlu0 2
    %7228 = vperm.xlu0 %7227, %v6696
    %v7229 = vpop.permute.xlu0 %7228
    %7231 = vset.pattern.permute.xlu0 2
    %7232 = vperm.xlu0 %7231, %v6697
    %v7233 = vpop.permute.xlu0 %7232
    %7235 = vset.pattern.permute.xlu0 2
    %7236 = vperm.xlu0 %7235, %v6698
    %v7237 = vpop.permute.xlu0 %7236
    %7239 = vset.pattern.permute.xlu0 2
    %7240 = vperm.xlu0 %7239, %v6699
    %v7241 = vpop.permute.xlu0 %7240
    %7243 = vset.pattern.permute.xlu0 2
    %7244 = vperm.xlu0 %7243, %v6700
    %v7245 = vpop.permute.xlu0 %7244
    %7247 = vset.pattern.permute.xlu0 2
    %7248 = vperm.xlu0 %7247, %v6701
    %v7249 = vpop.permute.xlu0 %7248
    %7251 = vset.pattern.permute.xlu0 2
    %7252 = vperm.xlu0 %7251, %v6702
    %v7253 = vpop.permute.xlu0 %7252
    %v7255 = vmul.f32 %v7193, %v4478
    %v7256 = vmul.f32 %v7197, %v4478
    %v7257 = vmul.f32 %v7201, %v4478
    %v7258 = vmul.f32 %v7205, %v4478
    %v7259 = vmul.f32 %v7209, %v4478
    %v7260 = vmul.f32 %v7213, %v4478
    %v7261 = vmul.f32 %v7217, %v4478
    %v7262 = vmul.f32 %v7221, %v4478
    %v7263 = vmul.f32 %v7225, %v4478
    %v7264 = vmul.f32 %v7229, %v4478
    %v7265 = vmul.f32 %v7233, %v4478
    %v7266 = vmul.f32 %v7237, %v4478
    %v7267 = vmul.f32 %v7241, %v4478
    %v7268 = vmul.f32 %v7245, %v4478
    %v7269 = vmul.f32 %v7249, %v4478
    %v7270 = vmul.f32 %v7253, %v4478
    %v7271 = vmul.f32 %v7255, 1.442695
    %v7272 = vpow.pop %v7271
    %v7273 = vmul.f32 %v7256, 1.442695
    %v7274 = vpow.pop %v7273
    %v7275 = vmul.f32 %v7257, 1.442695
    %v7276 = vpow.pop %v7275
    %v7277 = vmul.f32 %v7258, 1.442695
    %v7278 = vpow.pop %v7277
    %v7279 = vmul.f32 %v7259, 1.442695
    %v7280 = vpow.pop %v7279
    %v7281 = vmul.f32 %v7260, 1.442695
    %v7282 = vpow.pop %v7281
    %v7283 = vmul.f32 %v7261, 1.442695
    %v7284 = vpow.pop %v7283
    %v7285 = vmul.f32 %v7262, 1.442695
    %v7286 = vpow.pop %v7285
    %v7287 = vmul.f32 %v7263, 1.442695
    %v7288 = vpow.pop %v7287
    %v7289 = vmul.f32 %v7264, 1.442695
    %v7290 = vpow.pop %v7289
    %v7291 = vmul.f32 %v7265, 1.442695
    %v7292 = vpow.pop %v7291
    %v7293 = vmul.f32 %v7266, 1.442695
    %v7294 = vpow.pop %v7293
    %v7295 = vmul.f32 %v7267, 1.442695
    %v7296 = vpow.pop %v7295
    %v7297 = vmul.f32 %v7268, 1.442695
    %v7298 = vpow.pop %v7297
    %v7299 = vmul.f32 %v7269, 1.442695
    %v7300 = vpow.pop %v7299
    %v7301 = vmul.f32 %v7270, 1.442695
    %v7302 = vpow.pop %v7301
    %7303 = vset.pattern.permute.xlu0 2
    %7304 = vperm.xlu0 %7303, %v6719
    %v7305 = vpop.permute.xlu0 %7304
    %7307 = vset.pattern.permute.xlu0 2
    %7308 = vperm.xlu0 %7307, %v6720
    %v7309 = vpop.permute.xlu0 %7308
    %7311 = vset.pattern.permute.xlu0 2
    %7312 = vperm.xlu0 %7311, %v6721
    %v7313 = vpop.permute.xlu0 %7312
    %7315 = vset.pattern.permute.xlu0 2
    %7316 = vperm.xlu0 %7315, %v6722
    %v7317 = vpop.permute.xlu0 %7316
    %7319 = vset.pattern.permute.xlu0 2
    %7320 = vperm.xlu0 %7319, %v6723
    %v7321 = vpop.permute.xlu0 %7320
    %7323 = vset.pattern.permute.xlu0 2
    %7324 = vperm.xlu0 %7323, %v6724
    %v7325 = vpop.permute.xlu0 %7324
    %7327 = vset.pattern.permute.xlu0 2
    %7328 = vperm.xlu0 %7327, %v6725
    %v7329 = vpop.permute.xlu0 %7328
    %7331 = vset.pattern.permute.xlu0 2
    %7332 = vperm.xlu0 %7331, %v6726
    %v7333 = vpop.permute.xlu0 %7332
    %7335 = vset.pattern.permute.xlu0 2
    %7336 = vperm.xlu0 %7335, %v6727
    %v7337 = vpop.permute.xlu0 %7336
    %7339 = vset.pattern.permute.xlu0 2
    %7340 = vperm.xlu0 %7339, %v6728
    %v7341 = vpop.permute.xlu0 %7340
    %7343 = vset.pattern.permute.xlu0 2
    %7344 = vperm.xlu0 %7343, %v6729
    %v7345 = vpop.permute.xlu0 %7344
    %7347 = vset.pattern.permute.xlu0 2
    %7348 = vperm.xlu0 %7347, %v6730
    %v7349 = vpop.permute.xlu0 %7348
    %7351 = vset.pattern.permute.xlu0 2
    %7352 = vperm.xlu0 %7351, %v6731
    %v7353 = vpop.permute.xlu0 %7352
    %7355 = vset.pattern.permute.xlu0 2
    %7356 = vperm.xlu0 %7355, %v6732
    %v7357 = vpop.permute.xlu0 %7356
    %7359 = vset.pattern.permute.xlu0 2
    %7360 = vperm.xlu0 %7359, %v6733
    %v7361 = vpop.permute.xlu0 %7360
    %7363 = vset.pattern.permute.xlu0 2
    %7364 = vperm.xlu0 %7363, %v6734
    %v7365 = vpop.permute.xlu0 %7364
    %v7367 = vlaneseq
    %v7368 = vshrl.u32 %v7367, 7
    %v7369 = vsub.s32 2, %v7368
    %v7370 = vrot.slane %v4053, %v7369
    %v7371 = vmul.f32 %v7305, %v7370
    %v7372 = vmul.f32 %v7309, %v7370
    %v7373 = vmul.f32 %v7313, %v7370
    %v7374 = vmul.f32 %v7317, %v7370
    %v7375 = vmul.f32 %v7321, %v7370
    %v7376 = vmul.f32 %v7325, %v7370
    %v7377 = vmul.f32 %v7329, %v7370
    %v7378 = vmul.f32 %v7333, %v7370
    %v7379 = vmul.f32 %v7337, %v7370
    %v7380 = vmul.f32 %v7341, %v7370
    %v7381 = vmul.f32 %v7345, %v7370
    %v7382 = vmul.f32 %v7349, %v7370
    %v7383 = vmul.f32 %v7353, %v7370
    %v7384 = vmul.f32 %v7357, %v7370
    %v7385 = vmul.f32 %v7361, %v7370
    %v7386 = vmul.f32 %v7365, %v7370
    %v7387 = vmul.f32 %v7272, %v7371
    %v7388 = vmul.f32 %v7274, %v7372
    %v7389 = vmul.f32 %v7276, %v7373
    %v7390 = vmul.f32 %v7278, %v7374
    %v7391 = vmul.f32 %v7280, %v7375
    %v7392 = vmul.f32 %v7282, %v7376
    %v7393 = vmul.f32 %v7284, %v7377
    %v7394 = vmul.f32 %v7286, %v7378
    %v7395 = vmul.f32 %v7288, %v7379
    %v7396 = vmul.f32 %v7290, %v7380
    %v7397 = vmul.f32 %v7292, %v7381
    %v7398 = vmul.f32 %v7294, %v7382
    %v7399 = vmul.f32 %v7296, %v7383
    %v7400 = vmul.f32 %v7298, %v7384
    %v7401 = vmul.f32 %v7300, %v7385
    %v7402 = vmul.f32 %v7302, %v7386
    %7403 = vset.pattern.permute.xlu0 3
    %7404 = vperm.xlu0 %7403, %v6687
    %v7405 = vpop.permute.xlu0 %7404
    %7407 = vset.pattern.permute.xlu0 3
    %7408 = vperm.xlu0 %7407, %v6688
    %v7409 = vpop.permute.xlu0 %7408
    %7411 = vset.pattern.permute.xlu0 3
    %7412 = vperm.xlu0 %7411, %v6689
    %v7413 = vpop.permute.xlu0 %7412
    %7415 = vset.pattern.permute.xlu0 3
    %7416 = vperm.xlu0 %7415, %v6690
    %v7417 = vpop.permute.xlu0 %7416
    %7419 = vset.pattern.permute.xlu0 3
    %7420 = vperm.xlu0 %7419, %v6691
    %v7421 = vpop.permute.xlu0 %7420
    %7423 = vset.pattern.permute.xlu0 3
    %7424 = vperm.xlu0 %7423, %v6692
    %v7425 = vpop.permute.xlu0 %7424
    %7427 = vset.pattern.permute.xlu0 3
    %7428 = vperm.xlu0 %7427, %v6693
    %v7429 = vpop.permute.xlu0 %7428
    %7431 = vset.pattern.permute.xlu0 3
    %7432 = vperm.xlu0 %7431, %v6694
    %v7433 = vpop.permute.xlu0 %7432
    %7435 = vset.pattern.permute.xlu0 3
    %7436 = vperm.xlu0 %7435, %v6695
    %v7437 = vpop.permute.xlu0 %7436
    %7439 = vset.pattern.permute.xlu0 3
    %7440 = vperm.xlu0 %7439, %v6696
    %v7441 = vpop.permute.xlu0 %7440
    %7443 = vset.pattern.permute.xlu0 3
    %7444 = vperm.xlu0 %7443, %v6697
    %v7445 = vpop.permute.xlu0 %7444
    %7447 = vset.pattern.permute.xlu0 3
    %7448 = vperm.xlu0 %7447, %v6698
    %v7449 = vpop.permute.xlu0 %7448
    %7451 = vset.pattern.permute.xlu0 3
    %7452 = vperm.xlu0 %7451, %v6699
    %v7453 = vpop.permute.xlu0 %7452
    %7455 = vset.pattern.permute.xlu0 3
    %7456 = vperm.xlu0 %7455, %v6700
    %v7457 = vpop.permute.xlu0 %7456
    %7459 = vset.pattern.permute.xlu0 3
    %7460 = vperm.xlu0 %7459, %v6701
    %v7461 = vpop.permute.xlu0 %7460
    %7463 = vset.pattern.permute.xlu0 3
    %7464 = vperm.xlu0 %7463, %v6702
    %v7465 = vpop.permute.xlu0 %7464
    %v7467 = vmul.f32 %v7405, %v4478
    %v7468 = vmul.f32 %v7409, %v4478
    %v7469 = vmul.f32 %v7413, %v4478
    %v7470 = vmul.f32 %v7417, %v4478
    %v7471 = vmul.f32 %v7421, %v4478
    %v7472 = vmul.f32 %v7425, %v4478
    %v7473 = vmul.f32 %v7429, %v4478
    %v7474 = vmul.f32 %v7433, %v4478
    %v7475 = vmul.f32 %v7437, %v4478
    %v7476 = vmul.f32 %v7441, %v4478
    %v7477 = vmul.f32 %v7445, %v4478
    %v7478 = vmul.f32 %v7449, %v4478
    %v7479 = vmul.f32 %v7453, %v4478
    %v7480 = vmul.f32 %v7457, %v4478
    %v7481 = vmul.f32 %v7461, %v4478
    %v7482 = vmul.f32 %v7465, %v4478
    %v7483 = vmul.f32 %v7467, 1.442695
    %v7484 = vpow.pop %v7483
    %v7485 = vmul.f32 %v7468, 1.442695
    %v7486 = vpow.pop %v7485
    %v7487 = vmul.f32 %v7469, 1.442695
    %v7488 = vpow.pop %v7487
    %v7489 = vmul.f32 %v7470, 1.442695
    %v7490 = vpow.pop %v7489
    %v7491 = vmul.f32 %v7471, 1.442695
    %v7492 = vpow.pop %v7491
    %v7493 = vmul.f32 %v7472, 1.442695
    %v7494 = vpow.pop %v7493
    %v7495 = vmul.f32 %v7473, 1.442695
    %v7496 = vpow.pop %v7495
    %v7497 = vmul.f32 %v7474, 1.442695
    %v7498 = vpow.pop %v7497
    %v7499 = vmul.f32 %v7475, 1.442695
    %v7500 = vpow.pop %v7499
    %v7501 = vmul.f32 %v7476, 1.442695
    %v7502 = vpow.pop %v7501
    %v7503 = vmul.f32 %v7477, 1.442695
    %v7504 = vpow.pop %v7503
    %v7505 = vmul.f32 %v7478, 1.442695
    %v7506 = vpow.pop %v7505
    %v7507 = vmul.f32 %v7479, 1.442695
    %v7508 = vpow.pop %v7507
    %v7509 = vmul.f32 %v7480, 1.442695
    %v7510 = vpow.pop %v7509
    %v7511 = vmul.f32 %v7481, 1.442695
    %v7512 = vpow.pop %v7511
    %v7513 = vmul.f32 %v7482, 1.442695
    %v7514 = vpow.pop %v7513
    %7515 = vset.pattern.permute.xlu0 3
    %7516 = vperm.xlu0 %7515, %v6719
    %v7517 = vpop.permute.xlu0 %7516
    %7519 = vset.pattern.permute.xlu0 3
    %7520 = vperm.xlu0 %7519, %v6720
    %v7521 = vpop.permute.xlu0 %7520
    %7523 = vset.pattern.permute.xlu0 3
    %7524 = vperm.xlu0 %7523, %v6721
    %v7525 = vpop.permute.xlu0 %7524
    %7527 = vset.pattern.permute.xlu0 3
    %7528 = vperm.xlu0 %7527, %v6722
    %v7529 = vpop.permute.xlu0 %7528
    %7531 = vset.pattern.permute.xlu0 3
    %7532 = vperm.xlu0 %7531, %v6723
    %v7533 = vpop.permute.xlu0 %7532
    %7535 = vset.pattern.permute.xlu0 3
    %7536 = vperm.xlu0 %7535, %v6724
    %v7537 = vpop.permute.xlu0 %7536
    %7539 = vset.pattern.permute.xlu0 3
    %7540 = vperm.xlu0 %7539, %v6725
    %v7541 = vpop.permute.xlu0 %7540
    %7543 = vset.pattern.permute.xlu0 3
    %7544 = vperm.xlu0 %7543, %v6726
    %v7545 = vpop.permute.xlu0 %7544
    %7547 = vset.pattern.permute.xlu0 3
    %7548 = vperm.xlu0 %7547, %v6727
    %v7549 = vpop.permute.xlu0 %7548
    %7551 = vset.pattern.permute.xlu0 3
    %7552 = vperm.xlu0 %7551, %v6728
    %v7553 = vpop.permute.xlu0 %7552
    %7555 = vset.pattern.permute.xlu0 3
    %7556 = vperm.xlu0 %7555, %v6729
    %v7557 = vpop.permute.xlu0 %7556
    %7559 = vset.pattern.permute.xlu0 3
    %7560 = vperm.xlu0 %7559, %v6730
    %v7561 = vpop.permute.xlu0 %7560
    %7563 = vset.pattern.permute.xlu0 3
    %7564 = vperm.xlu0 %7563, %v6731
    %v7565 = vpop.permute.xlu0 %7564
    %7567 = vset.pattern.permute.xlu0 3
    %7568 = vperm.xlu0 %7567, %v6732
    %v7569 = vpop.permute.xlu0 %7568
    %7571 = vset.pattern.permute.xlu0 3
    %7572 = vperm.xlu0 %7571, %v6733
    %v7573 = vpop.permute.xlu0 %7572
    %7575 = vset.pattern.permute.xlu0 3
    %7576 = vperm.xlu0 %7575, %v6734
    %v7577 = vpop.permute.xlu0 %7576
    %v7579 = vlaneseq
    %v7580 = vshrl.u32 %v7579, 7
    %v7581 = vsub.s32 3, %v7580
    %v7582 = vrot.slane %v4053, %v7581
    %v7583 = vmul.f32 %v7517, %v7582
    %v7584 = vmul.f32 %v7521, %v7582
    %v7585 = vmul.f32 %v7525, %v7582
    %v7586 = vmul.f32 %v7529, %v7582
    %v7587 = vmul.f32 %v7533, %v7582
    %v7588 = vmul.f32 %v7537, %v7582
    %v7589 = vmul.f32 %v7541, %v7582
    %v7590 = vmul.f32 %v7545, %v7582
    %v7591 = vmul.f32 %v7549, %v7582
    %v7592 = vmul.f32 %v7553, %v7582
    %v7593 = vmul.f32 %v7557, %v7582
    %v7594 = vmul.f32 %v7561, %v7582
    %v7595 = vmul.f32 %v7565, %v7582
    %v7596 = vmul.f32 %v7569, %v7582
    %v7597 = vmul.f32 %v7573, %v7582
    %v7598 = vmul.f32 %v7577, %v7582
    %v7599 = vmul.f32 %v7484, %v7583
    %v7600 = vmul.f32 %v7486, %v7584
    %v7601 = vmul.f32 %v7488, %v7585
    %v7602 = vmul.f32 %v7490, %v7586
    %v7603 = vmul.f32 %v7492, %v7587
    %v7604 = vmul.f32 %v7494, %v7588
    %v7605 = vmul.f32 %v7496, %v7589
    %v7606 = vmul.f32 %v7498, %v7590
    %v7607 = vmul.f32 %v7500, %v7591
    %v7608 = vmul.f32 %v7502, %v7592
    %v7609 = vmul.f32 %v7504, %v7593
    %v7610 = vmul.f32 %v7506, %v7594
    %v7611 = vmul.f32 %v7508, %v7595
    %v7612 = vmul.f32 %v7510, %v7596
    %v7613 = vmul.f32 %v7512, %v7597
    %v7614 = vmul.f32 %v7514, %v7598
    %7615 = vset.pattern.permute.xlu0 4
    %7616 = vperm.xlu0 %7615, %v6687
    %v7617 = vpop.permute.xlu0 %7616
    %7619 = vset.pattern.permute.xlu0 4
    %7620 = vperm.xlu0 %7619, %v6688
    %v7621 = vpop.permute.xlu0 %7620
    %7623 = vset.pattern.permute.xlu0 4
    %7624 = vperm.xlu0 %7623, %v6689
    %v7625 = vpop.permute.xlu0 %7624
    %7627 = vset.pattern.permute.xlu0 4
    %7628 = vperm.xlu0 %7627, %v6690
    %v7629 = vpop.permute.xlu0 %7628
    %7631 = vset.pattern.permute.xlu0 4
    %7632 = vperm.xlu0 %7631, %v6691
    %v7633 = vpop.permute.xlu0 %7632
    %7635 = vset.pattern.permute.xlu0 4
    %7636 = vperm.xlu0 %7635, %v6692
    %v7637 = vpop.permute.xlu0 %7636
    %7639 = vset.pattern.permute.xlu0 4
    %7640 = vperm.xlu0 %7639, %v6693
    %v7641 = vpop.permute.xlu0 %7640
    %7643 = vset.pattern.permute.xlu0 4
    %7644 = vperm.xlu0 %7643, %v6694
    %v7645 = vpop.permute.xlu0 %7644
    %7647 = vset.pattern.permute.xlu0 4
    %7648 = vperm.xlu0 %7647, %v6695
    %v7649 = vpop.permute.xlu0 %7648
    %7651 = vset.pattern.permute.xlu0 4
    %7652 = vperm.xlu0 %7651, %v6696
    %v7653 = vpop.permute.xlu0 %7652
    %7655 = vset.pattern.permute.xlu0 4
    %7656 = vperm.xlu0 %7655, %v6697
    %v7657 = vpop.permute.xlu0 %7656
    %7659 = vset.pattern.permute.xlu0 4
    %7660 = vperm.xlu0 %7659, %v6698
    %v7661 = vpop.permute.xlu0 %7660
    %7663 = vset.pattern.permute.xlu0 4
    %7664 = vperm.xlu0 %7663, %v6699
    %v7665 = vpop.permute.xlu0 %7664
    %7667 = vset.pattern.permute.xlu0 4
    %7668 = vperm.xlu0 %7667, %v6700
    %v7669 = vpop.permute.xlu0 %7668
    %7671 = vset.pattern.permute.xlu0 4
    %7672 = vperm.xlu0 %7671, %v6701
    %v7673 = vpop.permute.xlu0 %7672
    %7675 = vset.pattern.permute.xlu0 4
    %7676 = vperm.xlu0 %7675, %v6702
    %v7677 = vpop.permute.xlu0 %7676
    %v7679 = vmul.f32 %v7617, %v4478
    %v7680 = vmul.f32 %v7621, %v4478
    %v7681 = vmul.f32 %v7625, %v4478
    %v7682 = vmul.f32 %v7629, %v4478
    %v7683 = vmul.f32 %v7633, %v4478
    %v7684 = vmul.f32 %v7637, %v4478
    %v7685 = vmul.f32 %v7641, %v4478
    %v7686 = vmul.f32 %v7645, %v4478
    %v7687 = vmul.f32 %v7649, %v4478
    %v7688 = vmul.f32 %v7653, %v4478
    %v7689 = vmul.f32 %v7657, %v4478
    %v7690 = vmul.f32 %v7661, %v4478
    %v7691 = vmul.f32 %v7665, %v4478
    %v7692 = vmul.f32 %v7669, %v4478
    %v7693 = vmul.f32 %v7673, %v4478
    %v7694 = vmul.f32 %v7677, %v4478
    %v7695 = vmul.f32 %v7679, 1.442695
    %v7696 = vpow.pop %v7695
    %v7697 = vmul.f32 %v7680, 1.442695
    %v7698 = vpow.pop %v7697
    %v7699 = vmul.f32 %v7681, 1.442695
    %v7700 = vpow.pop %v7699
    %v7701 = vmul.f32 %v7682, 1.442695
    %v7702 = vpow.pop %v7701
    %v7703 = vmul.f32 %v7683, 1.442695
    %v7704 = vpow.pop %v7703
    %v7705 = vmul.f32 %v7684, 1.442695
    %v7706 = vpow.pop %v7705
    %v7707 = vmul.f32 %v7685, 1.442695
    %v7708 = vpow.pop %v7707
    %v7709 = vmul.f32 %v7686, 1.442695
    %v7710 = vpow.pop %v7709
    %v7711 = vmul.f32 %v7687, 1.442695
    %v7712 = vpow.pop %v7711
    %v7713 = vmul.f32 %v7688, 1.442695
    %v7714 = vpow.pop %v7713
    %v7715 = vmul.f32 %v7689, 1.442695
    %v7716 = vpow.pop %v7715
    %v7717 = vmul.f32 %v7690, 1.442695
    %v7718 = vpow.pop %v7717
    %v7719 = vmul.f32 %v7691, 1.442695
    %v7720 = vpow.pop %v7719
    %v7721 = vmul.f32 %v7692, 1.442695
    %v7722 = vpow.pop %v7721
    %v7723 = vmul.f32 %v7693, 1.442695
    %v7724 = vpow.pop %v7723
    %v7725 = vmul.f32 %v7694, 1.442695
    %v7726 = vpow.pop %v7725
    %7727 = vset.pattern.permute.xlu0 4
    %7728 = vperm.xlu0 %7727, %v6719
    %v7729 = vpop.permute.xlu0 %7728
    %7731 = vset.pattern.permute.xlu0 4
    %7732 = vperm.xlu0 %7731, %v6720
    %v7733 = vpop.permute.xlu0 %7732
    %7735 = vset.pattern.permute.xlu0 4
    %7736 = vperm.xlu0 %7735, %v6721
    %v7737 = vpop.permute.xlu0 %7736
    %7739 = vset.pattern.permute.xlu0 4
    %7740 = vperm.xlu0 %7739, %v6722
    %v7741 = vpop.permute.xlu0 %7740
    %7743 = vset.pattern.permute.xlu0 4
    %7744 = vperm.xlu0 %7743, %v6723
    %v7745 = vpop.permute.xlu0 %7744
    %7747 = vset.pattern.permute.xlu0 4
    %7748 = vperm.xlu0 %7747, %v6724
    %v7749 = vpop.permute.xlu0 %7748
    %7751 = vset.pattern.permute.xlu0 4
    %7752 = vperm.xlu0 %7751, %v6725
    %v7753 = vpop.permute.xlu0 %7752
    %7755 = vset.pattern.permute.xlu0 4
    %7756 = vperm.xlu0 %7755, %v6726
    %v7757 = vpop.permute.xlu0 %7756
    %7759 = vset.pattern.permute.xlu0 4
    %7760 = vperm.xlu0 %7759, %v6727
    %v7761 = vpop.permute.xlu0 %7760
    %7763 = vset.pattern.permute.xlu0 4
    %7764 = vperm.xlu0 %7763, %v6728
    %v7765 = vpop.permute.xlu0 %7764
    %7767 = vset.pattern.permute.xlu0 4
    %7768 = vperm.xlu0 %7767, %v6729
    %v7769 = vpop.permute.xlu0 %7768
    %7771 = vset.pattern.permute.xlu0 4
    %7772 = vperm.xlu0 %7771, %v6730
    %v7773 = vpop.permute.xlu0 %7772
    %7775 = vset.pattern.permute.xlu0 4
    %7776 = vperm.xlu0 %7775, %v6731
    %v7777 = vpop.permute.xlu0 %7776
    %7779 = vset.pattern.permute.xlu0 4
    %7780 = vperm.xlu0 %7779, %v6732
    %v7781 = vpop.permute.xlu0 %7780
    %7783 = vset.pattern.permute.xlu0 4
    %7784 = vperm.xlu0 %7783, %v6733
    %v7785 = vpop.permute.xlu0 %7784
    %7787 = vset.pattern.permute.xlu0 4
    %7788 = vperm.xlu0 %7787, %v6734
    %v7789 = vpop.permute.xlu0 %7788
    %v7791 = vlaneseq
    %v7792 = vshrl.u32 %v7791, 7
    %v7793 = vsub.s32 4, %v7792
    %v7794 = vrot.slane %v4053, %v7793
    %v7795 = vmul.f32 %v7729, %v7794
    %v7796 = vmul.f32 %v7733, %v7794
    %v7797 = vmul.f32 %v7737, %v7794
    %v7798 = vmul.f32 %v7741, %v7794
    %v7799 = vmul.f32 %v7745, %v7794
    %v7800 = vmul.f32 %v7749, %v7794
    %v7801 = vmul.f32 %v7753, %v7794
    %v7802 = vmul.f32 %v7757, %v7794
    %v7803 = vmul.f32 %v7761, %v7794
    %v7804 = vmul.f32 %v7765, %v7794
    %v7805 = vmul.f32 %v7769, %v7794
    %v7806 = vmul.f32 %v7773, %v7794
    %v7807 = vmul.f32 %v7777, %v7794
    %v7808 = vmul.f32 %v7781, %v7794
    %v7809 = vmul.f32 %v7785, %v7794
    %v7810 = vmul.f32 %v7789, %v7794
    %v7811 = vmul.f32 %v7696, %v7795
    %v7812 = vmul.f32 %v7698, %v7796
    %v7813 = vmul.f32 %v7700, %v7797
    %v7814 = vmul.f32 %v7702, %v7798
    %v7815 = vmul.f32 %v7704, %v7799
    %v7816 = vmul.f32 %v7706, %v7800
    %v7817 = vmul.f32 %v7708, %v7801
    %v7818 = vmul.f32 %v7710, %v7802
    %v7819 = vmul.f32 %v7712, %v7803
    %v7820 = vmul.f32 %v7714, %v7804
    %v7821 = vmul.f32 %v7716, %v7805
    %v7822 = vmul.f32 %v7718, %v7806
    %v7823 = vmul.f32 %v7720, %v7807
    %v7824 = vmul.f32 %v7722, %v7808
    %v7825 = vmul.f32 %v7724, %v7809
    %v7826 = vmul.f32 %v7726, %v7810
    %7827 = vset.pattern.permute.xlu0 5
    %7828 = vperm.xlu0 %7827, %v6687
    %v7829 = vpop.permute.xlu0 %7828
    %7831 = vset.pattern.permute.xlu0 5
    %7832 = vperm.xlu0 %7831, %v6688
    %v7833 = vpop.permute.xlu0 %7832
    %7835 = vset.pattern.permute.xlu0 5
    %7836 = vperm.xlu0 %7835, %v6689
    %v7837 = vpop.permute.xlu0 %7836
    %7839 = vset.pattern.permute.xlu0 5
    %7840 = vperm.xlu0 %7839, %v6690
    %v7841 = vpop.permute.xlu0 %7840
    %7843 = vset.pattern.permute.xlu0 5
    %7844 = vperm.xlu0 %7843, %v6691
    %v7845 = vpop.permute.xlu0 %7844
    %7847 = vset.pattern.permute.xlu0 5
    %7848 = vperm.xlu0 %7847, %v6692
    %v7849 = vpop.permute.xlu0 %7848
    %7851 = vset.pattern.permute.xlu0 5
    %7852 = vperm.xlu0 %7851, %v6693
    %v7853 = vpop.permute.xlu0 %7852
    %7855 = vset.pattern.permute.xlu0 5
    %7856 = vperm.xlu0 %7855, %v6694
    %v7857 = vpop.permute.xlu0 %7856
    %7859 = vset.pattern.permute.xlu0 5
    %7860 = vperm.xlu0 %7859, %v6695
    %v7861 = vpop.permute.xlu0 %7860
    %7863 = vset.pattern.permute.xlu0 5
    %7864 = vperm.xlu0 %7863, %v6696
    %v7865 = vpop.permute.xlu0 %7864
    %7867 = vset.pattern.permute.xlu0 5
    %7868 = vperm.xlu0 %7867, %v6697
    %v7869 = vpop.permute.xlu0 %7868
    %7871 = vset.pattern.permute.xlu0 5
    %7872 = vperm.xlu0 %7871, %v6698
    %v7873 = vpop.permute.xlu0 %7872
    %7875 = vset.pattern.permute.xlu0 5
    %7876 = vperm.xlu0 %7875, %v6699
    %v7877 = vpop.permute.xlu0 %7876
    %7879 = vset.pattern.permute.xlu0 5
    %7880 = vperm.xlu0 %7879, %v6700
    %v7881 = vpop.permute.xlu0 %7880
    %7883 = vset.pattern.permute.xlu0 5
    %7884 = vperm.xlu0 %7883, %v6701
    %v7885 = vpop.permute.xlu0 %7884
    %7887 = vset.pattern.permute.xlu0 5
    %7888 = vperm.xlu0 %7887, %v6702
    %v7889 = vpop.permute.xlu0 %7888
    %v7891 = vmul.f32 %v7829, %v4478
    %v7892 = vmul.f32 %v7833, %v4478
    %v7893 = vmul.f32 %v7837, %v4478
    %v7894 = vmul.f32 %v7841, %v4478
    %v7895 = vmul.f32 %v7845, %v4478
    %v7896 = vmul.f32 %v7849, %v4478
    %v7897 = vmul.f32 %v7853, %v4478
    %v7898 = vmul.f32 %v7857, %v4478
    %v7899 = vmul.f32 %v7861, %v4478
    %v7900 = vmul.f32 %v7865, %v4478
    %v7901 = vmul.f32 %v7869, %v4478
    %v7902 = vmul.f32 %v7873, %v4478
    %v7903 = vmul.f32 %v7877, %v4478
    %v7904 = vmul.f32 %v7881, %v4478
    %v7905 = vmul.f32 %v7885, %v4478
    %v7906 = vmul.f32 %v7889, %v4478
    %v7907 = vmul.f32 %v7891, 1.442695
    %v7908 = vpow.pop %v7907
    %v7909 = vmul.f32 %v7892, 1.442695
    %v7910 = vpow.pop %v7909
    %v7911 = vmul.f32 %v7893, 1.442695
    %v7912 = vpow.pop %v7911
    %v7913 = vmul.f32 %v7894, 1.442695
    %v7914 = vpow.pop %v7913
    %v7915 = vmul.f32 %v7895, 1.442695
    %v7916 = vpow.pop %v7915
    %v7917 = vmul.f32 %v7896, 1.442695
    %v7918 = vpow.pop %v7917
    %v7919 = vmul.f32 %v7897, 1.442695
    %v7920 = vpow.pop %v7919
    %v7921 = vmul.f32 %v7898, 1.442695
    %v7922 = vpow.pop %v7921
    %v7923 = vmul.f32 %v7899, 1.442695
    %v7924 = vpow.pop %v7923
    %v7925 = vmul.f32 %v7900, 1.442695
    %v7926 = vpow.pop %v7925
    %v7927 = vmul.f32 %v7901, 1.442695
    %v7928 = vpow.pop %v7927
    %v7929 = vmul.f32 %v7902, 1.442695
    %v7930 = vpow.pop %v7929
    %v7931 = vmul.f32 %v7903, 1.442695
    %v7932 = vpow.pop %v7931
    %v7933 = vmul.f32 %v7904, 1.442695
    %v7934 = vpow.pop %v7933
    %v7935 = vmul.f32 %v7905, 1.442695
    %v7936 = vpow.pop %v7935
    %v7937 = vmul.f32 %v7906, 1.442695
    %v7938 = vpow.pop %v7937
    %7939 = vset.pattern.permute.xlu0 5
    %7940 = vperm.xlu0 %7939, %v6719
    %v7941 = vpop.permute.xlu0 %7940
    %7943 = vset.pattern.permute.xlu0 5
    %7944 = vperm.xlu0 %7943, %v6720
    %v7945 = vpop.permute.xlu0 %7944
    %7947 = vset.pattern.permute.xlu0 5
    %7948 = vperm.xlu0 %7947, %v6721
    %v7949 = vpop.permute.xlu0 %7948
    %7951 = vset.pattern.permute.xlu0 5
    %7952 = vperm.xlu0 %7951, %v6722
    %v7953 = vpop.permute.xlu0 %7952
    %7955 = vset.pattern.permute.xlu0 5
    %7956 = vperm.xlu0 %7955, %v6723
    %v7957 = vpop.permute.xlu0 %7956
    %7959 = vset.pattern.permute.xlu0 5
    %7960 = vperm.xlu0 %7959, %v6724
    %v7961 = vpop.permute.xlu0 %7960
    %7963 = vset.pattern.permute.xlu0 5
    %7964 = vperm.xlu0 %7963, %v6725
    %v7965 = vpop.permute.xlu0 %7964
    %7967 = vset.pattern.permute.xlu0 5
    %7968 = vperm.xlu0 %7967, %v6726
    %v7969 = vpop.permute.xlu0 %7968
    %7971 = vset.pattern.permute.xlu0 5
    %7972 = vperm.xlu0 %7971, %v6727
    %v7973 = vpop.permute.xlu0 %7972
    %7975 = vset.pattern.permute.xlu0 5
    %7976 = vperm.xlu0 %7975, %v6728
    %v7977 = vpop.permute.xlu0 %7976
    %7979 = vset.pattern.permute.xlu0 5
    %7980 = vperm.xlu0 %7979, %v6729
    %v7981 = vpop.permute.xlu0 %7980
    %7983 = vset.pattern.permute.xlu0 5
    %7984 = vperm.xlu0 %7983, %v6730
    %v7985 = vpop.permute.xlu0 %7984
    %7987 = vset.pattern.permute.xlu0 5
    %7988 = vperm.xlu0 %7987, %v6731
    %v7989 = vpop.permute.xlu0 %7988
    %7991 = vset.pattern.permute.xlu0 5
    %7992 = vperm.xlu0 %7991, %v6732
    %v7993 = vpop.permute.xlu0 %7992
    %7995 = vset.pattern.permute.xlu0 5
    %7996 = vperm.xlu0 %7995, %v6733
    %v7997 = vpop.permute.xlu0 %7996
    %7999 = vset.pattern.permute.xlu0 5
    %8000 = vperm.xlu0 %7999, %v6734
    %v8001 = vpop.permute.xlu0 %8000
    %v8003 = vlaneseq
    %v8004 = vshrl.u32 %v8003, 7
    %v8005 = vsub.s32 5, %v8004
    %v8006 = vrot.slane %v4053, %v8005
    %v8007 = vmul.f32 %v7941, %v8006
    %v8008 = vmul.f32 %v7945, %v8006
    %v8009 = vmul.f32 %v7949, %v8006
    %v8010 = vmul.f32 %v7953, %v8006
    %v8011 = vmul.f32 %v7957, %v8006
    %v8012 = vmul.f32 %v7961, %v8006
    %v8013 = vmul.f32 %v7965, %v8006
    %v8014 = vmul.f32 %v7969, %v8006
    %v8015 = vmul.f32 %v7973, %v8006
    %v8016 = vmul.f32 %v7977, %v8006
    %v8017 = vmul.f32 %v7981, %v8006
    %v8018 = vmul.f32 %v7985, %v8006
    %v8019 = vmul.f32 %v7989, %v8006
    %v8020 = vmul.f32 %v7993, %v8006
    %v8021 = vmul.f32 %v7997, %v8006
    %v8022 = vmul.f32 %v8001, %v8006
    %v8023 = vmul.f32 %v7908, %v8007
    %v8024 = vmul.f32 %v7910, %v8008
    %v8025 = vmul.f32 %v7912, %v8009
    %v8026 = vmul.f32 %v7914, %v8010
    %v8027 = vmul.f32 %v7916, %v8011
    %v8028 = vmul.f32 %v7918, %v8012
    %v8029 = vmul.f32 %v7920, %v8013
    %v8030 = vmul.f32 %v7922, %v8014
    %v8031 = vmul.f32 %v7924, %v8015
    %v8032 = vmul.f32 %v7926, %v8016
    %v8033 = vmul.f32 %v7928, %v8017
    %v8034 = vmul.f32 %v7930, %v8018
    %v8035 = vmul.f32 %v7932, %v8019
    %v8036 = vmul.f32 %v7934, %v8020
    %v8037 = vmul.f32 %v7936, %v8021
    %v8038 = vmul.f32 %v7938, %v8022
    %8039 = vset.pattern.permute.xlu0 6
    %8040 = vperm.xlu0 %8039, %v6687
    %v8041 = vpop.permute.xlu0 %8040
    %8043 = vset.pattern.permute.xlu0 6
    %8044 = vperm.xlu0 %8043, %v6688
    %v8045 = vpop.permute.xlu0 %8044
    %8047 = vset.pattern.permute.xlu0 6
    %8048 = vperm.xlu0 %8047, %v6689
    %v8049 = vpop.permute.xlu0 %8048
    %8051 = vset.pattern.permute.xlu0 6
    %8052 = vperm.xlu0 %8051, %v6690
    %v8053 = vpop.permute.xlu0 %8052
    %8055 = vset.pattern.permute.xlu0 6
    %8056 = vperm.xlu0 %8055, %v6691
    %v8057 = vpop.permute.xlu0 %8056
    %8059 = vset.pattern.permute.xlu0 6
    %8060 = vperm.xlu0 %8059, %v6692
    %v8061 = vpop.permute.xlu0 %8060
    %8063 = vset.pattern.permute.xlu0 6
    %8064 = vperm.xlu0 %8063, %v6693
    %v8065 = vpop.permute.xlu0 %8064
    %8067 = vset.pattern.permute.xlu0 6
    %8068 = vperm.xlu0 %8067, %v6694
    %v8069 = vpop.permute.xlu0 %8068
    %8071 = vset.pattern.permute.xlu0 6
    %8072 = vperm.xlu0 %8071, %v6695
    %v8073 = vpop.permute.xlu0 %8072
    %8075 = vset.pattern.permute.xlu0 6
    %8076 = vperm.xlu0 %8075, %v6696
    %v8077 = vpop.permute.xlu0 %8076
    %8079 = vset.pattern.permute.xlu0 6
    %8080 = vperm.xlu0 %8079, %v6697
    %v8081 = vpop.permute.xlu0 %8080
    %8083 = vset.pattern.permute.xlu0 6
    %8084 = vperm.xlu0 %8083, %v6698
    %v8085 = vpop.permute.xlu0 %8084
    %8087 = vset.pattern.permute.xlu0 6
    %8088 = vperm.xlu0 %8087, %v6699
    %v8089 = vpop.permute.xlu0 %8088
    %8091 = vset.pattern.permute.xlu0 6
    %8092 = vperm.xlu0 %8091, %v6700
    %v8093 = vpop.permute.xlu0 %8092
    %8095 = vset.pattern.permute.xlu0 6
    %8096 = vperm.xlu0 %8095, %v6701
    %v8097 = vpop.permute.xlu0 %8096
    %8099 = vset.pattern.permute.xlu0 6
    %8100 = vperm.xlu0 %8099, %v6702
    %v8101 = vpop.permute.xlu0 %8100
    %v8103 = vmul.f32 %v8041, %v4478
    %v8104 = vmul.f32 %v8045, %v4478
    %v8105 = vmul.f32 %v8049, %v4478
    %v8106 = vmul.f32 %v8053, %v4478
    %v8107 = vmul.f32 %v8057, %v4478
    %v8108 = vmul.f32 %v8061, %v4478
    %v8109 = vmul.f32 %v8065, %v4478
    %v8110 = vmul.f32 %v8069, %v4478
    %v8111 = vmul.f32 %v8073, %v4478
    %v8112 = vmul.f32 %v8077, %v4478
    %v8113 = vmul.f32 %v8081, %v4478
    %v8114 = vmul.f32 %v8085, %v4478
    %v8115 = vmul.f32 %v8089, %v4478
    %v8116 = vmul.f32 %v8093, %v4478
    %v8117 = vmul.f32 %v8097, %v4478
    %v8118 = vmul.f32 %v8101, %v4478
    %v8119 = vmul.f32 %v8103, 1.442695
    %v8120 = vpow.pop %v8119
    %v8121 = vmul.f32 %v8104, 1.442695
    %v8122 = vpow.pop %v8121
    %v8123 = vmul.f32 %v8105, 1.442695
    %v8124 = vpow.pop %v8123
    %v8125 = vmul.f32 %v8106, 1.442695
    %v8126 = vpow.pop %v8125
    %v8127 = vmul.f32 %v8107, 1.442695
    %v8128 = vpow.pop %v8127
    %v8129 = vmul.f32 %v8108, 1.442695
    %v8130 = vpow.pop %v8129
    %v8131 = vmul.f32 %v8109, 1.442695
    %v8132 = vpow.pop %v8131
    %v8133 = vmul.f32 %v8110, 1.442695
    %v8134 = vpow.pop %v8133
    %v8135 = vmul.f32 %v8111, 1.442695
    %v8136 = vpow.pop %v8135
    %v8137 = vmul.f32 %v8112, 1.442695
    %v8138 = vpow.pop %v8137
    %v8139 = vmul.f32 %v8113, 1.442695
    %v8140 = vpow.pop %v8139
    %v8141 = vmul.f32 %v8114, 1.442695
    %v8142 = vpow.pop %v8141
    %v8143 = vmul.f32 %v8115, 1.442695
    %v8144 = vpow.pop %v8143
    %v8145 = vmul.f32 %v8116, 1.442695
    %v8146 = vpow.pop %v8145
    %v8147 = vmul.f32 %v8117, 1.442695
    %v8148 = vpow.pop %v8147
    %v8149 = vmul.f32 %v8118, 1.442695
    %v8150 = vpow.pop %v8149
    %8151 = vset.pattern.permute.xlu0 6
    %8152 = vperm.xlu0 %8151, %v6719
    %v8153 = vpop.permute.xlu0 %8152
    %8155 = vset.pattern.permute.xlu0 6
    %8156 = vperm.xlu0 %8155, %v6720
    %v8157 = vpop.permute.xlu0 %8156
    %8159 = vset.pattern.permute.xlu0 6
    %8160 = vperm.xlu0 %8159, %v6721
    %v8161 = vpop.permute.xlu0 %8160
    %8163 = vset.pattern.permute.xlu0 6
    %8164 = vperm.xlu0 %8163, %v6722
    %v8165 = vpop.permute.xlu0 %8164
    %8167 = vset.pattern.permute.xlu0 6
    %8168 = vperm.xlu0 %8167, %v6723
    %v8169 = vpop.permute.xlu0 %8168
    %8171 = vset.pattern.permute.xlu0 6
    %8172 = vperm.xlu0 %8171, %v6724
    %v8173 = vpop.permute.xlu0 %8172
    %8175 = vset.pattern.permute.xlu0 6
    %8176 = vperm.xlu0 %8175, %v6725
    %v8177 = vpop.permute.xlu0 %8176
    %8179 = vset.pattern.permute.xlu0 6
    %8180 = vperm.xlu0 %8179, %v6726
    %v8181 = vpop.permute.xlu0 %8180
    %8183 = vset.pattern.permute.xlu0 6
    %8184 = vperm.xlu0 %8183, %v6727
    %v8185 = vpop.permute.xlu0 %8184
    %8187 = vset.pattern.permute.xlu0 6
    %8188 = vperm.xlu0 %8187, %v6728
    %v8189 = vpop.permute.xlu0 %8188
    %8191 = vset.pattern.permute.xlu0 6
    %8192 = vperm.xlu0 %8191, %v6729
    %v8193 = vpop.permute.xlu0 %8192
    %8195 = vset.pattern.permute.xlu0 6
    %8196 = vperm.xlu0 %8195, %v6730
    %v8197 = vpop.permute.xlu0 %8196
    %8199 = vset.pattern.permute.xlu0 6
    %8200 = vperm.xlu0 %8199, %v6731
    %v8201 = vpop.permute.xlu0 %8200
    %8203 = vset.pattern.permute.xlu0 6
    %8204 = vperm.xlu0 %8203, %v6732
    %v8205 = vpop.permute.xlu0 %8204
    %8207 = vset.pattern.permute.xlu0 6
    %8208 = vperm.xlu0 %8207, %v6733
    %v8209 = vpop.permute.xlu0 %8208
    %8211 = vset.pattern.permute.xlu0 6
    %8212 = vperm.xlu0 %8211, %v6734
    %v8213 = vpop.permute.xlu0 %8212
    %v8215 = vlaneseq
    %v8216 = vshrl.u32 %v8215, 7
    %v8217 = vsub.s32 6, %v8216
    %v8218 = vrot.slane %v4053, %v8217
    %v8219 = vmul.f32 %v8153, %v8218
    %v8220 = vmul.f32 %v8157, %v8218
    %v8221 = vmul.f32 %v8161, %v8218
    %v8222 = vmul.f32 %v8165, %v8218
    %v8223 = vmul.f32 %v8169, %v8218
    %v8224 = vmul.f32 %v8173, %v8218
    %v8225 = vmul.f32 %v8177, %v8218
    %v8226 = vmul.f32 %v8181, %v8218
    %v8227 = vmul.f32 %v8185, %v8218
    %v8228 = vmul.f32 %v8189, %v8218
    %v8229 = vmul.f32 %v8193, %v8218
    %v8230 = vmul.f32 %v8197, %v8218
    %v8231 = vmul.f32 %v8201, %v8218
    %v8232 = vmul.f32 %v8205, %v8218
    %v8233 = vmul.f32 %v8209, %v8218
    %v8234 = vmul.f32 %v8213, %v8218
    %v8235 = vmul.f32 %v8120, %v8219
    %v8236 = vmul.f32 %v8122, %v8220
    %v8237 = vmul.f32 %v8124, %v8221
    %v8238 = vmul.f32 %v8126, %v8222
    %v8239 = vmul.f32 %v8128, %v8223
    %v8240 = vmul.f32 %v8130, %v8224
    %v8241 = vmul.f32 %v8132, %v8225
    %v8242 = vmul.f32 %v8134, %v8226
    %v8243 = vmul.f32 %v8136, %v8227
    %v8244 = vmul.f32 %v8138, %v8228
    %v8245 = vmul.f32 %v8140, %v8229
    %v8246 = vmul.f32 %v8142, %v8230
    %v8247 = vmul.f32 %v8144, %v8231
    %v8248 = vmul.f32 %v8146, %v8232
    %v8249 = vmul.f32 %v8148, %v8233
    %v8250 = vmul.f32 %v8150, %v8234
    %8251 = vset.pattern.permute.xlu0 7
    %8252 = vperm.xlu0 %8251, %v6687
    %v8253 = vpop.permute.xlu0 %8252
    %8255 = vset.pattern.permute.xlu0 7
    %8256 = vperm.xlu0 %8255, %v6688
    %v8257 = vpop.permute.xlu0 %8256
    %8259 = vset.pattern.permute.xlu0 7
    %8260 = vperm.xlu0 %8259, %v6689
    %v8261 = vpop.permute.xlu0 %8260
    %8263 = vset.pattern.permute.xlu0 7
    %8264 = vperm.xlu0 %8263, %v6690
    %v8265 = vpop.permute.xlu0 %8264
    %8267 = vset.pattern.permute.xlu0 7
    %8268 = vperm.xlu0 %8267, %v6691
    %v8269 = vpop.permute.xlu0 %8268
    %8271 = vset.pattern.permute.xlu0 7
    %8272 = vperm.xlu0 %8271, %v6692
    %v8273 = vpop.permute.xlu0 %8272
    %8275 = vset.pattern.permute.xlu0 7
    %8276 = vperm.xlu0 %8275, %v6693
    %v8277 = vpop.permute.xlu0 %8276
    %8279 = vset.pattern.permute.xlu0 7
    %8280 = vperm.xlu0 %8279, %v6694
    %v8281 = vpop.permute.xlu0 %8280
    %8283 = vset.pattern.permute.xlu0 7
    %8284 = vperm.xlu0 %8283, %v6695
    %v8285 = vpop.permute.xlu0 %8284
    %8287 = vset.pattern.permute.xlu0 7
    %8288 = vperm.xlu0 %8287, %v6696
    %v8289 = vpop.permute.xlu0 %8288
    %8291 = vset.pattern.permute.xlu0 7
    %8292 = vperm.xlu0 %8291, %v6697
    %v8293 = vpop.permute.xlu0 %8292
    %8295 = vset.pattern.permute.xlu0 7
    %8296 = vperm.xlu0 %8295, %v6698
    %v8297 = vpop.permute.xlu0 %8296
    %8299 = vset.pattern.permute.xlu0 7
    %8300 = vperm.xlu0 %8299, %v6699
    %v8301 = vpop.permute.xlu0 %8300
    %8303 = vset.pattern.permute.xlu0 7
    %8304 = vperm.xlu0 %8303, %v6700
    %v8305 = vpop.permute.xlu0 %8304
    %8307 = vset.pattern.permute.xlu0 7
    %8308 = vperm.xlu0 %8307, %v6701
    %v8309 = vpop.permute.xlu0 %8308
    %8311 = vset.pattern.permute.xlu0 7
    %8312 = vperm.xlu0 %8311, %v6702
    %v8313 = vpop.permute.xlu0 %8312
    %v8315 = vmul.f32 %v8253, %v4478
    %v8316 = vmul.f32 %v8257, %v4478
    %v8317 = vmul.f32 %v8261, %v4478
    %v8318 = vmul.f32 %v8265, %v4478
    %v8319 = vmul.f32 %v8269, %v4478
    %v8320 = vmul.f32 %v8273, %v4478
    %v8321 = vmul.f32 %v8277, %v4478
    %v8322 = vmul.f32 %v8281, %v4478
    %v8323 = vmul.f32 %v8285, %v4478
    %v8324 = vmul.f32 %v8289, %v4478
    %v8325 = vmul.f32 %v8293, %v4478
    %v8326 = vmul.f32 %v8297, %v4478
    %v8327 = vmul.f32 %v8301, %v4478
    %v8328 = vmul.f32 %v8305, %v4478
    %v8329 = vmul.f32 %v8309, %v4478
    %v8330 = vmul.f32 %v8313, %v4478
    %v8331 = vmul.f32 %v8315, 1.442695
    %v8332 = vpow.pop %v8331
    %v8333 = vmul.f32 %v8316, 1.442695
    %v8334 = vpow.pop %v8333
    %v8335 = vmul.f32 %v8317, 1.442695
    %v8336 = vpow.pop %v8335
    %v8337 = vmul.f32 %v8318, 1.442695
    %v8338 = vpow.pop %v8337
    %v8339 = vmul.f32 %v8319, 1.442695
    %v8340 = vpow.pop %v8339
    %v8341 = vmul.f32 %v8320, 1.442695
    %v8342 = vpow.pop %v8341
    %v8343 = vmul.f32 %v8321, 1.442695
    %v8344 = vpow.pop %v8343
    %v8345 = vmul.f32 %v8322, 1.442695
    %v8346 = vpow.pop %v8345
    %v8347 = vmul.f32 %v8323, 1.442695
    %v8348 = vpow.pop %v8347
    %v8349 = vmul.f32 %v8324, 1.442695
    %v8350 = vpow.pop %v8349
    %v8351 = vmul.f32 %v8325, 1.442695
    %v8352 = vpow.pop %v8351
    %v8353 = vmul.f32 %v8326, 1.442695
    %v8354 = vpow.pop %v8353
    %v8355 = vmul.f32 %v8327, 1.442695
    %v8356 = vpow.pop %v8355
    %v8357 = vmul.f32 %v8328, 1.442695
    %v8358 = vpow.pop %v8357
    %v8359 = vmul.f32 %v8329, 1.442695
    %v8360 = vpow.pop %v8359
    %v8361 = vmul.f32 %v8330, 1.442695
    %v8362 = vpow.pop %v8361
    %8363 = vset.pattern.permute.xlu0 7
    %8364 = vperm.xlu0 %8363, %v6719
    %v8365 = vpop.permute.xlu0 %8364
    %8367 = vset.pattern.permute.xlu0 7
    %8368 = vperm.xlu0 %8367, %v6720
    %v8369 = vpop.permute.xlu0 %8368
    %8371 = vset.pattern.permute.xlu0 7
    %8372 = vperm.xlu0 %8371, %v6721
    %v8373 = vpop.permute.xlu0 %8372
    %8375 = vset.pattern.permute.xlu0 7
    %8376 = vperm.xlu0 %8375, %v6722
    %v8377 = vpop.permute.xlu0 %8376
    %8379 = vset.pattern.permute.xlu0 7
    %8380 = vperm.xlu0 %8379, %v6723
    %v8381 = vpop.permute.xlu0 %8380
    %8383 = vset.pattern.permute.xlu0 7
    %8384 = vperm.xlu0 %8383, %v6724
    %v8385 = vpop.permute.xlu0 %8384
    %8387 = vset.pattern.permute.xlu0 7
    %8388 = vperm.xlu0 %8387, %v6725
    %v8389 = vpop.permute.xlu0 %8388
    %8391 = vset.pattern.permute.xlu0 7
    %8392 = vperm.xlu0 %8391, %v6726
    %v8393 = vpop.permute.xlu0 %8392
    %8395 = vset.pattern.permute.xlu0 7
    %8396 = vperm.xlu0 %8395, %v6727
    %v8397 = vpop.permute.xlu0 %8396
    %8399 = vset.pattern.permute.xlu0 7
    %8400 = vperm.xlu0 %8399, %v6728
    %v8401 = vpop.permute.xlu0 %8400
    %8403 = vset.pattern.permute.xlu0 7
    %8404 = vperm.xlu0 %8403, %v6729
    %v8405 = vpop.permute.xlu0 %8404
    %8407 = vset.pattern.permute.xlu0 7
    %8408 = vperm.xlu0 %8407, %v6730
    %v8409 = vpop.permute.xlu0 %8408
    %8411 = vset.pattern.permute.xlu0 7
    %8412 = vperm.xlu0 %8411, %v6731
    %v8413 = vpop.permute.xlu0 %8412
    %8415 = vset.pattern.permute.xlu0 7
    %8416 = vperm.xlu0 %8415, %v6732
    %v8417 = vpop.permute.xlu0 %8416
    %8419 = vset.pattern.permute.xlu0 7
    %8420 = vperm.xlu0 %8419, %v6733
    %v8421 = vpop.permute.xlu0 %8420
    %8423 = vset.pattern.permute.xlu0 7
    %8424 = vperm.xlu0 %8423, %v6734
    %v8425 = vpop.permute.xlu0 %8424
    %v8427 = vlaneseq
    %v8428 = vshrl.u32 %v8427, 7
    %v8429 = vsub.s32 7, %v8428
    %v8430 = vrot.slane %v4053, %v8429
    %v8431 = vmul.f32 %v8365, %v8430
    %v8432 = vmul.f32 %v8369, %v8430
    %v8433 = vmul.f32 %v8373, %v8430
    %v8434 = vmul.f32 %v8377, %v8430
    %v8435 = vmul.f32 %v8381, %v8430
    %v8436 = vmul.f32 %v8385, %v8430
    %v8437 = vmul.f32 %v8389, %v8430
    %v8438 = vmul.f32 %v8393, %v8430
    %v8439 = vmul.f32 %v8397, %v8430
    %v8440 = vmul.f32 %v8401, %v8430
    %v8441 = vmul.f32 %v8405, %v8430
    %v8442 = vmul.f32 %v8409, %v8430
    %v8443 = vmul.f32 %v8413, %v8430
    %v8444 = vmul.f32 %v8417, %v8430
    %v8445 = vmul.f32 %v8421, %v8430
    %v8446 = vmul.f32 %v8425, %v8430
    %v8447 = vmul.f32 %v8332, %v8431
    %v8448 = vmul.f32 %v8334, %v8432
    %v8449 = vmul.f32 %v8336, %v8433
    %v8450 = vmul.f32 %v8338, %v8434
    %v8451 = vmul.f32 %v8340, %v8435
    %v8452 = vmul.f32 %v8342, %v8436
    %v8453 = vmul.f32 %v8344, %v8437
    %v8454 = vmul.f32 %v8346, %v8438
    %v8455 = vmul.f32 %v8348, %v8439
    %v8456 = vmul.f32 %v8350, %v8440
    %v8457 = vmul.f32 %v8352, %v8441
    %v8458 = vmul.f32 %v8354, %v8442
    %v8459 = vmul.f32 %v8356, %v8443
    %v8460 = vmul.f32 %v8358, %v8444
    %v8461 = vmul.f32 %v8360, %v8445
    %v8462 = vmul.f32 %v8362, %v8446
    %v8463 = vadd.f32 %v6963, %v7175
    %v8464 = vadd.f32 %v6964, %v7176
    %v8465 = vadd.f32 %v6965, %v7177
    %v8466 = vadd.f32 %v6966, %v7178
    %v8467 = vadd.f32 %v6967, %v7179
    %v8468 = vadd.f32 %v6968, %v7180
    %v8469 = vadd.f32 %v6969, %v7181
    %v8470 = vadd.f32 %v6970, %v7182
    %v8471 = vadd.f32 %v6971, %v7183
    %v8472 = vadd.f32 %v6972, %v7184
    %v8473 = vadd.f32 %v6973, %v7185
    %v8474 = vadd.f32 %v6974, %v7186
    %v8475 = vadd.f32 %v6975, %v7187
    %v8476 = vadd.f32 %v6976, %v7188
    %v8477 = vadd.f32 %v6977, %v7189
    %v8478 = vadd.f32 %v6978, %v7190
    %v8479 = vadd.f32 %v7387, %v7599
    %v8480 = vadd.f32 %v7388, %v7600
    %v8481 = vadd.f32 %v7389, %v7601
    %v8482 = vadd.f32 %v7390, %v7602
    %v8483 = vadd.f32 %v7391, %v7603
    %v8484 = vadd.f32 %v7392, %v7604
    %v8485 = vadd.f32 %v7393, %v7605
    %v8486 = vadd.f32 %v7394, %v7606
    %v8487 = vadd.f32 %v7395, %v7607
    %v8488 = vadd.f32 %v7396, %v7608
    %v8489 = vadd.f32 %v7397, %v7609
    %v8490 = vadd.f32 %v7398, %v7610
    %v8491 = vadd.f32 %v7399, %v7611
    %v8492 = vadd.f32 %v7400, %v7612
    %v8493 = vadd.f32 %v7401, %v7613
    %v8494 = vadd.f32 %v7402, %v7614
    %v8495 = vadd.f32 %v7811, %v8023
    %v8496 = vadd.f32 %v7812, %v8024
    %v8497 = vadd.f32 %v7813, %v8025
    %v8498 = vadd.f32 %v7814, %v8026
    %v8499 = vadd.f32 %v7815, %v8027
    %v8500 = vadd.f32 %v7816, %v8028
    %v8501 = vadd.f32 %v7817, %v8029
    %v8502 = vadd.f32 %v7818, %v8030
    %v8503 = vadd.f32 %v7819, %v8031
    %v8504 = vadd.f32 %v7820, %v8032
    %v8505 = vadd.f32 %v7821, %v8033
    %v8506 = vadd.f32 %v7822, %v8034
    %v8507 = vadd.f32 %v7823, %v8035
    %v8508 = vadd.f32 %v7824, %v8036
    %v8509 = vadd.f32 %v7825, %v8037
    %v8510 = vadd.f32 %v7826, %v8038
    %v8511 = vadd.f32 %v8235, %v8447
    %v8512 = vadd.f32 %v8236, %v8448
    %v8513 = vadd.f32 %v8237, %v8449
    %v8514 = vadd.f32 %v8238, %v8450
    %v8515 = vadd.f32 %v8239, %v8451
    %v8516 = vadd.f32 %v8240, %v8452
    %v8517 = vadd.f32 %v8241, %v8453
    %v8518 = vadd.f32 %v8242, %v8454
    %v8519 = vadd.f32 %v8243, %v8455
    %v8520 = vadd.f32 %v8244, %v8456
    %v8521 = vadd.f32 %v8245, %v8457
    %v8522 = vadd.f32 %v8246, %v8458
    %v8523 = vadd.f32 %v8247, %v8459
    %v8524 = vadd.f32 %v8248, %v8460
    %v8525 = vadd.f32 %v8249, %v8461
    %v8526 = vadd.f32 %v8250, %v8462
    %v8527 = vadd.f32 %v8463, %v8479
    %v8528 = vadd.f32 %v8464, %v8480
    %v8529 = vadd.f32 %v8465, %v8481
    %v8530 = vadd.f32 %v8466, %v8482
    %v8531 = vadd.f32 %v8467, %v8483
    %v8532 = vadd.f32 %v8468, %v8484
    %v8533 = vadd.f32 %v8469, %v8485
    %v8534 = vadd.f32 %v8470, %v8486
    %v8535 = vadd.f32 %v8471, %v8487
    %v8536 = vadd.f32 %v8472, %v8488
    %v8537 = vadd.f32 %v8473, %v8489
    %v8538 = vadd.f32 %v8474, %v8490
    %v8539 = vadd.f32 %v8475, %v8491
    %v8540 = vadd.f32 %v8476, %v8492
    %v8541 = vadd.f32 %v8477, %v8493
    %v8542 = vadd.f32 %v8478, %v8494
    %v8543 = vadd.f32 %v8495, %v8511
    %v8544 = vadd.f32 %v8496, %v8512
    %v8545 = vadd.f32 %v8497, %v8513
    %v8546 = vadd.f32 %v8498, %v8514
    %v8547 = vadd.f32 %v8499, %v8515
    %v8548 = vadd.f32 %v8500, %v8516
    %v8549 = vadd.f32 %v8501, %v8517
    %v8550 = vadd.f32 %v8502, %v8518
    %v8551 = vadd.f32 %v8503, %v8519
    %v8552 = vadd.f32 %v8504, %v8520
    %v8553 = vadd.f32 %v8505, %v8521
    %v8554 = vadd.f32 %v8506, %v8522
    %v8555 = vadd.f32 %v8507, %v8523
    %v8556 = vadd.f32 %v8508, %v8524
    %v8557 = vadd.f32 %v8509, %v8525
    %v8558 = vadd.f32 %v8510, %v8526
    %v8559 = vadd.f32 %v8527, %v8543
    %v8560 = vadd.f32 %v8528, %v8544
    %v8561 = vadd.f32 %v8529, %v8545
    %v8562 = vadd.f32 %v8530, %v8546
    %v8563 = vadd.f32 %v8531, %v8547
    %v8564 = vadd.f32 %v8532, %v8548
    %v8565 = vadd.f32 %v8533, %v8549
    %v8566 = vadd.f32 %v8534, %v8550
    %v8567 = vadd.f32 %v8535, %v8551
    %v8568 = vadd.f32 %v8536, %v8552
    %v8569 = vadd.f32 %v8537, %v8553
    %v8570 = vadd.f32 %v8538, %v8554
    %v8571 = vadd.f32 %v8539, %v8555
    %v8572 = vadd.f32 %v8540, %v8556
    %v8573 = vadd.f32 %v8541, %v8557
    %v8574 = vadd.f32 %v8542, %v8558
    %v8576 = vrot.slane %v3793, 7
    %8578 = vmatprep.subr.mxu0 0.0
    %8579 = vmatpush1.msra.mxu0 %v6255
    %8580 = vmatprep.subr.mxu0 0.0
    %8581 = vmatpush1.msra.mxu0 %v6254
    %8582 = vmatprep.subr.mxu0 0.0
    %8583 = vmatpush1.msra.mxu0 %v6253
    %8584 = vmatprep.subr.mxu0 0.0
    %8585 = vmatpush1.msra.mxu0 %v6252
    %8586 = vmatprep.subr.mxu0 0.0
    %8587 = vmatpush1.msra.mxu0 %v6251
    %8588 = vmatprep.subr.mxu0 0.0
    %8589 = vmatpush1.msra.mxu0 %v6250
    %8590 = vmatprep.subr.mxu0 0.0
    %8591 = vmatpush1.msra.mxu0 %v6249
    %8592 = vmatprep.subr.mxu0 0.0
    %8593 = vmatpush1.msra.mxu0 %v6248
    %8594 = vmatprep.subr.mxu0 0.0
    %8595 = vmatpush1.msra.mxu0 %v6247
    %8596 = vmatprep.subr.mxu0 0.0
    %8597 = vmatpush1.msra.mxu0 %v6246
    %8598 = vmatprep.subr.mxu0 0.0
    %8599 = vmatpush1.msra.mxu0 %v6245
    %8600 = vmatprep.subr.mxu0 0.0
    %8601 = vmatpush1.msra.mxu0 %v6244
    %8602 = vmatprep.subr.mxu0 0.0
    %8603 = vmatpush1.msra.mxu0 %v6243
    %8604 = vmatprep.subr.mxu0 0.0
    %8605 = vmatpush1.msra.mxu0 %v6242
    %8606 = vmatprep.subr.mxu0 0.0
    %8607 = vmatpush1.msra.mxu0 %v6241
    %8608 = vmatprep.subr.mxu0 0.0
    %8609 = vmatpush1.msra.mxu0 %v6240
    %8610 = vmatprep.subr.mxu0 0.0
    %8611 = vmatpush2.msra.mxu0 0.0
    %8612 = vmatprep.subr.mxu0 0.0
    %8613 = vmatpush2.msra.mxu0 0.0
    %8614 = vmatprep.subr.mxu0 0.0
    %8615 = vmatpush2.msra.mxu0 0.0
    %8616 = vmatprep.subr.mxu0 0.0
    %8617 = vmatpush2.msra.mxu0 0.0
    %8618 = vmatprep.subr.mxu0 0.0
    %8619 = vmatpush2.msra.mxu0 0.0
    %8620 = vmatprep.subr.mxu0 0.0
    %8621 = vmatpush2.msra.mxu0 0.0
    %8622 = vmatprep.subr.mxu0 0.0
    %8623 = vmatpush2.msra.mxu0 0.0
    %8624 = vmatprep.subr.mxu0 0.0
    %8625 = vmatpush2.msra.mxu0 0.0
    %8626 = vmatprep.subr.mxu0 0.0
    %8627 = vmatpush2.msra.mxu0 0.0
    %8628 = vmatprep.subr.mxu0 0.0
    %8629 = vmatpush2.msra.mxu0 0.0
    %8630 = vmatprep.subr.mxu0 0.0
    %8631 = vmatpush2.msra.mxu0 0.0
    %8632 = vmatprep.subr.mxu0 0.0
    %8633 = vmatpush2.msra.mxu0 0.0
    %8634 = vmatprep.subr.mxu0 0.0
    %8635 = vmatpush2.msra.mxu0 0.0
    %8636 = vmatprep.subr.mxu0 0.0
    %8637 = vmatpush2.msra.mxu0 0.0
    %8638 = vmatprep.subr.mxu0 0.0
    %8639 = vmatpush2.msra.mxu0 0.0
    %8640 = vmatprep.subr.mxu0 0.0
    %8641 = vmatpush2.msra.mxu0 0.0
    %8642 = vmatprep.mubr.f32.mxu0 0.0
    %8643 = vmatmul.mubr.f32.gmra.mxu0 %v8576
    %v8644 = vpop.f32.mrf.mxu0
    %v8645 = vadd.f32 0.0, %v8644
    %v8646 = vpop.f32.mrf.mxu0
    %8647 = vdwg.mxu0
    %v8648 = vmul.f32 %v3931, %v6334
    %v8650 = vrot.slane %v4055, 7
    %v8653 = vrot.slane %v8648, 7
    %8655 = vmatprep.subr.mxu0 0.0
    %8656 = vmatpush1.xpose.msra.mxu0 %v8574
    %8657 = vmatprep.subr.mxu0 0.0
    %8658 = vmatpush1.xpose.msra.mxu0 %v8573
    %8659 = vmatprep.subr.mxu0 0.0
    %8660 = vmatpush1.xpose.msra.mxu0 %v8572
    %8661 = vmatprep.subr.mxu0 0.0
    %8662 = vmatpush1.xpose.msra.mxu0 %v8571
    %8663 = vmatprep.subr.mxu0 0.0
    %8664 = vmatpush1.xpose.msra.mxu0 %v8570
    %8665 = vmatprep.subr.mxu0 0.0
    %8666 = vmatpush1.xpose.msra.mxu0 %v8569
    %8667 = vmatprep.subr.mxu0 0.0
    %8668 = vmatpush1.xpose.msra.mxu0 %v8568
    %8669 = vmatprep.subr.mxu0 0.0
    %8670 = vmatpush1.xpose.msra.mxu0 %v8567
    %8671 = vmatprep.subr.mxu0 0.0
    %8672 = vmatpush1.xpose.msra.mxu0 %v8566
    %8673 = vmatprep.subr.mxu0 0.0
    %8674 = vmatpush1.xpose.msra.mxu0 %v8565
    %8675 = vmatprep.subr.mxu0 0.0
    %8676 = vmatpush1.xpose.msra.mxu0 %v8564
    %8677 = vmatprep.subr.mxu0 0.0
    %8678 = vmatpush1.xpose.msra.mxu0 %v8563
    %8679 = vmatprep.subr.mxu0 0.0
    %8680 = vmatpush1.xpose.msra.mxu0 %v8562
    %8681 = vmatprep.subr.mxu0 0.0
    %8682 = vmatpush1.xpose.msra.mxu0 %v8561
    %8683 = vmatprep.subr.mxu0 0.0
    %8684 = vmatpush1.xpose.msra.mxu0 %v8560
    %8685 = vmatprep.subr.mxu0 0.0
    %8686 = vmatpush1.xpose.msra.mxu0 %v8559
    %8687 = vmatprep.subr.mxu0 0.0
    %8688 = vmatpush2.xpose.msra.mxu0 0.0
    %8689 = vmatprep.subr.mxu0 0.0
    %8690 = vmatpush2.xpose.msra.mxu0 0.0
    %8691 = vmatprep.subr.mxu0 0.0
    %8692 = vmatpush2.xpose.msra.mxu0 0.0
    %8693 = vmatprep.subr.mxu0 0.0
    %8694 = vmatpush2.xpose.msra.mxu0 0.0
    %8695 = vmatprep.subr.mxu0 0.0
    %8696 = vmatpush2.xpose.msra.mxu0 0.0
    %8697 = vmatprep.subr.mxu0 0.0
    %8698 = vmatpush2.xpose.msra.mxu0 0.0
    %8699 = vmatprep.subr.mxu0 0.0
    %8700 = vmatpush2.xpose.msra.mxu0 0.0
    %8701 = vmatprep.subr.mxu0 0.0
    %8702 = vmatpush2.xpose.msra.mxu0 0.0
    %8703 = vmatprep.subr.mxu0 0.0
    %8704 = vmatpush2.xpose.msra.mxu0 0.0
    %8705 = vmatprep.subr.mxu0 0.0
    %8706 = vmatpush2.xpose.msra.mxu0 0.0
    %8707 = vmatprep.subr.mxu0 0.0
    %8708 = vmatpush2.xpose.msra.mxu0 0.0
    %8709 = vmatprep.subr.mxu0 0.0
    %8710 = vmatpush2.xpose.msra.mxu0 0.0
    %8711 = vmatprep.subr.mxu0 0.0
    %8712 = vmatpush2.xpose.msra.mxu0 0.0
    %8713 = vmatprep.subr.mxu0 0.0
    %8714 = vmatpush2.xpose.msra.mxu0 0.0
    %8715 = vmatprep.subr.mxu0 0.0
    %8716 = vmatpush2.xpose.msra.mxu0 0.0
    %8717 = vmatprep.subr.mxu0 0.0
    %8718 = vmatpush2.xpose.msra.mxu0 0.0
    %8719 = vmatprep.mubr.f32.mxu0 0.0
    %8720 = vmatmul.mubr.f32.gmra.mxu0 %v8650
    %v8721 = vpop.f32.mrf.mxu0
    %v8722 = vadd.f32 %v8653, %v8721
    %v8723 = vpop.f32.mrf.mxu0
    %8724 = vdwg.mxu0
    %v8725 = vxor.u32 %v8645, 2147483648
    %v8726 = vmul.f32 %v8725, 1.442695
    %v8727 = vpow.pop %v8726
    %v8728 = vadd.f32 %v8727, 1.0
    %v8729 = vrcp.pop %v8728
    %v8730 = vmul.f32 1.0, %v8729
    %v8731 = vmul.f32 %v8645, %v8730
    %v8732 = vmul.f32 %v8722, %v8731
    %8733 = vmatprep.subr.mxu0 0.0
    %8734 = vmatpush1.msra.mxu0 %v6436
    %8735 = vmatprep.subr.mxu0 0.0
    %8736 = vmatpush1.msra.mxu0 %v6435
    %8737 = vmatprep.subr.mxu0 0.0
    %8738 = vmatpush1.msra.mxu0 %v6434
    %8739 = vmatprep.subr.mxu0 0.0
    %8740 = vmatpush1.msra.mxu0 %v6433
    %8741 = vmatprep.subr.mxu0 0.0
    %8742 = vmatpush1.msra.mxu0 %v6432
    %8743 = vmatprep.subr.mxu0 0.0
    %8744 = vmatpush1.msra.mxu0 %v6431
    %8745 = vmatprep.subr.mxu0 0.0
    %8746 = vmatpush1.msra.mxu0 %v6430
    %8747 = vmatprep.subr.mxu0 0.0
    %8748 = vmatpush1.msra.mxu0 %v6429
    %8749 = vmatprep.subr.mxu0 0.0
    %8750 = vmatpush1.msra.mxu0 %v6428
    %8751 = vmatprep.subr.mxu0 0.0
    %8752 = vmatpush1.msra.mxu0 %v6427
    %8753 = vmatprep.subr.mxu0 0.0
    %8754 = vmatpush1.msra.mxu0 %v6426
    %8755 = vmatprep.subr.mxu0 0.0
    %8756 = vmatpush1.msra.mxu0 %v6425
    %8757 = vmatprep.subr.mxu0 0.0
    %8758 = vmatpush1.msra.mxu0 %v6424
    %8759 = vmatprep.subr.mxu0 0.0
    %8760 = vmatpush1.msra.mxu0 %v6423
    %8761 = vmatprep.subr.mxu0 0.0
    %8762 = vmatpush1.msra.mxu0 %v6422
    %8763 = vmatprep.subr.mxu0 0.0
    %8764 = vmatpush1.msra.mxu0 %v6421
    %8765 = vmatprep.subr.mxu0 0.0
    %8766 = vmatpush2.msra.mxu0 0.0
    %8767 = vmatprep.subr.mxu0 0.0
    %8768 = vmatpush2.msra.mxu0 0.0
    %8769 = vmatprep.subr.mxu0 0.0
    %8770 = vmatpush2.msra.mxu0 0.0
    %8771 = vmatprep.subr.mxu0 0.0
    %8772 = vmatpush2.msra.mxu0 0.0
    %8773 = vmatprep.subr.mxu0 0.0
    %8774 = vmatpush2.msra.mxu0 0.0
    %8775 = vmatprep.subr.mxu0 0.0
    %8776 = vmatpush2.msra.mxu0 0.0
    %8777 = vmatprep.subr.mxu0 0.0
    %8778 = vmatpush2.msra.mxu0 0.0
    %8779 = vmatprep.subr.mxu0 0.0
    %8780 = vmatpush2.msra.mxu0 0.0
    %8781 = vmatprep.subr.mxu0 0.0
    %8782 = vmatpush2.msra.mxu0 0.0
    %8783 = vmatprep.subr.mxu0 0.0
    %8784 = vmatpush2.msra.mxu0 0.0
    %8785 = vmatprep.subr.mxu0 0.0
    %8786 = vmatpush2.msra.mxu0 0.0
    %8787 = vmatprep.subr.mxu0 0.0
    %8788 = vmatpush2.msra.mxu0 0.0
    %8789 = vmatprep.subr.mxu0 0.0
    %8790 = vmatpush2.msra.mxu0 0.0
    %8791 = vmatprep.subr.mxu0 0.0
    %8792 = vmatpush2.msra.mxu0 0.0
    %8793 = vmatprep.subr.mxu0 0.0
    %8794 = vmatpush2.msra.mxu0 0.0
    %8795 = vmatprep.subr.mxu0 0.0
    %8796 = vmatpush2.msra.mxu0 0.0
    %8797 = vmatprep.mubr.f32.mxu0 0.0
    %8798 = vmatmul.mubr.f32.gmra.mxu0 %v8732
    %v8799 = vpop.f32.mrf.mxu0
    %v8800 = vadd.f32 0.0, %v8799
    %v8801 = vpop.f32.mrf.mxu0
    %8802 = vdwg.mxu0
    %v8804 = vrot.slane %v8800, 1
    %v8806 = vadd.f32 %v3793, %v8804
    %v8808 = vrot.slane %v8806, 7
    %8810 = vmatprep.subr.mxu0 0.0
    %8811 = vmatpush1.msra.mxu0 %v6526
    %8812 = vmatprep.subr.mxu0 0.0
    %8813 = vmatpush1.msra.mxu0 %v6525
    %8814 = vmatprep.subr.mxu0 0.0
    %8815 = vmatpush1.msra.mxu0 %v6524
    %8816 = vmatprep.subr.mxu0 0.0
    %8817 = vmatpush1.msra.mxu0 %v6523
    %8818 = vmatprep.subr.mxu0 0.0
    %8819 = vmatpush1.msra.mxu0 %v6522
    %8820 = vmatprep.subr.mxu0 0.0
    %8821 = vmatpush1.msra.mxu0 %v6521
    %8822 = vmatprep.subr.mxu0 0.0
    %8823 = vmatpush1.msra.mxu0 %v6520
    %8824 = vmatprep.subr.mxu0 0.0
    %8825 = vmatpush1.msra.mxu0 %v6519
    %8826 = vmatprep.subr.mxu0 0.0
    %8827 = vmatpush1.msra.mxu0 %v6518
    %8828 = vmatprep.subr.mxu0 0.0
    %8829 = vmatpush1.msra.mxu0 %v6517
    %8830 = vmatprep.subr.mxu0 0.0
    %8831 = vmatpush1.msra.mxu0 %v6516
    %8832 = vmatprep.subr.mxu0 0.0
    %8833 = vmatpush1.msra.mxu0 %v6515
    %8834 = vmatprep.subr.mxu0 0.0
    %8835 = vmatpush1.msra.mxu0 %v6514
    %8836 = vmatprep.subr.mxu0 0.0
    %8837 = vmatpush1.msra.mxu0 %v6513
    %8838 = vmatprep.subr.mxu0 0.0
    %8839 = vmatpush1.msra.mxu0 %v6512
    %8840 = vmatprep.subr.mxu0 0.0
    %8841 = vmatpush1.msra.mxu0 %v6511
    %8842 = vmatprep.subr.mxu0 0.0
    %8843 = vmatpush2.msra.mxu0 0.0
    %8844 = vmatprep.subr.mxu0 0.0
    %8845 = vmatpush2.msra.mxu0 0.0
    %8846 = vmatprep.subr.mxu0 0.0
    %8847 = vmatpush2.msra.mxu0 0.0
    %8848 = vmatprep.subr.mxu0 0.0
    %8849 = vmatpush2.msra.mxu0 0.0
    %8850 = vmatprep.subr.mxu0 0.0
    %8851 = vmatpush2.msra.mxu0 0.0
    %8852 = vmatprep.subr.mxu0 0.0
    %8853 = vmatpush2.msra.mxu0 0.0
    %8854 = vmatprep.subr.mxu0 0.0
    %8855 = vmatpush2.msra.mxu0 0.0
    %8856 = vmatprep.subr.mxu0 0.0
    %8857 = vmatpush2.msra.mxu0 0.0
    %8858 = vmatprep.subr.mxu0 0.0
    %8859 = vmatpush2.msra.mxu0 0.0
    %8860 = vmatprep.subr.mxu0 0.0
    %8861 = vmatpush2.msra.mxu0 0.0
    %8862 = vmatprep.subr.mxu0 0.0
    %8863 = vmatpush2.msra.mxu0 0.0
    %8864 = vmatprep.subr.mxu0 0.0
    %8865 = vmatpush2.msra.mxu0 0.0
    %8866 = vmatprep.subr.mxu0 0.0
    %8867 = vmatpush2.msra.mxu0 0.0
    %8868 = vmatprep.subr.mxu0 0.0
    %8869 = vmatpush2.msra.mxu0 0.0
    %8870 = vmatprep.subr.mxu0 0.0
    %8871 = vmatpush2.msra.mxu0 0.0
    %8872 = vmatprep.subr.mxu0 0.0
    %8873 = vmatpush2.msra.mxu0 0.0
    %8874 = vmatprep.mubr.f32.mxu0 0.0
    %8875 = vmatmul.mubr.f32.gmra.mxu0 %v8808
    %v8876 = vpop.f32.mrf.mxu0
    %v8877 = vadd.f32 %v6527, %v8876
    %v8878 = vpop.f32.mrf.mxu0
    %8879 = vdwg.mxu0
    %v8880 = vld [vmem:[%s61] sm:$0x1]
    %v8881 = vmul.f32 %v6598, %v8880
    %v8882 = vsel %vm3700, %v8881, 0.0
    %8883 = vadd.xlane.f32.xlu0 %v8882
    %v8884 = vpop.xlane.xlu0 %8883
    %v8885 = vadd.f32 %v3704, %v8884
    %v8886 = vmul.f32 %v8877, %v8880
    %v8887 = vsel %vm3700, %v8886, 0.0
    %8888 = vadd.xlane.f32.xlu0 %v8887
    %v8889 = vpop.xlane.xlu0 %8888
    %v8890 = vadd.f32 %v3709, %v8889
    %vm8891 = vcmask 0
    %8892 = vst.msk [vmem:[%s65] sm:$0x1] %vm8891, %v8885
    %8893 = vst.msk [vmem:[%s65 + $0x1] sm:$0x1] %vm8891, %v8890
    // Predicated region
    $region198: #{mamba_forward.1} parent=1 // pred_check
      _
    $region199: #{mamba_forward.1} parent=1 // pred_check_branch
      %8895 = sbr.rel (0) target = $region201
    $region200: #{mamba_forward.1} parent=1 // pred_region
      _
    $region201: #{mamba_forward.1} parent=1 // pred_fallthru
      _
    // Predicated region
    $region202: #{mamba_forward.1} parent=1 // pred_check
      _
    $region203: #{mamba_forward.1} parent=1 // pred_check_branch
      %8897 = sbr.rel (0) target = $region205
    $region204: #{mamba_forward.1} parent=1 // pred_region
      _
    $region205: #{mamba_forward.1} parent=1 // pred_fallthru
      _
    %8898 = vsyncpa [#allocation4], 1
    %8899 = vsyncpa [#allocation6], 1
    %8900 = vsyncpa [#allocation9], 1
    %8901 = vsyncpa [#allocation12], 1
    %8902 = vsyncpa [#allocation15], 1
    %8903 = vsyncpa [#allocation18], 1
    %8904 = vsyncpa [#allocation21], 1
    %8905 = vsyncpa [#allocation24], 1
    %8906 = vsyncpa [#allocation27], 1

</llo_original>
